<compile_context>
chip_gen: v7x
topology: tpu7x:2x2x1
jax: 0.10.0
libtpu: 0.0.40
codegen_flags: <defaults>
</compile_context>

<pallas_src>
import functools
import math

import jax
import jax.numpy as jnp
import numpy as np
from jax.experimental import pallas as pl
from jax.experimental.pallas import tpu as pltpu


def _round_up(x, m):
    return (x + m - 1) // m * m


# -----------------------------------------------------------------------------
# Fused kernel: all conv layers + ReLU + 1x1 conv + spatial-mean subtraction
# -----------------------------------------------------------------------------
def _gennoise_kernel(x_ref, w0_ref, b0_ref, wmid_ref, bmid_ref,
                     wlast_ref, blast_ref, mask_ref, out_ref,
                     act_ref, slab_ref,
                     *, H, W, Wr, margin_x, margin_a, n_mid):
    # x_ref    : (1, Sx, C)   zero-padded input, Sx = Lp + 2*margin_x   (f32)
    # w0_ref   : (9, C, F)    layer-0 weight, tap index = dy*3 + dx     (f32)
    # b0_ref   : (1, F)
    # wmid_ref : (n_mid*3, 3F, F)  dx-folded mid weights, idx = l*3+dy  (bf16)
    # bmid_ref : (n_mid, 1, F)                                          (f32)
    # wlast_ref: (F, C)       final 1x1 conv weight                     (f32)
    # blast_ref: (1, C)
    # mask_ref : (Lp, 1)      1.0 on interior pixels, 0.0 on halo/pitch cols
    # out_ref  : (1, Lp, C)
    # act_ref  : (Sa, F)  f32 VMEM scratch, Sa = Lp + 2*margin_a
    # slab_ref : (Ss, 3F) VMEM scratch (bf16), Ss = Lp + 2*Wr
    F = act_ref.shape[-1]
    Hp = H + 2
    Lp = Hp * Wr
    slab_dt = slab_ref.dtype
    inv_hw = 1.0 / float(H * W)

    mask = mask_ref[...] > 0.5                                    # (Lp, 1) bool

    def mm(a, b):
        return jax.lax.dot_general(a, b, (((1,), (0,)), ((), ())),
                                   preferred_element_type=jnp.float32)

    # One-time zero fill of the scratch margin bands: every location a tap
    # window / slab build can read is then either freshly written or zero.
    act_ref[pl.ds(0, margin_a), :] = jnp.zeros((margin_a, F), act_ref.dtype)
    act_ref[pl.ds(margin_a + Lp, margin_a), :] = jnp.zeros((margin_a, F),
                                                           act_ref.dtype)
    slab_ref[pl.ds(0, Wr), :] = jnp.zeros((Wr, 3 * F), slab_dt)
    slab_ref[pl.ds(Wr + Lp, Wr), :] = jnp.zeros((Wr, 3 * F), slab_dt)

    def store_act(acc):
        # ReLU + zero the halo/pitch rows (== the per-layer zero padding of
        # the PyTorch conv).  Activation stays f32 + VMEM resident.
        act_ref[pl.ds(margin_a, Lp), :] = jnp.where(
            mask, jnp.maximum(acc, 0.0), 0.0)

    # ---- layer 0: 3x3 conv on the padded input (K = C, negligible FLOPs) ----
    acc = jnp.zeros((Lp, F), jnp.float32)
    for dy in range(3):
        for dx in range(3):
            start = margin_x + (dy - 1) * Wr + (dx - 1)
            acc = acc + mm(x_ref[0, pl.ds(start, Lp), :], w0_ref[dy * 3 + dx])
    acc = acc + b0_ref[...]
    store_act(acc)

    # ---- layers 1..NLayer-1: dx-folded 3x3 conv + ReLU, K = 3F --------------
    def layer_body(l, carry):
        # Build the dx-slab: slab[Wr + p, t*F:(t+1)*F] = act[p + t - 1].
        # Two of the three (Lp, F) reads are the unavoidable +-1-row shifts;
        # the slab stores and the dy-window reads below are sublane aligned.
        for t in range(3):
            v = act_ref[pl.ds(margin_a + t - 1, Lp), :]
            slab_ref[pl.ds(Wr, Lp), pl.ds(t * F, F)] = v.astype(slab_dt)
        acc = mm(slab_ref[pl.ds(0 * Wr, Lp), :], wmid_ref[l * 3 + 0])
        acc = acc + mm(slab_ref[pl.ds(1 * Wr, Lp), :], wmid_ref[l * 3 + 1])
        acc = acc + mm(slab_ref[pl.ds(2 * Wr, Lp), :], wmid_ref[l * 3 + 2])
        acc = acc + bmid_ref[l]
        store_act(acc)
        return carry

    jax.lax.fori_loop(0, n_mid, layer_body, jnp.int32(0))

    # ---- final 1x1 conv + bias + per-channel spatial-mean subtraction (f32) -
    y = mm(act_ref[pl.ds(margin_a, Lp), :], wlast_ref[...]) + blast_ref[...]
    y = jnp.where(mask, y, 0.0)                                    # (Lp, C)
    m = jnp.sum(y, axis=0, keepdims=True) * inv_hw                 # (1, C)
    out_ref[0] = jnp.where(mask, y - m, 0.0).astype(out_ref.dtype)


# -----------------------------------------------------------------------------
# Forward wrapper
# -----------------------------------------------------------------------------
def gen_noise_forward(params, x_nchw, *, act_dtype=jnp.bfloat16):
    """Mirror of GenNoise.forward; x_nchw: (N, C, H, W) f32 -> (N, C, H, W)."""
    (w0, b0) = params[0]
    mids = params[1:-1]
    (w_last, b_last) = params[-1]
    N, C, H, W = x_nchw.shape
    F = w0.shape[-1]
    n_mid = len(mids)
    assert n_mid >= 1, "GenNoise needs NLayer >= 2"

    ab = np.dtype(act_dtype).itemsize
    sub = 8 * 4 // ab                  # sublane granularity: 8 (f32) / 16 (bf16)
    Wr = _round_up(W + 2, sub)         # aligned activation row pitch
    Hp = H + 2
    Lp = Hp * Wr
    margin_x = Wr + 8                  # input margin: >= Wr + 1 and 8-aligned
    margin_a = 8                       # activation margin: >= 1 and 8-aligned
    Sx = Lp + 2 * margin_x
    Sa = Lp + 2 * margin_a
    Ss = Lp + 2 * Wr
    assert margin_x >= Wr + 1 and margin_x % 8 == 0
    assert margin_a >= 1 and margin_a % 8 == 0
    assert Wr % sub == 0

    # ---- host-side prep (small tensors only; no 9x im2col of the input) ----
    x = jnp.transpose(x_nchw, (0, 2, 3, 1))                       # NCHW -> NHWC
    xpad = jnp.pad(x, ((0, 0), (1, 1), (1, Wr - W - 1), (0, 0)))  # (N,Hp,Wr,C)
    x_flat = jnp.pad(xpad.reshape(N, Lp, C),
                     ((0, 0), (margin_x, margin_x), (0, 0)))      # (N, Sx, C)

    w0_p = w0.reshape(9, C, F)                                    # tap = dy*3+dx
    b0_p = b0.reshape(1, F)
    # dx-folded mid weights: K ordering = (dx, cin), matching the slab lanes.
    w_mid = jnp.stack([w for w, _ in mids], axis=0)               # (n_mid,3,3,F,F)
    w_mid = w_mid.reshape(n_mid * 3, 3 * F, F).astype(act_dtype)
    b_mid = jnp.stack([b for _, b in mids], axis=0).reshape(n_mid, 1, F)

    mask = jnp.zeros((Hp, Wr), jnp.float32).at[1:H + 1, 1:W + 1].set(1.0)
    mask = mask.reshape(Lp, 1)

    kernel = functools.partial(_gennoise_kernel, H=H, W=W, Wr=Wr,
                               margin_x=margin_x, margin_a=margin_a,
                               n_mid=n_mid)

    # ---- generation-aware VMEM limit (replaces the hard 60 MiB clamp) ------
    lane = 128
    vmem_need = (Sa * _round_up(F, lane) * 4
                 + Ss * _round_up(3 * F, lane) * ab
                 + 2 * Sx * _round_up(C, lane) * 4
                 + 2 * Lp * _round_up(C, lane) * 4
                 + 2 * n_mid * 3 * _round_up(3 * F, 16) * _round_up(F, lane) * ab
                 + 2 * 9 * _round_up(C, 8) * _round_up(F, lane) * 4
                 + 2 * Lp * lane * 4
                 + (1 << 20))
    try:
        cap = getattr(pltpu.get_tpu_info(), "vmem_capacity_bytes",
                      64 * 1024 * 1024)
    except Exception:
        cap = 64 * 1024 * 1024
    vmem_limit = int(min(max(int(1.5 * vmem_need), 32 * 1024 * 1024),
                         int(0.9 * cap)))

    flops = 2 * N * Lp * (9 * C * F + n_mid * 3 * (3 * F) * F + F * C)
    bytes_accessed = int(x_flat.size * 4 + w0_p.size * 4 + w_mid.size * ab
                         + b_mid.size * 4 + w_last.size * 4 + mask.size * 4
                         + N * Lp * C * 4 + 2 * F * 4 + 2 * C * 4)
    cost = pl.CostEstimate(flops=int(flops), transcendentals=0,
                           bytes_accessed=bytes_accessed)

    out_flat = pl.pallas_call(
        kernel,
        out_shape=jax.ShapeDtypeStruct((N, Lp, C), x.dtype),
        grid=(N,),
        in_specs=[
            pl.BlockSpec((1, Sx, C), lambda n: (n, 0, 0)),
            pl.BlockSpec((9, C, F), lambda n: (0, 0, 0)),
            pl.BlockSpec((1, F), lambda n: (0, 0)),
            pl.BlockSpec((n_mid * 3, 3 * F, F), lambda n: (0, 0, 0)),
            pl.BlockSpec((n_mid, 1, F), lambda n: (0, 0, 0)),
            pl.BlockSpec((F, C), lambda n: (0, 0)),
            pl.BlockSpec((1, C), lambda n: (0, 0)),
            pl.BlockSpec((Lp, 1), lambda n: (0, 0)),
        ],
        out_specs=pl.BlockSpec((1, Lp, C), lambda n: (n, 0, 0)),
        scratch_shapes=[pltpu.VMEM((Sa, F), jnp.float32),
                        pltpu.VMEM((Ss, 3 * F), act_dtype)],
        compiler_params=pltpu.CompilerParams(
            dimension_semantics=("parallel",),
            vmem_limit_bytes=vmem_limit),
        cost_estimate=cost,
    )(x_flat, w0_p, b0_p, w_mid, b_mid, w_last, b_last.reshape(1, C), mask)

    # Tiny epilogue: crop halo/pitch, NHWC -> NCHW.
    out = out_flat.reshape(N, Hp, Wr, C)[:, 1:H + 1, 1:W + 1, :]
    return jnp.transpose(out, (0, 3, 1, 2))


# -----------------------------------------------------------------------------
# Parameter construction (xavier_uniform weights, zero bias, like PyTorch init)
# -----------------------------------------------------------------------------
def _xavier_uniform(key, shape):
    kh, kw, cin, cout = shape
    bound = math.sqrt(6.0 / (cin * kh * kw + cout * kh * kw))
    return jax.random.uniform(key, shape, jnp.float32, -bound, bound)


def gen_noise_init(key, channels=3, n_layer=14, f_size=64):
    params = []
    k = key
    k, sub = jax.random.split(k)
    params.append((_xavier_uniform(sub, (3, 3, channels, f_size)),
                   jnp.zeros((f_size,), jnp.float32)))
    for _ in range(n_layer - 1):
        k, sub = jax.random.split(k)
        params.append((_xavier_uniform(sub, (3, 3, f_size, f_size)),
                       jnp.zeros((f_size,), jnp.float32)))
    k, sub = jax.random.split(k)
    w_last = _xavier_uniform(sub, (1, 1, f_size, channels))[0, 0]   # (F, C)
    params.append((w_last, jnp.zeros((channels,), jnp.float32)))
    return params


# -----------------------------------------------------------------------------
# Pure-JAX reference (for correctness check)
# -----------------------------------------------------------------------------
def _reference(params, x_nchw):
    x = jnp.transpose(x_nchw, (0, 2, 3, 1))
    dn = ("NHWC", "HWIO", "NHWC")
    for w, b in params[:-1]:
        x = jax.lax.conv_general_dilated(x, w, (1, 1), "SAME",
                                         dimension_numbers=dn)
        x = jax.nn.relu(x + b[None, None, None, :])
    w_last, b_last = params[-1]
    y = jax.lax.conv_general_dilated(x, w_last[None, None], (1, 1), "VALID",
                                     dimension_numbers=dn)
    y = y + b_last[None, None, None, :]
    y = y - jnp.mean(y, axis=(1, 2), keepdims=True)
    return jnp.transpose(y, (0, 3, 1, 2))


if __name__ == "__main__":
    # Small shapes consistent with the module (batch=2, channels=3, spatial=16,
    # NLayer=4, FSize=32 for a quick run).
    channels, n_layer, f_size = 3, 4, 32
    N, H, W = 2, 16, 16

    key = jax.random.PRNGKey(0)
    k_param, k_x = jax.random.split(key)
    params = gen_noise_init(k_param, channels=channels, n_layer=n_layer,
                            f_size=f_size)
    x = jax.random.normal(k_x, (N, channels, H, W), jnp.float32)

    out = jax.block_until_ready(gen_noise_forward(params, x))
    ref = jax.block_until_ready(_reference(params, x))

    assert out.shape == (N, channels, H, W)
    # bf16 slab / mid-layer weights (f32 accumulation, f32 first/last layers +
    # mean subtraction) => loosened tolerance vs the pure-f32 reference.
    np.testing.assert_allclose(np.asarray(out), np.asarray(ref),
                               rtol=2e-2, atol=2e-2)
    print("KERNEL_OK")
</pallas_src>

<mosaic_0001>
module attributes {stable_mosaic.version = 11 : i64} {
  func.func @_gennoise_kernel(%arg0: i32, %arg1: memref<1x656x3xf32, #tpu.memory_space<vmem>>, %arg2: memref<9x3x32xf32, #tpu.memory_space<vmem>>, %arg3: memref<1x32xf32, #tpu.memory_space<vmem>>, %arg4: memref<9x96x32xbf16, #tpu.memory_space<vmem>>, %arg5: memref<3x1x32xf32, #tpu.memory_space<vmem>>, %arg6: memref<32x3xf32, #tpu.memory_space<vmem>>, %arg7: memref<1x3xf32, #tpu.memory_space<vmem>>, %arg8: memref<576x1xf32, #tpu.memory_space<vmem>>, %arg9: memref<1x576x3xf32, #tpu.memory_space<vmem>>, %arg10: memref<592x32xf32, #tpu.memory_space<vmem>>, %arg11: memref<640x96xbf16, #tpu.memory_space<vmem>>) attributes {dimension_semantics = [#tpu.dimension_semantics<parallel>], iteration_bounds = array<i64: 2>, scalar_prefetch = 0 : i64, scratch_operands = 2 : i64, tpu.core_type = #tpu.core_type<tc>, window_params = [{transform_indices = @transform_0, window_bounds = array<i64: 1, 656, 3>}, {pipeline_mode = #tpu.pipeline_mode<synchronous>, transform_indices = @transform_1, window_bounds = array<i64: 9, 3, 32>}, {pipeline_mode = #tpu.pipeline_mode<synchronous>, transform_indices = @transform_2, window_bounds = array<i64: 1, 32>}, {pipeline_mode = #tpu.pipeline_mode<synchronous>, transform_indices = @transform_3, window_bounds = array<i64: 9, 96, 32>}, {pipeline_mode = #tpu.pipeline_mode<synchronous>, transform_indices = @transform_4, window_bounds = array<i64: 3, 1, 32>}, {pipeline_mode = #tpu.pipeline_mode<synchronous>, transform_indices = @transform_5, window_bounds = array<i64: 32, 3>}, {pipeline_mode = #tpu.pipeline_mode<synchronous>, transform_indices = @transform_6, window_bounds = array<i64: 1, 3>}, {pipeline_mode = #tpu.pipeline_mode<synchronous>, transform_indices = @transform_7, window_bounds = array<i64: 576, 1>}, {transform_indices = @transform_8, window_bounds = array<i64: 1, 576, 3>}]} {
    %c0 = arith.constant 0 : index
    %c0_0 = arith.constant 0 : index
    %0 = vector.load %arg8[%c0, %c0_0] : memref<576x1xf32, #tpu.memory_space<vmem>>, vector<576x1xf32>
    %cst = arith.constant 5.000000e-01 : f32
    %1 = vector.broadcast %cst : f32 to vector<576x1xf32>
    %2 = arith.cmpf ogt, %0, %1 : vector<576x1xf32>
    %cst_1 = arith.constant 0.000000e+00 : f32
    %3 = vector.broadcast %cst_1 : f32 to vector<8x32xf32>
    %c0_2 = arith.constant 0 : index
    %c0_3 = arith.constant 0 : index
    %4 = vector.load %arg10[%c0_2, %c0_3] : memref<592x32xf32, #tpu.memory_space<vmem>>, vector<8x32xf32>
    tpu.vector_store %arg10[%c0_2, %c0_3], %3 {strides = array<i32>} : memref<592x32xf32, #tpu.memory_space<vmem>>, vector<8x32xf32>,
    %cst_4 = arith.constant 0.000000e+00 : f32
    %5 = vector.broadcast %cst_4 : f32 to vector<8x32xf32>
    %c584 = arith.constant 584 : index
    %c0_5 = arith.constant 0 : index
    %6 = vector.load %arg10[%c584, %c0_5] : memref<592x32xf32, #tpu.memory_space<vmem>>, vector<8x32xf32>
    tpu.vector_store %arg10[%c584, %c0_5], %5 {strides = array<i32>} : memref<592x32xf32, #tpu.memory_space<vmem>>, vector<8x32xf32>,
    %cst_6 = arith.constant 0.000000e+00 : bf16
    %7 = vector.broadcast %cst_6 : bf16 to vector<32x96xbf16>
    %c0_7 = arith.constant 0 : index
    %c0_8 = arith.constant 0 : index
    %8 = vector.load %arg11[%c0_7, %c0_8] : memref<640x96xbf16, #tpu.memory_space<vmem>>, vector<32x96xbf16>
    tpu.vector_store %arg11[%c0_7, %c0_8], %7 {strides = array<i32>} : memref<640x96xbf16, #tpu.memory_space<vmem>>, vector<32x96xbf16>,
    %cst_9 = arith.constant 0.000000e+00 : bf16
    %9 = vector.broadcast %cst_9 : bf16 to vector<32x96xbf16>
    %c608 = arith.constant 608 : index
    %c0_10 = arith.constant 0 : index
    %10 = vector.load %arg11[%c608, %c0_10] : memref<640x96xbf16, #tpu.memory_space<vmem>>, vector<32x96xbf16>
    tpu.vector_store %arg11[%c608, %c0_10], %9 {strides = array<i32>} : memref<640x96xbf16, #tpu.memory_space<vmem>>, vector<32x96xbf16>,
    %cst_11 = arith.constant 0.000000e+00 : f32
    %11 = vector.broadcast %cst_11 : f32 to vector<576x32xf32>
    %c0_12 = arith.constant 0 : index
    %c7 = arith.constant 7 : index
    %c0_13 = arith.constant 0 : index
    %12 = vector.load %arg1[%c0_12, %c7, %c0_13] : memref<1x656x3xf32, #tpu.memory_space<vmem>>, vector<1x576x3xf32>
    %13 = vector.shape_cast %12 : vector<1x576x3xf32> to vector<576x3xf32>
    %c0_14 = arith.constant 0 : index
    %c0_15 = arith.constant 0 : index
    %c0_16 = arith.constant 0 : index
    %14 = vector.load %arg2[%c0_14, %c0_15, %c0_16] : memref<9x3x32xf32, #tpu.memory_space<vmem>>, vector<1x3x32xf32>
    %15 = vector.shape_cast %14 : vector<1x3x32xf32> to vector<3x32xf32>
    %cst_17 = arith.constant dense<0.000000e+00> : vector<576x32xf32>
    %16 = tpu.matmul %13, %15, %cst_17 {dimension_numbers = #tpu.dot_dimension_numbers<[1], [0], [0], [1], [0, 0, 1, 1], [], []>} : vector<576x3xf32>, vector<3x32xf32>, vector<576x32xf32> -> vector<576x32xf32>
    %17 = arith.addf %11, %16 : vector<576x32xf32>
    %c0_18 = arith.constant 0 : index
    %c8 = arith.constant 8 : index
    %c0_19 = arith.constant 0 : index
    %18 = vector.load %arg1[%c0_18, %c8, %c0_19] : memref<1x656x3xf32, #tpu.memory_space<vmem>>, vector<1x576x3xf32>
    %19 = vector.shape_cast %18 : vector<1x576x3xf32> to vector<576x3xf32>
    %c1 = arith.constant 1 : index
    %c0_20 = arith.constant 0 : index
    %c0_21 = arith.constant 0 : index
    %20 = vector.load %arg2[%c1, %c0_20, %c0_21] : memref<9x3x32xf32, #tpu.memory_space<vmem>>, vector<1x3x32xf32>
    %21 = vector.shape_cast %20 : vector<1x3x32xf32> to vector<3x32xf32>
    %cst_22 = arith.constant dense<0.000000e+00> : vector<576x32xf32>
    %22 = tpu.matmul %19, %21, %cst_22 {dimension_numbers = #tpu.dot_dimension_numbers<[1], [0], [0], [1], [0, 0, 1, 1], [], []>} : vector<576x3xf32>, vector<3x32xf32>, vector<576x32xf32> -> vector<576x32xf32>
    %23 = arith.addf %17, %22 : vector<576x32xf32>
    %c0_23 = arith.constant 0 : index
    %c9 = arith.constant 9 : index
    %c0_24 = arith.constant 0 : index
    %24 = vector.load %arg1[%c0_23, %c9, %c0_24] : memref<1x656x3xf32, #tpu.memory_space<vmem>>, vector<1x576x3xf32>
    %25 = vector.shape_cast %24 : vector<1x576x3xf32> to vector<576x3xf32>
    %c2 = arith.constant 2 : index
    %c0_25 = arith.constant 0 : index
    %c0_26 = arith.constant 0 : index
    %26 = vector.load %arg2[%c2, %c0_25, %c0_26] : memref<9x3x32xf32, #tpu.memory_space<vmem>>, vector<1x3x32xf32>
    %27 = vector.shape_cast %26 : vector<1x3x32xf32> to vector<3x32xf32>
    %cst_27 = arith.constant dense<0.000000e+00> : vector<576x32xf32>
    %28 = tpu.matmul %25, %27, %cst_27 {dimension_numbers = #tpu.dot_dimension_numbers<[1], [0], [0], [1], [0, 0, 1, 1], [], []>} : vector<576x3xf32>, vector<3x32xf32>, vector<576x32xf32> -> vector<576x32xf32>
    %29 = arith.addf %23, %28 : vector<576x32xf32>
    %c0_28 = arith.constant 0 : index
    %c39 = arith.constant 39 : index
    %c0_29 = arith.constant 0 : index
    %30 = vector.load %arg1[%c0_28, %c39, %c0_29] : memref<1x656x3xf32, #tpu.memory_space<vmem>>, vector<1x576x3xf32>
    %31 = vector.shape_cast %30 : vector<1x576x3xf32> to vector<576x3xf32>
    %c3 = arith.constant 3 : index
    %c0_30 = arith.constant 0 : index
    %c0_31 = arith.constant 0 : index
    %32 = vector.load %arg2[%c3, %c0_30, %c0_31] : memref<9x3x32xf32, #tpu.memory_space<vmem>>, vector<1x3x32xf32>
    %33 = vector.shape_cast %32 : vector<1x3x32xf32> to vector<3x32xf32>
    %cst_32 = arith.constant dense<0.000000e+00> : vector<576x32xf32>
    %34 = tpu.matmul %31, %33, %cst_32 {dimension_numbers = #tpu.dot_dimension_numbers<[1], [0], [0], [1], [0, 0, 1, 1], [], []>} : vector<576x3xf32>, vector<3x32xf32>, vector<576x32xf32> -> vector<576x32xf32>
    %35 = arith.addf %29, %34 : vector<576x32xf32>
    %c0_33 = arith.constant 0 : index
    %c40 = arith.constant 40 : index
    %c0_34 = arith.constant 0 : index
    %36 = vector.load %arg1[%c0_33, %c40, %c0_34] : memref<1x656x3xf32, #tpu.memory_space<vmem>>, vector<1x576x3xf32>
    %37 = vector.shape_cast %36 : vector<1x576x3xf32> to vector<576x3xf32>
    %c4 = arith.constant 4 : index
    %c0_35 = arith.constant 0 : index
    %c0_36 = arith.constant 0 : index
    %38 = vector.load %arg2[%c4, %c0_35, %c0_36] : memref<9x3x32xf32, #tpu.memory_space<vmem>>, vector<1x3x32xf32>
    %39 = vector.shape_cast %38 : vector<1x3x32xf32> to vector<3x32xf32>
    %cst_37 = arith.constant dense<0.000000e+00> : vector<576x32xf32>
    %40 = tpu.matmul %37, %39, %cst_37 {dimension_numbers = #tpu.dot_dimension_numbers<[1], [0], [0], [1], [0, 0, 1, 1], [], []>} : vector<576x3xf32>, vector<3x32xf32>, vector<576x32xf32> -> vector<576x32xf32>
    %41 = arith.addf %35, %40 : vector<576x32xf32>
    %c0_38 = arith.constant 0 : index
    %c41 = arith.constant 41 : index
    %c0_39 = arith.constant 0 : index
    %42 = vector.load %arg1[%c0_38, %c41, %c0_39] : memref<1x656x3xf32, #tpu.memory_space<vmem>>, vector<1x576x3xf32>
    %43 = vector.shape_cast %42 : vector<1x576x3xf32> to vector<576x3xf32>
    %c5 = arith.constant 5 : index
    %c0_40 = arith.constant 0 : index
    %c0_41 = arith.constant 0 : index
    %44 = vector.load %arg2[%c5, %c0_40, %c0_41] : memref<9x3x32xf32, #tpu.memory_space<vmem>>, vector<1x3x32xf32>
    %45 = vector.shape_cast %44 : vector<1x3x32xf32> to vector<3x32xf32>
    %cst_42 = arith.constant dense<0.000000e+00> : vector<576x32xf32>
    %46 = tpu.matmul %43, %45, %cst_42 {dimension_numbers = #tpu.dot_dimension_numbers<[1], [0], [0], [1], [0, 0, 1, 1], [], []>} : vector<576x3xf32>, vector<3x32xf32>, vector<576x32xf32> -> vector<576x32xf32>
    %47 = arith.addf %41, %46 : vector<576x32xf32>
    %c0_43 = arith.constant 0 : index
    %c71 = arith.constant 71 : index
    %c0_44 = arith.constant 0 : index
    %48 = vector.load %arg1[%c0_43, %c71, %c0_44] : memref<1x656x3xf32, #tpu.memory_space<vmem>>, vector<1x576x3xf32>
    %49 = vector.shape_cast %48 : vector<1x576x3xf32> to vector<576x3xf32>
    %c6 = arith.constant 6 : index
    %c0_45 = arith.constant 0 : index
    %c0_46 = arith.constant 0 : index
    %50 = vector.load %arg2[%c6, %c0_45, %c0_46] : memref<9x3x32xf32, #tpu.memory_space<vmem>>, vector<1x3x32xf32>
    %51 = vector.shape_cast %50 : vector<1x3x32xf32> to vector<3x32xf32>
    %cst_47 = arith.constant dense<0.000000e+00> : vector<576x32xf32>
    %52 = tpu.matmul %49, %51, %cst_47 {dimension_numbers = #tpu.dot_dimension_numbers<[1], [0], [0], [1], [0, 0, 1, 1], [], []>} : vector<576x3xf32>, vector<3x32xf32>, vector<576x32xf32> -> vector<576x32xf32>
    %53 = arith.addf %47, %52 : vector<576x32xf32>
    %c0_48 = arith.constant 0 : index
    %c72 = arith.constant 72 : index
    %c0_49 = arith.constant 0 : index
    %54 = vector.load %arg1[%c0_48, %c72, %c0_49] : memref<1x656x3xf32, #tpu.memory_space<vmem>>, vector<1x576x3xf32>
    %55 = vector.shape_cast %54 : vector<1x576x3xf32> to vector<576x3xf32>
    %c7_50 = arith.constant 7 : index
    %c0_51 = arith.constant 0 : index
    %c0_52 = arith.constant 0 : index
    %56 = vector.load %arg2[%c7_50, %c0_51, %c0_52] : memref<9x3x32xf32, #tpu.memory_space<vmem>>, vector<1x3x32xf32>
    %57 = vector.shape_cast %56 : vector<1x3x32xf32> to vector<3x32xf32>
    %cst_53 = arith.constant dense<0.000000e+00> : vector<576x32xf32>
    %58 = tpu.matmul %55, %57, %cst_53 {dimension_numbers = #tpu.dot_dimension_numbers<[1], [0], [0], [1], [0, 0, 1, 1], [], []>} : vector<576x3xf32>, vector<3x32xf32>, vector<576x32xf32> -> vector<576x32xf32>
    %59 = arith.addf %53, %58 : vector<576x32xf32>
    %c0_54 = arith.constant 0 : index
    %c73 = arith.constant 73 : index
    %c0_55 = arith.constant 0 : index
    %60 = vector.load %arg1[%c0_54, %c73, %c0_55] : memref<1x656x3xf32, #tpu.memory_space<vmem>>, vector<1x576x3xf32>
    %61 = vector.shape_cast %60 : vector<1x576x3xf32> to vector<576x3xf32>
    %c8_56 = arith.constant 8 : index
    %c0_57 = arith.constant 0 : index
    %c0_58 = arith.constant 0 : index
    %62 = vector.load %arg2[%c8_56, %c0_57, %c0_58] : memref<9x3x32xf32, #tpu.memory_space<vmem>>, vector<1x3x32xf32>
    %63 = vector.shape_cast %62 : vector<1x3x32xf32> to vector<3x32xf32>
    %cst_59 = arith.constant dense<0.000000e+00> : vector<576x32xf32>
    %64 = tpu.matmul %61, %63, %cst_59 {dimension_numbers = #tpu.dot_dimension_numbers<[1], [0], [0], [1], [0, 0, 1, 1], [], []>} : vector<576x3xf32>, vector<3x32xf32>, vector<576x32xf32> -> vector<576x32xf32>
    %65 = arith.addf %59, %64 : vector<576x32xf32>
    %c0_60 = arith.constant 0 : index
    %c0_61 = arith.constant 0 : index
    %66 = vector.load %arg3[%c0_60, %c0_61] : memref<1x32xf32, #tpu.memory_space<vmem>>, vector<1x32xf32>
    %67 = vector.broadcast %66 : vector<1x32xf32> to vector<576x32xf32>
    %68 = arith.addf %65, %67 : vector<576x32xf32>
    %cst_62 = arith.constant 0.000000e+00 : f32
    %69 = vector.broadcast %cst_62 : f32 to vector<576x32xf32>
    %70 = arith.maximumf %68, %69 : vector<576x32xf32>
    %cst_63 = arith.constant 0.000000e+00 : f32
    %71 = vector.shape_cast %2 : vector<576x1xi1> to vector<576x1xi1>
    %72 = vector.broadcast %71 : vector<576x1xi1> to vector<576x32xi1>
    %73 = vector.broadcast %cst_63 : f32 to vector<576x32xf32>
    %74 = arith.select %72, %70, %73 : vector<576x32xi1>, vector<576x32xf32>
    %c8_64 = arith.constant 8 : index
    %c0_65 = arith.constant 0 : index
    %75 = vector.load %arg10[%c8_64, %c0_65] : memref<592x32xf32, #tpu.memory_space<vmem>>, vector<576x32xf32>
    tpu.vector_store %arg10[%c8_64, %c0_65], %74 {strides = array<i32>} : memref<592x32xf32, #tpu.memory_space<vmem>>, vector<576x32xf32>,
    %c0_i32 = arith.constant 0 : i32
    %c3_i32 = arith.constant 3 : i32
    %76 = arith.addi %c0_i32, %c3_i32 : i32
    %c1_i32 = arith.constant 1 : i32
    scf.for %arg12 = %c0_i32 to %76 step %c1_i32  : i32 {
      %c7_81 = arith.constant 7 : index
      %c0_82 = arith.constant 0 : index
      %100 = vector.load %arg10[%c7_81, %c0_82] : memref<592x32xf32, #tpu.memory_space<vmem>>, vector<576x32xf32>
      %101 = arith.truncf %100 : vector<576x32xf32> to vector<576x32xbf16>
      %c32 = arith.constant 32 : index
      %c0_83 = arith.constant 0 : index
      %102 = vector.load %arg11[%c32, %c0_83] : memref<640x96xbf16, #tpu.memory_space<vmem>>, vector<576x32xbf16>
      tpu.vector_store %arg11[%c32, %c0_83], %101 {strides = array<i32>} : memref<640x96xbf16, #tpu.memory_space<vmem>>, vector<576x32xbf16>,
      %c8_84 = arith.constant 8 : index
      %c0_85 = arith.constant 0 : index
      %103 = vector.load %arg10[%c8_84, %c0_85] : memref<592x32xf32, #tpu.memory_space<vmem>>, vector<576x32xf32>
      %104 = arith.truncf %103 : vector<576x32xf32> to vector<576x32xbf16>
      %c32_86 = arith.constant 32 : index
      %c32_87 = arith.constant 32 : index
      %105 = vector.load %arg11[%c32_86, %c32_87] : memref<640x96xbf16, #tpu.memory_space<vmem>>, vector<576x32xbf16>
      tpu.vector_store %arg11[%c32_86, %c32_87], %104 {strides = array<i32>} : memref<640x96xbf16, #tpu.memory_space<vmem>>, vector<576x32xbf16>,
      %c9_88 = arith.constant 9 : index
      %c0_89 = arith.constant 0 : index
      %106 = vector.load %arg10[%c9_88, %c0_89] : memref<592x32xf32, #tpu.memory_space<vmem>>, vector<576x32xf32>
      %107 = arith.truncf %106 : vector<576x32xf32> to vector<576x32xbf16>
      %c32_90 = arith.constant 32 : index
      %c64 = arith.constant 64 : index
      %108 = vector.load %arg11[%c32_90, %c64] : memref<640x96xbf16, #tpu.memory_space<vmem>>, vector<576x32xbf16>
      tpu.vector_store %arg11[%c32_90, %c64], %107 {strides = array<i32>} : memref<640x96xbf16, #tpu.memory_space<vmem>>, vector<576x32xbf16>,
      %c0_91 = arith.constant 0 : index
      %c0_92 = arith.constant 0 : index
      %109 = vector.load %arg11[%c0_91, %c0_92] : memref<640x96xbf16, #tpu.memory_space<vmem>>, vector<576x96xbf16>
      %c3_i32_93 = arith.constant 3 : i32
      %110 = arith.muli %arg12, %c3_i32_93 : i32
      %c0_i32_94 = arith.constant 0 : i32
      %111 = arith.addi %110, %c0_i32_94 : i32
      %112 = arith.index_cast %111 : i32 to index
      %c0_95 = arith.constant 0 : index
      %c0_96 = arith.constant 0 : index
      %113 = vector.load %arg4[%112, %c0_95, %c0_96] : memref<9x96x32xbf16, #tpu.memory_space<vmem>>, vector<1x96x32xbf16>
      %114 = vector.shape_cast %113 : vector<1x96x32xbf16> to vector<96x32xbf16>
      %cst_97 = arith.constant dense<0.000000e+00> : vector<576x32xf32>
      %115 = tpu.matmul %109, %114, %cst_97 {dimension_numbers = #tpu.dot_dimension_numbers<[1], [0], [0], [1], [0, 0, 1, 1], [], []>} : vector<576x96xbf16>, vector<96x32xbf16>, vector<576x32xf32> -> vector<576x32xf32>
      %c32_98 = arith.constant 32 : index
      %c0_99 = arith.constant 0 : index
      %116 = vector.load %arg11[%c32_98, %c0_99] : memref<640x96xbf16, #tpu.memory_space<vmem>>, vector<576x96xbf16>
      %c3_i32_100 = arith.constant 3 : i32
      %117 = arith.muli %arg12, %c3_i32_100 : i32
      %c1_i32_101 = arith.constant 1 : i32
      %118 = arith.addi %117, %c1_i32_101 : i32
      %119 = arith.index_cast %118 : i32 to index
      %c0_102 = arith.constant 0 : index
      %c0_103 = arith.constant 0 : index
      %120 = vector.load %arg4[%119, %c0_102, %c0_103] : memref<9x96x32xbf16, #tpu.memory_space<vmem>>, vector<1x96x32xbf16>
      %121 = vector.shape_cast %120 : vector<1x96x32xbf16> to vector<96x32xbf16>
      %cst_104 = arith.constant dense<0.000000e+00> : vector<576x32xf32>
      %122 = tpu.matmul %116, %121, %cst_104 {dimension_numbers = #tpu.dot_dimension_numbers<[1], [0], [0], [1], [0, 0, 1, 1], [], []>} : vector<576x96xbf16>, vector<96x32xbf16>, vector<576x32xf32> -> vector<576x32xf32>
      %123 = arith.addf %115, %122 : vector<576x32xf32>
      %c64_105 = arith.constant 64 : index
      %c0_106 = arith.constant 0 : index
      %124 = vector.load %arg11[%c64_105, %c0_106] : memref<640x96xbf16, #tpu.memory_space<vmem>>, vector<576x96xbf16>
      %c3_i32_107 = arith.constant 3 : i32
      %125 = arith.muli %arg12, %c3_i32_107 : i32
      %c2_i32 = arith.constant 2 : i32
      %126 = arith.addi %125, %c2_i32 : i32
      %127 = arith.index_cast %126 : i32 to index
      %c0_108 = arith.constant 0 : index
      %c0_109 = arith.constant 0 : index
      %128 = vector.load %arg4[%127, %c0_108, %c0_109] : memref<9x96x32xbf16, #tpu.memory_space<vmem>>, vector<1x96x32xbf16>
      %129 = vector.shape_cast %128 : vector<1x96x32xbf16> to vector<96x32xbf16>
      %cst_110 = arith.constant dense<0.000000e+00> : vector<576x32xf32>
      %130 = tpu.matmul %124, %129, %cst_110 {dimension_numbers = #tpu.dot_dimension_numbers<[1], [0], [0], [1], [0, 0, 1, 1], [], []>} : vector<576x96xbf16>, vector<96x32xbf16>, vector<576x32xf32> -> vector<576x32xf32>
      %131 = arith.addf %123, %130 : vector<576x32xf32>
      %132 = arith.index_cast %arg12 : i32 to index
      %c0_111 = arith.constant 0 : index
      %c0_112 = arith.constant 0 : index
      %133 = vector.load %arg5[%132, %c0_111, %c0_112] : memref<3x1x32xf32, #tpu.memory_space<vmem>>, vector<1x1x32xf32>
      %134 = vector.shape_cast %133 : vector<1x1x32xf32> to vector<1x32xf32>
      %135 = vector.broadcast %134 : vector<1x32xf32> to vector<576x32xf32>
      %136 = arith.addf %131, %135 : vector<576x32xf32>
      %cst_113 = arith.constant 0.000000e+00 : f32
      %137 = vector.broadcast %cst_113 : f32 to vector<576x32xf32>
      %138 = arith.maximumf %136, %137 : vector<576x32xf32>
      %cst_114 = arith.constant 0.000000e+00 : f32
      %139 = vector.shape_cast %2 : vector<576x1xi1> to vector<576x1xi1>
      %140 = vector.broadcast %139 : vector<576x1xi1> to vector<576x32xi1>
      %141 = vector.broadcast %cst_114 : f32 to vector<576x32xf32>
      %142 = arith.select %140, %138, %141 : vector<576x32xi1>, vector<576x32xf32>
      %c8_115 = arith.constant 8 : index
      %c0_116 = arith.constant 0 : index
      %143 = vector.load %arg10[%c8_115, %c0_116] : memref<592x32xf32, #tpu.memory_space<vmem>>, vector<576x32xf32>
      tpu.vector_store %arg10[%c8_115, %c0_116], %142 {strides = array<i32>} : memref<592x32xf32, #tpu.memory_space<vmem>>, vector<576x32xf32>,
    }
    %c3_i32_66 = arith.constant 3 : i32
    %c8_67 = arith.constant 8 : index
    %c0_68 = arith.constant 0 : index
    %77 = vector.load %arg10[%c8_67, %c0_68] : memref<592x32xf32, #tpu.memory_space<vmem>>, vector<576x32xf32>
    %c0_69 = arith.constant 0 : index
    %c0_70 = arith.constant 0 : index
    %78 = vector.load %arg6[%c0_69, %c0_70] : memref<32x3xf32, #tpu.memory_space<vmem>>, vector<32x3xf32>
    %cst_71 = arith.constant dense<0.000000e+00> : vector<576x3xf32>
    %79 = tpu.matmul %77, %78, %cst_71 {dimension_numbers = #tpu.dot_dimension_numbers<[1], [0], [0], [1], [0, 0, 1, 1], [], []>} : vector<576x32xf32>, vector<32x3xf32>, vector<576x3xf32> -> vector<576x3xf32>
    %c0_72 = arith.constant 0 : index
    %c0_73 = arith.constant 0 : index
    %80 = vector.load %arg7[%c0_72, %c0_73] : memref<1x3xf32, #tpu.memory_space<vmem>>, vector<1x3xf32>
    %81 = vector.broadcast %80 : vector<1x3xf32> to vector<576x3xf32>
    %82 = arith.addf %79, %81 : vector<576x3xf32>
    %cst_74 = arith.constant 0.000000e+00 : f32
    %83 = vector.shape_cast %2 : vector<576x1xi1> to vector<576x1xi1>
    %84 = vector.broadcast %83 : vector<576x1xi1> to vector<576x3xi1>
    %85 = vector.broadcast %cst_74 : f32 to vector<576x3xf32>
    %86 = arith.select %84, %82, %85 : vector<576x3xi1>, vector<576x3xf32>
    %cst_75 = arith.constant dense<0.000000e+00> : vector<3xf32>
    %87 = vector.multi_reduction <add>, %86, %cst_75 [0] : vector<576x3xf32> to vector<3xf32>
    %88 = vector.shape_cast %87 : vector<3xf32> to vector<1x3xf32>
    %cst_76 = arith.constant 3.906250e-03 : f32
    %89 = vector.broadcast %cst_76 : f32 to vector<1x3xf32>
    %90 = arith.mulf %88, %89 : vector<1x3xf32>
    %91 = vector.broadcast %90 : vector<1x3xf32> to vector<576x3xf32>
    %92 = arith.subf %86, %91 : vector<576x3xf32>
    %cst_77 = arith.constant 0.000000e+00 : f32
    %93 = vector.shape_cast %2 : vector<576x1xi1> to vector<576x1xi1>
    %94 = vector.broadcast %93 : vector<576x1xi1> to vector<576x3xi1>
    %95 = vector.broadcast %cst_77 : f32 to vector<576x3xf32>
    %96 = arith.select %94, %92, %95 : vector<576x3xi1>, vector<576x3xf32>
    %c0_78 = arith.constant 0 : index
    %c0_79 = arith.constant 0 : index
    %c0_80 = arith.constant 0 : index
    %97 = vector.load %arg9[%c0_78, %c0_79, %c0_80] : memref<1x576x3xf32, #tpu.memory_space<vmem>>, vector<1x576x3xf32>
    %98 = vector.shape_cast %97 : vector<1x576x3xf32> to vector<576x3xf32>
    %99 = vector.shape_cast %96 : vector<576x3xf32> to vector<1x576x3xf32>
    tpu.vector_store %arg9[%c0_78, %c0_79, %c0_80], %99 {strides = array<i32>} : memref<1x576x3xf32, #tpu.memory_space<vmem>>, vector<1x576x3xf32>,
    return
  }
  func.func @transform_0(%arg0: i32) -> (i32, i32, i32) {
    %c0_i32 = arith.constant 0 : i32
    %c0_i32_0 = arith.constant 0 : i32
    %c0_i32_1 = arith.constant 0 : i32
    return %arg0, %c0_i32, %c0_i32_0 : i32, i32, i32
  }
  func.func @transform_1(%arg0: i32) -> (i32, i32, i32) {
    %c0_i32 = arith.constant 0 : i32
    %c0_i32_0 = arith.constant 0 : i32
    %c0_i32_1 = arith.constant 0 : i32
    %c0_i32_2 = arith.constant 0 : i32
    return %c0_i32, %c0_i32_0, %c0_i32_1 : i32, i32, i32
  }
  func.func @transform_2(%arg0: i32) -> (i32, i32) {
    %c0_i32 = arith.constant 0 : i32
    %c0_i32_0 = arith.constant 0 : i32
    %c0_i32_1 = arith.constant 0 : i32
    return %c0_i32, %c0_i32_0 : i32, i32
  }
  func.func @transform_3(%arg0: i32) -> (i32, i32, i32) {
    %c0_i32 = arith.constant 0 : i32
    %c0_i32_0 = arith.constant 0 : i32
    %c0_i32_1 = arith.constant 0 : i32
    %c0_i32_2 = arith.constant 0 : i32
    return %c0_i32, %c0_i32_0, %c0_i32_1 : i32, i32, i32
  }
  func.func @transform_4(%arg0: i32) -> (i32, i32, i32) {
    %c0_i32 = arith.constant 0 : i32
    %c0_i32_0 = arith.constant 0 : i32
    %c0_i32_1 = arith.constant 0 : i32
    %c0_i32_2 = arith.constant 0 : i32
    return %c0_i32, %c0_i32_0, %c0_i32_1 : i32, i32, i32
  }
  func.func @transform_5(%arg0: i32) -> (i32, i32) {
    %c0_i32 = arith.constant 0 : i32
    %c0_i32_0 = arith.constant 0 : i32
    %c0_i32_1 = arith.constant 0 : i32
    return %c0_i32, %c0_i32_0 : i32, i32
  }
  func.func @transform_6(%arg0: i32) -> (i32, i32) {
    %c0_i32 = arith.constant 0 : i32
    %c0_i32_0 = arith.constant 0 : i32
    %c0_i32_1 = arith.constant 0 : i32
    return %c0_i32, %c0_i32_0 : i32, i32
  }
  func.func @transform_7(%arg0: i32) -> (i32, i32) {
    %c0_i32 = arith.constant 0 : i32
    %c0_i32_0 = arith.constant 0 : i32
    %c0_i32_1 = arith.constant 0 : i32
    return %c0_i32, %c0_i32_0 : i32, i32
  }
  func.func @transform_8(%arg0: i32) -> (i32, i32, i32) {
    %c0_i32 = arith.constant 0 : i32
    %c0_i32_0 = arith.constant 0 : i32
    %c0_i32_1 = arith.constant 0 : i32
    return %arg0, %c0_i32, %c0_i32_0 : i32, i32, i32
  }
}

</mosaic_0001>

<llo_original>
// kernel: tpu_custom_call.1
$region0: #{tpu_custom_call.1}
  #allocation0 [shape = 'u32[]', space=smem, size = 0x4, offset = 0x4, fixed_abs, tag = 'smem constant byte address 0x4 - core index']
  #allocation1 [shape = 'u32[144,128]{1,0:T(1,128)}', space=vmem, size = 0x12000, scoped, tag = 'internal scratch']
  #allocation2 [shape = 'f32[592,32]{1,0:T(8,128)}', space=vmem, size = 0x4a000, scoped, tag = 'scratch operand']
  #allocation3 [shape = 'bf16[640,96]{1,0:T(16,128)(2,1)}', space=vmem, size = 0x28000, scoped, tag = 'scratch operand']
  %s0 = inlined_call_operand.vmem [shape: f32[2,656,3], index: 0, kind: input, shape index: {}]
  %s1 = inlined_call_operand.vmem [shape: f32[9,3,32], index: 1, kind: input, shape index: {}]
  %s2 = inlined_call_operand.vmem [shape: f32[1,32], index: 2, kind: input, shape index: {}]
  %s3 = inlined_call_operand.vmem [shape: bf16[9,96,32], index: 3, kind: input, shape index: {}]
  %s4 = inlined_call_operand.vmem [shape: f32[3,1,32], index: 4, kind: input, shape index: {}]
  %s5 = inlined_call_operand.vmem [shape: f32[32,3], index: 5, kind: input, shape index: {}]
  %s6 = inlined_call_operand.vmem [shape: f32[1,3], index: 6, kind: input, shape index: {}]
  %s7 = inlined_call_operand.vmem [shape: f32[576,1], index: 7, kind: input, shape index: {}]
  %s8 = inlined_call_operand.vmem [shape: f32[2,576,3], index: 8, kind: output, shape index: {}]
  %s9 = sld [smem:[#allocation0]]
  $region72: #{tpu_custom_call.1} parent=0
    _
  %s11 = ssub.s32 1, %s9
  %s12 = scalar_select 0, %s11, %s9
  loop: start=0, step=1, limit=4
  $region2: #{tpu_custom_call.1} parent=0 // loop_pre_header
    _
  $region3: #{tpu_custom_call.1} parent=0 // loop_header
    %s14 = sphi 0, %s18
    %p15 = scmp.ge.s32.totalorder %s14, 4
    %s24 = sphi 0, %s26
    %s27 = sphi 0, %s24
    %s28 = sphi 0, %s27
    %s44 = sphi 0, %s28
    %s48 = sphi 0, %s48
    %s50 = sphi 0, %s48
    %s51 = sphi 0, %s50
    %s65 = sphi 0, %s51
    %s69 = sphi 0, %s69
    %s71 = sphi 0, %s69
    %s72 = sphi 0, %s71
    %s86 = sphi 0, %s72
    %s90 = sphi 0, %s90
    %s92 = sphi 0, %s90
    %s93 = sphi 0, %s92
    %s107 = sphi 0, %s93
    %s111 = sphi 0, %s111
    %s113 = sphi 0, %s111
    %s114 = sphi 0, %s113
    %s128 = sphi 0, %s114
    %s132 = sphi 0, %s132
    %s134 = sphi 0, %s132
    %s135 = sphi 0, %s134
    %s149 = sphi 0, %s135
    %s153 = sphi 0, %s153
    %s155 = sphi 0, %s153
    %s156 = sphi 0, %s155
    %s170 = sphi 0, %s156
    %s174 = sphi 0, %s174
    %s176 = sphi 0, %s174
    %s177 = sphi 0, %s176
    %s191 = sphi 0, %s177
    %s197 = sphi 0, %s199
    %s200 = sphi 0, %s197
    %s201 = sphi 0, %s200
    %s217 = sphi 0, %s201
  $region4: #{tpu_custom_call.1} parent=0 // loop_header_branch
    %17 = sbr.rel (%p15) target = $region8
  $region5: #{tpu_custom_call.1} parent=0 // loop_body
    %s19 = ssub.s32 %s14, 1
    %s20 = ssub.s32 %s14, 2
    %s21 = sadd.s32 %s14, 1
    %s22 = ssub.s32 %s14, %s21
    %p23 = scmp.eq.s32.totalorder %s22, 0
    %s25 = sadd.s32 %s24, 1
    %s26 = scalar_select %p23, %s24, %s25
    %p29 = pneg %p23
    %p30 = scmp.eq.s32.totalorder %s14, 1
    %p31 = por %p29, %p30
    %p32 = scmp.ne.s32.totalorder %s24, %s27
    %p33 = scmp.eq.s32.totalorder %s14, 0
    %p34 = por %p32, %p33
    %p35 = scmp.ne.s32.totalorder %s24, %s27
    %p36 = scmp.eq.s32.totalorder %s19, 1
    %p37 = por %p35, %p36
    %p38 = scmp.ne.s32.totalorder %s27, %s28
    %p39 = scmp.eq.s32.totalorder %s19, 0
    %p40 = por %p38, %p39
    %p41 = scmp.ne.s32.totalorder %s27, %s28
    %p42 = scmp.eq.s32.totalorder %s20, 1
    %p43 = por %p41, %p42
    %p45 = scmp.ne.s32.totalorder %s28, %s44
    %p46 = scmp.eq.s32.totalorder %s20, 0
    %p47 = por %p45, %p46
    %s49 = sadd.s32 %s48, 1
    %p52 = scmp.eq.s32.totalorder %s14, 1
    %p53 = scmp.ne.s32.totalorder %s48, %s50
    %p54 = scmp.eq.s32.totalorder %s14, 0
    %p55 = por %p53, %p54
    %p56 = scmp.ne.s32.totalorder %s48, %s50
    %p57 = scmp.eq.s32.totalorder %s19, 1
    %p58 = por %p56, %p57
    %p59 = scmp.ne.s32.totalorder %s50, %s51
    %p60 = scmp.eq.s32.totalorder %s19, 0
    %p61 = por %p59, %p60
    %p62 = scmp.ne.s32.totalorder %s50, %s51
    %p63 = scmp.eq.s32.totalorder %s20, 1
    %p64 = por %p62, %p63
    %p66 = scmp.ne.s32.totalorder %s51, %s65
    %p67 = scmp.eq.s32.totalorder %s20, 0
    %p68 = por %p66, %p67
    %s70 = sadd.s32 %s69, 1
    %p73 = scmp.eq.s32.totalorder %s14, 1
    %p74 = scmp.ne.s32.totalorder %s69, %s71
    %p75 = scmp.eq.s32.totalorder %s14, 0
    %p76 = por %p74, %p75
    %p77 = scmp.ne.s32.totalorder %s69, %s71
    %p78 = scmp.eq.s32.totalorder %s19, 1
    %p79 = por %p77, %p78
    %p80 = scmp.ne.s32.totalorder %s71, %s72
    %p81 = scmp.eq.s32.totalorder %s19, 0
    %p82 = por %p80, %p81
    %p83 = scmp.ne.s32.totalorder %s71, %s72
    %p84 = scmp.eq.s32.totalorder %s20, 1
    %p85 = por %p83, %p84
    %p87 = scmp.ne.s32.totalorder %s72, %s86
    %p88 = scmp.eq.s32.totalorder %s20, 0
    %p89 = por %p87, %p88
    %s91 = sadd.s32 %s90, 1
    %p94 = scmp.eq.s32.totalorder %s14, 1
    %p95 = scmp.ne.s32.totalorder %s90, %s92
    %p96 = scmp.eq.s32.totalorder %s14, 0
    %p97 = por %p95, %p96
    %p98 = scmp.ne.s32.totalorder %s90, %s92
    %p99 = scmp.eq.s32.totalorder %s19, 1
    %p100 = por %p98, %p99
    %p101 = scmp.ne.s32.totalorder %s92, %s93
    %p102 = scmp.eq.s32.totalorder %s19, 0
    %p103 = por %p101, %p102
    %p104 = scmp.ne.s32.totalorder %s92, %s93
    %p105 = scmp.eq.s32.totalorder %s20, 1
    %p106 = por %p104, %p105
    %p108 = scmp.ne.s32.totalorder %s93, %s107
    %p109 = scmp.eq.s32.totalorder %s20, 0
    %p110 = por %p108, %p109
    %s112 = sadd.s32 %s111, 1
    %p115 = scmp.eq.s32.totalorder %s14, 1
    %p116 = scmp.ne.s32.totalorder %s111, %s113
    %p117 = scmp.eq.s32.totalorder %s14, 0
    %p118 = por %p116, %p117
    %p119 = scmp.ne.s32.totalorder %s111, %s113
    %p120 = scmp.eq.s32.totalorder %s19, 1
    %p121 = por %p119, %p120
    %p122 = scmp.ne.s32.totalorder %s113, %s114
    %p123 = scmp.eq.s32.totalorder %s19, 0
    %p124 = por %p122, %p123
    %p125 = scmp.ne.s32.totalorder %s113, %s114
    %p126 = scmp.eq.s32.totalorder %s20, 1
    %p127 = por %p125, %p126
    %p129 = scmp.ne.s32.totalorder %s114, %s128
    %p130 = scmp.eq.s32.totalorder %s20, 0
    %p131 = por %p129, %p130
    %s133 = sadd.s32 %s132, 1
    %p136 = scmp.eq.s32.totalorder %s14, 1
    %p137 = scmp.ne.s32.totalorder %s132, %s134
    %p138 = scmp.eq.s32.totalorder %s14, 0
    %p139 = por %p137, %p138
    %p140 = scmp.ne.s32.totalorder %s132, %s134
    %p141 = scmp.eq.s32.totalorder %s19, 1
    %p142 = por %p140, %p141
    %p143 = scmp.ne.s32.totalorder %s134, %s135
    %p144 = scmp.eq.s32.totalorder %s19, 0
    %p145 = por %p143, %p144
    %p146 = scmp.ne.s32.totalorder %s134, %s135
    %p147 = scmp.eq.s32.totalorder %s20, 1
    %p148 = por %p146, %p147
    %p150 = scmp.ne.s32.totalorder %s135, %s149
    %p151 = scmp.eq.s32.totalorder %s20, 0
    %p152 = por %p150, %p151
    %s154 = sadd.s32 %s153, 1
    %p157 = scmp.eq.s32.totalorder %s14, 1
    %p158 = scmp.ne.s32.totalorder %s153, %s155
    %p159 = scmp.eq.s32.totalorder %s14, 0
    %p160 = por %p158, %p159
    %p161 = scmp.ne.s32.totalorder %s153, %s155
    %p162 = scmp.eq.s32.totalorder %s19, 1
    %p163 = por %p161, %p162
    %p164 = scmp.ne.s32.totalorder %s155, %s156
    %p165 = scmp.eq.s32.totalorder %s19, 0
    %p166 = por %p164, %p165
    %p167 = scmp.ne.s32.totalorder %s155, %s156
    %p168 = scmp.eq.s32.totalorder %s20, 1
    %p169 = por %p167, %p168
    %p171 = scmp.ne.s32.totalorder %s156, %s170
    %p172 = scmp.eq.s32.totalorder %s20, 0
    %p173 = por %p171, %p172
    %s175 = sadd.s32 %s174, 1
    %p178 = scmp.eq.s32.totalorder %s14, 1
    %p179 = scmp.ne.s32.totalorder %s174, %s176
    %p180 = scmp.eq.s32.totalorder %s14, 0
    %p181 = por %p179, %p180
    %p182 = scmp.ne.s32.totalorder %s174, %s176
    %p183 = scmp.eq.s32.totalorder %s19, 1
    %p184 = por %p182, %p183
    %p185 = scmp.ne.s32.totalorder %s176, %s177
    %p186 = scmp.eq.s32.totalorder %s19, 0
    %p187 = por %p185, %p186
    %p188 = scmp.ne.s32.totalorder %s176, %s177
    %p189 = scmp.eq.s32.totalorder %s20, 1
    %p190 = por %p188, %p189
    %p192 = scmp.ne.s32.totalorder %s177, %s191
    %p193 = scmp.eq.s32.totalorder %s20, 0
    %p194 = por %p192, %p193
    %s195 = ssub.s32 %s14, %s21
    %p196 = scmp.eq.s32.totalorder %s195, 0
    %s198 = sadd.s32 %s197, 1
    %s199 = scalar_select %p196, %s197, %s198
    %p202 = pneg %p196
    %p203 = scmp.eq.s32.totalorder %s14, 1
    %p204 = por %p202, %p203
    %p205 = scmp.ne.s32.totalorder %s197, %s200
    %p206 = scmp.eq.s32.totalorder %s14, 0
    %p207 = por %p205, %p206
    %p208 = scmp.ne.s32.totalorder %s197, %s200
    %p209 = scmp.eq.s32.totalorder %s19, 1
    %p210 = por %p208, %p209
    %p211 = scmp.ne.s32.totalorder %s200, %s201
    %p212 = scmp.eq.s32.totalorder %s19, 0
    %p213 = por %p211, %p212
    %p214 = scmp.ne.s32.totalorder %s200, %s201
    %p215 = scmp.eq.s32.totalorder %s20, 1
    %p216 = por %p214, %p215
    %p218 = scmp.ne.s32.totalorder %s201, %s217
    %p219 = scmp.eq.s32.totalorder %s20, 0
    %p220 = por %p218, %p219
    %p221 = scmp.le.s32.totalorder 1, %s14
    %p222 = scmp.lt.s32.totalorder %s14, 3
    %p223 = pnand %p221, %p222
    %p224 = pneg %p223
    // Predicated region
    $region9: #{tpu_custom_call.1} parent=5 // pred_check
      _
    $region10: #{tpu_custom_call.1} parent=5 // pred_check_branch
      %226 = sbr.rel (%p223) target = $region12
    $region11: #{tpu_custom_call.1} parent=5 // pred_region
      %s227 = ssub.s32 %s14, 1
      // Predicated region
      $region13: #{tpu_custom_call.1} parent=11 // pred_check
        %p228 = pneg %p61
      $region14: #{tpu_custom_call.1} parent=11 // pred_check_branch
        %230 = sbr.rel (%p228) target = $region16
      $region15: #{tpu_custom_call.1} parent=11 // pred_region
        _
      $region16: #{tpu_custom_call.1} parent=11 // pred_fallthru
        _
      // Predicated region
      $region17: #{tpu_custom_call.1} parent=11 // pred_check
        %p231 = pneg %p82
      $region18: #{tpu_custom_call.1} parent=11 // pred_check_branch
        %233 = sbr.rel (%p231) target = $region20
      $region19: #{tpu_custom_call.1} parent=11 // pred_region
        _
      $region20: #{tpu_custom_call.1} parent=11 // pred_fallthru
        _
      // Predicated region
      $region21: #{tpu_custom_call.1} parent=11 // pred_check
        %p234 = pneg %p103
      $region22: #{tpu_custom_call.1} parent=11 // pred_check_branch
        %236 = sbr.rel (%p234) target = $region24
      $region23: #{tpu_custom_call.1} parent=11 // pred_region
        _
      $region24: #{tpu_custom_call.1} parent=11 // pred_fallthru
        _
      // Predicated region
      $region25: #{tpu_custom_call.1} parent=11 // pred_check
        %p237 = pneg %p124
      $region26: #{tpu_custom_call.1} parent=11 // pred_check_branch
        %239 = sbr.rel (%p237) target = $region28
      $region27: #{tpu_custom_call.1} parent=11 // pred_region
        _
      $region28: #{tpu_custom_call.1} parent=11 // pred_fallthru
        _
      // Predicated region
      $region29: #{tpu_custom_call.1} parent=11 // pred_check
        %p240 = pneg %p145
      $region30: #{tpu_custom_call.1} parent=11 // pred_check_branch
        %242 = sbr.rel (%p240) target = $region32
      $region31: #{tpu_custom_call.1} parent=11 // pred_region
        _
      $region32: #{tpu_custom_call.1} parent=11 // pred_fallthru
        _
      // Predicated region
      $region33: #{tpu_custom_call.1} parent=11 // pred_check
        %p243 = pneg %p166
      $region34: #{tpu_custom_call.1} parent=11 // pred_check_branch
        %245 = sbr.rel (%p243) target = $region36
      $region35: #{tpu_custom_call.1} parent=11 // pred_region
        _
      $region36: #{tpu_custom_call.1} parent=11 // pred_fallthru
        _
      // Predicated region
      $region37: #{tpu_custom_call.1} parent=11 // pred_check
        %p246 = pneg %p187
      $region38: #{tpu_custom_call.1} parent=11 // pred_check_branch
        %248 = sbr.rel (%p246) target = $region40
      $region39: #{tpu_custom_call.1} parent=11 // pred_region
        _
      $region40: #{tpu_custom_call.1} parent=11 // pred_fallthru
        _
    $region12: #{tpu_custom_call.1} parent=5 // pred_fallthru
      _
    %p249 = scmp.lt.s32.totalorder %s14, 2
    // Predicated region
    $region41: #{tpu_custom_call.1} parent=5 // pred_check
      %p250 = pneg %p249
    $region42: #{tpu_custom_call.1} parent=5 // pred_check_branch
      %252 = sbr.rel (%p250) target = $region44
    $region43: #{tpu_custom_call.1} parent=5 // pred_region
      // Predicated region
      $region45: #{tpu_custom_call.1} parent=43 // pred_check
        %p253 = pneg %p34
      $region46: #{tpu_custom_call.1} parent=43 // pred_check_branch
        %255 = sbr.rel (%p253) target = $region48
      $region47: #{tpu_custom_call.1} parent=43 // pred_region
        %p256 = scmp.lt.s32.totalorder %s14, 1
        %s257 = scalar_select %p256, %s14, 1
        %s258 = smul.addr %s257, 82
        %s259 = smul.addr %s258, 8
        %s260 = scalar_lea.vmem %s0, %s259
      $region48: #{tpu_custom_call.1} parent=43 // pred_fallthru
        _
    $region44: #{tpu_custom_call.1} parent=5 // pred_fallthru
      _
    %p261 = scmp.le.s32.totalorder 1, %s14
    %p262 = scmp.lt.s32.totalorder %s14, 3
    %p263 = pnand %p261, %p262
    %p264 = pneg %p263
    // Predicated region
    $region49: #{tpu_custom_call.1} parent=5 // pred_check
      _
    $region50: #{tpu_custom_call.1} parent=5 // pred_check_branch
      %266 = sbr.rel (%p263) target = $region52
    $region51: #{tpu_custom_call.1} parent=5 // pred_region
      %s267 = ssub.s32 %s14, 1
      %p268 = scmp.lt.s32.totalorder %s19, 1
      %s269 = scalar_select %p268, %s19, 1
      %s270 = smul.addr %s269, 82
      %s271 = smul.addr %s270, 8
      %s272 = scalar_lea.vmem %s0, %s271
      %p273 = pneg %p40
      %p274 = pneg %p37
      %p275 = pneg %p61
      %p276 = pneg %p58
      %p277 = pneg %p82
      %p278 = pneg %p79
      %p279 = pneg %p103
      %p280 = pneg %p100
      %p281 = pneg %p124
      %p282 = pneg %p121
      %p283 = pneg %p145
      %p284 = pneg %p142
      %p285 = pneg %p166
      %p286 = pneg %p163
      %p287 = pneg %p187
      %p288 = pneg %p184
      %p289 = pneg %p213
      %p290 = pneg %p210
      %p291 = scmp.lt.s32.totalorder %s19, 1
      %s292 = scalar_select %p291, %s19, 1
      %s293 = smul.addr %s292, 72
      %s294 = smul.addr %s293, 8
      %s295 = scalar_lea.vmem %s8, %s294
      %p296 = scmp.lt.s32.totalorder %s19, 1
      %s297 = scalar_select %p296, %s19, 1
      %s298 = smul.addr %s297, 82
      %s299 = smul.addr %s298, 8
      %s300 = scalar_lea.vmem %s0, %s299
      %p301 = scmp.lt.s32.totalorder %s19, 1
      %s302 = scalar_select %p301, %s19, 1
      %s303 = smul.addr %s302, 72
      %s304 = smul.addr %s303, 8
      %s305 = scalar_lea.vmem %s8, %s304
      %v307 = vld [vmem:[%s7] sm:$0xff]
      %v308 = vld [vmem:[%s7 + $0x8] sm:$0xff]
      %v309 = vld [vmem:[%s7 + $0x10] sm:$0xff]
      %v310 = vld [vmem:[%s7 + $0x18] sm:$0xff]
      %v311 = vld [vmem:[%s7 + $0x20] sm:$0xff]
      %v312 = vld [vmem:[%s7 + $0x28] sm:$0xff]
      %v313 = vld [vmem:[%s7 + $0x30] sm:$0xff]
      %v314 = vld [vmem:[%s7 + $0x38] sm:$0xff]
      %v315 = vld [vmem:[%s7 + $0x40] sm:$0xff]
      %v316 = vld [vmem:[%s7 + $0x48] sm:$0xff]
      %v317 = vld [vmem:[%s7 + $0x50] sm:$0xff]
      %v318 = vld [vmem:[%s7 + $0x58] sm:$0xff]
      %v319 = vld [vmem:[%s7 + $0x60] sm:$0xff]
      %v320 = vld [vmem:[%s7 + $0x68] sm:$0xff]
      %v321 = vld [vmem:[%s7 + $0x70] sm:$0xff]
      %v322 = vld [vmem:[%s7 + $0x78] sm:$0xff]
      %v323 = vld [vmem:[%s7 + $0x80] sm:$0xff]
      %v324 = vld [vmem:[%s7 + $0x88] sm:$0xff]
      %v325 = vld [vmem:[%s7 + $0x90] sm:$0xff]
      %v326 = vld [vmem:[%s7 + $0x98] sm:$0xff]
      %v327 = vld [vmem:[%s7 + $0xa0] sm:$0xff]
      %v328 = vld [vmem:[%s7 + $0xa8] sm:$0xff]
      %v329 = vld [vmem:[%s7 + $0xb0] sm:$0xff]
      %v330 = vld [vmem:[%s7 + $0xb8] sm:$0xff]
      %v331 = vld [vmem:[%s7 + $0xc0] sm:$0xff]
      %v332 = vld [vmem:[%s7 + $0xc8] sm:$0xff]
      %v333 = vld [vmem:[%s7 + $0xd0] sm:$0xff]
      %v334 = vld [vmem:[%s7 + $0xd8] sm:$0xff]
      %v335 = vld [vmem:[%s7 + $0xe0] sm:$0xff]
      %v336 = vld [vmem:[%s7 + $0xe8] sm:$0xff]
      %v337 = vld [vmem:[%s7 + $0xf0] sm:$0xff]
      %v338 = vld [vmem:[%s7 + $0xf8] sm:$0xff]
      %v339 = vld [vmem:[%s7 + $0x100] sm:$0xff]
      %v340 = vld [vmem:[%s7 + $0x108] sm:$0xff]
      %v341 = vld [vmem:[%s7 + $0x110] sm:$0xff]
      %v342 = vld [vmem:[%s7 + $0x118] sm:$0xff]
      %v343 = vld [vmem:[%s7 + $0x120] sm:$0xff]
      %v344 = vld [vmem:[%s7 + $0x128] sm:$0xff]
      %v345 = vld [vmem:[%s7 + $0x130] sm:$0xff]
      %v346 = vld [vmem:[%s7 + $0x138] sm:$0xff]
      %v347 = vld [vmem:[%s7 + $0x140] sm:$0xff]
      %v348 = vld [vmem:[%s7 + $0x148] sm:$0xff]
      %v349 = vld [vmem:[%s7 + $0x150] sm:$0xff]
      %v350 = vld [vmem:[%s7 + $0x158] sm:$0xff]
      %v351 = vld [vmem:[%s7 + $0x160] sm:$0xff]
      %v352 = vld [vmem:[%s7 + $0x168] sm:$0xff]
      %v353 = vld [vmem:[%s7 + $0x170] sm:$0xff]
      %v354 = vld [vmem:[%s7 + $0x178] sm:$0xff]
      %v355 = vld [vmem:[%s7 + $0x180] sm:$0xff]
      %v356 = vld [vmem:[%s7 + $0x188] sm:$0xff]
      %v357 = vld [vmem:[%s7 + $0x190] sm:$0xff]
      %v358 = vld [vmem:[%s7 + $0x198] sm:$0xff]
      %v359 = vld [vmem:[%s7 + $0x1a0] sm:$0xff]
      %v360 = vld [vmem:[%s7 + $0x1a8] sm:$0xff]
      %v361 = vld [vmem:[%s7 + $0x1b0] sm:$0xff]
      %v362 = vld [vmem:[%s7 + $0x1b8] sm:$0xff]
      %v363 = vld [vmem:[%s7 + $0x1c0] sm:$0xff]
      %v364 = vld [vmem:[%s7 + $0x1c8] sm:$0xff]
      %v365 = vld [vmem:[%s7 + $0x1d0] sm:$0xff]
      %v366 = vld [vmem:[%s7 + $0x1d8] sm:$0xff]
      %v367 = vld [vmem:[%s7 + $0x1e0] sm:$0xff]
      %v368 = vld [vmem:[%s7 + $0x1e8] sm:$0xff]
      %v369 = vld [vmem:[%s7 + $0x1f0] sm:$0xff]
      %v370 = vld [vmem:[%s7 + $0x1f8] sm:$0xff]
      %v371 = vld [vmem:[%s7 + $0x200] sm:$0xff]
      %v372 = vld [vmem:[%s7 + $0x208] sm:$0xff]
      %v373 = vld [vmem:[%s7 + $0x210] sm:$0xff]
      %v374 = vld [vmem:[%s7 + $0x218] sm:$0xff]
      %v375 = vld [vmem:[%s7 + $0x220] sm:$0xff]
      %v376 = vld [vmem:[%s7 + $0x228] sm:$0xff]
      %v377 = vld [vmem:[%s7 + $0x230] sm:$0xff]
      %v378 = vld [vmem:[%s7 + $0x238] sm:$0xff]
      %vm379 = vcmp.gt.f32.partialorder %v307, 0.5
      %vm380 = vcmp.gt.f32.partialorder %v308, 0.5
      %vm381 = vcmp.gt.f32.partialorder %v309, 0.5
      %vm382 = vcmp.gt.f32.partialorder %v310, 0.5
      %vm383 = vcmp.gt.f32.partialorder %v311, 0.5
      %vm384 = vcmp.gt.f32.partialorder %v312, 0.5
      %vm385 = vcmp.gt.f32.partialorder %v313, 0.5
      %vm386 = vcmp.gt.f32.partialorder %v314, 0.5
      %vm387 = vcmp.gt.f32.partialorder %v315, 0.5
      %vm388 = vcmp.gt.f32.partialorder %v316, 0.5
      %vm389 = vcmp.gt.f32.partialorder %v317, 0.5
      %vm390 = vcmp.gt.f32.partialorder %v318, 0.5
      %vm391 = vcmp.gt.f32.partialorder %v319, 0.5
      %vm392 = vcmp.gt.f32.partialorder %v320, 0.5
      %vm393 = vcmp.gt.f32.partialorder %v321, 0.5
      %vm394 = vcmp.gt.f32.partialorder %v322, 0.5
      %vm395 = vcmp.gt.f32.partialorder %v323, 0.5
      %vm396 = vcmp.gt.f32.partialorder %v324, 0.5
      %vm397 = vcmp.gt.f32.partialorder %v325, 0.5
      %vm398 = vcmp.gt.f32.partialorder %v326, 0.5
      %vm399 = vcmp.gt.f32.partialorder %v327, 0.5
      %vm400 = vcmp.gt.f32.partialorder %v328, 0.5
      %vm401 = vcmp.gt.f32.partialorder %v329, 0.5
      %vm402 = vcmp.gt.f32.partialorder %v330, 0.5
      %vm403 = vcmp.gt.f32.partialorder %v331, 0.5
      %vm404 = vcmp.gt.f32.partialorder %v332, 0.5
      %vm405 = vcmp.gt.f32.partialorder %v333, 0.5
      %vm406 = vcmp.gt.f32.partialorder %v334, 0.5
      %vm407 = vcmp.gt.f32.partialorder %v335, 0.5
      %vm408 = vcmp.gt.f32.partialorder %v336, 0.5
      %vm409 = vcmp.gt.f32.partialorder %v337, 0.5
      %vm410 = vcmp.gt.f32.partialorder %v338, 0.5
      %vm411 = vcmp.gt.f32.partialorder %v339, 0.5
      %vm412 = vcmp.gt.f32.partialorder %v340, 0.5
      %vm413 = vcmp.gt.f32.partialorder %v341, 0.5
      %vm414 = vcmp.gt.f32.partialorder %v342, 0.5
      %vm415 = vcmp.gt.f32.partialorder %v343, 0.5
      %vm416 = vcmp.gt.f32.partialorder %v344, 0.5
      %vm417 = vcmp.gt.f32.partialorder %v345, 0.5
      %vm418 = vcmp.gt.f32.partialorder %v346, 0.5
      %vm419 = vcmp.gt.f32.partialorder %v347, 0.5
      %vm420 = vcmp.gt.f32.partialorder %v348, 0.5
      %vm421 = vcmp.gt.f32.partialorder %v349, 0.5
      %vm422 = vcmp.gt.f32.partialorder %v350, 0.5
      %vm423 = vcmp.gt.f32.partialorder %v351, 0.5
      %vm424 = vcmp.gt.f32.partialorder %v352, 0.5
      %vm425 = vcmp.gt.f32.partialorder %v353, 0.5
      %vm426 = vcmp.gt.f32.partialorder %v354, 0.5
      %vm427 = vcmp.gt.f32.partialorder %v355, 0.5
      %vm428 = vcmp.gt.f32.partialorder %v356, 0.5
      %vm429 = vcmp.gt.f32.partialorder %v357, 0.5
      %vm430 = vcmp.gt.f32.partialorder %v358, 0.5
      %vm431 = vcmp.gt.f32.partialorder %v359, 0.5
      %vm432 = vcmp.gt.f32.partialorder %v360, 0.5
      %vm433 = vcmp.gt.f32.partialorder %v361, 0.5
      %vm434 = vcmp.gt.f32.partialorder %v362, 0.5
      %vm435 = vcmp.gt.f32.partialorder %v363, 0.5
      %vm436 = vcmp.gt.f32.partialorder %v364, 0.5
      %vm437 = vcmp.gt.f32.partialorder %v365, 0.5
      %vm438 = vcmp.gt.f32.partialorder %v366, 0.5
      %vm439 = vcmp.gt.f32.partialorder %v367, 0.5
      %vm440 = vcmp.gt.f32.partialorder %v368, 0.5
      %vm441 = vcmp.gt.f32.partialorder %v369, 0.5
      %vm442 = vcmp.gt.f32.partialorder %v370, 0.5
      %vm443 = vcmp.gt.f32.partialorder %v371, 0.5
      %vm444 = vcmp.gt.f32.partialorder %v372, 0.5
      %vm445 = vcmp.gt.f32.partialorder %v373, 0.5
      %vm446 = vcmp.gt.f32.partialorder %v374, 0.5
      %vm447 = vcmp.gt.f32.partialorder %v375, 0.5
      %vm448 = vcmp.gt.f32.partialorder %v376, 0.5
      %vm449 = vcmp.gt.f32.partialorder %v377, 0.5
      %vm450 = vcmp.gt.f32.partialorder %v378, 0.5
      %vm451 = vcmask 261120
      %452 = vst.msk [vmem:[#allocation2] sm:$0xff] %vm451, 0.0
      %453 = vst.msk [vmem:[#allocation2 + $0x248] sm:$0xff] %vm451, 0.0
      %vm454 = vcmask 785408
      %455 = vst.msk [vmem:[#allocation3] sm:$0xff] %vm454, 0
      %456 = vst.msk [vmem:[#allocation3 + $0x8] sm:$0xff] %vm454, 0
      %457 = vst.msk [vmem:[#allocation3 + $0x130] sm:$0xff] %vm454, 0
      %458 = vst.msk [vmem:[#allocation3 + $0x138] sm:$0xff] %vm454, 0
      %v459 = vld [vmem:[%s300 + $0x7] sm:$0xff]
      %v460 = vld [vmem:[%s300 + $0xf] sm:$0xff]
      %v461 = vld [vmem:[%s300 + $0x17] sm:$0xff]
      %v462 = vld [vmem:[%s300 + $0x1f] sm:$0xff]
      %v463 = vld [vmem:[%s300 + $0x27] sm:$0xff]
      %v464 = vld [vmem:[%s300 + $0x2f] sm:$0xff]
      %v465 = vld [vmem:[%s300 + $0x37] sm:$0xff]
      %v466 = vld [vmem:[%s300 + $0x3f] sm:$0xff]
      %v467 = vld [vmem:[%s300 + $0x47] sm:$0xff]
      %v468 = vld [vmem:[%s300 + $0x4f] sm:$0xff]
      %v469 = vld [vmem:[%s300 + $0x57] sm:$0xff]
      %v470 = vld [vmem:[%s300 + $0x5f] sm:$0xff]
      %v471 = vld [vmem:[%s300 + $0x67] sm:$0xff]
      %v472 = vld [vmem:[%s300 + $0x6f] sm:$0xff]
      %v473 = vld [vmem:[%s300 + $0x77] sm:$0xff]
      %v474 = vld [vmem:[%s300 + $0x7f] sm:$0xff]
      %v475 = vld [vmem:[%s300 + $0x87] sm:$0xff]
      %v476 = vld [vmem:[%s300 + $0x8f] sm:$0xff]
      %v477 = vld [vmem:[%s300 + $0x97] sm:$0xff]
      %v478 = vld [vmem:[%s300 + $0x9f] sm:$0xff]
      %v479 = vld [vmem:[%s300 + $0xa7] sm:$0xff]
      %v480 = vld [vmem:[%s300 + $0xaf] sm:$0xff]
      %v481 = vld [vmem:[%s300 + $0xb7] sm:$0xff]
      %v482 = vld [vmem:[%s300 + $0xbf] sm:$0xff]
      %v483 = vld [vmem:[%s300 + $0xc7] sm:$0xff]
      %v484 = vld [vmem:[%s300 + $0xcf] sm:$0xff]
      %v485 = vld [vmem:[%s300 + $0xd7] sm:$0xff]
      %v486 = vld [vmem:[%s300 + $0xdf] sm:$0xff]
      %v487 = vld [vmem:[%s300 + $0xe7] sm:$0xff]
      %v488 = vld [vmem:[%s300 + $0xef] sm:$0xff]
      %v489 = vld [vmem:[%s300 + $0xf7] sm:$0xff]
      %v490 = vld [vmem:[%s300 + $0xff] sm:$0xff]
      %v491 = vld [vmem:[%s300 + $0x107] sm:$0xff]
      %v492 = vld [vmem:[%s300 + $0x10f] sm:$0xff]
      %v493 = vld [vmem:[%s300 + $0x117] sm:$0xff]
      %v494 = vld [vmem:[%s300 + $0x11f] sm:$0xff]
      %v495 = vld [vmem:[%s300 + $0x127] sm:$0xff]
      %v496 = vld [vmem:[%s300 + $0x12f] sm:$0xff]
      %v497 = vld [vmem:[%s300 + $0x137] sm:$0xff]
      %v498 = vld [vmem:[%s300 + $0x13f] sm:$0xff]
      %v499 = vld [vmem:[%s300 + $0x147] sm:$0xff]
      %v500 = vld [vmem:[%s300 + $0x14f] sm:$0xff]
      %v501 = vld [vmem:[%s300 + $0x157] sm:$0xff]
      %v502 = vld [vmem:[%s300 + $0x15f] sm:$0xff]
      %v503 = vld [vmem:[%s300 + $0x167] sm:$0xff]
      %v504 = vld [vmem:[%s300 + $0x16f] sm:$0xff]
      %v505 = vld [vmem:[%s300 + $0x177] sm:$0xff]
      %v506 = vld [vmem:[%s300 + $0x17f] sm:$0xff]
      %v507 = vld [vmem:[%s300 + $0x187] sm:$0xff]
      %v508 = vld [vmem:[%s300 + $0x18f] sm:$0xff]
      %v509 = vld [vmem:[%s300 + $0x197] sm:$0xff]
      %v510 = vld [vmem:[%s300 + $0x19f] sm:$0xff]
      %v511 = vld [vmem:[%s300 + $0x1a7] sm:$0xff]
      %v512 = vld [vmem:[%s300 + $0x1af] sm:$0xff]
      %v513 = vld [vmem:[%s300 + $0x1b7] sm:$0xff]
      %v514 = vld [vmem:[%s300 + $0x1bf] sm:$0xff]
      %v515 = vld [vmem:[%s300 + $0x1c7] sm:$0xff]
      %v516 = vld [vmem:[%s300 + $0x1cf] sm:$0xff]
      %v517 = vld [vmem:[%s300 + $0x1d7] sm:$0xff]
      %v518 = vld [vmem:[%s300 + $0x1df] sm:$0xff]
      %v519 = vld [vmem:[%s300 + $0x1e7] sm:$0xff]
      %v520 = vld [vmem:[%s300 + $0x1ef] sm:$0xff]
      %v521 = vld [vmem:[%s300 + $0x1f7] sm:$0xff]
      %v522 = vld [vmem:[%s300 + $0x1ff] sm:$0xff]
      %v523 = vld [vmem:[%s300 + $0x207] sm:$0xff]
      %v524 = vld [vmem:[%s300 + $0x20f] sm:$0xff]
      %v525 = vld [vmem:[%s300 + $0x217] sm:$0xff]
      %v526 = vld [vmem:[%s300 + $0x21f] sm:$0xff]
      %v527 = vld [vmem:[%s300 + $0x227] sm:$0xff]
      %v528 = vld [vmem:[%s300 + $0x22f] sm:$0xff]
      %v529 = vld [vmem:[%s300 + $0x237] sm:$0xff]
      %v530 = vld [vmem:[%s300 + $0x23f] sm:$0xff]
      %v531 = vld [vmem:[%s1] sm:$0x7]
      %v532 = vld [vmem:[%s300 + $0x8] sm:$0xff]
      %v533 = vld [vmem:[%s300 + $0x10] sm:$0xff]
      %v534 = vld [vmem:[%s300 + $0x18] sm:$0xff]
      %v535 = vld [vmem:[%s300 + $0x20] sm:$0xff]
      %v536 = vld [vmem:[%s300 + $0x28] sm:$0xff]
      %v537 = vld [vmem:[%s300 + $0x30] sm:$0xff]
      %v538 = vld [vmem:[%s300 + $0x38] sm:$0xff]
      %v539 = vld [vmem:[%s300 + $0x40] sm:$0xff]
      %v540 = vld [vmem:[%s300 + $0x48] sm:$0xff]
      %v541 = vld [vmem:[%s300 + $0x50] sm:$0xff]
      %v542 = vld [vmem:[%s300 + $0x58] sm:$0xff]
      %v543 = vld [vmem:[%s300 + $0x60] sm:$0xff]
      %v544 = vld [vmem:[%s300 + $0x68] sm:$0xff]
      %v545 = vld [vmem:[%s300 + $0x70] sm:$0xff]
      %v546 = vld [vmem:[%s300 + $0x78] sm:$0xff]
      %v547 = vld [vmem:[%s300 + $0x80] sm:$0xff]
      %v548 = vld [vmem:[%s300 + $0x88] sm:$0xff]
      %v549 = vld [vmem:[%s300 + $0x90] sm:$0xff]
      %v550 = vld [vmem:[%s300 + $0x98] sm:$0xff]
      %v551 = vld [vmem:[%s300 + $0xa0] sm:$0xff]
      %v552 = vld [vmem:[%s300 + $0xa8] sm:$0xff]
      %v553 = vld [vmem:[%s300 + $0xb0] sm:$0xff]
      %v554 = vld [vmem:[%s300 + $0xb8] sm:$0xff]
      %v555 = vld [vmem:[%s300 + $0xc0] sm:$0xff]
      %v556 = vld [vmem:[%s300 + $0xc8] sm:$0xff]
      %v557 = vld [vmem:[%s300 + $0xd0] sm:$0xff]
      %v558 = vld [vmem:[%s300 + $0xd8] sm:$0xff]
      %v559 = vld [vmem:[%s300 + $0xe0] sm:$0xff]
      %v560 = vld [vmem:[%s300 + $0xe8] sm:$0xff]
      %v561 = vld [vmem:[%s300 + $0xf0] sm:$0xff]
      %v562 = vld [vmem:[%s300 + $0xf8] sm:$0xff]
      %v563 = vld [vmem:[%s300 + $0x100] sm:$0xff]
      %v564 = vld [vmem:[%s300 + $0x108] sm:$0xff]
      %v565 = vld [vmem:[%s300 + $0x110] sm:$0xff]
      %v566 = vld [vmem:[%s300 + $0x118] sm:$0xff]
      %v567 = vld [vmem:[%s300 + $0x120] sm:$0xff]
      %v568 = vld [vmem:[%s300 + $0x128] sm:$0xff]
      %v569 = vld [vmem:[%s300 + $0x130] sm:$0xff]
      %v570 = vld [vmem:[%s300 + $0x138] sm:$0xff]
      %v571 = vld [vmem:[%s300 + $0x140] sm:$0xff]
      %v572 = vld [vmem:[%s300 + $0x148] sm:$0xff]
      %v573 = vld [vmem:[%s300 + $0x150] sm:$0xff]
      %v574 = vld [vmem:[%s300 + $0x158] sm:$0xff]
      %v575 = vld [vmem:[%s300 + $0x160] sm:$0xff]
      %v576 = vld [vmem:[%s300 + $0x168] sm:$0xff]
      %v577 = vld [vmem:[%s300 + $0x170] sm:$0xff]
      %v578 = vld [vmem:[%s300 + $0x178] sm:$0xff]
      %v579 = vld [vmem:[%s300 + $0x180] sm:$0xff]
      %v580 = vld [vmem:[%s300 + $0x188] sm:$0xff]
      %v581 = vld [vmem:[%s300 + $0x190] sm:$0xff]
      %v582 = vld [vmem:[%s300 + $0x198] sm:$0xff]
      %v583 = vld [vmem:[%s300 + $0x1a0] sm:$0xff]
      %v584 = vld [vmem:[%s300 + $0x1a8] sm:$0xff]
      %v585 = vld [vmem:[%s300 + $0x1b0] sm:$0xff]
      %v586 = vld [vmem:[%s300 + $0x1b8] sm:$0xff]
      %v587 = vld [vmem:[%s300 + $0x1c0] sm:$0xff]
      %v588 = vld [vmem:[%s300 + $0x1c8] sm:$0xff]
      %v589 = vld [vmem:[%s300 + $0x1d0] sm:$0xff]
      %v590 = vld [vmem:[%s300 + $0x1d8] sm:$0xff]
      %v591 = vld [vmem:[%s300 + $0x1e0] sm:$0xff]
      %v592 = vld [vmem:[%s300 + $0x1e8] sm:$0xff]
      %v593 = vld [vmem:[%s300 + $0x1f0] sm:$0xff]
      %v594 = vld [vmem:[%s300 + $0x1f8] sm:$0xff]
      %v595 = vld [vmem:[%s300 + $0x200] sm:$0xff]
      %v596 = vld [vmem:[%s300 + $0x208] sm:$0xff]
      %v597 = vld [vmem:[%s300 + $0x210] sm:$0xff]
      %v598 = vld [vmem:[%s300 + $0x218] sm:$0xff]
      %v599 = vld [vmem:[%s300 + $0x220] sm:$0xff]
      %v600 = vld [vmem:[%s300 + $0x228] sm:$0xff]
      %v601 = vld [vmem:[%s300 + $0x230] sm:$0xff]
      %v602 = vld [vmem:[%s300 + $0x238] sm:$0xff]
      %v603 = vld [vmem:[%s300 + $0x240] sm:$0xff]
      %s604 = scalar_lea.vmem %s1, 4
      %v605 = vld [vmem:[%s604] sm:$0x7]
      %vm606 = vcmask 23552
      %v608 = vsel %vm606, %v532, 0
      %v611 = vsel %vm606, %v533, 0
      %v614 = vsel %vm606, %v534, 0
      %v617 = vsel %vm606, %v535, 0
      %v620 = vsel %vm606, %v536, 0
      %v623 = vsel %vm606, %v537, 0
      %v626 = vsel %vm606, %v538, 0
      %v629 = vsel %vm606, %v539, 0
      %v632 = vsel %vm606, %v540, 0
      %v635 = vsel %vm606, %v541, 0
      %v638 = vsel %vm606, %v542, 0
      %v641 = vsel %vm606, %v543, 0
      %v644 = vsel %vm606, %v544, 0
      %v647 = vsel %vm606, %v545, 0
      %v650 = vsel %vm606, %v546, 0
      %v653 = vsel %vm606, %v547, 0
      %v656 = vsel %vm606, %v548, 0
      %v659 = vsel %vm606, %v549, 0
      %v662 = vsel %vm606, %v550, 0
      %v665 = vsel %vm606, %v551, 0
      %v668 = vsel %vm606, %v552, 0
      %v671 = vsel %vm606, %v553, 0
      %v674 = vsel %vm606, %v554, 0
      %v677 = vsel %vm606, %v555, 0
      %v680 = vsel %vm606, %v556, 0
      %v683 = vsel %vm606, %v557, 0
      %v686 = vsel %vm606, %v558, 0
      %v689 = vsel %vm606, %v559, 0
      %v692 = vsel %vm606, %v560, 0
      %v695 = vsel %vm606, %v561, 0
      %v698 = vsel %vm606, %v562, 0
      %v701 = vsel %vm606, %v563, 0
      %v704 = vsel %vm606, %v564, 0
      %v707 = vsel %vm606, %v565, 0
      %v710 = vsel %vm606, %v566, 0
      %v713 = vsel %vm606, %v567, 0
      %v716 = vsel %vm606, %v568, 0
      %v719 = vsel %vm606, %v569, 0
      %v722 = vsel %vm606, %v570, 0
      %v725 = vsel %vm606, %v571, 0
      %v728 = vsel %vm606, %v572, 0
      %v731 = vsel %vm606, %v573, 0
      %v734 = vsel %vm606, %v574, 0
      %v737 = vsel %vm606, %v575, 0
      %v740 = vsel %vm606, %v576, 0
      %v743 = vsel %vm606, %v577, 0
      %v746 = vsel %vm606, %v578, 0
      %v749 = vsel %vm606, %v579, 0
      %v752 = vsel %vm606, %v580, 0
      %v755 = vsel %vm606, %v581, 0
      %v758 = vsel %vm606, %v582, 0
      %v761 = vsel %vm606, %v583, 0
      %v764 = vsel %vm606, %v584, 0
      %v767 = vsel %vm606, %v585, 0
      %v770 = vsel %vm606, %v586, 0
      %v773 = vsel %vm606, %v587, 0
      %v776 = vsel %vm606, %v588, 0
      %v779 = vsel %vm606, %v589, 0
      %v782 = vsel %vm606, %v590, 0
      %v785 = vsel %vm606, %v591, 0
      %v788 = vsel %vm606, %v592, 0
      %v791 = vsel %vm606, %v593, 0
      %v794 = vsel %vm606, %v594, 0
      %v797 = vsel %vm606, %v595, 0
      %v800 = vsel %vm606, %v596, 0
      %v803 = vsel %vm606, %v597, 0
      %v806 = vsel %vm606, %v598, 0
      %v809 = vsel %vm606, %v599, 0
      %v812 = vsel %vm606, %v600, 0
      %v815 = vsel %vm606, %v601, 0
      %v818 = vsel %vm606, %v602, 0
      %v821 = vsel %vm606, %v603, 0
      %vm823 = vcmask 1042432
      %v825 = vsel %vm823, %v605, 0
      %827 = vmatprep.subr.mxu0 0.0
      %828 = vmatpush1.msra.mxu0 %v825
      %829 = vmatprep.subr.mxu0 0.0
      %830 = vmatpush1.msra.mxu0 0.0
      %831 = vmatprep.subr.mxu0 0.0
      %832 = vmatpush1.msra.mxu0 0.0
      %833 = vmatprep.subr.mxu0 0.0
      %834 = vmatpush1.msra.mxu0 0.0
      %835 = vmatprep.subr.mxu0 0.0
      %836 = vmatpush1.msra.mxu0 0.0
      %837 = vmatprep.subr.mxu0 0.0
      %838 = vmatpush1.msra.mxu0 0.0
      %839 = vmatprep.subr.mxu0 0.0
      %840 = vmatpush1.msra.mxu0 0.0
      %841 = vmatprep.subr.mxu0 0.0
      %842 = vmatpush1.msra.mxu0 0.0
      %843 = vmatprep.subr.mxu0 0.0
      %844 = vmatpush1.msra.mxu0 0.0
      %845 = vmatprep.subr.mxu0 0.0
      %846 = vmatpush1.msra.mxu0 0.0
      %847 = vmatprep.subr.mxu0 0.0
      %848 = vmatpush1.msra.mxu0 0.0
      %849 = vmatprep.subr.mxu0 0.0
      %850 = vmatpush1.msra.mxu0 0.0
      %851 = vmatprep.subr.mxu0 0.0
      %852 = vmatpush1.msra.mxu0 0.0
      %853 = vmatprep.subr.mxu0 0.0
      %854 = vmatpush1.msra.mxu0 0.0
      %855 = vmatprep.subr.mxu0 0.0
      %856 = vmatpush1.msra.mxu0 0.0
      %857 = vmatprep.subr.mxu0 0.0
      %858 = vmatpush1.msra.mxu0 0.0
      %859 = vmatprep.subr.mxu0 0.0
      %860 = vmatpush1.msra.mxu0 0.0
      %861 = vmatprep.subr.mxu0 0.0
      %862 = vmatpush1.msra.mxu0 0.0
      %863 = vmatprep.subr.mxu0 0.0
      %864 = vmatpush1.msra.mxu0 0.0
      %865 = vmatprep.subr.mxu0 0.0
      %866 = vmatpush1.msra.mxu0 0.0
      %867 = vmatprep.subr.mxu0 0.0
      %868 = vmatpush1.msra.mxu0 0.0
      %869 = vmatprep.subr.mxu0 0.0
      %870 = vmatpush1.msra.mxu0 0.0
      %871 = vmatprep.subr.mxu0 0.0
      %872 = vmatpush1.msra.mxu0 0.0
      %873 = vmatprep.subr.mxu0 0.0
      %874 = vmatpush1.msra.mxu0 0.0
      %875 = vmatprep.subr.mxu0 0.0
      %876 = vmatpush1.msra.mxu0 0.0
      %877 = vmatprep.subr.mxu0 0.0
      %878 = vmatpush1.msra.mxu0 0.0
      %879 = vmatprep.subr.mxu0 0.0
      %880 = vmatpush1.msra.mxu0 0.0
      %881 = vmatprep.subr.mxu0 0.0
      %882 = vmatpush1.msra.mxu0 0.0
      %883 = vmatprep.subr.mxu0 0.0
      %884 = vmatpush1.msra.mxu0 0.0
      %885 = vmatprep.subr.mxu0 0.0
      %886 = vmatpush1.msra.mxu0 0.0
      %887 = vmatprep.subr.mxu0 0.0
      %888 = vmatpush1.msra.mxu0 0.0
      %889 = vmatprep.subr.mxu0 0.0
      %890 = vmatpush1.msra.mxu0 0.0
      %891 = vmatprep.mubr.f32.mxu0 0.0
      %892 = vmatmul.mubr.f32.gmra.mrb[0].mxu0 %v608
      %v893 = vpop.f32.mrb[0].mxu0
      %v894 = vadd.f32 0.0, %v893
      %v895 = vpop.f32.mrb[0].mxu0
      %896 = vmatprep.mubr.f32.mxu0 0.0
      %897 = vmatmul.mubr.f32.gmra.mrb[0].mxu0 %v611
      %v898 = vpop.f32.mrb[0].mxu0
      %v899 = vadd.f32 0.0, %v898
      %v900 = vpop.f32.mrb[0].mxu0
      %901 = vmatprep.mubr.f32.mxu0 0.0
      %902 = vmatmul.mubr.f32.gmra.mrb[0].mxu0 %v614
      %v903 = vpop.f32.mrb[0].mxu0
      %v904 = vadd.f32 0.0, %v903
      %v905 = vpop.f32.mrb[0].mxu0
      %906 = vmatprep.mubr.f32.mxu0 0.0
      %907 = vmatmul.mubr.f32.gmra.mrb[0].mxu0 %v617
      %v908 = vpop.f32.mrb[0].mxu0
      %v909 = vadd.f32 0.0, %v908
      %v910 = vpop.f32.mrb[0].mxu0
      %911 = vmatprep.mubr.f32.mxu0 0.0
      %912 = vmatmul.mubr.f32.gmra.mrb[0].mxu0 %v620
      %v913 = vpop.f32.mrb[0].mxu0
      %v914 = vadd.f32 0.0, %v913
      %v915 = vpop.f32.mrb[0].mxu0
      %916 = vmatprep.mubr.f32.mxu0 0.0
      %917 = vmatmul.mubr.f32.gmra.mrb[0].mxu0 %v623
      %v918 = vpop.f32.mrb[0].mxu0
      %v919 = vadd.f32 0.0, %v918
      %v920 = vpop.f32.mrb[0].mxu0
      %921 = vmatprep.mubr.f32.mxu0 0.0
      %922 = vmatmul.mubr.f32.gmra.mrb[0].mxu0 %v626
      %v923 = vpop.f32.mrb[0].mxu0
      %v924 = vadd.f32 0.0, %v923
      %v925 = vpop.f32.mrb[0].mxu0
      %926 = vmatprep.mubr.f32.mxu0 0.0
      %927 = vmatmul.mubr.f32.gmra.mrb[0].mxu0 %v629
      %v928 = vpop.f32.mrb[0].mxu0
      %v929 = vadd.f32 0.0, %v928
      %v930 = vpop.f32.mrb[0].mxu0
      %931 = vmatprep.mubr.f32.mxu0 0.0
      %932 = vmatmul.mubr.f32.gmra.mrb[0].mxu0 %v632
      %v933 = vpop.f32.mrb[0].mxu0
      %v934 = vadd.f32 0.0, %v933
      %v935 = vpop.f32.mrb[0].mxu0
      %936 = vmatprep.mubr.f32.mxu0 0.0
      %937 = vmatmul.mubr.f32.gmra.mrb[0].mxu0 %v635
      %v938 = vpop.f32.mrb[0].mxu0
      %v939 = vadd.f32 0.0, %v938
      %v940 = vpop.f32.mrb[0].mxu0
      %941 = vmatprep.mubr.f32.mxu0 0.0
      %942 = vmatmul.mubr.f32.gmra.mrb[0].mxu0 %v638
      %v943 = vpop.f32.mrb[0].mxu0
      %v944 = vadd.f32 0.0, %v943
      %v945 = vpop.f32.mrb[0].mxu0
      %946 = vmatprep.mubr.f32.mxu0 0.0
      %947 = vmatmul.mubr.f32.gmra.mrb[0].mxu0 %v641
      %v948 = vpop.f32.mrb[0].mxu0
      %v949 = vadd.f32 0.0, %v948
      %v950 = vpop.f32.mrb[0].mxu0
      %951 = vmatprep.mubr.f32.mxu0 0.0
      %952 = vmatmul.mubr.f32.gmra.mrb[0].mxu0 %v644
      %v953 = vpop.f32.mrb[0].mxu0
      %v954 = vadd.f32 0.0, %v953
      %v955 = vpop.f32.mrb[0].mxu0
      %956 = vmatprep.mubr.f32.mxu0 0.0
      %957 = vmatmul.mubr.f32.gmra.mrb[0].mxu0 %v647
      %v958 = vpop.f32.mrb[0].mxu0
      %v959 = vadd.f32 0.0, %v958
      %v960 = vpop.f32.mrb[0].mxu0
      %961 = vmatprep.mubr.f32.mxu0 0.0
      %962 = vmatmul.mubr.f32.gmra.mrb[0].mxu0 %v650
      %v963 = vpop.f32.mrb[0].mxu0
      %v964 = vadd.f32 0.0, %v963
      %v965 = vpop.f32.mrb[0].mxu0
      %966 = vmatprep.mubr.f32.mxu0 0.0
      %967 = vmatmul.mubr.f32.gmra.mrb[0].mxu0 %v653
      %v968 = vpop.f32.mrb[0].mxu0
      %v969 = vadd.f32 0.0, %v968
      %v970 = vpop.f32.mrb[0].mxu0
      %971 = vmatprep.mubr.f32.mxu0 0.0
      %972 = vmatmul.mubr.f32.gmra.mrb[0].mxu0 %v656
      %v973 = vpop.f32.mrb[0].mxu0
      %v974 = vadd.f32 0.0, %v973
      %v975 = vpop.f32.mrb[0].mxu0
      %976 = vmatprep.mubr.f32.mxu0 0.0
      %977 = vmatmul.mubr.f32.gmra.mrb[0].mxu0 %v659
      %v978 = vpop.f32.mrb[0].mxu0
      %v979 = vadd.f32 0.0, %v978
      %v980 = vpop.f32.mrb[0].mxu0
      %981 = vmatprep.mubr.f32.mxu0 0.0
      %982 = vmatmul.mubr.f32.gmra.mrb[0].mxu0 %v662
      %v983 = vpop.f32.mrb[0].mxu0
      %v984 = vadd.f32 0.0, %v983
      %v985 = vpop.f32.mrb[0].mxu0
      %986 = vmatprep.mubr.f32.mxu0 0.0
      %987 = vmatmul.mubr.f32.gmra.mrb[0].mxu0 %v665
      %v988 = vpop.f32.mrb[0].mxu0
      %v989 = vadd.f32 0.0, %v988
      %v990 = vpop.f32.mrb[0].mxu0
      %991 = vmatprep.mubr.f32.mxu0 0.0
      %992 = vmatmul.mubr.f32.gmra.mrb[0].mxu0 %v668
      %v993 = vpop.f32.mrb[0].mxu0
      %v994 = vadd.f32 0.0, %v993
      %v995 = vpop.f32.mrb[0].mxu0
      %996 = vmatprep.mubr.f32.mxu0 0.0
      %997 = vmatmul.mubr.f32.gmra.mrb[0].mxu0 %v671
      %v998 = vpop.f32.mrb[0].mxu0
      %v999 = vadd.f32 0.0, %v998
      %v1000 = vpop.f32.mrb[0].mxu0
      %1001 = vmatprep.mubr.f32.mxu0 0.0
      %1002 = vmatmul.mubr.f32.gmra.mrb[0].mxu0 %v674
      %v1003 = vpop.f32.mrb[0].mxu0
      %v1004 = vadd.f32 0.0, %v1003
      %v1005 = vpop.f32.mrb[0].mxu0
      %1006 = vmatprep.mubr.f32.mxu0 0.0
      %1007 = vmatmul.mubr.f32.gmra.mrb[0].mxu0 %v677
      %v1008 = vpop.f32.mrb[0].mxu0
      %v1009 = vadd.f32 0.0, %v1008
      %v1010 = vpop.f32.mrb[0].mxu0
      %1011 = vmatprep.mubr.f32.mxu0 0.0
      %1012 = vmatmul.mubr.f32.gmra.mrb[0].mxu0 %v680
      %v1013 = vpop.f32.mrb[0].mxu0
      %v1014 = vadd.f32 0.0, %v1013
      %v1015 = vpop.f32.mrb[0].mxu0
      %1016 = vmatprep.mubr.f32.mxu0 0.0
      %1017 = vmatmul.mubr.f32.gmra.mrb[0].mxu0 %v683
      %v1018 = vpop.f32.mrb[0].mxu0
      %v1019 = vadd.f32 0.0, %v1018
      %v1020 = vpop.f32.mrb[0].mxu0
      %1021 = vmatprep.mubr.f32.mxu0 0.0
      %1022 = vmatmul.mubr.f32.gmra.mrb[0].mxu0 %v686
      %v1023 = vpop.f32.mrb[0].mxu0
      %v1024 = vadd.f32 0.0, %v1023
      %v1025 = vpop.f32.mrb[0].mxu0
      %1026 = vmatprep.mubr.f32.mxu0 0.0
      %1027 = vmatmul.mubr.f32.gmra.mrb[0].mxu0 %v689
      %v1028 = vpop.f32.mrb[0].mxu0
      %v1029 = vadd.f32 0.0, %v1028
      %v1030 = vpop.f32.mrb[0].mxu0
      %1031 = vmatprep.mubr.f32.mxu0 0.0
      %1032 = vmatmul.mubr.f32.gmra.mrb[0].mxu0 %v692
      %v1033 = vpop.f32.mrb[0].mxu0
      %v1034 = vadd.f32 0.0, %v1033
      %v1035 = vpop.f32.mrb[0].mxu0
      %1036 = vmatprep.mubr.f32.mxu0 0.0
      %1037 = vmatmul.mubr.f32.gmra.mrb[0].mxu0 %v695
      %v1038 = vpop.f32.mrb[0].mxu0
      %v1039 = vadd.f32 0.0, %v1038
      %v1040 = vpop.f32.mrb[0].mxu0
      %1041 = vmatprep.mubr.f32.mxu0 0.0
      %1042 = vmatmul.mubr.f32.gmra.mrb[0].mxu0 %v698
      %v1043 = vpop.f32.mrb[0].mxu0
      %v1044 = vadd.f32 0.0, %v1043
      %v1045 = vpop.f32.mrb[0].mxu0
      %1046 = vmatprep.mubr.f32.mxu0 0.0
      %1047 = vmatmul.mubr.f32.gmra.mrb[0].mxu0 %v701
      %v1048 = vpop.f32.mrb[0].mxu0
      %v1049 = vadd.f32 0.0, %v1048
      %v1050 = vpop.f32.mrb[0].mxu0
      %1051 = vmatprep.mubr.f32.mxu0 0.0
      %1052 = vmatmul.mubr.f32.gmra.mrb[0].mxu0 %v704
      %v1053 = vpop.f32.mrb[0].mxu0
      %v1054 = vadd.f32 0.0, %v1053
      %v1055 = vpop.f32.mrb[0].mxu0
      %1056 = vmatprep.mubr.f32.mxu0 0.0
      %1057 = vmatmul.mubr.f32.gmra.mrb[0].mxu0 %v707
      %v1058 = vpop.f32.mrb[0].mxu0
      %v1059 = vadd.f32 0.0, %v1058
      %v1060 = vpop.f32.mrb[0].mxu0
      %1061 = vmatprep.mubr.f32.mxu0 0.0
      %1062 = vmatmul.mubr.f32.gmra.mrb[0].mxu0 %v710
      %v1063 = vpop.f32.mrb[0].mxu0
      %v1064 = vadd.f32 0.0, %v1063
      %v1065 = vpop.f32.mrb[0].mxu0
      %1066 = vmatprep.mubr.f32.mxu0 0.0
      %1067 = vmatmul.mubr.f32.gmra.mrb[0].mxu0 %v713
      %v1068 = vpop.f32.mrb[0].mxu0
      %v1069 = vadd.f32 0.0, %v1068
      %v1070 = vpop.f32.mrb[0].mxu0
      %1071 = vmatprep.mubr.f32.mxu0 0.0
      %1072 = vmatmul.mubr.f32.gmra.mrb[0].mxu0 %v716
      %v1073 = vpop.f32.mrb[0].mxu0
      %v1074 = vadd.f32 0.0, %v1073
      %v1075 = vpop.f32.mrb[0].mxu0
      %1076 = vmatprep.mubr.f32.mxu0 0.0
      %1077 = vmatmul.mubr.f32.gmra.mrb[0].mxu0 %v719
      %v1078 = vpop.f32.mrb[0].mxu0
      %v1079 = vadd.f32 0.0, %v1078
      %v1080 = vpop.f32.mrb[0].mxu0
      %1081 = vmatprep.mubr.f32.mxu0 0.0
      %1082 = vmatmul.mubr.f32.gmra.mrb[0].mxu0 %v722
      %v1083 = vpop.f32.mrb[0].mxu0
      %v1084 = vadd.f32 0.0, %v1083
      %v1085 = vpop.f32.mrb[0].mxu0
      %1086 = vmatprep.mubr.f32.mxu0 0.0
      %1087 = vmatmul.mubr.f32.gmra.mrb[0].mxu0 %v725
      %v1088 = vpop.f32.mrb[0].mxu0
      %v1089 = vadd.f32 0.0, %v1088
      %v1090 = vpop.f32.mrb[0].mxu0
      %1091 = vmatprep.mubr.f32.mxu0 0.0
      %1092 = vmatmul.mubr.f32.gmra.mrb[0].mxu0 %v728
      %v1093 = vpop.f32.mrb[0].mxu0
      %v1094 = vadd.f32 0.0, %v1093
      %v1095 = vpop.f32.mrb[0].mxu0
      %1096 = vmatprep.mubr.f32.mxu0 0.0
      %1097 = vmatmul.mubr.f32.gmra.mrb[0].mxu0 %v731
      %v1098 = vpop.f32.mrb[0].mxu0
      %v1099 = vadd.f32 0.0, %v1098
      %v1100 = vpop.f32.mrb[0].mxu0
      %1101 = vmatprep.mubr.f32.mxu0 0.0
      %1102 = vmatmul.mubr.f32.gmra.mrb[0].mxu0 %v734
      %v1103 = vpop.f32.mrb[0].mxu0
      %v1104 = vadd.f32 0.0, %v1103
      %v1105 = vpop.f32.mrb[0].mxu0
      %1106 = vmatprep.mubr.f32.mxu0 0.0
      %1107 = vmatmul.mubr.f32.gmra.mrb[0].mxu0 %v737
      %v1108 = vpop.f32.mrb[0].mxu0
      %v1109 = vadd.f32 0.0, %v1108
      %v1110 = vpop.f32.mrb[0].mxu0
      %1111 = vmatprep.mubr.f32.mxu0 0.0
      %1112 = vmatmul.mubr.f32.gmra.mrb[0].mxu0 %v740
      %v1113 = vpop.f32.mrb[0].mxu0
      %v1114 = vadd.f32 0.0, %v1113
      %v1115 = vpop.f32.mrb[0].mxu0
      %1116 = vmatprep.mubr.f32.mxu0 0.0
      %1117 = vmatmul.mubr.f32.gmra.mrb[0].mxu0 %v743
      %v1118 = vpop.f32.mrb[0].mxu0
      %v1119 = vadd.f32 0.0, %v1118
      %v1120 = vpop.f32.mrb[0].mxu0
      %1121 = vmatprep.mubr.f32.mxu0 0.0
      %1122 = vmatmul.mubr.f32.gmra.mrb[0].mxu0 %v746
      %v1123 = vpop.f32.mrb[0].mxu0
      %v1124 = vadd.f32 0.0, %v1123
      %v1125 = vpop.f32.mrb[0].mxu0
      %1126 = vmatprep.mubr.f32.mxu0 0.0
      %1127 = vmatmul.mubr.f32.gmra.mrb[0].mxu0 %v749
      %v1128 = vpop.f32.mrb[0].mxu0
      %v1129 = vadd.f32 0.0, %v1128
      %v1130 = vpop.f32.mrb[0].mxu0
      %1131 = vmatprep.mubr.f32.mxu0 0.0
      %1132 = vmatmul.mubr.f32.gmra.mrb[0].mxu0 %v752
      %v1133 = vpop.f32.mrb[0].mxu0
      %v1134 = vadd.f32 0.0, %v1133
      %v1135 = vpop.f32.mrb[0].mxu0
      %1136 = vmatprep.mubr.f32.mxu0 0.0
      %1137 = vmatmul.mubr.f32.gmra.mrb[0].mxu0 %v755
      %v1138 = vpop.f32.mrb[0].mxu0
      %v1139 = vadd.f32 0.0, %v1138
      %v1140 = vpop.f32.mrb[0].mxu0
      %1141 = vmatprep.mubr.f32.mxu0 0.0
      %1142 = vmatmul.mubr.f32.gmra.mrb[0].mxu0 %v758
      %v1143 = vpop.f32.mrb[0].mxu0
      %v1144 = vadd.f32 0.0, %v1143
      %v1145 = vpop.f32.mrb[0].mxu0
      %1146 = vmatprep.mubr.f32.mxu0 0.0
      %1147 = vmatmul.mubr.f32.gmra.mrb[0].mxu0 %v761
      %v1148 = vpop.f32.mrb[0].mxu0
      %v1149 = vadd.f32 0.0, %v1148
      %v1150 = vpop.f32.mrb[0].mxu0
      %1151 = vmatprep.mubr.f32.mxu0 0.0
      %1152 = vmatmul.mubr.f32.gmra.mrb[0].mxu0 %v764
      %v1153 = vpop.f32.mrb[0].mxu0
      %v1154 = vadd.f32 0.0, %v1153
      %v1155 = vpop.f32.mrb[0].mxu0
      %1156 = vmatprep.mubr.f32.mxu0 0.0
      %1157 = vmatmul.mubr.f32.gmra.mrb[0].mxu0 %v767
      %v1158 = vpop.f32.mrb[0].mxu0
      %v1159 = vadd.f32 0.0, %v1158
      %v1160 = vpop.f32.mrb[0].mxu0
      %1161 = vmatprep.mubr.f32.mxu0 0.0
      %1162 = vmatmul.mubr.f32.gmra.mrb[0].mxu0 %v770
      %v1163 = vpop.f32.mrb[0].mxu0
      %v1164 = vadd.f32 0.0, %v1163
      %v1165 = vpop.f32.mrb[0].mxu0
      %1166 = vmatprep.mubr.f32.mxu0 0.0
      %1167 = vmatmul.mubr.f32.gmra.mrb[0].mxu0 %v773
      %v1168 = vpop.f32.mrb[0].mxu0
      %v1169 = vadd.f32 0.0, %v1168
      %v1170 = vpop.f32.mrb[0].mxu0
      %1171 = vmatprep.mubr.f32.mxu0 0.0
      %1172 = vmatmul.mubr.f32.gmra.mrb[0].mxu0 %v776
      %v1173 = vpop.f32.mrb[0].mxu0
      %v1174 = vadd.f32 0.0, %v1173
      %v1175 = vpop.f32.mrb[0].mxu0
      %1176 = vmatprep.mubr.f32.mxu0 0.0
      %1177 = vmatmul.mubr.f32.gmra.mrb[0].mxu0 %v779
      %v1178 = vpop.f32.mrb[0].mxu0
      %v1179 = vadd.f32 0.0, %v1178
      %v1180 = vpop.f32.mrb[0].mxu0
      %1181 = vmatprep.mubr.f32.mxu0 0.0
      %1182 = vmatmul.mubr.f32.gmra.mrb[0].mxu0 %v782
      %v1183 = vpop.f32.mrb[0].mxu0
      %v1184 = vadd.f32 0.0, %v1183
      %v1185 = vpop.f32.mrb[0].mxu0
      %1186 = vmatprep.mubr.f32.mxu0 0.0
      %1187 = vmatmul.mubr.f32.gmra.mrb[0].mxu0 %v785
      %v1188 = vpop.f32.mrb[0].mxu0
      %v1189 = vadd.f32 0.0, %v1188
      %v1190 = vpop.f32.mrb[0].mxu0
      %1191 = vmatprep.mubr.f32.mxu0 0.0
      %1192 = vmatmul.mubr.f32.gmra.mrb[0].mxu0 %v788
      %v1193 = vpop.f32.mrb[0].mxu0
      %v1194 = vadd.f32 0.0, %v1193
      %v1195 = vpop.f32.mrb[0].mxu0
      %1196 = vmatprep.mubr.f32.mxu0 0.0
      %1197 = vmatmul.mubr.f32.gmra.mrb[0].mxu0 %v791
      %v1198 = vpop.f32.mrb[0].mxu0
      %v1199 = vadd.f32 0.0, %v1198
      %v1200 = vpop.f32.mrb[0].mxu0
      %1201 = vmatprep.mubr.f32.mxu0 0.0
      %1202 = vmatmul.mubr.f32.gmra.mrb[0].mxu0 %v794
      %v1203 = vpop.f32.mrb[0].mxu0
      %v1204 = vadd.f32 0.0, %v1203
      %v1205 = vpop.f32.mrb[0].mxu0
      %1206 = vmatprep.mubr.f32.mxu0 0.0
      %1207 = vmatmul.mubr.f32.gmra.mrb[0].mxu0 %v797
      %v1208 = vpop.f32.mrb[0].mxu0
      %v1209 = vadd.f32 0.0, %v1208
      %v1210 = vpop.f32.mrb[0].mxu0
      %1211 = vmatprep.mubr.f32.mxu0 0.0
      %1212 = vmatmul.mubr.f32.gmra.mrb[0].mxu0 %v800
      %v1213 = vpop.f32.mrb[0].mxu0
      %v1214 = vadd.f32 0.0, %v1213
      %v1215 = vpop.f32.mrb[0].mxu0
      %1216 = vmatprep.mubr.f32.mxu0 0.0
      %1217 = vmatmul.mubr.f32.gmra.mrb[0].mxu0 %v803
      %v1218 = vpop.f32.mrb[0].mxu0
      %v1219 = vadd.f32 0.0, %v1218
      %v1220 = vpop.f32.mrb[0].mxu0
      %1221 = vmatprep.mubr.f32.mxu0 0.0
      %1222 = vmatmul.mubr.f32.gmra.mrb[0].mxu0 %v806
      %v1223 = vpop.f32.mrb[0].mxu0
      %v1224 = vadd.f32 0.0, %v1223
      %v1225 = vpop.f32.mrb[0].mxu0
      %1226 = vmatprep.mubr.f32.mxu0 0.0
      %1227 = vmatmul.mubr.f32.gmra.mrb[0].mxu0 %v809
      %v1228 = vpop.f32.mrb[0].mxu0
      %v1229 = vadd.f32 0.0, %v1228
      %v1230 = vpop.f32.mrb[0].mxu0
      %1231 = vmatprep.mubr.f32.mxu0 0.0
      %1232 = vmatmul.mubr.f32.gmra.mrb[0].mxu0 %v812
      %v1233 = vpop.f32.mrb[0].mxu0
      %v1234 = vadd.f32 0.0, %v1233
      %v1235 = vpop.f32.mrb[0].mxu0
      %1236 = vmatprep.mubr.f32.mxu0 0.0
      %1237 = vmatmul.mubr.f32.gmra.mrb[0].mxu0 %v815
      %v1238 = vpop.f32.mrb[0].mxu0
      %v1239 = vadd.f32 0.0, %v1238
      %v1240 = vpop.f32.mrb[0].mxu0
      %1241 = vmatprep.mubr.f32.mxu0 0.0
      %1242 = vmatmul.mubr.f32.gmra.mrb[0].mxu0 %v818
      %v1243 = vpop.f32.mrb[0].mxu0
      %v1244 = vadd.f32 0.0, %v1243
      %v1245 = vpop.f32.mrb[0].mxu0
      %1246 = vmatprep.mubr.f32.mxu0 0.0
      %1247 = vmatmul.mubr.f32.gmra.mrb[0].mxu0 %v821
      %v1248 = vpop.f32.mrb[0].mxu0
      %v1249 = vadd.f32 0.0, %v1248
      %v1250 = vpop.f32.mrb[0].mxu0
      %1251 = vdwg.mxu0
      %v1253 = vsel %vm606, %v459, 0
      %v1256 = vsel %vm606, %v460, 0
      %v1259 = vsel %vm606, %v461, 0
      %v1262 = vsel %vm606, %v462, 0
      %v1265 = vsel %vm606, %v463, 0
      %v1268 = vsel %vm606, %v464, 0
      %v1271 = vsel %vm606, %v465, 0
      %v1274 = vsel %vm606, %v466, 0
      %v1277 = vsel %vm606, %v467, 0
      %v1280 = vsel %vm606, %v468, 0
      %v1283 = vsel %vm606, %v469, 0
      %v1286 = vsel %vm606, %v470, 0
      %v1289 = vsel %vm606, %v471, 0
      %v1292 = vsel %vm606, %v472, 0
      %v1295 = vsel %vm606, %v473, 0
      %v1298 = vsel %vm606, %v474, 0
      %v1301 = vsel %vm606, %v475, 0
      %v1304 = vsel %vm606, %v476, 0
      %v1307 = vsel %vm606, %v477, 0
      %v1310 = vsel %vm606, %v478, 0
      %v1313 = vsel %vm606, %v479, 0
      %v1316 = vsel %vm606, %v480, 0
      %v1319 = vsel %vm606, %v481, 0
      %v1322 = vsel %vm606, %v482, 0
      %v1325 = vsel %vm606, %v483, 0
      %v1328 = vsel %vm606, %v484, 0
      %v1331 = vsel %vm606, %v485, 0
      %v1334 = vsel %vm606, %v486, 0
      %v1337 = vsel %vm606, %v487, 0
      %v1340 = vsel %vm606, %v488, 0
      %v1343 = vsel %vm606, %v489, 0
      %v1346 = vsel %vm606, %v490, 0
      %v1349 = vsel %vm606, %v491, 0
      %v1352 = vsel %vm606, %v492, 0
      %v1355 = vsel %vm606, %v493, 0
      %v1358 = vsel %vm606, %v494, 0
      %v1361 = vsel %vm606, %v495, 0
      %v1364 = vsel %vm606, %v496, 0
      %v1367 = vsel %vm606, %v497, 0
      %v1370 = vsel %vm606, %v498, 0
      %v1373 = vsel %vm606, %v499, 0
      %v1376 = vsel %vm606, %v500, 0
      %v1379 = vsel %vm606, %v501, 0
      %v1382 = vsel %vm606, %v502, 0
      %v1385 = vsel %vm606, %v503, 0
      %v1388 = vsel %vm606, %v504, 0
      %v1391 = vsel %vm606, %v505, 0
      %v1394 = vsel %vm606, %v506, 0
      %v1397 = vsel %vm606, %v507, 0
      %v1400 = vsel %vm606, %v508, 0
      %v1403 = vsel %vm606, %v509, 0
      %v1406 = vsel %vm606, %v510, 0
      %v1409 = vsel %vm606, %v511, 0
      %v1412 = vsel %vm606, %v512, 0
      %v1415 = vsel %vm606, %v513, 0
      %v1418 = vsel %vm606, %v514, 0
      %v1421 = vsel %vm606, %v515, 0
      %v1424 = vsel %vm606, %v516, 0
      %v1427 = vsel %vm606, %v517, 0
      %v1430 = vsel %vm606, %v518, 0
      %v1433 = vsel %vm606, %v519, 0
      %v1436 = vsel %vm606, %v520, 0
      %v1439 = vsel %vm606, %v521, 0
      %v1442 = vsel %vm606, %v522, 0
      %v1445 = vsel %vm606, %v523, 0
      %v1448 = vsel %vm606, %v524, 0
      %v1451 = vsel %vm606, %v525, 0
      %v1454 = vsel %vm606, %v526, 0
      %v1457 = vsel %vm606, %v527, 0
      %v1460 = vsel %vm606, %v528, 0
      %v1463 = vsel %vm606, %v529, 0
      %v1466 = vsel %vm606, %v530, 0
      %v1469 = vsel %vm823, %v531, 0
      %1471 = vmatprep.subr.mxu0 0.0
      %1472 = vmatpush1.msra.mxu0 %v1469
      %1473 = vmatprep.subr.mxu0 0.0
      %1474 = vmatpush1.msra.mxu0 0.0
      %1475 = vmatprep.subr.mxu0 0.0
      %1476 = vmatpush1.msra.mxu0 0.0
      %1477 = vmatprep.subr.mxu0 0.0
      %1478 = vmatpush1.msra.mxu0 0.0
      %1479 = vmatprep.subr.mxu0 0.0
      %1480 = vmatpush1.msra.mxu0 0.0
      %1481 = vmatprep.subr.mxu0 0.0
      %1482 = vmatpush1.msra.mxu0 0.0
      %1483 = vmatprep.subr.mxu0 0.0
      %1484 = vmatpush1.msra.mxu0 0.0
      %1485 = vmatprep.subr.mxu0 0.0
      %1486 = vmatpush1.msra.mxu0 0.0
      %1487 = vmatprep.subr.mxu0 0.0
      %1488 = vmatpush1.msra.mxu0 0.0
      %1489 = vmatprep.subr.mxu0 0.0
      %1490 = vmatpush1.msra.mxu0 0.0
      %1491 = vmatprep.subr.mxu0 0.0
      %1492 = vmatpush1.msra.mxu0 0.0
      %1493 = vmatprep.subr.mxu0 0.0
      %1494 = vmatpush1.msra.mxu0 0.0
      %1495 = vmatprep.subr.mxu0 0.0
      %1496 = vmatpush1.msra.mxu0 0.0
      %1497 = vmatprep.subr.mxu0 0.0
      %1498 = vmatpush1.msra.mxu0 0.0
      %1499 = vmatprep.subr.mxu0 0.0
      %1500 = vmatpush1.msra.mxu0 0.0
      %1501 = vmatprep.subr.mxu0 0.0
      %1502 = vmatpush1.msra.mxu0 0.0
      %1503 = vmatprep.subr.mxu0 0.0
      %1504 = vmatpush1.msra.mxu0 0.0
      %1505 = vmatprep.subr.mxu0 0.0
      %1506 = vmatpush1.msra.mxu0 0.0
      %1507 = vmatprep.subr.mxu0 0.0
      %1508 = vmatpush1.msra.mxu0 0.0
      %1509 = vmatprep.subr.mxu0 0.0
      %1510 = vmatpush1.msra.mxu0 0.0
      %1511 = vmatprep.subr.mxu0 0.0
      %1512 = vmatpush1.msra.mxu0 0.0
      %1513 = vmatprep.subr.mxu0 0.0
      %1514 = vmatpush1.msra.mxu0 0.0
      %1515 = vmatprep.subr.mxu0 0.0
      %1516 = vmatpush1.msra.mxu0 0.0
      %1517 = vmatprep.subr.mxu0 0.0
      %1518 = vmatpush1.msra.mxu0 0.0
      %1519 = vmatprep.subr.mxu0 0.0
      %1520 = vmatpush1.msra.mxu0 0.0
      %1521 = vmatprep.subr.mxu0 0.0
      %1522 = vmatpush1.msra.mxu0 0.0
      %1523 = vmatprep.subr.mxu0 0.0
      %1524 = vmatpush1.msra.mxu0 0.0
      %1525 = vmatprep.subr.mxu0 0.0
      %1526 = vmatpush1.msra.mxu0 0.0
      %1527 = vmatprep.subr.mxu0 0.0
      %1528 = vmatpush1.msra.mxu0 0.0
      %1529 = vmatprep.subr.mxu0 0.0
      %1530 = vmatpush1.msra.mxu0 0.0
      %1531 = vmatprep.subr.mxu0 0.0
      %1532 = vmatpush1.msra.mxu0 0.0
      %1533 = vmatprep.subr.mxu0 0.0
      %1534 = vmatpush1.msra.mxu0 0.0
      %1535 = vmatprep.mubr.f32.mxu0 0.0
      %1536 = vmatmul.mubr.f32.gmra.mrb[0].mxu0 %v1253
      %v1537 = vpop.f32.mrb[0].mxu0
      %v1538 = vadd.f32 %v894, %v1537
      %v1539 = vpop.f32.mrb[0].mxu0
      %1540 = vmatprep.mubr.f32.mxu0 0.0
      %1541 = vmatmul.mubr.f32.gmra.mrb[0].mxu0 %v1256
      %v1542 = vpop.f32.mrb[0].mxu0
      %v1543 = vadd.f32 %v899, %v1542
      %v1544 = vpop.f32.mrb[0].mxu0
      %1545 = vmatprep.mubr.f32.mxu0 0.0
      %1546 = vmatmul.mubr.f32.gmra.mrb[0].mxu0 %v1259
      %v1547 = vpop.f32.mrb[0].mxu0
      %v1548 = vadd.f32 %v904, %v1547
      %v1549 = vpop.f32.mrb[0].mxu0
      %1550 = vmatprep.mubr.f32.mxu0 0.0
      %1551 = vmatmul.mubr.f32.gmra.mrb[0].mxu0 %v1262
      %v1552 = vpop.f32.mrb[0].mxu0
      %v1553 = vadd.f32 %v909, %v1552
      %v1554 = vpop.f32.mrb[0].mxu0
      %1555 = vmatprep.mubr.f32.mxu0 0.0
      %1556 = vmatmul.mubr.f32.gmra.mrb[0].mxu0 %v1265
      %v1557 = vpop.f32.mrb[0].mxu0
      %v1558 = vadd.f32 %v914, %v1557
      %v1559 = vpop.f32.mrb[0].mxu0
      %1560 = vmatprep.mubr.f32.mxu0 0.0
      %1561 = vmatmul.mubr.f32.gmra.mrb[0].mxu0 %v1268
      %v1562 = vpop.f32.mrb[0].mxu0
      %v1563 = vadd.f32 %v919, %v1562
      %v1564 = vpop.f32.mrb[0].mxu0
      %1565 = vmatprep.mubr.f32.mxu0 0.0
      %1566 = vmatmul.mubr.f32.gmra.mrb[0].mxu0 %v1271
      %v1567 = vpop.f32.mrb[0].mxu0
      %v1568 = vadd.f32 %v924, %v1567
      %v1569 = vpop.f32.mrb[0].mxu0
      %1570 = vmatprep.mubr.f32.mxu0 0.0
      %1571 = vmatmul.mubr.f32.gmra.mrb[0].mxu0 %v1274
      %v1572 = vpop.f32.mrb[0].mxu0
      %v1573 = vadd.f32 %v929, %v1572
      %v1574 = vpop.f32.mrb[0].mxu0
      %1575 = vmatprep.mubr.f32.mxu0 0.0
      %1576 = vmatmul.mubr.f32.gmra.mrb[0].mxu0 %v1277
      %v1577 = vpop.f32.mrb[0].mxu0
      %v1578 = vadd.f32 %v934, %v1577
      %v1579 = vpop.f32.mrb[0].mxu0
      %1580 = vmatprep.mubr.f32.mxu0 0.0
      %1581 = vmatmul.mubr.f32.gmra.mrb[0].mxu0 %v1280
      %v1582 = vpop.f32.mrb[0].mxu0
      %v1583 = vadd.f32 %v939, %v1582
      %v1584 = vpop.f32.mrb[0].mxu0
      %1585 = vmatprep.mubr.f32.mxu0 0.0
      %1586 = vmatmul.mubr.f32.gmra.mrb[0].mxu0 %v1283
      %v1587 = vpop.f32.mrb[0].mxu0
      %v1588 = vadd.f32 %v944, %v1587
      %v1589 = vpop.f32.mrb[0].mxu0
      %1590 = vmatprep.mubr.f32.mxu0 0.0
      %1591 = vmatmul.mubr.f32.gmra.mrb[0].mxu0 %v1286
      %v1592 = vpop.f32.mrb[0].mxu0
      %v1593 = vadd.f32 %v949, %v1592
      %v1594 = vpop.f32.mrb[0].mxu0
      %1595 = vmatprep.mubr.f32.mxu0 0.0
      %1596 = vmatmul.mubr.f32.gmra.mrb[0].mxu0 %v1289
      %v1597 = vpop.f32.mrb[0].mxu0
      %v1598 = vadd.f32 %v954, %v1597
      %v1599 = vpop.f32.mrb[0].mxu0
      %1600 = vmatprep.mubr.f32.mxu0 0.0
      %1601 = vmatmul.mubr.f32.gmra.mrb[0].mxu0 %v1292
      %v1602 = vpop.f32.mrb[0].mxu0
      %v1603 = vadd.f32 %v959, %v1602
      %v1604 = vpop.f32.mrb[0].mxu0
      %1605 = vmatprep.mubr.f32.mxu0 0.0
      %1606 = vmatmul.mubr.f32.gmra.mrb[0].mxu0 %v1295
      %v1607 = vpop.f32.mrb[0].mxu0
      %v1608 = vadd.f32 %v964, %v1607
      %v1609 = vpop.f32.mrb[0].mxu0
      %1610 = vmatprep.mubr.f32.mxu0 0.0
      %1611 = vmatmul.mubr.f32.gmra.mrb[0].mxu0 %v1298
      %v1612 = vpop.f32.mrb[0].mxu0
      %v1613 = vadd.f32 %v969, %v1612
      %v1614 = vpop.f32.mrb[0].mxu0
      %1615 = vmatprep.mubr.f32.mxu0 0.0
      %1616 = vmatmul.mubr.f32.gmra.mrb[0].mxu0 %v1301
      %v1617 = vpop.f32.mrb[0].mxu0
      %v1618 = vadd.f32 %v974, %v1617
      %v1619 = vpop.f32.mrb[0].mxu0
      %1620 = vmatprep.mubr.f32.mxu0 0.0
      %1621 = vmatmul.mubr.f32.gmra.mrb[0].mxu0 %v1304
      %v1622 = vpop.f32.mrb[0].mxu0
      %v1623 = vadd.f32 %v979, %v1622
      %v1624 = vpop.f32.mrb[0].mxu0
      %1625 = vmatprep.mubr.f32.mxu0 0.0
      %1626 = vmatmul.mubr.f32.gmra.mrb[0].mxu0 %v1307
      %v1627 = vpop.f32.mrb[0].mxu0
      %v1628 = vadd.f32 %v984, %v1627
      %v1629 = vpop.f32.mrb[0].mxu0
      %1630 = vmatprep.mubr.f32.mxu0 0.0
      %1631 = vmatmul.mubr.f32.gmra.mrb[0].mxu0 %v1310
      %v1632 = vpop.f32.mrb[0].mxu0
      %v1633 = vadd.f32 %v989, %v1632
      %v1634 = vpop.f32.mrb[0].mxu0
      %1635 = vmatprep.mubr.f32.mxu0 0.0
      %1636 = vmatmul.mubr.f32.gmra.mrb[0].mxu0 %v1313
      %v1637 = vpop.f32.mrb[0].mxu0
      %v1638 = vadd.f32 %v994, %v1637
      %v1639 = vpop.f32.mrb[0].mxu0
      %1640 = vmatprep.mubr.f32.mxu0 0.0
      %1641 = vmatmul.mubr.f32.gmra.mrb[0].mxu0 %v1316
      %v1642 = vpop.f32.mrb[0].mxu0
      %v1643 = vadd.f32 %v999, %v1642
      %v1644 = vpop.f32.mrb[0].mxu0
      %1645 = vmatprep.mubr.f32.mxu0 0.0
      %1646 = vmatmul.mubr.f32.gmra.mrb[0].mxu0 %v1319
      %v1647 = vpop.f32.mrb[0].mxu0
      %v1648 = vadd.f32 %v1004, %v1647
      %v1649 = vpop.f32.mrb[0].mxu0
      %1650 = vmatprep.mubr.f32.mxu0 0.0
      %1651 = vmatmul.mubr.f32.gmra.mrb[0].mxu0 %v1322
      %v1652 = vpop.f32.mrb[0].mxu0
      %v1653 = vadd.f32 %v1009, %v1652
      %v1654 = vpop.f32.mrb[0].mxu0
      %1655 = vmatprep.mubr.f32.mxu0 0.0
      %1656 = vmatmul.mubr.f32.gmra.mrb[0].mxu0 %v1325
      %v1657 = vpop.f32.mrb[0].mxu0
      %v1658 = vadd.f32 %v1014, %v1657
      %v1659 = vpop.f32.mrb[0].mxu0
      %1660 = vmatprep.mubr.f32.mxu0 0.0
      %1661 = vmatmul.mubr.f32.gmra.mrb[0].mxu0 %v1328
      %v1662 = vpop.f32.mrb[0].mxu0
      %v1663 = vadd.f32 %v1019, %v1662
      %v1664 = vpop.f32.mrb[0].mxu0
      %1665 = vmatprep.mubr.f32.mxu0 0.0
      %1666 = vmatmul.mubr.f32.gmra.mrb[0].mxu0 %v1331
      %v1667 = vpop.f32.mrb[0].mxu0
      %v1668 = vadd.f32 %v1024, %v1667
      %v1669 = vpop.f32.mrb[0].mxu0
      %1670 = vmatprep.mubr.f32.mxu0 0.0
      %1671 = vmatmul.mubr.f32.gmra.mrb[0].mxu0 %v1334
      %v1672 = vpop.f32.mrb[0].mxu0
      %v1673 = vadd.f32 %v1029, %v1672
      %v1674 = vpop.f32.mrb[0].mxu0
      %1675 = vmatprep.mubr.f32.mxu0 0.0
      %1676 = vmatmul.mubr.f32.gmra.mrb[0].mxu0 %v1337
      %v1677 = vpop.f32.mrb[0].mxu0
      %v1678 = vadd.f32 %v1034, %v1677
      %v1679 = vpop.f32.mrb[0].mxu0
      %1680 = vmatprep.mubr.f32.mxu0 0.0
      %1681 = vmatmul.mubr.f32.gmra.mrb[0].mxu0 %v1340
      %v1682 = vpop.f32.mrb[0].mxu0
      %v1683 = vadd.f32 %v1039, %v1682
      %v1684 = vpop.f32.mrb[0].mxu0
      %1685 = vmatprep.mubr.f32.mxu0 0.0
      %1686 = vmatmul.mubr.f32.gmra.mrb[0].mxu0 %v1343
      %v1687 = vpop.f32.mrb[0].mxu0
      %v1688 = vadd.f32 %v1044, %v1687
      %v1689 = vpop.f32.mrb[0].mxu0
      %1690 = vmatprep.mubr.f32.mxu0 0.0
      %1691 = vmatmul.mubr.f32.gmra.mrb[0].mxu0 %v1346
      %v1692 = vpop.f32.mrb[0].mxu0
      %v1693 = vadd.f32 %v1049, %v1692
      %v1694 = vpop.f32.mrb[0].mxu0
      %1695 = vmatprep.mubr.f32.mxu0 0.0
      %1696 = vmatmul.mubr.f32.gmra.mrb[0].mxu0 %v1349
      %v1697 = vpop.f32.mrb[0].mxu0
      %v1698 = vadd.f32 %v1054, %v1697
      %v1699 = vpop.f32.mrb[0].mxu0
      %1700 = vmatprep.mubr.f32.mxu0 0.0
      %1701 = vmatmul.mubr.f32.gmra.mrb[0].mxu0 %v1352
      %v1702 = vpop.f32.mrb[0].mxu0
      %v1703 = vadd.f32 %v1059, %v1702
      %v1704 = vpop.f32.mrb[0].mxu0
      %1705 = vmatprep.mubr.f32.mxu0 0.0
      %1706 = vmatmul.mubr.f32.gmra.mrb[0].mxu0 %v1355
      %v1707 = vpop.f32.mrb[0].mxu0
      %v1708 = vadd.f32 %v1064, %v1707
      %v1709 = vpop.f32.mrb[0].mxu0
      %1710 = vmatprep.mubr.f32.mxu0 0.0
      %1711 = vmatmul.mubr.f32.gmra.mrb[0].mxu0 %v1358
      %v1712 = vpop.f32.mrb[0].mxu0
      %v1713 = vadd.f32 %v1069, %v1712
      %v1714 = vpop.f32.mrb[0].mxu0
      %1715 = vmatprep.mubr.f32.mxu0 0.0
      %1716 = vmatmul.mubr.f32.gmra.mrb[0].mxu0 %v1361
      %v1717 = vpop.f32.mrb[0].mxu0
      %v1718 = vadd.f32 %v1074, %v1717
      %v1719 = vpop.f32.mrb[0].mxu0
      %1720 = vmatprep.mubr.f32.mxu0 0.0
      %1721 = vmatmul.mubr.f32.gmra.mrb[0].mxu0 %v1364
      %v1722 = vpop.f32.mrb[0].mxu0
      %v1723 = vadd.f32 %v1079, %v1722
      %v1724 = vpop.f32.mrb[0].mxu0
      %1725 = vmatprep.mubr.f32.mxu0 0.0
      %1726 = vmatmul.mubr.f32.gmra.mrb[0].mxu0 %v1367
      %v1727 = vpop.f32.mrb[0].mxu0
      %v1728 = vadd.f32 %v1084, %v1727
      %v1729 = vpop.f32.mrb[0].mxu0
      %1730 = vmatprep.mubr.f32.mxu0 0.0
      %1731 = vmatmul.mubr.f32.gmra.mrb[0].mxu0 %v1370
      %v1732 = vpop.f32.mrb[0].mxu0
      %v1733 = vadd.f32 %v1089, %v1732
      %v1734 = vpop.f32.mrb[0].mxu0
      %1735 = vmatprep.mubr.f32.mxu0 0.0
      %1736 = vmatmul.mubr.f32.gmra.mrb[0].mxu0 %v1373
      %v1737 = vpop.f32.mrb[0].mxu0
      %v1738 = vadd.f32 %v1094, %v1737
      %v1739 = vpop.f32.mrb[0].mxu0
      %1740 = vmatprep.mubr.f32.mxu0 0.0
      %1741 = vmatmul.mubr.f32.gmra.mrb[0].mxu0 %v1376
      %v1742 = vpop.f32.mrb[0].mxu0
      %v1743 = vadd.f32 %v1099, %v1742
      %v1744 = vpop.f32.mrb[0].mxu0
      %1745 = vmatprep.mubr.f32.mxu0 0.0
      %1746 = vmatmul.mubr.f32.gmra.mrb[0].mxu0 %v1379
      %v1747 = vpop.f32.mrb[0].mxu0
      %v1748 = vadd.f32 %v1104, %v1747
      %v1749 = vpop.f32.mrb[0].mxu0
      %1750 = vmatprep.mubr.f32.mxu0 0.0
      %1751 = vmatmul.mubr.f32.gmra.mrb[0].mxu0 %v1382
      %v1752 = vpop.f32.mrb[0].mxu0
      %v1753 = vadd.f32 %v1109, %v1752
      %v1754 = vpop.f32.mrb[0].mxu0
      %1755 = vmatprep.mubr.f32.mxu0 0.0
      %1756 = vmatmul.mubr.f32.gmra.mrb[0].mxu0 %v1385
      %v1757 = vpop.f32.mrb[0].mxu0
      %v1758 = vadd.f32 %v1114, %v1757
      %v1759 = vpop.f32.mrb[0].mxu0
      %1760 = vmatprep.mubr.f32.mxu0 0.0
      %1761 = vmatmul.mubr.f32.gmra.mrb[0].mxu0 %v1388
      %v1762 = vpop.f32.mrb[0].mxu0
      %v1763 = vadd.f32 %v1119, %v1762
      %v1764 = vpop.f32.mrb[0].mxu0
      %1765 = vmatprep.mubr.f32.mxu0 0.0
      %1766 = vmatmul.mubr.f32.gmra.mrb[0].mxu0 %v1391
      %v1767 = vpop.f32.mrb[0].mxu0
      %v1768 = vadd.f32 %v1124, %v1767
      %v1769 = vpop.f32.mrb[0].mxu0
      %1770 = vmatprep.mubr.f32.mxu0 0.0
      %1771 = vmatmul.mubr.f32.gmra.mrb[0].mxu0 %v1394
      %v1772 = vpop.f32.mrb[0].mxu0
      %v1773 = vadd.f32 %v1129, %v1772
      %v1774 = vpop.f32.mrb[0].mxu0
      %1775 = vmatprep.mubr.f32.mxu0 0.0
      %1776 = vmatmul.mubr.f32.gmra.mrb[0].mxu0 %v1397
      %v1777 = vpop.f32.mrb[0].mxu0
      %v1778 = vadd.f32 %v1134, %v1777
      %v1779 = vpop.f32.mrb[0].mxu0
      %1780 = vmatprep.mubr.f32.mxu0 0.0
      %1781 = vmatmul.mubr.f32.gmra.mrb[0].mxu0 %v1400
      %v1782 = vpop.f32.mrb[0].mxu0
      %v1783 = vadd.f32 %v1139, %v1782
      %v1784 = vpop.f32.mrb[0].mxu0
      %1785 = vmatprep.mubr.f32.mxu0 0.0
      %1786 = vmatmul.mubr.f32.gmra.mrb[0].mxu0 %v1403
      %v1787 = vpop.f32.mrb[0].mxu0
      %v1788 = vadd.f32 %v1144, %v1787
      %v1789 = vpop.f32.mrb[0].mxu0
      %1790 = vmatprep.mubr.f32.mxu0 0.0
      %1791 = vmatmul.mubr.f32.gmra.mrb[0].mxu0 %v1406
      %v1792 = vpop.f32.mrb[0].mxu0
      %v1793 = vadd.f32 %v1149, %v1792
      %v1794 = vpop.f32.mrb[0].mxu0
      %1795 = vmatprep.mubr.f32.mxu0 0.0
      %1796 = vmatmul.mubr.f32.gmra.mrb[0].mxu0 %v1409
      %v1797 = vpop.f32.mrb[0].mxu0
      %v1798 = vadd.f32 %v1154, %v1797
      %v1799 = vpop.f32.mrb[0].mxu0
      %1800 = vmatprep.mubr.f32.mxu0 0.0
      %1801 = vmatmul.mubr.f32.gmra.mrb[0].mxu0 %v1412
      %v1802 = vpop.f32.mrb[0].mxu0
      %v1803 = vadd.f32 %v1159, %v1802
      %v1804 = vpop.f32.mrb[0].mxu0
      %1805 = vmatprep.mubr.f32.mxu0 0.0
      %1806 = vmatmul.mubr.f32.gmra.mrb[0].mxu0 %v1415
      %v1807 = vpop.f32.mrb[0].mxu0
      %v1808 = vadd.f32 %v1164, %v1807
      %v1809 = vpop.f32.mrb[0].mxu0
      %1810 = vmatprep.mubr.f32.mxu0 0.0
      %1811 = vmatmul.mubr.f32.gmra.mrb[0].mxu0 %v1418
      %v1812 = vpop.f32.mrb[0].mxu0
      %v1813 = vadd.f32 %v1169, %v1812
      %v1814 = vpop.f32.mrb[0].mxu0
      %1815 = vmatprep.mubr.f32.mxu0 0.0
      %1816 = vmatmul.mubr.f32.gmra.mrb[0].mxu0 %v1421
      %v1817 = vpop.f32.mrb[0].mxu0
      %v1818 = vadd.f32 %v1174, %v1817
      %v1819 = vpop.f32.mrb[0].mxu0
      %1820 = vmatprep.mubr.f32.mxu0 0.0
      %1821 = vmatmul.mubr.f32.gmra.mrb[0].mxu0 %v1424
      %v1822 = vpop.f32.mrb[0].mxu0
      %v1823 = vadd.f32 %v1179, %v1822
      %v1824 = vpop.f32.mrb[0].mxu0
      %1825 = vmatprep.mubr.f32.mxu0 0.0
      %1826 = vmatmul.mubr.f32.gmra.mrb[0].mxu0 %v1427
      %v1827 = vpop.f32.mrb[0].mxu0
      %v1828 = vadd.f32 %v1184, %v1827
      %v1829 = vpop.f32.mrb[0].mxu0
      %1830 = vmatprep.mubr.f32.mxu0 0.0
      %1831 = vmatmul.mubr.f32.gmra.mrb[0].mxu0 %v1430
      %v1832 = vpop.f32.mrb[0].mxu0
      %v1833 = vadd.f32 %v1189, %v1832
      %v1834 = vpop.f32.mrb[0].mxu0
      %1835 = vmatprep.mubr.f32.mxu0 0.0
      %1836 = vmatmul.mubr.f32.gmra.mrb[0].mxu0 %v1433
      %v1837 = vpop.f32.mrb[0].mxu0
      %v1838 = vadd.f32 %v1194, %v1837
      %v1839 = vpop.f32.mrb[0].mxu0
      %1840 = vmatprep.mubr.f32.mxu0 0.0
      %1841 = vmatmul.mubr.f32.gmra.mrb[0].mxu0 %v1436
      %v1842 = vpop.f32.mrb[0].mxu0
      %v1843 = vadd.f32 %v1199, %v1842
      %v1844 = vpop.f32.mrb[0].mxu0
      %1845 = vmatprep.mubr.f32.mxu0 0.0
      %1846 = vmatmul.mubr.f32.gmra.mrb[0].mxu0 %v1439
      %v1847 = vpop.f32.mrb[0].mxu0
      %v1848 = vadd.f32 %v1204, %v1847
      %v1849 = vpop.f32.mrb[0].mxu0
      %1850 = vmatprep.mubr.f32.mxu0 0.0
      %1851 = vmatmul.mubr.f32.gmra.mrb[0].mxu0 %v1442
      %v1852 = vpop.f32.mrb[0].mxu0
      %v1853 = vadd.f32 %v1209, %v1852
      %v1854 = vpop.f32.mrb[0].mxu0
      %1855 = vmatprep.mubr.f32.mxu0 0.0
      %1856 = vmatmul.mubr.f32.gmra.mrb[0].mxu0 %v1445
      %v1857 = vpop.f32.mrb[0].mxu0
      %v1858 = vadd.f32 %v1214, %v1857
      %v1859 = vpop.f32.mrb[0].mxu0
      %1860 = vmatprep.mubr.f32.mxu0 0.0
      %1861 = vmatmul.mubr.f32.gmra.mrb[0].mxu0 %v1448
      %v1862 = vpop.f32.mrb[0].mxu0
      %v1863 = vadd.f32 %v1219, %v1862
      %v1864 = vpop.f32.mrb[0].mxu0
      %1865 = vmatprep.mubr.f32.mxu0 0.0
      %1866 = vmatmul.mubr.f32.gmra.mrb[0].mxu0 %v1451
      %v1867 = vpop.f32.mrb[0].mxu0
      %v1868 = vadd.f32 %v1224, %v1867
      %v1869 = vpop.f32.mrb[0].mxu0
      %1870 = vmatprep.mubr.f32.mxu0 0.0
      %1871 = vmatmul.mubr.f32.gmra.mrb[0].mxu0 %v1454
      %v1872 = vpop.f32.mrb[0].mxu0
      %v1873 = vadd.f32 %v1229, %v1872
      %v1874 = vpop.f32.mrb[0].mxu0
      %1875 = vmatprep.mubr.f32.mxu0 0.0
      %1876 = vmatmul.mubr.f32.gmra.mrb[0].mxu0 %v1457
      %v1877 = vpop.f32.mrb[0].mxu0
      %v1878 = vadd.f32 %v1234, %v1877
      %v1879 = vpop.f32.mrb[0].mxu0
      %1880 = vmatprep.mubr.f32.mxu0 0.0
      %1881 = vmatmul.mubr.f32.gmra.mrb[0].mxu0 %v1460
      %v1882 = vpop.f32.mrb[0].mxu0
      %v1883 = vadd.f32 %v1239, %v1882
      %v1884 = vpop.f32.mrb[0].mxu0
      %1885 = vmatprep.mubr.f32.mxu0 0.0
      %1886 = vmatmul.mubr.f32.gmra.mrb[0].mxu0 %v1463
      %v1887 = vpop.f32.mrb[0].mxu0
      %v1888 = vadd.f32 %v1244, %v1887
      %v1889 = vpop.f32.mrb[0].mxu0
      %1890 = vmatprep.mubr.f32.mxu0 0.0
      %1891 = vmatmul.mubr.f32.gmra.mrb[0].mxu0 %v1466
      %v1892 = vpop.f32.mrb[0].mxu0
      %v1893 = vadd.f32 %v1249, %v1892
      %v1894 = vpop.f32.mrb[0].mxu0
      %1895 = vdwg.mxu0
      %v1896 = vld [vmem:[%s300 + $0x9] sm:$0xff]
      %v1897 = vld [vmem:[%s300 + $0x11] sm:$0xff]
      %v1898 = vld [vmem:[%s300 + $0x19] sm:$0xff]
      %v1899 = vld [vmem:[%s300 + $0x21] sm:$0xff]
      %v1900 = vld [vmem:[%s300 + $0x29] sm:$0xff]
      %v1901 = vld [vmem:[%s300 + $0x31] sm:$0xff]
      %v1902 = vld [vmem:[%s300 + $0x39] sm:$0xff]
      %v1903 = vld [vmem:[%s300 + $0x41] sm:$0xff]
      %v1904 = vld [vmem:[%s300 + $0x49] sm:$0xff]
      %v1905 = vld [vmem:[%s300 + $0x51] sm:$0xff]
      %v1906 = vld [vmem:[%s300 + $0x59] sm:$0xff]
      %v1907 = vld [vmem:[%s300 + $0x61] sm:$0xff]
      %v1908 = vld [vmem:[%s300 + $0x69] sm:$0xff]
      %v1909 = vld [vmem:[%s300 + $0x71] sm:$0xff]
      %v1910 = vld [vmem:[%s300 + $0x79] sm:$0xff]
      %v1911 = vld [vmem:[%s300 + $0x81] sm:$0xff]
      %v1912 = vld [vmem:[%s300 + $0x89] sm:$0xff]
      %v1913 = vld [vmem:[%s300 + $0x91] sm:$0xff]
      %v1914 = vld [vmem:[%s300 + $0x99] sm:$0xff]
      %v1915 = vld [vmem:[%s300 + $0xa1] sm:$0xff]
      %v1916 = vld [vmem:[%s300 + $0xa9] sm:$0xff]
      %v1917 = vld [vmem:[%s300 + $0xb1] sm:$0xff]
      %v1918 = vld [vmem:[%s300 + $0xb9] sm:$0xff]
      %v1919 = vld [vmem:[%s300 + $0xc1] sm:$0xff]
      %v1920 = vld [vmem:[%s300 + $0xc9] sm:$0xff]
      %v1921 = vld [vmem:[%s300 + $0xd1] sm:$0xff]
      %v1922 = vld [vmem:[%s300 + $0xd9] sm:$0xff]
      %v1923 = vld [vmem:[%s300 + $0xe1] sm:$0xff]
      %v1924 = vld [vmem:[%s300 + $0xe9] sm:$0xff]
      %v1925 = vld [vmem:[%s300 + $0xf1] sm:$0xff]
      %v1926 = vld [vmem:[%s300 + $0xf9] sm:$0xff]
      %v1927 = vld [vmem:[%s300 + $0x101] sm:$0xff]
      %v1928 = vld [vmem:[%s300 + $0x109] sm:$0xff]
      %v1929 = vld [vmem:[%s300 + $0x111] sm:$0xff]
      %v1930 = vld [vmem:[%s300 + $0x119] sm:$0xff]
      %v1931 = vld [vmem:[%s300 + $0x121] sm:$0xff]
      %v1932 = vld [vmem:[%s300 + $0x129] sm:$0xff]
      %v1933 = vld [vmem:[%s300 + $0x131] sm:$0xff]
      %v1934 = vld [vmem:[%s300 + $0x139] sm:$0xff]
      %v1935 = vld [vmem:[%s300 + $0x141] sm:$0xff]
      %v1936 = vld [vmem:[%s300 + $0x149] sm:$0xff]
      %v1937 = vld [vmem:[%s300 + $0x151] sm:$0xff]
      %v1938 = vld [vmem:[%s300 + $0x159] sm:$0xff]
      %v1939 = vld [vmem:[%s300 + $0x161] sm:$0xff]
      %v1940 = vld [vmem:[%s300 + $0x169] sm:$0xff]
      %v1941 = vld [vmem:[%s300 + $0x171] sm:$0xff]
      %v1942 = vld [vmem:[%s300 + $0x179] sm:$0xff]
      %v1943 = vld [vmem:[%s300 + $0x181] sm:$0xff]
      %v1944 = vld [vmem:[%s300 + $0x189] sm:$0xff]
      %v1945 = vld [vmem:[%s300 + $0x191] sm:$0xff]
      %v1946 = vld [vmem:[%s300 + $0x199] sm:$0xff]
      %v1947 = vld [vmem:[%s300 + $0x1a1] sm:$0xff]
      %v1948 = vld [vmem:[%s300 + $0x1a9] sm:$0xff]
      %v1949 = vld [vmem:[%s300 + $0x1b1] sm:$0xff]
      %v1950 = vld [vmem:[%s300 + $0x1b9] sm:$0xff]
      %v1951 = vld [vmem:[%s300 + $0x1c1] sm:$0xff]
      %v1952 = vld [vmem:[%s300 + $0x1c9] sm:$0xff]
      %v1953 = vld [vmem:[%s300 + $0x1d1] sm:$0xff]
      %v1954 = vld [vmem:[%s300 + $0x1d9] sm:$0xff]
      %v1955 = vld [vmem:[%s300 + $0x1e1] sm:$0xff]
      %v1956 = vld [vmem:[%s300 + $0x1e9] sm:$0xff]
      %v1957 = vld [vmem:[%s300 + $0x1f1] sm:$0xff]
      %v1958 = vld [vmem:[%s300 + $0x1f9] sm:$0xff]
      %v1959 = vld [vmem:[%s300 + $0x201] sm:$0xff]
      %v1960 = vld [vmem:[%s300 + $0x209] sm:$0xff]
      %v1961 = vld [vmem:[%s300 + $0x211] sm:$0xff]
      %v1962 = vld [vmem:[%s300 + $0x219] sm:$0xff]
      %v1963 = vld [vmem:[%s300 + $0x221] sm:$0xff]
      %v1964 = vld [vmem:[%s300 + $0x229] sm:$0xff]
      %v1965 = vld [vmem:[%s300 + $0x231] sm:$0xff]
      %v1966 = vld [vmem:[%s300 + $0x239] sm:$0xff]
      %v1967 = vld [vmem:[%s300 + $0x241] sm:$0xff]
      %s1968 = scalar_lea.vmem %s1, 8
      %v1969 = vld [vmem:[%s1968] sm:$0x7]
      %v1971 = vsel %vm606, %v1896, 0
      %v1974 = vsel %vm606, %v1897, 0
      %v1977 = vsel %vm606, %v1898, 0
      %v1980 = vsel %vm606, %v1899, 0
      %v1983 = vsel %vm606, %v1900, 0
      %v1986 = vsel %vm606, %v1901, 0
      %v1989 = vsel %vm606, %v1902, 0
      %v1992 = vsel %vm606, %v1903, 0
      %v1995 = vsel %vm606, %v1904, 0
      %v1998 = vsel %vm606, %v1905, 0
      %v2001 = vsel %vm606, %v1906, 0
      %v2004 = vsel %vm606, %v1907, 0
      %v2007 = vsel %vm606, %v1908, 0
      %v2010 = vsel %vm606, %v1909, 0
      %v2013 = vsel %vm606, %v1910, 0
      %v2016 = vsel %vm606, %v1911, 0
      %v2019 = vsel %vm606, %v1912, 0
      %v2022 = vsel %vm606, %v1913, 0
      %v2025 = vsel %vm606, %v1914, 0
      %v2028 = vsel %vm606, %v1915, 0
      %v2031 = vsel %vm606, %v1916, 0
      %v2034 = vsel %vm606, %v1917, 0
      %v2037 = vsel %vm606, %v1918, 0
      %v2040 = vsel %vm606, %v1919, 0
      %v2043 = vsel %vm606, %v1920, 0
      %v2046 = vsel %vm606, %v1921, 0
      %v2049 = vsel %vm606, %v1922, 0
      %v2052 = vsel %vm606, %v1923, 0
      %v2055 = vsel %vm606, %v1924, 0
      %v2058 = vsel %vm606, %v1925, 0
      %v2061 = vsel %vm606, %v1926, 0
      %v2064 = vsel %vm606, %v1927, 0
      %v2067 = vsel %vm606, %v1928, 0
      %v2070 = vsel %vm606, %v1929, 0
      %v2073 = vsel %vm606, %v1930, 0
      %v2076 = vsel %vm606, %v1931, 0
      %v2079 = vsel %vm606, %v1932, 0
      %v2082 = vsel %vm606, %v1933, 0
      %v2085 = vsel %vm606, %v1934, 0
      %v2088 = vsel %vm606, %v1935, 0
      %v2091 = vsel %vm606, %v1936, 0
      %v2094 = vsel %vm606, %v1937, 0
      %v2097 = vsel %vm606, %v1938, 0
      %v2100 = vsel %vm606, %v1939, 0
      %v2103 = vsel %vm606, %v1940, 0
      %v2106 = vsel %vm606, %v1941, 0
      %v2109 = vsel %vm606, %v1942, 0
      %v2112 = vsel %vm606, %v1943, 0
      %v2115 = vsel %vm606, %v1944, 0
      %v2118 = vsel %vm606, %v1945, 0
      %v2121 = vsel %vm606, %v1946, 0
      %v2124 = vsel %vm606, %v1947, 0
      %v2127 = vsel %vm606, %v1948, 0
      %v2130 = vsel %vm606, %v1949, 0
      %v2133 = vsel %vm606, %v1950, 0
      %v2136 = vsel %vm606, %v1951, 0
      %v2139 = vsel %vm606, %v1952, 0
      %v2142 = vsel %vm606, %v1953, 0
      %v2145 = vsel %vm606, %v1954, 0
      %v2148 = vsel %vm606, %v1955, 0
      %v2151 = vsel %vm606, %v1956, 0
      %v2154 = vsel %vm606, %v1957, 0
      %v2157 = vsel %vm606, %v1958, 0
      %v2160 = vsel %vm606, %v1959, 0
      %v2163 = vsel %vm606, %v1960, 0
      %v2166 = vsel %vm606, %v1961, 0
      %v2169 = vsel %vm606, %v1962, 0
      %v2172 = vsel %vm606, %v1963, 0
      %v2175 = vsel %vm606, %v1964, 0
      %v2178 = vsel %vm606, %v1965, 0
      %v2181 = vsel %vm606, %v1966, 0
      %v2184 = vsel %vm606, %v1967, 0
      %v2187 = vsel %vm823, %v1969, 0
      %2189 = vmatprep.subr.mxu0 0.0
      %2190 = vmatpush1.msra.mxu0 %v2187
      %2191 = vmatprep.subr.mxu0 0.0
      %2192 = vmatpush1.msra.mxu0 0.0
      %2193 = vmatprep.subr.mxu0 0.0
      %2194 = vmatpush1.msra.mxu0 0.0
      %2195 = vmatprep.subr.mxu0 0.0
      %2196 = vmatpush1.msra.mxu0 0.0
      %2197 = vmatprep.subr.mxu0 0.0
      %2198 = vmatpush1.msra.mxu0 0.0
      %2199 = vmatprep.subr.mxu0 0.0
      %2200 = vmatpush1.msra.mxu0 0.0
      %2201 = vmatprep.subr.mxu0 0.0
      %2202 = vmatpush1.msra.mxu0 0.0
      %2203 = vmatprep.subr.mxu0 0.0
      %2204 = vmatpush1.msra.mxu0 0.0
      %2205 = vmatprep.subr.mxu0 0.0
      %2206 = vmatpush1.msra.mxu0 0.0
      %2207 = vmatprep.subr.mxu0 0.0
      %2208 = vmatpush1.msra.mxu0 0.0
      %2209 = vmatprep.subr.mxu0 0.0
      %2210 = vmatpush1.msra.mxu0 0.0
      %2211 = vmatprep.subr.mxu0 0.0
      %2212 = vmatpush1.msra.mxu0 0.0
      %2213 = vmatprep.subr.mxu0 0.0
      %2214 = vmatpush1.msra.mxu0 0.0
      %2215 = vmatprep.subr.mxu0 0.0
      %2216 = vmatpush1.msra.mxu0 0.0
      %2217 = vmatprep.subr.mxu0 0.0
      %2218 = vmatpush1.msra.mxu0 0.0
      %2219 = vmatprep.subr.mxu0 0.0
      %2220 = vmatpush1.msra.mxu0 0.0
      %2221 = vmatprep.subr.mxu0 0.0
      %2222 = vmatpush1.msra.mxu0 0.0
      %2223 = vmatprep.subr.mxu0 0.0
      %2224 = vmatpush1.msra.mxu0 0.0
      %2225 = vmatprep.subr.mxu0 0.0
      %2226 = vmatpush1.msra.mxu0 0.0
      %2227 = vmatprep.subr.mxu0 0.0
      %2228 = vmatpush1.msra.mxu0 0.0
      %2229 = vmatprep.subr.mxu0 0.0
      %2230 = vmatpush1.msra.mxu0 0.0
      %2231 = vmatprep.subr.mxu0 0.0
      %2232 = vmatpush1.msra.mxu0 0.0
      %2233 = vmatprep.subr.mxu0 0.0
      %2234 = vmatpush1.msra.mxu0 0.0
      %2235 = vmatprep.subr.mxu0 0.0
      %2236 = vmatpush1.msra.mxu0 0.0
      %2237 = vmatprep.subr.mxu0 0.0
      %2238 = vmatpush1.msra.mxu0 0.0
      %2239 = vmatprep.subr.mxu0 0.0
      %2240 = vmatpush1.msra.mxu0 0.0
      %2241 = vmatprep.subr.mxu0 0.0
      %2242 = vmatpush1.msra.mxu0 0.0
      %2243 = vmatprep.subr.mxu0 0.0
      %2244 = vmatpush1.msra.mxu0 0.0
      %2245 = vmatprep.subr.mxu0 0.0
      %2246 = vmatpush1.msra.mxu0 0.0
      %2247 = vmatprep.subr.mxu0 0.0
      %2248 = vmatpush1.msra.mxu0 0.0
      %2249 = vmatprep.subr.mxu0 0.0
      %2250 = vmatpush1.msra.mxu0 0.0
      %2251 = vmatprep.subr.mxu0 0.0
      %2252 = vmatpush1.msra.mxu0 0.0
      %2253 = vmatprep.mubr.f32.mxu0 0.0
      %2254 = vmatmul.mubr.f32.gmra.mrb[0].mxu0 %v1971
      %v2255 = vpop.f32.mrb[0].mxu0
      %v2256 = vadd.f32 0.0, %v2255
      %v2257 = vpop.f32.mrb[0].mxu0
      %2258 = vmatprep.mubr.f32.mxu0 0.0
      %2259 = vmatmul.mubr.f32.gmra.mrb[0].mxu0 %v1974
      %v2260 = vpop.f32.mrb[0].mxu0
      %v2261 = vadd.f32 0.0, %v2260
      %v2262 = vpop.f32.mrb[0].mxu0
      %2263 = vmatprep.mubr.f32.mxu0 0.0
      %2264 = vmatmul.mubr.f32.gmra.mrb[0].mxu0 %v1977
      %v2265 = vpop.f32.mrb[0].mxu0
      %v2266 = vadd.f32 0.0, %v2265
      %v2267 = vpop.f32.mrb[0].mxu0
      %2268 = vmatprep.mubr.f32.mxu0 0.0
      %2269 = vmatmul.mubr.f32.gmra.mrb[0].mxu0 %v1980
      %v2270 = vpop.f32.mrb[0].mxu0
      %v2271 = vadd.f32 0.0, %v2270
      %v2272 = vpop.f32.mrb[0].mxu0
      %2273 = vmatprep.mubr.f32.mxu0 0.0
      %2274 = vmatmul.mubr.f32.gmra.mrb[0].mxu0 %v1983
      %v2275 = vpop.f32.mrb[0].mxu0
      %v2276 = vadd.f32 0.0, %v2275
      %v2277 = vpop.f32.mrb[0].mxu0
      %2278 = vmatprep.mubr.f32.mxu0 0.0
      %2279 = vmatmul.mubr.f32.gmra.mrb[0].mxu0 %v1986
      %v2280 = vpop.f32.mrb[0].mxu0
      %v2281 = vadd.f32 0.0, %v2280
      %v2282 = vpop.f32.mrb[0].mxu0
      %2283 = vmatprep.mubr.f32.mxu0 0.0
      %2284 = vmatmul.mubr.f32.gmra.mrb[0].mxu0 %v1989
      %v2285 = vpop.f32.mrb[0].mxu0
      %v2286 = vadd.f32 0.0, %v2285
      %v2287 = vpop.f32.mrb[0].mxu0
      %2288 = vmatprep.mubr.f32.mxu0 0.0
      %2289 = vmatmul.mubr.f32.gmra.mrb[0].mxu0 %v1992
      %v2290 = vpop.f32.mrb[0].mxu0
      %v2291 = vadd.f32 0.0, %v2290
      %v2292 = vpop.f32.mrb[0].mxu0
      %2293 = vmatprep.mubr.f32.mxu0 0.0
      %2294 = vmatmul.mubr.f32.gmra.mrb[0].mxu0 %v1995
      %v2295 = vpop.f32.mrb[0].mxu0
      %v2296 = vadd.f32 0.0, %v2295
      %v2297 = vpop.f32.mrb[0].mxu0
      %2298 = vmatprep.mubr.f32.mxu0 0.0
      %2299 = vmatmul.mubr.f32.gmra.mrb[0].mxu0 %v1998
      %v2300 = vpop.f32.mrb[0].mxu0
      %v2301 = vadd.f32 0.0, %v2300
      %v2302 = vpop.f32.mrb[0].mxu0
      %2303 = vmatprep.mubr.f32.mxu0 0.0
      %2304 = vmatmul.mubr.f32.gmra.mrb[0].mxu0 %v2001
      %v2305 = vpop.f32.mrb[0].mxu0
      %v2306 = vadd.f32 0.0, %v2305
      %v2307 = vpop.f32.mrb[0].mxu0
      %2308 = vmatprep.mubr.f32.mxu0 0.0
      %2309 = vmatmul.mubr.f32.gmra.mrb[0].mxu0 %v2004
      %v2310 = vpop.f32.mrb[0].mxu0
      %v2311 = vadd.f32 0.0, %v2310
      %v2312 = vpop.f32.mrb[0].mxu0
      %2313 = vmatprep.mubr.f32.mxu0 0.0
      %2314 = vmatmul.mubr.f32.gmra.mrb[0].mxu0 %v2007
      %v2315 = vpop.f32.mrb[0].mxu0
      %v2316 = vadd.f32 0.0, %v2315
      %v2317 = vpop.f32.mrb[0].mxu0
      %2318 = vmatprep.mubr.f32.mxu0 0.0
      %2319 = vmatmul.mubr.f32.gmra.mrb[0].mxu0 %v2010
      %v2320 = vpop.f32.mrb[0].mxu0
      %v2321 = vadd.f32 0.0, %v2320
      %v2322 = vpop.f32.mrb[0].mxu0
      %2323 = vmatprep.mubr.f32.mxu0 0.0
      %2324 = vmatmul.mubr.f32.gmra.mrb[0].mxu0 %v2013
      %v2325 = vpop.f32.mrb[0].mxu0
      %v2326 = vadd.f32 0.0, %v2325
      %v2327 = vpop.f32.mrb[0].mxu0
      %2328 = vmatprep.mubr.f32.mxu0 0.0
      %2329 = vmatmul.mubr.f32.gmra.mrb[0].mxu0 %v2016
      %v2330 = vpop.f32.mrb[0].mxu0
      %v2331 = vadd.f32 0.0, %v2330
      %v2332 = vpop.f32.mrb[0].mxu0
      %2333 = vmatprep.mubr.f32.mxu0 0.0
      %2334 = vmatmul.mubr.f32.gmra.mrb[0].mxu0 %v2019
      %v2335 = vpop.f32.mrb[0].mxu0
      %v2336 = vadd.f32 0.0, %v2335
      %v2337 = vpop.f32.mrb[0].mxu0
      %2338 = vmatprep.mubr.f32.mxu0 0.0
      %2339 = vmatmul.mubr.f32.gmra.mrb[0].mxu0 %v2022
      %v2340 = vpop.f32.mrb[0].mxu0
      %v2341 = vadd.f32 0.0, %v2340
      %v2342 = vpop.f32.mrb[0].mxu0
      %2343 = vmatprep.mubr.f32.mxu0 0.0
      %2344 = vmatmul.mubr.f32.gmra.mrb[0].mxu0 %v2025
      %v2345 = vpop.f32.mrb[0].mxu0
      %v2346 = vadd.f32 0.0, %v2345
      %v2347 = vpop.f32.mrb[0].mxu0
      %2348 = vmatprep.mubr.f32.mxu0 0.0
      %2349 = vmatmul.mubr.f32.gmra.mrb[0].mxu0 %v2028
      %v2350 = vpop.f32.mrb[0].mxu0
      %v2351 = vadd.f32 0.0, %v2350
      %v2352 = vpop.f32.mrb[0].mxu0
      %2353 = vmatprep.mubr.f32.mxu0 0.0
      %2354 = vmatmul.mubr.f32.gmra.mrb[0].mxu0 %v2031
      %v2355 = vpop.f32.mrb[0].mxu0
      %v2356 = vadd.f32 0.0, %v2355
      %v2357 = vpop.f32.mrb[0].mxu0
      %2358 = vmatprep.mubr.f32.mxu0 0.0
      %2359 = vmatmul.mubr.f32.gmra.mrb[0].mxu0 %v2034
      %v2360 = vpop.f32.mrb[0].mxu0
      %v2361 = vadd.f32 0.0, %v2360
      %v2362 = vpop.f32.mrb[0].mxu0
      %2363 = vmatprep.mubr.f32.mxu0 0.0
      %2364 = vmatmul.mubr.f32.gmra.mrb[0].mxu0 %v2037
      %v2365 = vpop.f32.mrb[0].mxu0
      %v2366 = vadd.f32 0.0, %v2365
      %v2367 = vpop.f32.mrb[0].mxu0
      %2368 = vmatprep.mubr.f32.mxu0 0.0
      %2369 = vmatmul.mubr.f32.gmra.mrb[0].mxu0 %v2040
      %v2370 = vpop.f32.mrb[0].mxu0
      %v2371 = vadd.f32 0.0, %v2370
      %v2372 = vpop.f32.mrb[0].mxu0
      %2373 = vmatprep.mubr.f32.mxu0 0.0
      %2374 = vmatmul.mubr.f32.gmra.mrb[0].mxu0 %v2043
      %v2375 = vpop.f32.mrb[0].mxu0
      %v2376 = vadd.f32 0.0, %v2375
      %v2377 = vpop.f32.mrb[0].mxu0
      %2378 = vmatprep.mubr.f32.mxu0 0.0
      %2379 = vmatmul.mubr.f32.gmra.mrb[0].mxu0 %v2046
      %v2380 = vpop.f32.mrb[0].mxu0
      %v2381 = vadd.f32 0.0, %v2380
      %v2382 = vpop.f32.mrb[0].mxu0
      %2383 = vmatprep.mubr.f32.mxu0 0.0
      %2384 = vmatmul.mubr.f32.gmra.mrb[0].mxu0 %v2049
      %v2385 = vpop.f32.mrb[0].mxu0
      %v2386 = vadd.f32 0.0, %v2385
      %v2387 = vpop.f32.mrb[0].mxu0
      %2388 = vmatprep.mubr.f32.mxu0 0.0
      %2389 = vmatmul.mubr.f32.gmra.mrb[0].mxu0 %v2052
      %v2390 = vpop.f32.mrb[0].mxu0
      %v2391 = vadd.f32 0.0, %v2390
      %v2392 = vpop.f32.mrb[0].mxu0
      %2393 = vmatprep.mubr.f32.mxu0 0.0
      %2394 = vmatmul.mubr.f32.gmra.mrb[0].mxu0 %v2055
      %v2395 = vpop.f32.mrb[0].mxu0
      %v2396 = vadd.f32 0.0, %v2395
      %v2397 = vpop.f32.mrb[0].mxu0
      %2398 = vmatprep.mubr.f32.mxu0 0.0
      %2399 = vmatmul.mubr.f32.gmra.mrb[0].mxu0 %v2058
      %v2400 = vpop.f32.mrb[0].mxu0
      %v2401 = vadd.f32 0.0, %v2400
      %v2402 = vpop.f32.mrb[0].mxu0
      %2403 = vmatprep.mubr.f32.mxu0 0.0
      %2404 = vmatmul.mubr.f32.gmra.mrb[0].mxu0 %v2061
      %v2405 = vpop.f32.mrb[0].mxu0
      %v2406 = vadd.f32 0.0, %v2405
      %v2407 = vpop.f32.mrb[0].mxu0
      %2408 = vmatprep.mubr.f32.mxu0 0.0
      %2409 = vmatmul.mubr.f32.gmra.mrb[0].mxu0 %v2064
      %v2410 = vpop.f32.mrb[0].mxu0
      %v2411 = vadd.f32 0.0, %v2410
      %v2412 = vpop.f32.mrb[0].mxu0
      %2413 = vmatprep.mubr.f32.mxu0 0.0
      %2414 = vmatmul.mubr.f32.gmra.mrb[0].mxu0 %v2067
      %v2415 = vpop.f32.mrb[0].mxu0
      %v2416 = vadd.f32 0.0, %v2415
      %v2417 = vpop.f32.mrb[0].mxu0
      %2418 = vmatprep.mubr.f32.mxu0 0.0
      %2419 = vmatmul.mubr.f32.gmra.mrb[0].mxu0 %v2070
      %v2420 = vpop.f32.mrb[0].mxu0
      %v2421 = vadd.f32 0.0, %v2420
      %v2422 = vpop.f32.mrb[0].mxu0
      %2423 = vmatprep.mubr.f32.mxu0 0.0
      %2424 = vmatmul.mubr.f32.gmra.mrb[0].mxu0 %v2073
      %v2425 = vpop.f32.mrb[0].mxu0
      %v2426 = vadd.f32 0.0, %v2425
      %v2427 = vpop.f32.mrb[0].mxu0
      %2428 = vmatprep.mubr.f32.mxu0 0.0
      %2429 = vmatmul.mubr.f32.gmra.mrb[0].mxu0 %v2076
      %v2430 = vpop.f32.mrb[0].mxu0
      %v2431 = vadd.f32 0.0, %v2430
      %v2432 = vpop.f32.mrb[0].mxu0
      %2433 = vmatprep.mubr.f32.mxu0 0.0
      %2434 = vmatmul.mubr.f32.gmra.mrb[0].mxu0 %v2079
      %v2435 = vpop.f32.mrb[0].mxu0
      %v2436 = vadd.f32 0.0, %v2435
      %v2437 = vpop.f32.mrb[0].mxu0
      %2438 = vmatprep.mubr.f32.mxu0 0.0
      %2439 = vmatmul.mubr.f32.gmra.mrb[0].mxu0 %v2082
      %v2440 = vpop.f32.mrb[0].mxu0
      %v2441 = vadd.f32 0.0, %v2440
      %v2442 = vpop.f32.mrb[0].mxu0
      %2443 = vmatprep.mubr.f32.mxu0 0.0
      %2444 = vmatmul.mubr.f32.gmra.mrb[0].mxu0 %v2085
      %v2445 = vpop.f32.mrb[0].mxu0
      %v2446 = vadd.f32 0.0, %v2445
      %v2447 = vpop.f32.mrb[0].mxu0
      %2448 = vmatprep.mubr.f32.mxu0 0.0
      %2449 = vmatmul.mubr.f32.gmra.mrb[0].mxu0 %v2088
      %v2450 = vpop.f32.mrb[0].mxu0
      %v2451 = vadd.f32 0.0, %v2450
      %v2452 = vpop.f32.mrb[0].mxu0
      %2453 = vmatprep.mubr.f32.mxu0 0.0
      %2454 = vmatmul.mubr.f32.gmra.mrb[0].mxu0 %v2091
      %v2455 = vpop.f32.mrb[0].mxu0
      %v2456 = vadd.f32 0.0, %v2455
      %v2457 = vpop.f32.mrb[0].mxu0
      %2458 = vmatprep.mubr.f32.mxu0 0.0
      %2459 = vmatmul.mubr.f32.gmra.mrb[0].mxu0 %v2094
      %v2460 = vpop.f32.mrb[0].mxu0
      %v2461 = vadd.f32 0.0, %v2460
      %v2462 = vpop.f32.mrb[0].mxu0
      %2463 = vmatprep.mubr.f32.mxu0 0.0
      %2464 = vmatmul.mubr.f32.gmra.mrb[0].mxu0 %v2097
      %v2465 = vpop.f32.mrb[0].mxu0
      %v2466 = vadd.f32 0.0, %v2465
      %v2467 = vpop.f32.mrb[0].mxu0
      %2468 = vmatprep.mubr.f32.mxu0 0.0
      %2469 = vmatmul.mubr.f32.gmra.mrb[0].mxu0 %v2100
      %v2470 = vpop.f32.mrb[0].mxu0
      %v2471 = vadd.f32 0.0, %v2470
      %v2472 = vpop.f32.mrb[0].mxu0
      %2473 = vmatprep.mubr.f32.mxu0 0.0
      %2474 = vmatmul.mubr.f32.gmra.mrb[0].mxu0 %v2103
      %v2475 = vpop.f32.mrb[0].mxu0
      %v2476 = vadd.f32 0.0, %v2475
      %v2477 = vpop.f32.mrb[0].mxu0
      %2478 = vmatprep.mubr.f32.mxu0 0.0
      %2479 = vmatmul.mubr.f32.gmra.mrb[0].mxu0 %v2106
      %v2480 = vpop.f32.mrb[0].mxu0
      %v2481 = vadd.f32 0.0, %v2480
      %v2482 = vpop.f32.mrb[0].mxu0
      %2483 = vmatprep.mubr.f32.mxu0 0.0
      %2484 = vmatmul.mubr.f32.gmra.mrb[0].mxu0 %v2109
      %v2485 = vpop.f32.mrb[0].mxu0
      %v2486 = vadd.f32 0.0, %v2485
      %v2487 = vpop.f32.mrb[0].mxu0
      %2488 = vmatprep.mubr.f32.mxu0 0.0
      %2489 = vmatmul.mubr.f32.gmra.mrb[0].mxu0 %v2112
      %v2490 = vpop.f32.mrb[0].mxu0
      %v2491 = vadd.f32 0.0, %v2490
      %v2492 = vpop.f32.mrb[0].mxu0
      %2493 = vmatprep.mubr.f32.mxu0 0.0
      %2494 = vmatmul.mubr.f32.gmra.mrb[0].mxu0 %v2115
      %v2495 = vpop.f32.mrb[0].mxu0
      %v2496 = vadd.f32 0.0, %v2495
      %v2497 = vpop.f32.mrb[0].mxu0
      %2498 = vmatprep.mubr.f32.mxu0 0.0
      %2499 = vmatmul.mubr.f32.gmra.mrb[0].mxu0 %v2118
      %v2500 = vpop.f32.mrb[0].mxu0
      %v2501 = vadd.f32 0.0, %v2500
      %v2502 = vpop.f32.mrb[0].mxu0
      %2503 = vmatprep.mubr.f32.mxu0 0.0
      %2504 = vmatmul.mubr.f32.gmra.mrb[0].mxu0 %v2121
      %v2505 = vpop.f32.mrb[0].mxu0
      %v2506 = vadd.f32 0.0, %v2505
      %v2507 = vpop.f32.mrb[0].mxu0
      %2508 = vmatprep.mubr.f32.mxu0 0.0
      %2509 = vmatmul.mubr.f32.gmra.mrb[0].mxu0 %v2124
      %v2510 = vpop.f32.mrb[0].mxu0
      %v2511 = vadd.f32 0.0, %v2510
      %v2512 = vpop.f32.mrb[0].mxu0
      %2513 = vmatprep.mubr.f32.mxu0 0.0
      %2514 = vmatmul.mubr.f32.gmra.mrb[0].mxu0 %v2127
      %v2515 = vpop.f32.mrb[0].mxu0
      %v2516 = vadd.f32 0.0, %v2515
      %v2517 = vpop.f32.mrb[0].mxu0
      %2518 = vmatprep.mubr.f32.mxu0 0.0
      %2519 = vmatmul.mubr.f32.gmra.mrb[0].mxu0 %v2130
      %v2520 = vpop.f32.mrb[0].mxu0
      %v2521 = vadd.f32 0.0, %v2520
      %v2522 = vpop.f32.mrb[0].mxu0
      %2523 = vmatprep.mubr.f32.mxu0 0.0
      %2524 = vmatmul.mubr.f32.gmra.mrb[0].mxu0 %v2133
      %v2525 = vpop.f32.mrb[0].mxu0
      %v2526 = vadd.f32 0.0, %v2525
      %v2527 = vpop.f32.mrb[0].mxu0
      %2528 = vmatprep.mubr.f32.mxu0 0.0
      %2529 = vmatmul.mubr.f32.gmra.mrb[0].mxu0 %v2136
      %v2530 = vpop.f32.mrb[0].mxu0
      %v2531 = vadd.f32 0.0, %v2530
      %v2532 = vpop.f32.mrb[0].mxu0
      %2533 = vmatprep.mubr.f32.mxu0 0.0
      %2534 = vmatmul.mubr.f32.gmra.mrb[0].mxu0 %v2139
      %v2535 = vpop.f32.mrb[0].mxu0
      %v2536 = vadd.f32 0.0, %v2535
      %v2537 = vpop.f32.mrb[0].mxu0
      %2538 = vmatprep.mubr.f32.mxu0 0.0
      %2539 = vmatmul.mubr.f32.gmra.mrb[0].mxu0 %v2142
      %v2540 = vpop.f32.mrb[0].mxu0
      %v2541 = vadd.f32 0.0, %v2540
      %v2542 = vpop.f32.mrb[0].mxu0
      %2543 = vmatprep.mubr.f32.mxu0 0.0
      %2544 = vmatmul.mubr.f32.gmra.mrb[0].mxu0 %v2145
      %v2545 = vpop.f32.mrb[0].mxu0
      %v2546 = vadd.f32 0.0, %v2545
      %v2547 = vpop.f32.mrb[0].mxu0
      %2548 = vmatprep.mubr.f32.mxu0 0.0
      %2549 = vmatmul.mubr.f32.gmra.mrb[0].mxu0 %v2148
      %v2550 = vpop.f32.mrb[0].mxu0
      %v2551 = vadd.f32 0.0, %v2550
      %v2552 = vpop.f32.mrb[0].mxu0
      %2553 = vmatprep.mubr.f32.mxu0 0.0
      %2554 = vmatmul.mubr.f32.gmra.mrb[0].mxu0 %v2151
      %v2555 = vpop.f32.mrb[0].mxu0
      %v2556 = vadd.f32 0.0, %v2555
      %v2557 = vpop.f32.mrb[0].mxu0
      %2558 = vmatprep.mubr.f32.mxu0 0.0
      %2559 = vmatmul.mubr.f32.gmra.mrb[0].mxu0 %v2154
      %v2560 = vpop.f32.mrb[0].mxu0
      %v2561 = vadd.f32 0.0, %v2560
      %v2562 = vpop.f32.mrb[0].mxu0
      %2563 = vmatprep.mubr.f32.mxu0 0.0
      %2564 = vmatmul.mubr.f32.gmra.mrb[0].mxu0 %v2157
      %v2565 = vpop.f32.mrb[0].mxu0
      %v2566 = vadd.f32 0.0, %v2565
      %v2567 = vpop.f32.mrb[0].mxu0
      %2568 = vmatprep.mubr.f32.mxu0 0.0
      %2569 = vmatmul.mubr.f32.gmra.mrb[0].mxu0 %v2160
      %v2570 = vpop.f32.mrb[0].mxu0
      %v2571 = vadd.f32 0.0, %v2570
      %v2572 = vpop.f32.mrb[0].mxu0
      %2573 = vmatprep.mubr.f32.mxu0 0.0
      %2574 = vmatmul.mubr.f32.gmra.mrb[0].mxu0 %v2163
      %v2575 = vpop.f32.mrb[0].mxu0
      %v2576 = vadd.f32 0.0, %v2575
      %v2577 = vpop.f32.mrb[0].mxu0
      %2578 = vmatprep.mubr.f32.mxu0 0.0
      %2579 = vmatmul.mubr.f32.gmra.mrb[0].mxu0 %v2166
      %v2580 = vpop.f32.mrb[0].mxu0
      %v2581 = vadd.f32 0.0, %v2580
      %v2582 = vpop.f32.mrb[0].mxu0
      %2583 = vmatprep.mubr.f32.mxu0 0.0
      %2584 = vmatmul.mubr.f32.gmra.mrb[0].mxu0 %v2169
      %v2585 = vpop.f32.mrb[0].mxu0
      %v2586 = vadd.f32 0.0, %v2585
      %v2587 = vpop.f32.mrb[0].mxu0
      %2588 = vmatprep.mubr.f32.mxu0 0.0
      %2589 = vmatmul.mubr.f32.gmra.mrb[0].mxu0 %v2172
      %v2590 = vpop.f32.mrb[0].mxu0
      %v2591 = vadd.f32 0.0, %v2590
      %v2592 = vpop.f32.mrb[0].mxu0
      %2593 = vmatprep.mubr.f32.mxu0 0.0
      %2594 = vmatmul.mubr.f32.gmra.mrb[0].mxu0 %v2175
      %v2595 = vpop.f32.mrb[0].mxu0
      %v2596 = vadd.f32 0.0, %v2595
      %v2597 = vpop.f32.mrb[0].mxu0
      %2598 = vmatprep.mubr.f32.mxu0 0.0
      %2599 = vmatmul.mubr.f32.gmra.mrb[0].mxu0 %v2178
      %v2600 = vpop.f32.mrb[0].mxu0
      %v2601 = vadd.f32 0.0, %v2600
      %v2602 = vpop.f32.mrb[0].mxu0
      %2603 = vmatprep.mubr.f32.mxu0 0.0
      %2604 = vmatmul.mubr.f32.gmra.mrb[0].mxu0 %v2181
      %v2605 = vpop.f32.mrb[0].mxu0
      %v2606 = vadd.f32 0.0, %v2605
      %v2607 = vpop.f32.mrb[0].mxu0
      %2608 = vmatprep.mubr.f32.mxu0 0.0
      %2609 = vmatmul.mubr.f32.gmra.mrb[0].mxu0 %v2184
      %v2610 = vpop.f32.mrb[0].mxu0
      %v2611 = vadd.f32 0.0, %v2610
      %v2612 = vpop.f32.mrb[0].mxu0
      %2613 = vdwg.mxu0
      %v2614 = vadd.f32 %v1538, %v2256
      %v2615 = vadd.f32 %v1543, %v2261
      %v2616 = vadd.f32 %v1548, %v2266
      %v2617 = vadd.f32 %v1553, %v2271
      %v2618 = vadd.f32 %v1558, %v2276
      %v2619 = vadd.f32 %v1563, %v2281
      %v2620 = vadd.f32 %v1568, %v2286
      %v2621 = vadd.f32 %v1573, %v2291
      %v2622 = vadd.f32 %v1578, %v2296
      %v2623 = vadd.f32 %v1583, %v2301
      %v2624 = vadd.f32 %v1588, %v2306
      %v2625 = vadd.f32 %v1593, %v2311
      %v2626 = vadd.f32 %v1598, %v2316
      %v2627 = vadd.f32 %v1603, %v2321
      %v2628 = vadd.f32 %v1608, %v2326
      %v2629 = vadd.f32 %v1613, %v2331
      %v2630 = vadd.f32 %v1618, %v2336
      %v2631 = vadd.f32 %v1623, %v2341
      %v2632 = vadd.f32 %v1628, %v2346
      %v2633 = vadd.f32 %v1633, %v2351
      %v2634 = vadd.f32 %v1638, %v2356
      %v2635 = vadd.f32 %v1643, %v2361
      %v2636 = vadd.f32 %v1648, %v2366
      %v2637 = vadd.f32 %v1653, %v2371
      %v2638 = vadd.f32 %v1658, %v2376
      %v2639 = vadd.f32 %v1663, %v2381
      %v2640 = vadd.f32 %v1668, %v2386
      %v2641 = vadd.f32 %v1673, %v2391
      %v2642 = vadd.f32 %v1678, %v2396
      %v2643 = vadd.f32 %v1683, %v2401
      %v2644 = vadd.f32 %v1688, %v2406
      %v2645 = vadd.f32 %v1693, %v2411
      %v2646 = vadd.f32 %v1698, %v2416
      %v2647 = vadd.f32 %v1703, %v2421
      %v2648 = vadd.f32 %v1708, %v2426
      %v2649 = vadd.f32 %v1713, %v2431
      %v2650 = vadd.f32 %v1718, %v2436
      %v2651 = vadd.f32 %v1723, %v2441
      %v2652 = vadd.f32 %v1728, %v2446
      %v2653 = vadd.f32 %v1733, %v2451
      %v2654 = vadd.f32 %v1738, %v2456
      %v2655 = vadd.f32 %v1743, %v2461
      %v2656 = vadd.f32 %v1748, %v2466
      %v2657 = vadd.f32 %v1753, %v2471
      %v2658 = vadd.f32 %v1758, %v2476
      %v2659 = vadd.f32 %v1763, %v2481
      %v2660 = vadd.f32 %v1768, %v2486
      %v2661 = vadd.f32 %v1773, %v2491
      %v2662 = vadd.f32 %v1778, %v2496
      %v2663 = vadd.f32 %v1783, %v2501
      %v2664 = vadd.f32 %v1788, %v2506
      %v2665 = vadd.f32 %v1793, %v2511
      %v2666 = vadd.f32 %v1798, %v2516
      %v2667 = vadd.f32 %v1803, %v2521
      %v2668 = vadd.f32 %v1808, %v2526
      %v2669 = vadd.f32 %v1813, %v2531
      %v2670 = vadd.f32 %v1818, %v2536
      %v2671 = vadd.f32 %v1823, %v2541
      %v2672 = vadd.f32 %v1828, %v2546
      %v2673 = vadd.f32 %v1833, %v2551
      %v2674 = vadd.f32 %v1838, %v2556
      %v2675 = vadd.f32 %v1843, %v2561
      %v2676 = vadd.f32 %v1848, %v2566
      %v2677 = vadd.f32 %v1853, %v2571
      %v2678 = vadd.f32 %v1858, %v2576
      %v2679 = vadd.f32 %v1863, %v2581
      %v2680 = vadd.f32 %v1868, %v2586
      %v2681 = vadd.f32 %v1873, %v2591
      %v2682 = vadd.f32 %v1878, %v2596
      %v2683 = vadd.f32 %v1883, %v2601
      %v2684 = vadd.f32 %v1888, %v2606
      %v2685 = vadd.f32 %v1893, %v2611
      %v2686 = vld [vmem:[%s300 + $0x27] sm:$0xff]
      %v2687 = vld [vmem:[%s300 + $0x2f] sm:$0xff]
      %v2688 = vld [vmem:[%s300 + $0x37] sm:$0xff]
      %v2689 = vld [vmem:[%s300 + $0x3f] sm:$0xff]
      %v2690 = vld [vmem:[%s300 + $0x47] sm:$0xff]
      %v2691 = vld [vmem:[%s300 + $0x4f] sm:$0xff]
      %v2692 = vld [vmem:[%s300 + $0x57] sm:$0xff]
      %v2693 = vld [vmem:[%s300 + $0x5f] sm:$0xff]
      %v2694 = vld [vmem:[%s300 + $0x67] sm:$0xff]
      %v2695 = vld [vmem:[%s300 + $0x6f] sm:$0xff]
      %v2696 = vld [vmem:[%s300 + $0x77] sm:$0xff]
      %v2697 = vld [vmem:[%s300 + $0x7f] sm:$0xff]
      %v2698 = vld [vmem:[%s300 + $0x87] sm:$0xff]
      %v2699 = vld [vmem:[%s300 + $0x8f] sm:$0xff]
      %v2700 = vld [vmem:[%s300 + $0x97] sm:$0xff]
      %v2701 = vld [vmem:[%s300 + $0x9f] sm:$0xff]
      %v2702 = vld [vmem:[%s300 + $0xa7] sm:$0xff]
      %v2703 = vld [vmem:[%s300 + $0xaf] sm:$0xff]
      %v2704 = vld [vmem:[%s300 + $0xb7] sm:$0xff]
      %v2705 = vld [vmem:[%s300 + $0xbf] sm:$0xff]
      %v2706 = vld [vmem:[%s300 + $0xc7] sm:$0xff]
      %v2707 = vld [vmem:[%s300 + $0xcf] sm:$0xff]
      %v2708 = vld [vmem:[%s300 + $0xd7] sm:$0xff]
      %v2709 = vld [vmem:[%s300 + $0xdf] sm:$0xff]
      %v2710 = vld [vmem:[%s300 + $0xe7] sm:$0xff]
      %v2711 = vld [vmem:[%s300 + $0xef] sm:$0xff]
      %v2712 = vld [vmem:[%s300 + $0xf7] sm:$0xff]
      %v2713 = vld [vmem:[%s300 + $0xff] sm:$0xff]
      %v2714 = vld [vmem:[%s300 + $0x107] sm:$0xff]
      %v2715 = vld [vmem:[%s300 + $0x10f] sm:$0xff]
      %v2716 = vld [vmem:[%s300 + $0x117] sm:$0xff]
      %v2717 = vld [vmem:[%s300 + $0x11f] sm:$0xff]
      %v2718 = vld [vmem:[%s300 + $0x127] sm:$0xff]
      %v2719 = vld [vmem:[%s300 + $0x12f] sm:$0xff]
      %v2720 = vld [vmem:[%s300 + $0x137] sm:$0xff]
      %v2721 = vld [vmem:[%s300 + $0x13f] sm:$0xff]
      %v2722 = vld [vmem:[%s300 + $0x147] sm:$0xff]
      %v2723 = vld [vmem:[%s300 + $0x14f] sm:$0xff]
      %v2724 = vld [vmem:[%s300 + $0x157] sm:$0xff]
      %v2725 = vld [vmem:[%s300 + $0x15f] sm:$0xff]
      %v2726 = vld [vmem:[%s300 + $0x167] sm:$0xff]
      %v2727 = vld [vmem:[%s300 + $0x16f] sm:$0xff]
      %v2728 = vld [vmem:[%s300 + $0x177] sm:$0xff]
      %v2729 = vld [vmem:[%s300 + $0x17f] sm:$0xff]
      %v2730 = vld [vmem:[%s300 + $0x187] sm:$0xff]
      %v2731 = vld [vmem:[%s300 + $0x18f] sm:$0xff]
      %v2732 = vld [vmem:[%s300 + $0x197] sm:$0xff]
      %v2733 = vld [vmem:[%s300 + $0x19f] sm:$0xff]
      %v2734 = vld [vmem:[%s300 + $0x1a7] sm:$0xff]
      %v2735 = vld [vmem:[%s300 + $0x1af] sm:$0xff]
      %v2736 = vld [vmem:[%s300 + $0x1b7] sm:$0xff]
      %v2737 = vld [vmem:[%s300 + $0x1bf] sm:$0xff]
      %v2738 = vld [vmem:[%s300 + $0x1c7] sm:$0xff]
      %v2739 = vld [vmem:[%s300 + $0x1cf] sm:$0xff]
      %v2740 = vld [vmem:[%s300 + $0x1d7] sm:$0xff]
      %v2741 = vld [vmem:[%s300 + $0x1df] sm:$0xff]
      %v2742 = vld [vmem:[%s300 + $0x1e7] sm:$0xff]
      %v2743 = vld [vmem:[%s300 + $0x1ef] sm:$0xff]
      %v2744 = vld [vmem:[%s300 + $0x1f7] sm:$0xff]
      %v2745 = vld [vmem:[%s300 + $0x1ff] sm:$0xff]
      %v2746 = vld [vmem:[%s300 + $0x207] sm:$0xff]
      %v2747 = vld [vmem:[%s300 + $0x20f] sm:$0xff]
      %v2748 = vld [vmem:[%s300 + $0x217] sm:$0xff]
      %v2749 = vld [vmem:[%s300 + $0x21f] sm:$0xff]
      %v2750 = vld [vmem:[%s300 + $0x227] sm:$0xff]
      %v2751 = vld [vmem:[%s300 + $0x22f] sm:$0xff]
      %v2752 = vld [vmem:[%s300 + $0x237] sm:$0xff]
      %v2753 = vld [vmem:[%s300 + $0x23f] sm:$0xff]
      %v2754 = vld [vmem:[%s300 + $0x247] sm:$0xff]
      %v2755 = vld [vmem:[%s300 + $0x24f] sm:$0xff]
      %v2756 = vld [vmem:[%s300 + $0x257] sm:$0xff]
      %v2757 = vld [vmem:[%s300 + $0x25f] sm:$0xff]
      %s2758 = scalar_lea.vmem %s1, 12
      %v2759 = vld [vmem:[%s2758] sm:$0x7]
      %v2761 = vsel %vm606, %v2686, 0
      %v2764 = vsel %vm606, %v2687, 0
      %v2767 = vsel %vm606, %v2688, 0
      %v2770 = vsel %vm606, %v2689, 0
      %v2773 = vsel %vm606, %v2690, 0
      %v2776 = vsel %vm606, %v2691, 0
      %v2779 = vsel %vm606, %v2692, 0
      %v2782 = vsel %vm606, %v2693, 0
      %v2785 = vsel %vm606, %v2694, 0
      %v2788 = vsel %vm606, %v2695, 0
      %v2791 = vsel %vm606, %v2696, 0
      %v2794 = vsel %vm606, %v2697, 0
      %v2797 = vsel %vm606, %v2698, 0
      %v2800 = vsel %vm606, %v2699, 0
      %v2803 = vsel %vm606, %v2700, 0
      %v2806 = vsel %vm606, %v2701, 0
      %v2809 = vsel %vm606, %v2702, 0
      %v2812 = vsel %vm606, %v2703, 0
      %v2815 = vsel %vm606, %v2704, 0
      %v2818 = vsel %vm606, %v2705, 0
      %v2821 = vsel %vm606, %v2706, 0
      %v2824 = vsel %vm606, %v2707, 0
      %v2827 = vsel %vm606, %v2708, 0
      %v2830 = vsel %vm606, %v2709, 0
      %v2833 = vsel %vm606, %v2710, 0
      %v2836 = vsel %vm606, %v2711, 0
      %v2839 = vsel %vm606, %v2712, 0
      %v2842 = vsel %vm606, %v2713, 0
      %v2845 = vsel %vm606, %v2714, 0
      %v2848 = vsel %vm606, %v2715, 0
      %v2851 = vsel %vm606, %v2716, 0
      %v2854 = vsel %vm606, %v2717, 0
      %v2857 = vsel %vm606, %v2718, 0
      %v2860 = vsel %vm606, %v2719, 0
      %v2863 = vsel %vm606, %v2720, 0
      %v2866 = vsel %vm606, %v2721, 0
      %v2869 = vsel %vm606, %v2722, 0
      %v2872 = vsel %vm606, %v2723, 0
      %v2875 = vsel %vm606, %v2724, 0
      %v2878 = vsel %vm606, %v2725, 0
      %v2881 = vsel %vm606, %v2726, 0
      %v2884 = vsel %vm606, %v2727, 0
      %v2887 = vsel %vm606, %v2728, 0
      %v2890 = vsel %vm606, %v2729, 0
      %v2893 = vsel %vm606, %v2730, 0
      %v2896 = vsel %vm606, %v2731, 0
      %v2899 = vsel %vm606, %v2732, 0
      %v2902 = vsel %vm606, %v2733, 0
      %v2905 = vsel %vm606, %v2734, 0
      %v2908 = vsel %vm606, %v2735, 0
      %v2911 = vsel %vm606, %v2736, 0
      %v2914 = vsel %vm606, %v2737, 0
      %v2917 = vsel %vm606, %v2738, 0
      %v2920 = vsel %vm606, %v2739, 0
      %v2923 = vsel %vm606, %v2740, 0
      %v2926 = vsel %vm606, %v2741, 0
      %v2929 = vsel %vm606, %v2742, 0
      %v2932 = vsel %vm606, %v2743, 0
      %v2935 = vsel %vm606, %v2744, 0
      %v2938 = vsel %vm606, %v2745, 0
      %v2941 = vsel %vm606, %v2746, 0
      %v2944 = vsel %vm606, %v2747, 0
      %v2947 = vsel %vm606, %v2748, 0
      %v2950 = vsel %vm606, %v2749, 0
      %v2953 = vsel %vm606, %v2750, 0
      %v2956 = vsel %vm606, %v2751, 0
      %v2959 = vsel %vm606, %v2752, 0
      %v2962 = vsel %vm606, %v2753, 0
      %v2965 = vsel %vm606, %v2754, 0
      %v2968 = vsel %vm606, %v2755, 0
      %v2971 = vsel %vm606, %v2756, 0
      %v2974 = vsel %vm606, %v2757, 0
      %v2977 = vsel %vm823, %v2759, 0
      %2979 = vmatprep.subr.mxu0 0.0
      %2980 = vmatpush1.msra.mxu0 %v2977
      %2981 = vmatprep.subr.mxu0 0.0
      %2982 = vmatpush1.msra.mxu0 0.0
      %2983 = vmatprep.subr.mxu0 0.0
      %2984 = vmatpush1.msra.mxu0 0.0
      %2985 = vmatprep.subr.mxu0 0.0
      %2986 = vmatpush1.msra.mxu0 0.0
      %2987 = vmatprep.subr.mxu0 0.0
      %2988 = vmatpush1.msra.mxu0 0.0
      %2989 = vmatprep.subr.mxu0 0.0
      %2990 = vmatpush1.msra.mxu0 0.0
      %2991 = vmatprep.subr.mxu0 0.0
      %2992 = vmatpush1.msra.mxu0 0.0
      %2993 = vmatprep.subr.mxu0 0.0
      %2994 = vmatpush1.msra.mxu0 0.0
      %2995 = vmatprep.subr.mxu0 0.0
      %2996 = vmatpush1.msra.mxu0 0.0
      %2997 = vmatprep.subr.mxu0 0.0
      %2998 = vmatpush1.msra.mxu0 0.0
      %2999 = vmatprep.subr.mxu0 0.0
      %3000 = vmatpush1.msra.mxu0 0.0
      %3001 = vmatprep.subr.mxu0 0.0
      %3002 = vmatpush1.msra.mxu0 0.0
      %3003 = vmatprep.subr.mxu0 0.0
      %3004 = vmatpush1.msra.mxu0 0.0
      %3005 = vmatprep.subr.mxu0 0.0
      %3006 = vmatpush1.msra.mxu0 0.0
      %3007 = vmatprep.subr.mxu0 0.0
      %3008 = vmatpush1.msra.mxu0 0.0
      %3009 = vmatprep.subr.mxu0 0.0
      %3010 = vmatpush1.msra.mxu0 0.0
      %3011 = vmatprep.subr.mxu0 0.0
      %3012 = vmatpush1.msra.mxu0 0.0
      %3013 = vmatprep.subr.mxu0 0.0
      %3014 = vmatpush1.msra.mxu0 0.0
      %3015 = vmatprep.subr.mxu0 0.0
      %3016 = vmatpush1.msra.mxu0 0.0
      %3017 = vmatprep.subr.mxu0 0.0
      %3018 = vmatpush1.msra.mxu0 0.0
      %3019 = vmatprep.subr.mxu0 0.0
      %3020 = vmatpush1.msra.mxu0 0.0
      %3021 = vmatprep.subr.mxu0 0.0
      %3022 = vmatpush1.msra.mxu0 0.0
      %3023 = vmatprep.subr.mxu0 0.0
      %3024 = vmatpush1.msra.mxu0 0.0
      %3025 = vmatprep.subr.mxu0 0.0
      %3026 = vmatpush1.msra.mxu0 0.0
      %3027 = vmatprep.subr.mxu0 0.0
      %3028 = vmatpush1.msra.mxu0 0.0
      %3029 = vmatprep.subr.mxu0 0.0
      %3030 = vmatpush1.msra.mxu0 0.0
      %3031 = vmatprep.subr.mxu0 0.0
      %3032 = vmatpush1.msra.mxu0 0.0
      %3033 = vmatprep.subr.mxu0 0.0
      %3034 = vmatpush1.msra.mxu0 0.0
      %3035 = vmatprep.subr.mxu0 0.0
      %3036 = vmatpush1.msra.mxu0 0.0
      %3037 = vmatprep.subr.mxu0 0.0
      %3038 = vmatpush1.msra.mxu0 0.0
      %3039 = vmatprep.subr.mxu0 0.0
      %3040 = vmatpush1.msra.mxu0 0.0
      %3041 = vmatprep.subr.mxu0 0.0
      %3042 = vmatpush1.msra.mxu0 0.0
      %3043 = vmatprep.mubr.f32.mxu0 0.0
      %3044 = vmatmul.mubr.f32.gmra.mrb[0].mxu0 %v2761
      %v3045 = vpop.f32.mrb[0].mxu0
      %v3046 = vadd.f32 0.0, %v3045
      %v3047 = vpop.f32.mrb[0].mxu0
      %3048 = vmatprep.mubr.f32.mxu0 0.0
      %3049 = vmatmul.mubr.f32.gmra.mrb[0].mxu0 %v2764
      %v3050 = vpop.f32.mrb[0].mxu0
      %v3051 = vadd.f32 0.0, %v3050
      %v3052 = vpop.f32.mrb[0].mxu0
      %3053 = vmatprep.mubr.f32.mxu0 0.0
      %3054 = vmatmul.mubr.f32.gmra.mrb[0].mxu0 %v2767
      %v3055 = vpop.f32.mrb[0].mxu0
      %v3056 = vadd.f32 0.0, %v3055
      %v3057 = vpop.f32.mrb[0].mxu0
      %3058 = vmatprep.mubr.f32.mxu0 0.0
      %3059 = vmatmul.mubr.f32.gmra.mrb[0].mxu0 %v2770
      %v3060 = vpop.f32.mrb[0].mxu0
      %v3061 = vadd.f32 0.0, %v3060
      %v3062 = vpop.f32.mrb[0].mxu0
      %3063 = vmatprep.mubr.f32.mxu0 0.0
      %3064 = vmatmul.mubr.f32.gmra.mrb[0].mxu0 %v2773
      %v3065 = vpop.f32.mrb[0].mxu0
      %v3066 = vadd.f32 0.0, %v3065
      %v3067 = vpop.f32.mrb[0].mxu0
      %3068 = vmatprep.mubr.f32.mxu0 0.0
      %3069 = vmatmul.mubr.f32.gmra.mrb[0].mxu0 %v2776
      %v3070 = vpop.f32.mrb[0].mxu0
      %v3071 = vadd.f32 0.0, %v3070
      %v3072 = vpop.f32.mrb[0].mxu0
      %3073 = vmatprep.mubr.f32.mxu0 0.0
      %3074 = vmatmul.mubr.f32.gmra.mrb[0].mxu0 %v2779
      %v3075 = vpop.f32.mrb[0].mxu0
      %v3076 = vadd.f32 0.0, %v3075
      %v3077 = vpop.f32.mrb[0].mxu0
      %3078 = vmatprep.mubr.f32.mxu0 0.0
      %3079 = vmatmul.mubr.f32.gmra.mrb[0].mxu0 %v2782
      %v3080 = vpop.f32.mrb[0].mxu0
      %v3081 = vadd.f32 0.0, %v3080
      %v3082 = vpop.f32.mrb[0].mxu0
      %3083 = vmatprep.mubr.f32.mxu0 0.0
      %3084 = vmatmul.mubr.f32.gmra.mrb[0].mxu0 %v2785
      %v3085 = vpop.f32.mrb[0].mxu0
      %v3086 = vadd.f32 0.0, %v3085
      %v3087 = vpop.f32.mrb[0].mxu0
      %3088 = vmatprep.mubr.f32.mxu0 0.0
      %3089 = vmatmul.mubr.f32.gmra.mrb[0].mxu0 %v2788
      %v3090 = vpop.f32.mrb[0].mxu0
      %v3091 = vadd.f32 0.0, %v3090
      %v3092 = vpop.f32.mrb[0].mxu0
      %3093 = vmatprep.mubr.f32.mxu0 0.0
      %3094 = vmatmul.mubr.f32.gmra.mrb[0].mxu0 %v2791
      %v3095 = vpop.f32.mrb[0].mxu0
      %v3096 = vadd.f32 0.0, %v3095
      %v3097 = vpop.f32.mrb[0].mxu0
      %3098 = vmatprep.mubr.f32.mxu0 0.0
      %3099 = vmatmul.mubr.f32.gmra.mrb[0].mxu0 %v2794
      %v3100 = vpop.f32.mrb[0].mxu0
      %v3101 = vadd.f32 0.0, %v3100
      %v3102 = vpop.f32.mrb[0].mxu0
      %3103 = vmatprep.mubr.f32.mxu0 0.0
      %3104 = vmatmul.mubr.f32.gmra.mrb[0].mxu0 %v2797
      %v3105 = vpop.f32.mrb[0].mxu0
      %v3106 = vadd.f32 0.0, %v3105
      %v3107 = vpop.f32.mrb[0].mxu0
      %3108 = vmatprep.mubr.f32.mxu0 0.0
      %3109 = vmatmul.mubr.f32.gmra.mrb[0].mxu0 %v2800
      %v3110 = vpop.f32.mrb[0].mxu0
      %v3111 = vadd.f32 0.0, %v3110
      %v3112 = vpop.f32.mrb[0].mxu0
      %3113 = vmatprep.mubr.f32.mxu0 0.0
      %3114 = vmatmul.mubr.f32.gmra.mrb[0].mxu0 %v2803
      %v3115 = vpop.f32.mrb[0].mxu0
      %v3116 = vadd.f32 0.0, %v3115
      %v3117 = vpop.f32.mrb[0].mxu0
      %3118 = vmatprep.mubr.f32.mxu0 0.0
      %3119 = vmatmul.mubr.f32.gmra.mrb[0].mxu0 %v2806
      %v3120 = vpop.f32.mrb[0].mxu0
      %v3121 = vadd.f32 0.0, %v3120
      %v3122 = vpop.f32.mrb[0].mxu0
      %3123 = vmatprep.mubr.f32.mxu0 0.0
      %3124 = vmatmul.mubr.f32.gmra.mrb[0].mxu0 %v2809
      %v3125 = vpop.f32.mrb[0].mxu0
      %v3126 = vadd.f32 0.0, %v3125
      %v3127 = vpop.f32.mrb[0].mxu0
      %3128 = vmatprep.mubr.f32.mxu0 0.0
      %3129 = vmatmul.mubr.f32.gmra.mrb[0].mxu0 %v2812
      %v3130 = vpop.f32.mrb[0].mxu0
      %v3131 = vadd.f32 0.0, %v3130
      %v3132 = vpop.f32.mrb[0].mxu0
      %3133 = vmatprep.mubr.f32.mxu0 0.0
      %3134 = vmatmul.mubr.f32.gmra.mrb[0].mxu0 %v2815
      %v3135 = vpop.f32.mrb[0].mxu0
      %v3136 = vadd.f32 0.0, %v3135
      %v3137 = vpop.f32.mrb[0].mxu0
      %3138 = vmatprep.mubr.f32.mxu0 0.0
      %3139 = vmatmul.mubr.f32.gmra.mrb[0].mxu0 %v2818
      %v3140 = vpop.f32.mrb[0].mxu0
      %v3141 = vadd.f32 0.0, %v3140
      %v3142 = vpop.f32.mrb[0].mxu0
      %3143 = vmatprep.mubr.f32.mxu0 0.0
      %3144 = vmatmul.mubr.f32.gmra.mrb[0].mxu0 %v2821
      %v3145 = vpop.f32.mrb[0].mxu0
      %v3146 = vadd.f32 0.0, %v3145
      %v3147 = vpop.f32.mrb[0].mxu0
      %3148 = vmatprep.mubr.f32.mxu0 0.0
      %3149 = vmatmul.mubr.f32.gmra.mrb[0].mxu0 %v2824
      %v3150 = vpop.f32.mrb[0].mxu0
      %v3151 = vadd.f32 0.0, %v3150
      %v3152 = vpop.f32.mrb[0].mxu0
      %3153 = vmatprep.mubr.f32.mxu0 0.0
      %3154 = vmatmul.mubr.f32.gmra.mrb[0].mxu0 %v2827
      %v3155 = vpop.f32.mrb[0].mxu0
      %v3156 = vadd.f32 0.0, %v3155
      %v3157 = vpop.f32.mrb[0].mxu0
      %3158 = vmatprep.mubr.f32.mxu0 0.0
      %3159 = vmatmul.mubr.f32.gmra.mrb[0].mxu0 %v2830
      %v3160 = vpop.f32.mrb[0].mxu0
      %v3161 = vadd.f32 0.0, %v3160
      %v3162 = vpop.f32.mrb[0].mxu0
      %3163 = vmatprep.mubr.f32.mxu0 0.0
      %3164 = vmatmul.mubr.f32.gmra.mrb[0].mxu0 %v2833
      %v3165 = vpop.f32.mrb[0].mxu0
      %v3166 = vadd.f32 0.0, %v3165
      %v3167 = vpop.f32.mrb[0].mxu0
      %3168 = vmatprep.mubr.f32.mxu0 0.0
      %3169 = vmatmul.mubr.f32.gmra.mrb[0].mxu0 %v2836
      %v3170 = vpop.f32.mrb[0].mxu0
      %v3171 = vadd.f32 0.0, %v3170
      %v3172 = vpop.f32.mrb[0].mxu0
      %3173 = vmatprep.mubr.f32.mxu0 0.0
      %3174 = vmatmul.mubr.f32.gmra.mrb[0].mxu0 %v2839
      %v3175 = vpop.f32.mrb[0].mxu0
      %v3176 = vadd.f32 0.0, %v3175
      %v3177 = vpop.f32.mrb[0].mxu0
      %3178 = vmatprep.mubr.f32.mxu0 0.0
      %3179 = vmatmul.mubr.f32.gmra.mrb[0].mxu0 %v2842
      %v3180 = vpop.f32.mrb[0].mxu0
      %v3181 = vadd.f32 0.0, %v3180
      %v3182 = vpop.f32.mrb[0].mxu0
      %3183 = vmatprep.mubr.f32.mxu0 0.0
      %3184 = vmatmul.mubr.f32.gmra.mrb[0].mxu0 %v2845
      %v3185 = vpop.f32.mrb[0].mxu0
      %v3186 = vadd.f32 0.0, %v3185
      %v3187 = vpop.f32.mrb[0].mxu0
      %3188 = vmatprep.mubr.f32.mxu0 0.0
      %3189 = vmatmul.mubr.f32.gmra.mrb[0].mxu0 %v2848
      %v3190 = vpop.f32.mrb[0].mxu0
      %v3191 = vadd.f32 0.0, %v3190
      %v3192 = vpop.f32.mrb[0].mxu0
      %3193 = vmatprep.mubr.f32.mxu0 0.0
      %3194 = vmatmul.mubr.f32.gmra.mrb[0].mxu0 %v2851
      %v3195 = vpop.f32.mrb[0].mxu0
      %v3196 = vadd.f32 0.0, %v3195
      %v3197 = vpop.f32.mrb[0].mxu0
      %3198 = vmatprep.mubr.f32.mxu0 0.0
      %3199 = vmatmul.mubr.f32.gmra.mrb[0].mxu0 %v2854
      %v3200 = vpop.f32.mrb[0].mxu0
      %v3201 = vadd.f32 0.0, %v3200
      %v3202 = vpop.f32.mrb[0].mxu0
      %3203 = vmatprep.mubr.f32.mxu0 0.0
      %3204 = vmatmul.mubr.f32.gmra.mrb[0].mxu0 %v2857
      %v3205 = vpop.f32.mrb[0].mxu0
      %v3206 = vadd.f32 0.0, %v3205
      %v3207 = vpop.f32.mrb[0].mxu0
      %3208 = vmatprep.mubr.f32.mxu0 0.0
      %3209 = vmatmul.mubr.f32.gmra.mrb[0].mxu0 %v2860
      %v3210 = vpop.f32.mrb[0].mxu0
      %v3211 = vadd.f32 0.0, %v3210
      %v3212 = vpop.f32.mrb[0].mxu0
      %3213 = vmatprep.mubr.f32.mxu0 0.0
      %3214 = vmatmul.mubr.f32.gmra.mrb[0].mxu0 %v2863
      %v3215 = vpop.f32.mrb[0].mxu0
      %v3216 = vadd.f32 0.0, %v3215
      %v3217 = vpop.f32.mrb[0].mxu0
      %3218 = vmatprep.mubr.f32.mxu0 0.0
      %3219 = vmatmul.mubr.f32.gmra.mrb[0].mxu0 %v2866
      %v3220 = vpop.f32.mrb[0].mxu0
      %v3221 = vadd.f32 0.0, %v3220
      %v3222 = vpop.f32.mrb[0].mxu0
      %3223 = vmatprep.mubr.f32.mxu0 0.0
      %3224 = vmatmul.mubr.f32.gmra.mrb[0].mxu0 %v2869
      %v3225 = vpop.f32.mrb[0].mxu0
      %v3226 = vadd.f32 0.0, %v3225
      %v3227 = vpop.f32.mrb[0].mxu0
      %3228 = vmatprep.mubr.f32.mxu0 0.0
      %3229 = vmatmul.mubr.f32.gmra.mrb[0].mxu0 %v2872
      %v3230 = vpop.f32.mrb[0].mxu0
      %v3231 = vadd.f32 0.0, %v3230
      %v3232 = vpop.f32.mrb[0].mxu0
      %3233 = vmatprep.mubr.f32.mxu0 0.0
      %3234 = vmatmul.mubr.f32.gmra.mrb[0].mxu0 %v2875
      %v3235 = vpop.f32.mrb[0].mxu0
      %v3236 = vadd.f32 0.0, %v3235
      %v3237 = vpop.f32.mrb[0].mxu0
      %3238 = vmatprep.mubr.f32.mxu0 0.0
      %3239 = vmatmul.mubr.f32.gmra.mrb[0].mxu0 %v2878
      %v3240 = vpop.f32.mrb[0].mxu0
      %v3241 = vadd.f32 0.0, %v3240
      %v3242 = vpop.f32.mrb[0].mxu0
      %3243 = vmatprep.mubr.f32.mxu0 0.0
      %3244 = vmatmul.mubr.f32.gmra.mrb[0].mxu0 %v2881
      %v3245 = vpop.f32.mrb[0].mxu0
      %v3246 = vadd.f32 0.0, %v3245
      %v3247 = vpop.f32.mrb[0].mxu0
      %3248 = vmatprep.mubr.f32.mxu0 0.0
      %3249 = vmatmul.mubr.f32.gmra.mrb[0].mxu0 %v2884
      %v3250 = vpop.f32.mrb[0].mxu0
      %v3251 = vadd.f32 0.0, %v3250
      %v3252 = vpop.f32.mrb[0].mxu0
      %3253 = vmatprep.mubr.f32.mxu0 0.0
      %3254 = vmatmul.mubr.f32.gmra.mrb[0].mxu0 %v2887
      %v3255 = vpop.f32.mrb[0].mxu0
      %v3256 = vadd.f32 0.0, %v3255
      %v3257 = vpop.f32.mrb[0].mxu0
      %3258 = vmatprep.mubr.f32.mxu0 0.0
      %3259 = vmatmul.mubr.f32.gmra.mrb[0].mxu0 %v2890
      %v3260 = vpop.f32.mrb[0].mxu0
      %v3261 = vadd.f32 0.0, %v3260
      %v3262 = vpop.f32.mrb[0].mxu0
      %3263 = vmatprep.mubr.f32.mxu0 0.0
      %3264 = vmatmul.mubr.f32.gmra.mrb[0].mxu0 %v2893
      %v3265 = vpop.f32.mrb[0].mxu0
      %v3266 = vadd.f32 0.0, %v3265
      %v3267 = vpop.f32.mrb[0].mxu0
      %3268 = vmatprep.mubr.f32.mxu0 0.0
      %3269 = vmatmul.mubr.f32.gmra.mrb[0].mxu0 %v2896
      %v3270 = vpop.f32.mrb[0].mxu0
      %v3271 = vadd.f32 0.0, %v3270
      %v3272 = vpop.f32.mrb[0].mxu0
      %3273 = vmatprep.mubr.f32.mxu0 0.0
      %3274 = vmatmul.mubr.f32.gmra.mrb[0].mxu0 %v2899
      %v3275 = vpop.f32.mrb[0].mxu0
      %v3276 = vadd.f32 0.0, %v3275
      %v3277 = vpop.f32.mrb[0].mxu0
      %3278 = vmatprep.mubr.f32.mxu0 0.0
      %3279 = vmatmul.mubr.f32.gmra.mrb[0].mxu0 %v2902
      %v3280 = vpop.f32.mrb[0].mxu0
      %v3281 = vadd.f32 0.0, %v3280
      %v3282 = vpop.f32.mrb[0].mxu0
      %3283 = vmatprep.mubr.f32.mxu0 0.0
      %3284 = vmatmul.mubr.f32.gmra.mrb[0].mxu0 %v2905
      %v3285 = vpop.f32.mrb[0].mxu0
      %v3286 = vadd.f32 0.0, %v3285
      %v3287 = vpop.f32.mrb[0].mxu0
      %3288 = vmatprep.mubr.f32.mxu0 0.0
      %3289 = vmatmul.mubr.f32.gmra.mrb[0].mxu0 %v2908
      %v3290 = vpop.f32.mrb[0].mxu0
      %v3291 = vadd.f32 0.0, %v3290
      %v3292 = vpop.f32.mrb[0].mxu0
      %3293 = vmatprep.mubr.f32.mxu0 0.0
      %3294 = vmatmul.mubr.f32.gmra.mrb[0].mxu0 %v2911
      %v3295 = vpop.f32.mrb[0].mxu0
      %v3296 = vadd.f32 0.0, %v3295
      %v3297 = vpop.f32.mrb[0].mxu0
      %3298 = vmatprep.mubr.f32.mxu0 0.0
      %3299 = vmatmul.mubr.f32.gmra.mrb[0].mxu0 %v2914
      %v3300 = vpop.f32.mrb[0].mxu0
      %v3301 = vadd.f32 0.0, %v3300
      %v3302 = vpop.f32.mrb[0].mxu0
      %3303 = vmatprep.mubr.f32.mxu0 0.0
      %3304 = vmatmul.mubr.f32.gmra.mrb[0].mxu0 %v2917
      %v3305 = vpop.f32.mrb[0].mxu0
      %v3306 = vadd.f32 0.0, %v3305
      %v3307 = vpop.f32.mrb[0].mxu0
      %3308 = vmatprep.mubr.f32.mxu0 0.0
      %3309 = vmatmul.mubr.f32.gmra.mrb[0].mxu0 %v2920
      %v3310 = vpop.f32.mrb[0].mxu0
      %v3311 = vadd.f32 0.0, %v3310
      %v3312 = vpop.f32.mrb[0].mxu0
      %3313 = vmatprep.mubr.f32.mxu0 0.0
      %3314 = vmatmul.mubr.f32.gmra.mrb[0].mxu0 %v2923
      %v3315 = vpop.f32.mrb[0].mxu0
      %v3316 = vadd.f32 0.0, %v3315
      %v3317 = vpop.f32.mrb[0].mxu0
      %3318 = vmatprep.mubr.f32.mxu0 0.0
      %3319 = vmatmul.mubr.f32.gmra.mrb[0].mxu0 %v2926
      %v3320 = vpop.f32.mrb[0].mxu0
      %v3321 = vadd.f32 0.0, %v3320
      %v3322 = vpop.f32.mrb[0].mxu0
      %3323 = vmatprep.mubr.f32.mxu0 0.0
      %3324 = vmatmul.mubr.f32.gmra.mrb[0].mxu0 %v2929
      %v3325 = vpop.f32.mrb[0].mxu0
      %v3326 = vadd.f32 0.0, %v3325
      %v3327 = vpop.f32.mrb[0].mxu0
      %3328 = vmatprep.mubr.f32.mxu0 0.0
      %3329 = vmatmul.mubr.f32.gmra.mrb[0].mxu0 %v2932
      %v3330 = vpop.f32.mrb[0].mxu0
      %v3331 = vadd.f32 0.0, %v3330
      %v3332 = vpop.f32.mrb[0].mxu0
      %3333 = vmatprep.mubr.f32.mxu0 0.0
      %3334 = vmatmul.mubr.f32.gmra.mrb[0].mxu0 %v2935
      %v3335 = vpop.f32.mrb[0].mxu0
      %v3336 = vadd.f32 0.0, %v3335
      %v3337 = vpop.f32.mrb[0].mxu0
      %3338 = vmatprep.mubr.f32.mxu0 0.0
      %3339 = vmatmul.mubr.f32.gmra.mrb[0].mxu0 %v2938
      %v3340 = vpop.f32.mrb[0].mxu0
      %v3341 = vadd.f32 0.0, %v3340
      %v3342 = vpop.f32.mrb[0].mxu0
      %3343 = vmatprep.mubr.f32.mxu0 0.0
      %3344 = vmatmul.mubr.f32.gmra.mrb[0].mxu0 %v2941
      %v3345 = vpop.f32.mrb[0].mxu0
      %v3346 = vadd.f32 0.0, %v3345
      %v3347 = vpop.f32.mrb[0].mxu0
      %3348 = vmatprep.mubr.f32.mxu0 0.0
      %3349 = vmatmul.mubr.f32.gmra.mrb[0].mxu0 %v2944
      %v3350 = vpop.f32.mrb[0].mxu0
      %v3351 = vadd.f32 0.0, %v3350
      %v3352 = vpop.f32.mrb[0].mxu0
      %3353 = vmatprep.mubr.f32.mxu0 0.0
      %3354 = vmatmul.mubr.f32.gmra.mrb[0].mxu0 %v2947
      %v3355 = vpop.f32.mrb[0].mxu0
      %v3356 = vadd.f32 0.0, %v3355
      %v3357 = vpop.f32.mrb[0].mxu0
      %3358 = vmatprep.mubr.f32.mxu0 0.0
      %3359 = vmatmul.mubr.f32.gmra.mrb[0].mxu0 %v2950
      %v3360 = vpop.f32.mrb[0].mxu0
      %v3361 = vadd.f32 0.0, %v3360
      %v3362 = vpop.f32.mrb[0].mxu0
      %3363 = vmatprep.mubr.f32.mxu0 0.0
      %3364 = vmatmul.mubr.f32.gmra.mrb[0].mxu0 %v2953
      %v3365 = vpop.f32.mrb[0].mxu0
      %v3366 = vadd.f32 0.0, %v3365
      %v3367 = vpop.f32.mrb[0].mxu0
      %3368 = vmatprep.mubr.f32.mxu0 0.0
      %3369 = vmatmul.mubr.f32.gmra.mrb[0].mxu0 %v2956
      %v3370 = vpop.f32.mrb[0].mxu0
      %v3371 = vadd.f32 0.0, %v3370
      %v3372 = vpop.f32.mrb[0].mxu0
      %3373 = vmatprep.mubr.f32.mxu0 0.0
      %3374 = vmatmul.mubr.f32.gmra.mrb[0].mxu0 %v2959
      %v3375 = vpop.f32.mrb[0].mxu0
      %v3376 = vadd.f32 0.0, %v3375
      %v3377 = vpop.f32.mrb[0].mxu0
      %3378 = vmatprep.mubr.f32.mxu0 0.0
      %3379 = vmatmul.mubr.f32.gmra.mrb[0].mxu0 %v2962
      %v3380 = vpop.f32.mrb[0].mxu0
      %v3381 = vadd.f32 0.0, %v3380
      %v3382 = vpop.f32.mrb[0].mxu0
      %3383 = vmatprep.mubr.f32.mxu0 0.0
      %3384 = vmatmul.mubr.f32.gmra.mrb[0].mxu0 %v2965
      %v3385 = vpop.f32.mrb[0].mxu0
      %v3386 = vadd.f32 0.0, %v3385
      %v3387 = vpop.f32.mrb[0].mxu0
      %3388 = vmatprep.mubr.f32.mxu0 0.0
      %3389 = vmatmul.mubr.f32.gmra.mrb[0].mxu0 %v2968
      %v3390 = vpop.f32.mrb[0].mxu0
      %v3391 = vadd.f32 0.0, %v3390
      %v3392 = vpop.f32.mrb[0].mxu0
      %3393 = vmatprep.mubr.f32.mxu0 0.0
      %3394 = vmatmul.mubr.f32.gmra.mrb[0].mxu0 %v2971
      %v3395 = vpop.f32.mrb[0].mxu0
      %v3396 = vadd.f32 0.0, %v3395
      %v3397 = vpop.f32.mrb[0].mxu0
      %3398 = vmatprep.mubr.f32.mxu0 0.0
      %3399 = vmatmul.mubr.f32.gmra.mrb[0].mxu0 %v2974
      %v3400 = vpop.f32.mrb[0].mxu0
      %v3401 = vadd.f32 0.0, %v3400
      %v3402 = vpop.f32.mrb[0].mxu0
      %3403 = vdwg.mxu0
      %v3404 = vadd.f32 %v2614, %v3046
      %v3405 = vadd.f32 %v2615, %v3051
      %v3406 = vadd.f32 %v2616, %v3056
      %v3407 = vadd.f32 %v2617, %v3061
      %v3408 = vadd.f32 %v2618, %v3066
      %v3409 = vadd.f32 %v2619, %v3071
      %v3410 = vadd.f32 %v2620, %v3076
      %v3411 = vadd.f32 %v2621, %v3081
      %v3412 = vadd.f32 %v2622, %v3086
      %v3413 = vadd.f32 %v2623, %v3091
      %v3414 = vadd.f32 %v2624, %v3096
      %v3415 = vadd.f32 %v2625, %v3101
      %v3416 = vadd.f32 %v2626, %v3106
      %v3417 = vadd.f32 %v2627, %v3111
      %v3418 = vadd.f32 %v2628, %v3116
      %v3419 = vadd.f32 %v2629, %v3121
      %v3420 = vadd.f32 %v2630, %v3126
      %v3421 = vadd.f32 %v2631, %v3131
      %v3422 = vadd.f32 %v2632, %v3136
      %v3423 = vadd.f32 %v2633, %v3141
      %v3424 = vadd.f32 %v2634, %v3146
      %v3425 = vadd.f32 %v2635, %v3151
      %v3426 = vadd.f32 %v2636, %v3156
      %v3427 = vadd.f32 %v2637, %v3161
      %v3428 = vadd.f32 %v2638, %v3166
      %v3429 = vadd.f32 %v2639, %v3171
      %v3430 = vadd.f32 %v2640, %v3176
      %v3431 = vadd.f32 %v2641, %v3181
      %v3432 = vadd.f32 %v2642, %v3186
      %v3433 = vadd.f32 %v2643, %v3191
      %v3434 = vadd.f32 %v2644, %v3196
      %v3435 = vadd.f32 %v2645, %v3201
      %v3436 = vadd.f32 %v2646, %v3206
      %v3437 = vadd.f32 %v2647, %v3211
      %v3438 = vadd.f32 %v2648, %v3216
      %v3439 = vadd.f32 %v2649, %v3221
      %v3440 = vadd.f32 %v2650, %v3226
      %v3441 = vadd.f32 %v2651, %v3231
      %v3442 = vadd.f32 %v2652, %v3236
      %v3443 = vadd.f32 %v2653, %v3241
      %v3444 = vadd.f32 %v2654, %v3246
      %v3445 = vadd.f32 %v2655, %v3251
      %v3446 = vadd.f32 %v2656, %v3256
      %v3447 = vadd.f32 %v2657, %v3261
      %v3448 = vadd.f32 %v2658, %v3266
      %v3449 = vadd.f32 %v2659, %v3271
      %v3450 = vadd.f32 %v2660, %v3276
      %v3451 = vadd.f32 %v2661, %v3281
      %v3452 = vadd.f32 %v2662, %v3286
      %v3453 = vadd.f32 %v2663, %v3291
      %v3454 = vadd.f32 %v2664, %v3296
      %v3455 = vadd.f32 %v2665, %v3301
      %v3456 = vadd.f32 %v2666, %v3306
      %v3457 = vadd.f32 %v2667, %v3311
      %v3458 = vadd.f32 %v2668, %v3316
      %v3459 = vadd.f32 %v2669, %v3321
      %v3460 = vadd.f32 %v2670, %v3326
      %v3461 = vadd.f32 %v2671, %v3331
      %v3462 = vadd.f32 %v2672, %v3336
      %v3463 = vadd.f32 %v2673, %v3341
      %v3464 = vadd.f32 %v2674, %v3346
      %v3465 = vadd.f32 %v2675, %v3351
      %v3466 = vadd.f32 %v2676, %v3356
      %v3467 = vadd.f32 %v2677, %v3361
      %v3468 = vadd.f32 %v2678, %v3366
      %v3469 = vadd.f32 %v2679, %v3371
      %v3470 = vadd.f32 %v2680, %v3376
      %v3471 = vadd.f32 %v2681, %v3381
      %v3472 = vadd.f32 %v2682, %v3386
      %v3473 = vadd.f32 %v2683, %v3391
      %v3474 = vadd.f32 %v2684, %v3396
      %v3475 = vadd.f32 %v2685, %v3401
      %v3476 = vld [vmem:[%s300 + $0x28] sm:$0xff]
      %v3477 = vld [vmem:[%s300 + $0x30] sm:$0xff]
      %v3478 = vld [vmem:[%s300 + $0x38] sm:$0xff]
      %v3479 = vld [vmem:[%s300 + $0x40] sm:$0xff]
      %v3480 = vld [vmem:[%s300 + $0x48] sm:$0xff]
      %v3481 = vld [vmem:[%s300 + $0x50] sm:$0xff]
      %v3482 = vld [vmem:[%s300 + $0x58] sm:$0xff]
      %v3483 = vld [vmem:[%s300 + $0x60] sm:$0xff]
      %v3484 = vld [vmem:[%s300 + $0x68] sm:$0xff]
      %v3485 = vld [vmem:[%s300 + $0x70] sm:$0xff]
      %v3486 = vld [vmem:[%s300 + $0x78] sm:$0xff]
      %v3487 = vld [vmem:[%s300 + $0x80] sm:$0xff]
      %v3488 = vld [vmem:[%s300 + $0x88] sm:$0xff]
      %v3489 = vld [vmem:[%s300 + $0x90] sm:$0xff]
      %v3490 = vld [vmem:[%s300 + $0x98] sm:$0xff]
      %v3491 = vld [vmem:[%s300 + $0xa0] sm:$0xff]
      %v3492 = vld [vmem:[%s300 + $0xa8] sm:$0xff]
      %v3493 = vld [vmem:[%s300 + $0xb0] sm:$0xff]
      %v3494 = vld [vmem:[%s300 + $0xb8] sm:$0xff]
      %v3495 = vld [vmem:[%s300 + $0xc0] sm:$0xff]
      %v3496 = vld [vmem:[%s300 + $0xc8] sm:$0xff]
      %v3497 = vld [vmem:[%s300 + $0xd0] sm:$0xff]
      %v3498 = vld [vmem:[%s300 + $0xd8] sm:$0xff]
      %v3499 = vld [vmem:[%s300 + $0xe0] sm:$0xff]
      %v3500 = vld [vmem:[%s300 + $0xe8] sm:$0xff]
      %v3501 = vld [vmem:[%s300 + $0xf0] sm:$0xff]
      %v3502 = vld [vmem:[%s300 + $0xf8] sm:$0xff]
      %v3503 = vld [vmem:[%s300 + $0x100] sm:$0xff]
      %v3504 = vld [vmem:[%s300 + $0x108] sm:$0xff]
      %v3505 = vld [vmem:[%s300 + $0x110] sm:$0xff]
      %v3506 = vld [vmem:[%s300 + $0x118] sm:$0xff]
      %v3507 = vld [vmem:[%s300 + $0x120] sm:$0xff]
      %v3508 = vld [vmem:[%s300 + $0x128] sm:$0xff]
      %v3509 = vld [vmem:[%s300 + $0x130] sm:$0xff]
      %v3510 = vld [vmem:[%s300 + $0x138] sm:$0xff]
      %v3511 = vld [vmem:[%s300 + $0x140] sm:$0xff]
      %v3512 = vld [vmem:[%s300 + $0x148] sm:$0xff]
      %v3513 = vld [vmem:[%s300 + $0x150] sm:$0xff]
      %v3514 = vld [vmem:[%s300 + $0x158] sm:$0xff]
      %v3515 = vld [vmem:[%s300 + $0x160] sm:$0xff]
      %v3516 = vld [vmem:[%s300 + $0x168] sm:$0xff]
      %v3517 = vld [vmem:[%s300 + $0x170] sm:$0xff]
      %v3518 = vld [vmem:[%s300 + $0x178] sm:$0xff]
      %v3519 = vld [vmem:[%s300 + $0x180] sm:$0xff]
      %v3520 = vld [vmem:[%s300 + $0x188] sm:$0xff]
      %v3521 = vld [vmem:[%s300 + $0x190] sm:$0xff]
      %v3522 = vld [vmem:[%s300 + $0x198] sm:$0xff]
      %v3523 = vld [vmem:[%s300 + $0x1a0] sm:$0xff]
      %v3524 = vld [vmem:[%s300 + $0x1a8] sm:$0xff]
      %v3525 = vld [vmem:[%s300 + $0x1b0] sm:$0xff]
      %v3526 = vld [vmem:[%s300 + $0x1b8] sm:$0xff]
      %v3527 = vld [vmem:[%s300 + $0x1c0] sm:$0xff]
      %v3528 = vld [vmem:[%s300 + $0x1c8] sm:$0xff]
      %v3529 = vld [vmem:[%s300 + $0x1d0] sm:$0xff]
      %v3530 = vld [vmem:[%s300 + $0x1d8] sm:$0xff]
      %v3531 = vld [vmem:[%s300 + $0x1e0] sm:$0xff]
      %v3532 = vld [vmem:[%s300 + $0x1e8] sm:$0xff]
      %v3533 = vld [vmem:[%s300 + $0x1f0] sm:$0xff]
      %v3534 = vld [vmem:[%s300 + $0x1f8] sm:$0xff]
      %v3535 = vld [vmem:[%s300 + $0x200] sm:$0xff]
      %v3536 = vld [vmem:[%s300 + $0x208] sm:$0xff]
      %v3537 = vld [vmem:[%s300 + $0x210] sm:$0xff]
      %v3538 = vld [vmem:[%s300 + $0x218] sm:$0xff]
      %v3539 = vld [vmem:[%s300 + $0x220] sm:$0xff]
      %v3540 = vld [vmem:[%s300 + $0x228] sm:$0xff]
      %v3541 = vld [vmem:[%s300 + $0x230] sm:$0xff]
      %v3542 = vld [vmem:[%s300 + $0x238] sm:$0xff]
      %v3543 = vld [vmem:[%s300 + $0x240] sm:$0xff]
      %v3544 = vld [vmem:[%s300 + $0x248] sm:$0xff]
      %v3545 = vld [vmem:[%s300 + $0x250] sm:$0xff]
      %v3546 = vld [vmem:[%s300 + $0x258] sm:$0xff]
      %v3547 = vld [vmem:[%s300 + $0x260] sm:$0xff]
      %s3548 = scalar_lea.vmem %s1, 16
      %v3549 = vld [vmem:[%s3548] sm:$0x7]
      %v3551 = vsel %vm606, %v3476, 0
      %v3554 = vsel %vm606, %v3477, 0
      %v3557 = vsel %vm606, %v3478, 0
      %v3560 = vsel %vm606, %v3479, 0
      %v3563 = vsel %vm606, %v3480, 0
      %v3566 = vsel %vm606, %v3481, 0
      %v3569 = vsel %vm606, %v3482, 0
      %v3572 = vsel %vm606, %v3483, 0
      %v3575 = vsel %vm606, %v3484, 0
      %v3578 = vsel %vm606, %v3485, 0
      %v3581 = vsel %vm606, %v3486, 0
      %v3584 = vsel %vm606, %v3487, 0
      %v3587 = vsel %vm606, %v3488, 0
      %v3590 = vsel %vm606, %v3489, 0
      %v3593 = vsel %vm606, %v3490, 0
      %v3596 = vsel %vm606, %v3491, 0
      %v3599 = vsel %vm606, %v3492, 0
      %v3602 = vsel %vm606, %v3493, 0
      %v3605 = vsel %vm606, %v3494, 0
      %v3608 = vsel %vm606, %v3495, 0
      %v3611 = vsel %vm606, %v3496, 0
      %v3614 = vsel %vm606, %v3497, 0
      %v3617 = vsel %vm606, %v3498, 0
      %v3620 = vsel %vm606, %v3499, 0
      %v3623 = vsel %vm606, %v3500, 0
      %v3626 = vsel %vm606, %v3501, 0
      %v3629 = vsel %vm606, %v3502, 0
      %v3632 = vsel %vm606, %v3503, 0
      %v3635 = vsel %vm606, %v3504, 0
      %v3638 = vsel %vm606, %v3505, 0
      %v3641 = vsel %vm606, %v3506, 0
      %v3644 = vsel %vm606, %v3507, 0
      %v3647 = vsel %vm606, %v3508, 0
      %v3650 = vsel %vm606, %v3509, 0
      %v3653 = vsel %vm606, %v3510, 0
      %v3656 = vsel %vm606, %v3511, 0
      %v3659 = vsel %vm606, %v3512, 0
      %v3662 = vsel %vm606, %v3513, 0
      %v3665 = vsel %vm606, %v3514, 0
      %v3668 = vsel %vm606, %v3515, 0
      %v3671 = vsel %vm606, %v3516, 0
      %v3674 = vsel %vm606, %v3517, 0
      %v3677 = vsel %vm606, %v3518, 0
      %v3680 = vsel %vm606, %v3519, 0
      %v3683 = vsel %vm606, %v3520, 0
      %v3686 = vsel %vm606, %v3521, 0
      %v3689 = vsel %vm606, %v3522, 0
      %v3692 = vsel %vm606, %v3523, 0
      %v3695 = vsel %vm606, %v3524, 0
      %v3698 = vsel %vm606, %v3525, 0
      %v3701 = vsel %vm606, %v3526, 0
      %v3704 = vsel %vm606, %v3527, 0
      %v3707 = vsel %vm606, %v3528, 0
      %v3710 = vsel %vm606, %v3529, 0
      %v3713 = vsel %vm606, %v3530, 0
      %v3716 = vsel %vm606, %v3531, 0
      %v3719 = vsel %vm606, %v3532, 0
      %v3722 = vsel %vm606, %v3533, 0
      %v3725 = vsel %vm606, %v3534, 0
      %v3728 = vsel %vm606, %v3535, 0
      %v3731 = vsel %vm606, %v3536, 0
      %v3734 = vsel %vm606, %v3537, 0
      %v3737 = vsel %vm606, %v3538, 0
      %v3740 = vsel %vm606, %v3539, 0
      %v3743 = vsel %vm606, %v3540, 0
      %v3746 = vsel %vm606, %v3541, 0
      %v3749 = vsel %vm606, %v3542, 0
      %v3752 = vsel %vm606, %v3543, 0
      %v3755 = vsel %vm606, %v3544, 0
      %v3758 = vsel %vm606, %v3545, 0
      %v3761 = vsel %vm606, %v3546, 0
      %v3764 = vsel %vm606, %v3547, 0
      %v3767 = vsel %vm823, %v3549, 0
      %3769 = vmatprep.subr.mxu0 0.0
      %3770 = vmatpush1.msra.mxu0 %v3767
      %3771 = vmatprep.subr.mxu0 0.0
      %3772 = vmatpush1.msra.mxu0 0.0
      %3773 = vmatprep.subr.mxu0 0.0
      %3774 = vmatpush1.msra.mxu0 0.0
      %3775 = vmatprep.subr.mxu0 0.0
      %3776 = vmatpush1.msra.mxu0 0.0
      %3777 = vmatprep.subr.mxu0 0.0
      %3778 = vmatpush1.msra.mxu0 0.0
      %3779 = vmatprep.subr.mxu0 0.0
      %3780 = vmatpush1.msra.mxu0 0.0
      %3781 = vmatprep.subr.mxu0 0.0
      %3782 = vmatpush1.msra.mxu0 0.0
      %3783 = vmatprep.subr.mxu0 0.0
      %3784 = vmatpush1.msra.mxu0 0.0
      %3785 = vmatprep.subr.mxu0 0.0
      %3786 = vmatpush1.msra.mxu0 0.0
      %3787 = vmatprep.subr.mxu0 0.0
      %3788 = vmatpush1.msra.mxu0 0.0
      %3789 = vmatprep.subr.mxu0 0.0
      %3790 = vmatpush1.msra.mxu0 0.0
      %3791 = vmatprep.subr.mxu0 0.0
      %3792 = vmatpush1.msra.mxu0 0.0
      %3793 = vmatprep.subr.mxu0 0.0
      %3794 = vmatpush1.msra.mxu0 0.0
      %3795 = vmatprep.subr.mxu0 0.0
      %3796 = vmatpush1.msra.mxu0 0.0
      %3797 = vmatprep.subr.mxu0 0.0
      %3798 = vmatpush1.msra.mxu0 0.0
      %3799 = vmatprep.subr.mxu0 0.0
      %3800 = vmatpush1.msra.mxu0 0.0
      %3801 = vmatprep.subr.mxu0 0.0
      %3802 = vmatpush1.msra.mxu0 0.0
      %3803 = vmatprep.subr.mxu0 0.0
      %3804 = vmatpush1.msra.mxu0 0.0
      %3805 = vmatprep.subr.mxu0 0.0
      %3806 = vmatpush1.msra.mxu0 0.0
      %3807 = vmatprep.subr.mxu0 0.0
      %3808 = vmatpush1.msra.mxu0 0.0
      %3809 = vmatprep.subr.mxu0 0.0
      %3810 = vmatpush1.msra.mxu0 0.0
      %3811 = vmatprep.subr.mxu0 0.0
      %3812 = vmatpush1.msra.mxu0 0.0
      %3813 = vmatprep.subr.mxu0 0.0
      %3814 = vmatpush1.msra.mxu0 0.0
      %3815 = vmatprep.subr.mxu0 0.0
      %3816 = vmatpush1.msra.mxu0 0.0
      %3817 = vmatprep.subr.mxu0 0.0
      %3818 = vmatpush1.msra.mxu0 0.0
      %3819 = vmatprep.subr.mxu0 0.0
      %3820 = vmatpush1.msra.mxu0 0.0
      %3821 = vmatprep.subr.mxu0 0.0
      %3822 = vmatpush1.msra.mxu0 0.0
      %3823 = vmatprep.subr.mxu0 0.0
      %3824 = vmatpush1.msra.mxu0 0.0
      %3825 = vmatprep.subr.mxu0 0.0
      %3826 = vmatpush1.msra.mxu0 0.0
      %3827 = vmatprep.subr.mxu0 0.0
      %3828 = vmatpush1.msra.mxu0 0.0
      %3829 = vmatprep.subr.mxu0 0.0
      %3830 = vmatpush1.msra.mxu0 0.0
      %3831 = vmatprep.subr.mxu0 0.0
      %3832 = vmatpush1.msra.mxu0 0.0
      %3833 = vmatprep.mubr.f32.mxu0 0.0
      %3834 = vmatmul.mubr.f32.gmra.mrb[0].mxu0 %v3551
      %v3835 = vpop.f32.mrb[0].mxu0
      %v3836 = vadd.f32 0.0, %v3835
      %v3837 = vpop.f32.mrb[0].mxu0
      %3838 = vmatprep.mubr.f32.mxu0 0.0
      %3839 = vmatmul.mubr.f32.gmra.mrb[0].mxu0 %v3554
      %v3840 = vpop.f32.mrb[0].mxu0
      %v3841 = vadd.f32 0.0, %v3840
      %v3842 = vpop.f32.mrb[0].mxu0
      %3843 = vmatprep.mubr.f32.mxu0 0.0
      %3844 = vmatmul.mubr.f32.gmra.mrb[0].mxu0 %v3557
      %v3845 = vpop.f32.mrb[0].mxu0
      %v3846 = vadd.f32 0.0, %v3845
      %v3847 = vpop.f32.mrb[0].mxu0
      %3848 = vmatprep.mubr.f32.mxu0 0.0
      %3849 = vmatmul.mubr.f32.gmra.mrb[0].mxu0 %v3560
      %v3850 = vpop.f32.mrb[0].mxu0
      %v3851 = vadd.f32 0.0, %v3850
      %v3852 = vpop.f32.mrb[0].mxu0
      %3853 = vmatprep.mubr.f32.mxu0 0.0
      %3854 = vmatmul.mubr.f32.gmra.mrb[0].mxu0 %v3563
      %v3855 = vpop.f32.mrb[0].mxu0
      %v3856 = vadd.f32 0.0, %v3855
      %v3857 = vpop.f32.mrb[0].mxu0
      %3858 = vmatprep.mubr.f32.mxu0 0.0
      %3859 = vmatmul.mubr.f32.gmra.mrb[0].mxu0 %v3566
      %v3860 = vpop.f32.mrb[0].mxu0
      %v3861 = vadd.f32 0.0, %v3860
      %v3862 = vpop.f32.mrb[0].mxu0
      %3863 = vmatprep.mubr.f32.mxu0 0.0
      %3864 = vmatmul.mubr.f32.gmra.mrb[0].mxu0 %v3569
      %v3865 = vpop.f32.mrb[0].mxu0
      %v3866 = vadd.f32 0.0, %v3865
      %v3867 = vpop.f32.mrb[0].mxu0
      %3868 = vmatprep.mubr.f32.mxu0 0.0
      %3869 = vmatmul.mubr.f32.gmra.mrb[0].mxu0 %v3572
      %v3870 = vpop.f32.mrb[0].mxu0
      %v3871 = vadd.f32 0.0, %v3870
      %v3872 = vpop.f32.mrb[0].mxu0
      %3873 = vmatprep.mubr.f32.mxu0 0.0
      %3874 = vmatmul.mubr.f32.gmra.mrb[0].mxu0 %v3575
      %v3875 = vpop.f32.mrb[0].mxu0
      %v3876 = vadd.f32 0.0, %v3875
      %v3877 = vpop.f32.mrb[0].mxu0
      %3878 = vmatprep.mubr.f32.mxu0 0.0
      %3879 = vmatmul.mubr.f32.gmra.mrb[0].mxu0 %v3578
      %v3880 = vpop.f32.mrb[0].mxu0
      %v3881 = vadd.f32 0.0, %v3880
      %v3882 = vpop.f32.mrb[0].mxu0
      %3883 = vmatprep.mubr.f32.mxu0 0.0
      %3884 = vmatmul.mubr.f32.gmra.mrb[0].mxu0 %v3581
      %v3885 = vpop.f32.mrb[0].mxu0
      %v3886 = vadd.f32 0.0, %v3885
      %v3887 = vpop.f32.mrb[0].mxu0
      %3888 = vmatprep.mubr.f32.mxu0 0.0
      %3889 = vmatmul.mubr.f32.gmra.mrb[0].mxu0 %v3584
      %v3890 = vpop.f32.mrb[0].mxu0
      %v3891 = vadd.f32 0.0, %v3890
      %v3892 = vpop.f32.mrb[0].mxu0
      %3893 = vmatprep.mubr.f32.mxu0 0.0
      %3894 = vmatmul.mubr.f32.gmra.mrb[0].mxu0 %v3587
      %v3895 = vpop.f32.mrb[0].mxu0
      %v3896 = vadd.f32 0.0, %v3895
      %v3897 = vpop.f32.mrb[0].mxu0
      %3898 = vmatprep.mubr.f32.mxu0 0.0
      %3899 = vmatmul.mubr.f32.gmra.mrb[0].mxu0 %v3590
      %v3900 = vpop.f32.mrb[0].mxu0
      %v3901 = vadd.f32 0.0, %v3900
      %v3902 = vpop.f32.mrb[0].mxu0
      %3903 = vmatprep.mubr.f32.mxu0 0.0
      %3904 = vmatmul.mubr.f32.gmra.mrb[0].mxu0 %v3593
      %v3905 = vpop.f32.mrb[0].mxu0
      %v3906 = vadd.f32 0.0, %v3905
      %v3907 = vpop.f32.mrb[0].mxu0
      %3908 = vmatprep.mubr.f32.mxu0 0.0
      %3909 = vmatmul.mubr.f32.gmra.mrb[0].mxu0 %v3596
      %v3910 = vpop.f32.mrb[0].mxu0
      %v3911 = vadd.f32 0.0, %v3910
      %v3912 = vpop.f32.mrb[0].mxu0
      %3913 = vmatprep.mubr.f32.mxu0 0.0
      %3914 = vmatmul.mubr.f32.gmra.mrb[0].mxu0 %v3599
      %v3915 = vpop.f32.mrb[0].mxu0
      %v3916 = vadd.f32 0.0, %v3915
      %v3917 = vpop.f32.mrb[0].mxu0
      %3918 = vmatprep.mubr.f32.mxu0 0.0
      %3919 = vmatmul.mubr.f32.gmra.mrb[0].mxu0 %v3602
      %v3920 = vpop.f32.mrb[0].mxu0
      %v3921 = vadd.f32 0.0, %v3920
      %v3922 = vpop.f32.mrb[0].mxu0
      %3923 = vmatprep.mubr.f32.mxu0 0.0
      %3924 = vmatmul.mubr.f32.gmra.mrb[0].mxu0 %v3605
      %v3925 = vpop.f32.mrb[0].mxu0
      %v3926 = vadd.f32 0.0, %v3925
      %v3927 = vpop.f32.mrb[0].mxu0
      %3928 = vmatprep.mubr.f32.mxu0 0.0
      %3929 = vmatmul.mubr.f32.gmra.mrb[0].mxu0 %v3608
      %v3930 = vpop.f32.mrb[0].mxu0
      %v3931 = vadd.f32 0.0, %v3930
      %v3932 = vpop.f32.mrb[0].mxu0
      %3933 = vmatprep.mubr.f32.mxu0 0.0
      %3934 = vmatmul.mubr.f32.gmra.mrb[0].mxu0 %v3611
      %v3935 = vpop.f32.mrb[0].mxu0
      %v3936 = vadd.f32 0.0, %v3935
      %v3937 = vpop.f32.mrb[0].mxu0
      %3938 = vmatprep.mubr.f32.mxu0 0.0
      %3939 = vmatmul.mubr.f32.gmra.mrb[0].mxu0 %v3614
      %v3940 = vpop.f32.mrb[0].mxu0
      %v3941 = vadd.f32 0.0, %v3940
      %v3942 = vpop.f32.mrb[0].mxu0
      %3943 = vmatprep.mubr.f32.mxu0 0.0
      %3944 = vmatmul.mubr.f32.gmra.mrb[0].mxu0 %v3617
      %v3945 = vpop.f32.mrb[0].mxu0
      %v3946 = vadd.f32 0.0, %v3945
      %v3947 = vpop.f32.mrb[0].mxu0
      %3948 = vmatprep.mubr.f32.mxu0 0.0
      %3949 = vmatmul.mubr.f32.gmra.mrb[0].mxu0 %v3620
      %v3950 = vpop.f32.mrb[0].mxu0
      %v3951 = vadd.f32 0.0, %v3950
      %v3952 = vpop.f32.mrb[0].mxu0
      %3953 = vmatprep.mubr.f32.mxu0 0.0
      %3954 = vmatmul.mubr.f32.gmra.mrb[0].mxu0 %v3623
      %v3955 = vpop.f32.mrb[0].mxu0
      %v3956 = vadd.f32 0.0, %v3955
      %v3957 = vpop.f32.mrb[0].mxu0
      %3958 = vmatprep.mubr.f32.mxu0 0.0
      %3959 = vmatmul.mubr.f32.gmra.mrb[0].mxu0 %v3626
      %v3960 = vpop.f32.mrb[0].mxu0
      %v3961 = vadd.f32 0.0, %v3960
      %v3962 = vpop.f32.mrb[0].mxu0
      %3963 = vmatprep.mubr.f32.mxu0 0.0
      %3964 = vmatmul.mubr.f32.gmra.mrb[0].mxu0 %v3629
      %v3965 = vpop.f32.mrb[0].mxu0
      %v3966 = vadd.f32 0.0, %v3965
      %v3967 = vpop.f32.mrb[0].mxu0
      %3968 = vmatprep.mubr.f32.mxu0 0.0
      %3969 = vmatmul.mubr.f32.gmra.mrb[0].mxu0 %v3632
      %v3970 = vpop.f32.mrb[0].mxu0
      %v3971 = vadd.f32 0.0, %v3970
      %v3972 = vpop.f32.mrb[0].mxu0
      %3973 = vmatprep.mubr.f32.mxu0 0.0
      %3974 = vmatmul.mubr.f32.gmra.mrb[0].mxu0 %v3635
      %v3975 = vpop.f32.mrb[0].mxu0
      %v3976 = vadd.f32 0.0, %v3975
      %v3977 = vpop.f32.mrb[0].mxu0
      %3978 = vmatprep.mubr.f32.mxu0 0.0
      %3979 = vmatmul.mubr.f32.gmra.mrb[0].mxu0 %v3638
      %v3980 = vpop.f32.mrb[0].mxu0
      %v3981 = vadd.f32 0.0, %v3980
      %v3982 = vpop.f32.mrb[0].mxu0
      %3983 = vmatprep.mubr.f32.mxu0 0.0
      %3984 = vmatmul.mubr.f32.gmra.mrb[0].mxu0 %v3641
      %v3985 = vpop.f32.mrb[0].mxu0
      %v3986 = vadd.f32 0.0, %v3985
      %v3987 = vpop.f32.mrb[0].mxu0
      %3988 = vmatprep.mubr.f32.mxu0 0.0
      %3989 = vmatmul.mubr.f32.gmra.mrb[0].mxu0 %v3644
      %v3990 = vpop.f32.mrb[0].mxu0
      %v3991 = vadd.f32 0.0, %v3990
      %v3992 = vpop.f32.mrb[0].mxu0
      %3993 = vmatprep.mubr.f32.mxu0 0.0
      %3994 = vmatmul.mubr.f32.gmra.mrb[0].mxu0 %v3647
      %v3995 = vpop.f32.mrb[0].mxu0
      %v3996 = vadd.f32 0.0, %v3995
      %v3997 = vpop.f32.mrb[0].mxu0
      %3998 = vmatprep.mubr.f32.mxu0 0.0
      %3999 = vmatmul.mubr.f32.gmra.mrb[0].mxu0 %v3650
      %v4000 = vpop.f32.mrb[0].mxu0
      %v4001 = vadd.f32 0.0, %v4000
      %v4002 = vpop.f32.mrb[0].mxu0
      %4003 = vmatprep.mubr.f32.mxu0 0.0
      %4004 = vmatmul.mubr.f32.gmra.mrb[0].mxu0 %v3653
      %v4005 = vpop.f32.mrb[0].mxu0
      %v4006 = vadd.f32 0.0, %v4005
      %v4007 = vpop.f32.mrb[0].mxu0
      %4008 = vmatprep.mubr.f32.mxu0 0.0
      %4009 = vmatmul.mubr.f32.gmra.mrb[0].mxu0 %v3656
      %v4010 = vpop.f32.mrb[0].mxu0
      %v4011 = vadd.f32 0.0, %v4010
      %v4012 = vpop.f32.mrb[0].mxu0
      %4013 = vmatprep.mubr.f32.mxu0 0.0
      %4014 = vmatmul.mubr.f32.gmra.mrb[0].mxu0 %v3659
      %v4015 = vpop.f32.mrb[0].mxu0
      %v4016 = vadd.f32 0.0, %v4015
      %v4017 = vpop.f32.mrb[0].mxu0
      %4018 = vmatprep.mubr.f32.mxu0 0.0
      %4019 = vmatmul.mubr.f32.gmra.mrb[0].mxu0 %v3662
      %v4020 = vpop.f32.mrb[0].mxu0
      %v4021 = vadd.f32 0.0, %v4020
      %v4022 = vpop.f32.mrb[0].mxu0
      %4023 = vmatprep.mubr.f32.mxu0 0.0
      %4024 = vmatmul.mubr.f32.gmra.mrb[0].mxu0 %v3665
      %v4025 = vpop.f32.mrb[0].mxu0
      %v4026 = vadd.f32 0.0, %v4025
      %v4027 = vpop.f32.mrb[0].mxu0
      %4028 = vmatprep.mubr.f32.mxu0 0.0
      %4029 = vmatmul.mubr.f32.gmra.mrb[0].mxu0 %v3668
      %v4030 = vpop.f32.mrb[0].mxu0
      %v4031 = vadd.f32 0.0, %v4030
      %v4032 = vpop.f32.mrb[0].mxu0
      %4033 = vmatprep.mubr.f32.mxu0 0.0
      %4034 = vmatmul.mubr.f32.gmra.mrb[0].mxu0 %v3671
      %v4035 = vpop.f32.mrb[0].mxu0
      %v4036 = vadd.f32 0.0, %v4035
      %v4037 = vpop.f32.mrb[0].mxu0
      %4038 = vmatprep.mubr.f32.mxu0 0.0
      %4039 = vmatmul.mubr.f32.gmra.mrb[0].mxu0 %v3674
      %v4040 = vpop.f32.mrb[0].mxu0
      %v4041 = vadd.f32 0.0, %v4040
      %v4042 = vpop.f32.mrb[0].mxu0
      %4043 = vmatprep.mubr.f32.mxu0 0.0
      %4044 = vmatmul.mubr.f32.gmra.mrb[0].mxu0 %v3677
      %v4045 = vpop.f32.mrb[0].mxu0
      %v4046 = vadd.f32 0.0, %v4045
      %v4047 = vpop.f32.mrb[0].mxu0
      %4048 = vmatprep.mubr.f32.mxu0 0.0
      %4049 = vmatmul.mubr.f32.gmra.mrb[0].mxu0 %v3680
      %v4050 = vpop.f32.mrb[0].mxu0
      %v4051 = vadd.f32 0.0, %v4050
      %v4052 = vpop.f32.mrb[0].mxu0
      %4053 = vmatprep.mubr.f32.mxu0 0.0
      %4054 = vmatmul.mubr.f32.gmra.mrb[0].mxu0 %v3683
      %v4055 = vpop.f32.mrb[0].mxu0
      %v4056 = vadd.f32 0.0, %v4055
      %v4057 = vpop.f32.mrb[0].mxu0
      %4058 = vmatprep.mubr.f32.mxu0 0.0
      %4059 = vmatmul.mubr.f32.gmra.mrb[0].mxu0 %v3686
      %v4060 = vpop.f32.mrb[0].mxu0
      %v4061 = vadd.f32 0.0, %v4060
      %v4062 = vpop.f32.mrb[0].mxu0
      %4063 = vmatprep.mubr.f32.mxu0 0.0
      %4064 = vmatmul.mubr.f32.gmra.mrb[0].mxu0 %v3689
      %v4065 = vpop.f32.mrb[0].mxu0
      %v4066 = vadd.f32 0.0, %v4065
      %v4067 = vpop.f32.mrb[0].mxu0
      %4068 = vmatprep.mubr.f32.mxu0 0.0
      %4069 = vmatmul.mubr.f32.gmra.mrb[0].mxu0 %v3692
      %v4070 = vpop.f32.mrb[0].mxu0
      %v4071 = vadd.f32 0.0, %v4070
      %v4072 = vpop.f32.mrb[0].mxu0
      %4073 = vmatprep.mubr.f32.mxu0 0.0
      %4074 = vmatmul.mubr.f32.gmra.mrb[0].mxu0 %v3695
      %v4075 = vpop.f32.mrb[0].mxu0
      %v4076 = vadd.f32 0.0, %v4075
      %v4077 = vpop.f32.mrb[0].mxu0
      %4078 = vmatprep.mubr.f32.mxu0 0.0
      %4079 = vmatmul.mubr.f32.gmra.mrb[0].mxu0 %v3698
      %v4080 = vpop.f32.mrb[0].mxu0
      %v4081 = vadd.f32 0.0, %v4080
      %v4082 = vpop.f32.mrb[0].mxu0
      %4083 = vmatprep.mubr.f32.mxu0 0.0
      %4084 = vmatmul.mubr.f32.gmra.mrb[0].mxu0 %v3701
      %v4085 = vpop.f32.mrb[0].mxu0
      %v4086 = vadd.f32 0.0, %v4085
      %v4087 = vpop.f32.mrb[0].mxu0
      %4088 = vmatprep.mubr.f32.mxu0 0.0
      %4089 = vmatmul.mubr.f32.gmra.mrb[0].mxu0 %v3704
      %v4090 = vpop.f32.mrb[0].mxu0
      %v4091 = vadd.f32 0.0, %v4090
      %v4092 = vpop.f32.mrb[0].mxu0
      %4093 = vmatprep.mubr.f32.mxu0 0.0
      %4094 = vmatmul.mubr.f32.gmra.mrb[0].mxu0 %v3707
      %v4095 = vpop.f32.mrb[0].mxu0
      %v4096 = vadd.f32 0.0, %v4095
      %v4097 = vpop.f32.mrb[0].mxu0
      %4098 = vmatprep.mubr.f32.mxu0 0.0
      %4099 = vmatmul.mubr.f32.gmra.mrb[0].mxu0 %v3710
      %v4100 = vpop.f32.mrb[0].mxu0
      %v4101 = vadd.f32 0.0, %v4100
      %v4102 = vpop.f32.mrb[0].mxu0
      %4103 = vmatprep.mubr.f32.mxu0 0.0
      %4104 = vmatmul.mubr.f32.gmra.mrb[0].mxu0 %v3713
      %v4105 = vpop.f32.mrb[0].mxu0
      %v4106 = vadd.f32 0.0, %v4105
      %v4107 = vpop.f32.mrb[0].mxu0
      %4108 = vmatprep.mubr.f32.mxu0 0.0
      %4109 = vmatmul.mubr.f32.gmra.mrb[0].mxu0 %v3716
      %v4110 = vpop.f32.mrb[0].mxu0
      %v4111 = vadd.f32 0.0, %v4110
      %v4112 = vpop.f32.mrb[0].mxu0
      %4113 = vmatprep.mubr.f32.mxu0 0.0
      %4114 = vmatmul.mubr.f32.gmra.mrb[0].mxu0 %v3719
      %v4115 = vpop.f32.mrb[0].mxu0
      %v4116 = vadd.f32 0.0, %v4115
      %v4117 = vpop.f32.mrb[0].mxu0
      %4118 = vmatprep.mubr.f32.mxu0 0.0
      %4119 = vmatmul.mubr.f32.gmra.mrb[0].mxu0 %v3722
      %v4120 = vpop.f32.mrb[0].mxu0
      %v4121 = vadd.f32 0.0, %v4120
      %v4122 = vpop.f32.mrb[0].mxu0
      %4123 = vmatprep.mubr.f32.mxu0 0.0
      %4124 = vmatmul.mubr.f32.gmra.mrb[0].mxu0 %v3725
      %v4125 = vpop.f32.mrb[0].mxu0
      %v4126 = vadd.f32 0.0, %v4125
      %v4127 = vpop.f32.mrb[0].mxu0
      %4128 = vmatprep.mubr.f32.mxu0 0.0
      %4129 = vmatmul.mubr.f32.gmra.mrb[0].mxu0 %v3728
      %v4130 = vpop.f32.mrb[0].mxu0
      %v4131 = vadd.f32 0.0, %v4130
      %v4132 = vpop.f32.mrb[0].mxu0
      %4133 = vmatprep.mubr.f32.mxu0 0.0
      %4134 = vmatmul.mubr.f32.gmra.mrb[0].mxu0 %v3731
      %v4135 = vpop.f32.mrb[0].mxu0
      %v4136 = vadd.f32 0.0, %v4135
      %v4137 = vpop.f32.mrb[0].mxu0
      %4138 = vmatprep.mubr.f32.mxu0 0.0
      %4139 = vmatmul.mubr.f32.gmra.mrb[0].mxu0 %v3734
      %v4140 = vpop.f32.mrb[0].mxu0
      %v4141 = vadd.f32 0.0, %v4140
      %v4142 = vpop.f32.mrb[0].mxu0
      %4143 = vmatprep.mubr.f32.mxu0 0.0
      %4144 = vmatmul.mubr.f32.gmra.mrb[0].mxu0 %v3737
      %v4145 = vpop.f32.mrb[0].mxu0
      %v4146 = vadd.f32 0.0, %v4145
      %v4147 = vpop.f32.mrb[0].mxu0
      %4148 = vmatprep.mubr.f32.mxu0 0.0
      %4149 = vmatmul.mubr.f32.gmra.mrb[0].mxu0 %v3740
      %v4150 = vpop.f32.mrb[0].mxu0
      %v4151 = vadd.f32 0.0, %v4150
      %v4152 = vpop.f32.mrb[0].mxu0
      %4153 = vmatprep.mubr.f32.mxu0 0.0
      %4154 = vmatmul.mubr.f32.gmra.mrb[0].mxu0 %v3743
      %v4155 = vpop.f32.mrb[0].mxu0
      %v4156 = vadd.f32 0.0, %v4155
      %v4157 = vpop.f32.mrb[0].mxu0
      %4158 = vmatprep.mubr.f32.mxu0 0.0
      %4159 = vmatmul.mubr.f32.gmra.mrb[0].mxu0 %v3746
      %v4160 = vpop.f32.mrb[0].mxu0
      %v4161 = vadd.f32 0.0, %v4160
      %v4162 = vpop.f32.mrb[0].mxu0
      %4163 = vmatprep.mubr.f32.mxu0 0.0
      %4164 = vmatmul.mubr.f32.gmra.mrb[0].mxu0 %v3749
      %v4165 = vpop.f32.mrb[0].mxu0
      %v4166 = vadd.f32 0.0, %v4165
      %v4167 = vpop.f32.mrb[0].mxu0
      %4168 = vmatprep.mubr.f32.mxu0 0.0
      %4169 = vmatmul.mubr.f32.gmra.mrb[0].mxu0 %v3752
      %v4170 = vpop.f32.mrb[0].mxu0
      %v4171 = vadd.f32 0.0, %v4170
      %v4172 = vpop.f32.mrb[0].mxu0
      %4173 = vmatprep.mubr.f32.mxu0 0.0
      %4174 = vmatmul.mubr.f32.gmra.mrb[0].mxu0 %v3755
      %v4175 = vpop.f32.mrb[0].mxu0
      %v4176 = vadd.f32 0.0, %v4175
      %v4177 = vpop.f32.mrb[0].mxu0
      %4178 = vmatprep.mubr.f32.mxu0 0.0
      %4179 = vmatmul.mubr.f32.gmra.mrb[0].mxu0 %v3758
      %v4180 = vpop.f32.mrb[0].mxu0
      %v4181 = vadd.f32 0.0, %v4180
      %v4182 = vpop.f32.mrb[0].mxu0
      %4183 = vmatprep.mubr.f32.mxu0 0.0
      %4184 = vmatmul.mubr.f32.gmra.mrb[0].mxu0 %v3761
      %v4185 = vpop.f32.mrb[0].mxu0
      %v4186 = vadd.f32 0.0, %v4185
      %v4187 = vpop.f32.mrb[0].mxu0
      %4188 = vmatprep.mubr.f32.mxu0 0.0
      %4189 = vmatmul.mubr.f32.gmra.mrb[0].mxu0 %v3764
      %v4190 = vpop.f32.mrb[0].mxu0
      %v4191 = vadd.f32 0.0, %v4190
      %v4192 = vpop.f32.mrb[0].mxu0
      %4193 = vdwg.mxu0
      %v4194 = vadd.f32 %v3404, %v3836
      %v4195 = vadd.f32 %v3405, %v3841
      %v4196 = vadd.f32 %v3406, %v3846
      %v4197 = vadd.f32 %v3407, %v3851
      %v4198 = vadd.f32 %v3408, %v3856
      %v4199 = vadd.f32 %v3409, %v3861
      %v4200 = vadd.f32 %v3410, %v3866
      %v4201 = vadd.f32 %v3411, %v3871
      %v4202 = vadd.f32 %v3412, %v3876
      %v4203 = vadd.f32 %v3413, %v3881
      %v4204 = vadd.f32 %v3414, %v3886
      %v4205 = vadd.f32 %v3415, %v3891
      %v4206 = vadd.f32 %v3416, %v3896
      %v4207 = vadd.f32 %v3417, %v3901
      %v4208 = vadd.f32 %v3418, %v3906
      %v4209 = vadd.f32 %v3419, %v3911
      %v4210 = vadd.f32 %v3420, %v3916
      %v4211 = vadd.f32 %v3421, %v3921
      %v4212 = vadd.f32 %v3422, %v3926
      %v4213 = vadd.f32 %v3423, %v3931
      %v4214 = vadd.f32 %v3424, %v3936
      %v4215 = vadd.f32 %v3425, %v3941
      %v4216 = vadd.f32 %v3426, %v3946
      %v4217 = vadd.f32 %v3427, %v3951
      %v4218 = vadd.f32 %v3428, %v3956
      %v4219 = vadd.f32 %v3429, %v3961
      %v4220 = vadd.f32 %v3430, %v3966
      %v4221 = vadd.f32 %v3431, %v3971
      %v4222 = vadd.f32 %v3432, %v3976
      %v4223 = vadd.f32 %v3433, %v3981
      %v4224 = vadd.f32 %v3434, %v3986
      %v4225 = vadd.f32 %v3435, %v3991
      %v4226 = vadd.f32 %v3436, %v3996
      %v4227 = vadd.f32 %v3437, %v4001
      %v4228 = vadd.f32 %v3438, %v4006
      %v4229 = vadd.f32 %v3439, %v4011
      %v4230 = vadd.f32 %v3440, %v4016
      %v4231 = vadd.f32 %v3441, %v4021
      %v4232 = vadd.f32 %v3442, %v4026
      %v4233 = vadd.f32 %v3443, %v4031
      %v4234 = vadd.f32 %v3444, %v4036
      %v4235 = vadd.f32 %v3445, %v4041
      %v4236 = vadd.f32 %v3446, %v4046
      %v4237 = vadd.f32 %v3447, %v4051
      %v4238 = vadd.f32 %v3448, %v4056
      %v4239 = vadd.f32 %v3449, %v4061
      %v4240 = vadd.f32 %v3450, %v4066
      %v4241 = vadd.f32 %v3451, %v4071
      %v4242 = vadd.f32 %v3452, %v4076
      %v4243 = vadd.f32 %v3453, %v4081
      %v4244 = vadd.f32 %v3454, %v4086
      %v4245 = vadd.f32 %v3455, %v4091
      %v4246 = vadd.f32 %v3456, %v4096
      %v4247 = vadd.f32 %v3457, %v4101
      %v4248 = vadd.f32 %v3458, %v4106
      %v4249 = vadd.f32 %v3459, %v4111
      %v4250 = vadd.f32 %v3460, %v4116
      %v4251 = vadd.f32 %v3461, %v4121
      %v4252 = vadd.f32 %v3462, %v4126
      %v4253 = vadd.f32 %v3463, %v4131
      %v4254 = vadd.f32 %v3464, %v4136
      %v4255 = vadd.f32 %v3465, %v4141
      %v4256 = vadd.f32 %v3466, %v4146
      %v4257 = vadd.f32 %v3467, %v4151
      %v4258 = vadd.f32 %v3468, %v4156
      %v4259 = vadd.f32 %v3469, %v4161
      %v4260 = vadd.f32 %v3470, %v4166
      %v4261 = vadd.f32 %v3471, %v4171
      %v4262 = vadd.f32 %v3472, %v4176
      %v4263 = vadd.f32 %v3473, %v4181
      %v4264 = vadd.f32 %v3474, %v4186
      %v4265 = vadd.f32 %v3475, %v4191
      %v4266 = vld [vmem:[%s300 + $0x29] sm:$0xff]
      %v4267 = vld [vmem:[%s300 + $0x31] sm:$0xff]
      %v4268 = vld [vmem:[%s300 + $0x39] sm:$0xff]
      %v4269 = vld [vmem:[%s300 + $0x41] sm:$0xff]
      %v4270 = vld [vmem:[%s300 + $0x49] sm:$0xff]
      %v4271 = vld [vmem:[%s300 + $0x51] sm:$0xff]
      %v4272 = vld [vmem:[%s300 + $0x59] sm:$0xff]
      %v4273 = vld [vmem:[%s300 + $0x61] sm:$0xff]
      %v4274 = vld [vmem:[%s300 + $0x69] sm:$0xff]
      %v4275 = vld [vmem:[%s300 + $0x71] sm:$0xff]
      %v4276 = vld [vmem:[%s300 + $0x79] sm:$0xff]
      %v4277 = vld [vmem:[%s300 + $0x81] sm:$0xff]
      %v4278 = vld [vmem:[%s300 + $0x89] sm:$0xff]
      %v4279 = vld [vmem:[%s300 + $0x91] sm:$0xff]
      %v4280 = vld [vmem:[%s300 + $0x99] sm:$0xff]
      %v4281 = vld [vmem:[%s300 + $0xa1] sm:$0xff]
      %v4282 = vld [vmem:[%s300 + $0xa9] sm:$0xff]
      %v4283 = vld [vmem:[%s300 + $0xb1] sm:$0xff]
      %v4284 = vld [vmem:[%s300 + $0xb9] sm:$0xff]
      %v4285 = vld [vmem:[%s300 + $0xc1] sm:$0xff]
      %v4286 = vld [vmem:[%s300 + $0xc9] sm:$0xff]
      %v4287 = vld [vmem:[%s300 + $0xd1] sm:$0xff]
      %v4288 = vld [vmem:[%s300 + $0xd9] sm:$0xff]
      %v4289 = vld [vmem:[%s300 + $0xe1] sm:$0xff]
      %v4290 = vld [vmem:[%s300 + $0xe9] sm:$0xff]
      %v4291 = vld [vmem:[%s300 + $0xf1] sm:$0xff]
      %v4292 = vld [vmem:[%s300 + $0xf9] sm:$0xff]
      %v4293 = vld [vmem:[%s300 + $0x101] sm:$0xff]
      %v4294 = vld [vmem:[%s300 + $0x109] sm:$0xff]
      %v4295 = vld [vmem:[%s300 + $0x111] sm:$0xff]
      %v4296 = vld [vmem:[%s300 + $0x119] sm:$0xff]
      %v4297 = vld [vmem:[%s300 + $0x121] sm:$0xff]
      %v4298 = vld [vmem:[%s300 + $0x129] sm:$0xff]
      %v4299 = vld [vmem:[%s300 + $0x131] sm:$0xff]
      %v4300 = vld [vmem:[%s300 + $0x139] sm:$0xff]
      %v4301 = vld [vmem:[%s300 + $0x141] sm:$0xff]
      %v4302 = vld [vmem:[%s300 + $0x149] sm:$0xff]
      %v4303 = vld [vmem:[%s300 + $0x151] sm:$0xff]
      %v4304 = vld [vmem:[%s300 + $0x159] sm:$0xff]
      %v4305 = vld [vmem:[%s300 + $0x161] sm:$0xff]
      %v4306 = vld [vmem:[%s300 + $0x169] sm:$0xff]
      %v4307 = vld [vmem:[%s300 + $0x171] sm:$0xff]
      %v4308 = vld [vmem:[%s300 + $0x179] sm:$0xff]
      %v4309 = vld [vmem:[%s300 + $0x181] sm:$0xff]
      %v4310 = vld [vmem:[%s300 + $0x189] sm:$0xff]
      %v4311 = vld [vmem:[%s300 + $0x191] sm:$0xff]
      %v4312 = vld [vmem:[%s300 + $0x199] sm:$0xff]
      %v4313 = vld [vmem:[%s300 + $0x1a1] sm:$0xff]
      %v4314 = vld [vmem:[%s300 + $0x1a9] sm:$0xff]
      %v4315 = vld [vmem:[%s300 + $0x1b1] sm:$0xff]
      %v4316 = vld [vmem:[%s300 + $0x1b9] sm:$0xff]
      %v4317 = vld [vmem:[%s300 + $0x1c1] sm:$0xff]
      %v4318 = vld [vmem:[%s300 + $0x1c9] sm:$0xff]
      %v4319 = vld [vmem:[%s300 + $0x1d1] sm:$0xff]
      %v4320 = vld [vmem:[%s300 + $0x1d9] sm:$0xff]
      %v4321 = vld [vmem:[%s300 + $0x1e1] sm:$0xff]
      %v4322 = vld [vmem:[%s300 + $0x1e9] sm:$0xff]
      %v4323 = vld [vmem:[%s300 + $0x1f1] sm:$0xff]
      %v4324 = vld [vmem:[%s300 + $0x1f9] sm:$0xff]
      %v4325 = vld [vmem:[%s300 + $0x201] sm:$0xff]
      %v4326 = vld [vmem:[%s300 + $0x209] sm:$0xff]
      %v4327 = vld [vmem:[%s300 + $0x211] sm:$0xff]
      %v4328 = vld [vmem:[%s300 + $0x219] sm:$0xff]
      %v4329 = vld [vmem:[%s300 + $0x221] sm:$0xff]
      %v4330 = vld [vmem:[%s300 + $0x229] sm:$0xff]
      %v4331 = vld [vmem:[%s300 + $0x231] sm:$0xff]
      %v4332 = vld [vmem:[%s300 + $0x239] sm:$0xff]
      %v4333 = vld [vmem:[%s300 + $0x241] sm:$0xff]
      %v4334 = vld [vmem:[%s300 + $0x249] sm:$0xff]
      %v4335 = vld [vmem:[%s300 + $0x251] sm:$0xff]
      %v4336 = vld [vmem:[%s300 + $0x259] sm:$0xff]
      %v4337 = vld [vmem:[%s300 + $0x261] sm:$0xff]
      %s4338 = scalar_lea.vmem %s1, 20
      %v4339 = vld [vmem:[%s4338] sm:$0x7]
      %v4341 = vsel %vm606, %v4266, 0
      %v4344 = vsel %vm606, %v4267, 0
      %v4347 = vsel %vm606, %v4268, 0
      %v4350 = vsel %vm606, %v4269, 0
      %v4353 = vsel %vm606, %v4270, 0
      %v4356 = vsel %vm606, %v4271, 0
      %v4359 = vsel %vm606, %v4272, 0
      %v4362 = vsel %vm606, %v4273, 0
      %v4365 = vsel %vm606, %v4274, 0
      %v4368 = vsel %vm606, %v4275, 0
      %v4371 = vsel %vm606, %v4276, 0
      %v4374 = vsel %vm606, %v4277, 0
      %v4377 = vsel %vm606, %v4278, 0
      %v4380 = vsel %vm606, %v4279, 0
      %v4383 = vsel %vm606, %v4280, 0
      %v4386 = vsel %vm606, %v4281, 0
      %v4389 = vsel %vm606, %v4282, 0
      %v4392 = vsel %vm606, %v4283, 0
      %v4395 = vsel %vm606, %v4284, 0
      %v4398 = vsel %vm606, %v4285, 0
      %v4401 = vsel %vm606, %v4286, 0
      %v4404 = vsel %vm606, %v4287, 0
      %v4407 = vsel %vm606, %v4288, 0
      %v4410 = vsel %vm606, %v4289, 0
      %v4413 = vsel %vm606, %v4290, 0
      %v4416 = vsel %vm606, %v4291, 0
      %v4419 = vsel %vm606, %v4292, 0
      %v4422 = vsel %vm606, %v4293, 0
      %v4425 = vsel %vm606, %v4294, 0
      %v4428 = vsel %vm606, %v4295, 0
      %v4431 = vsel %vm606, %v4296, 0
      %v4434 = vsel %vm606, %v4297, 0
      %v4437 = vsel %vm606, %v4298, 0
      %v4440 = vsel %vm606, %v4299, 0
      %v4443 = vsel %vm606, %v4300, 0
      %v4446 = vsel %vm606, %v4301, 0
      %v4449 = vsel %vm606, %v4302, 0
      %v4452 = vsel %vm606, %v4303, 0
      %v4455 = vsel %vm606, %v4304, 0
      %v4458 = vsel %vm606, %v4305, 0
      %v4461 = vsel %vm606, %v4306, 0
      %v4464 = vsel %vm606, %v4307, 0
      %v4467 = vsel %vm606, %v4308, 0
      %v4470 = vsel %vm606, %v4309, 0
      %v4473 = vsel %vm606, %v4310, 0
      %v4476 = vsel %vm606, %v4311, 0
      %v4479 = vsel %vm606, %v4312, 0
      %v4482 = vsel %vm606, %v4313, 0
      %v4485 = vsel %vm606, %v4314, 0
      %v4488 = vsel %vm606, %v4315, 0
      %v4491 = vsel %vm606, %v4316, 0
      %v4494 = vsel %vm606, %v4317, 0
      %v4497 = vsel %vm606, %v4318, 0
      %v4500 = vsel %vm606, %v4319, 0
      %v4503 = vsel %vm606, %v4320, 0
      %v4506 = vsel %vm606, %v4321, 0
      %v4509 = vsel %vm606, %v4322, 0
      %v4512 = vsel %vm606, %v4323, 0
      %v4515 = vsel %vm606, %v4324, 0
      %v4518 = vsel %vm606, %v4325, 0
      %v4521 = vsel %vm606, %v4326, 0
      %v4524 = vsel %vm606, %v4327, 0
      %v4527 = vsel %vm606, %v4328, 0
      %v4530 = vsel %vm606, %v4329, 0
      %v4533 = vsel %vm606, %v4330, 0
      %v4536 = vsel %vm606, %v4331, 0
      %v4539 = vsel %vm606, %v4332, 0
      %v4542 = vsel %vm606, %v4333, 0
      %v4545 = vsel %vm606, %v4334, 0
      %v4548 = vsel %vm606, %v4335, 0
      %v4551 = vsel %vm606, %v4336, 0
      %v4554 = vsel %vm606, %v4337, 0
      %v4557 = vsel %vm823, %v4339, 0
      %4559 = vmatprep.subr.mxu0 0.0
      %4560 = vmatpush1.msra.mxu0 %v4557
      %4561 = vmatprep.subr.mxu0 0.0
      %4562 = vmatpush1.msra.mxu0 0.0
      %4563 = vmatprep.subr.mxu0 0.0
      %4564 = vmatpush1.msra.mxu0 0.0
      %4565 = vmatprep.subr.mxu0 0.0
      %4566 = vmatpush1.msra.mxu0 0.0
      %4567 = vmatprep.subr.mxu0 0.0
      %4568 = vmatpush1.msra.mxu0 0.0
      %4569 = vmatprep.subr.mxu0 0.0
      %4570 = vmatpush1.msra.mxu0 0.0
      %4571 = vmatprep.subr.mxu0 0.0
      %4572 = vmatpush1.msra.mxu0 0.0
      %4573 = vmatprep.subr.mxu0 0.0
      %4574 = vmatpush1.msra.mxu0 0.0
      %4575 = vmatprep.subr.mxu0 0.0
      %4576 = vmatpush1.msra.mxu0 0.0
      %4577 = vmatprep.subr.mxu0 0.0
      %4578 = vmatpush1.msra.mxu0 0.0
      %4579 = vmatprep.subr.mxu0 0.0
      %4580 = vmatpush1.msra.mxu0 0.0
      %4581 = vmatprep.subr.mxu0 0.0
      %4582 = vmatpush1.msra.mxu0 0.0
      %4583 = vmatprep.subr.mxu0 0.0
      %4584 = vmatpush1.msra.mxu0 0.0
      %4585 = vmatprep.subr.mxu0 0.0
      %4586 = vmatpush1.msra.mxu0 0.0
      %4587 = vmatprep.subr.mxu0 0.0
      %4588 = vmatpush1.msra.mxu0 0.0
      %4589 = vmatprep.subr.mxu0 0.0
      %4590 = vmatpush1.msra.mxu0 0.0
      %4591 = vmatprep.subr.mxu0 0.0
      %4592 = vmatpush1.msra.mxu0 0.0
      %4593 = vmatprep.subr.mxu0 0.0
      %4594 = vmatpush1.msra.mxu0 0.0
      %4595 = vmatprep.subr.mxu0 0.0
      %4596 = vmatpush1.msra.mxu0 0.0
      %4597 = vmatprep.subr.mxu0 0.0
      %4598 = vmatpush1.msra.mxu0 0.0
      %4599 = vmatprep.subr.mxu0 0.0
      %4600 = vmatpush1.msra.mxu0 0.0
      %4601 = vmatprep.subr.mxu0 0.0
      %4602 = vmatpush1.msra.mxu0 0.0
      %4603 = vmatprep.subr.mxu0 0.0
      %4604 = vmatpush1.msra.mxu0 0.0
      %4605 = vmatprep.subr.mxu0 0.0
      %4606 = vmatpush1.msra.mxu0 0.0
      %4607 = vmatprep.subr.mxu0 0.0
      %4608 = vmatpush1.msra.mxu0 0.0
      %4609 = vmatprep.subr.mxu0 0.0
      %4610 = vmatpush1.msra.mxu0 0.0
      %4611 = vmatprep.subr.mxu0 0.0
      %4612 = vmatpush1.msra.mxu0 0.0
      %4613 = vmatprep.subr.mxu0 0.0
      %4614 = vmatpush1.msra.mxu0 0.0
      %4615 = vmatprep.subr.mxu0 0.0
      %4616 = vmatpush1.msra.mxu0 0.0
      %4617 = vmatprep.subr.mxu0 0.0
      %4618 = vmatpush1.msra.mxu0 0.0
      %4619 = vmatprep.subr.mxu0 0.0
      %4620 = vmatpush1.msra.mxu0 0.0
      %4621 = vmatprep.subr.mxu0 0.0
      %4622 = vmatpush1.msra.mxu0 0.0
      %4623 = vmatprep.mubr.f32.mxu0 0.0
      %4624 = vmatmul.mubr.f32.gmra.mrb[0].mxu0 %v4341
      %v4625 = vpop.f32.mrb[0].mxu0
      %v4626 = vadd.f32 0.0, %v4625
      %v4627 = vpop.f32.mrb[0].mxu0
      %4628 = vmatprep.mubr.f32.mxu0 0.0
      %4629 = vmatmul.mubr.f32.gmra.mrb[0].mxu0 %v4344
      %v4630 = vpop.f32.mrb[0].mxu0
      %v4631 = vadd.f32 0.0, %v4630
      %v4632 = vpop.f32.mrb[0].mxu0
      %4633 = vmatprep.mubr.f32.mxu0 0.0
      %4634 = vmatmul.mubr.f32.gmra.mrb[0].mxu0 %v4347
      %v4635 = vpop.f32.mrb[0].mxu0
      %v4636 = vadd.f32 0.0, %v4635
      %v4637 = vpop.f32.mrb[0].mxu0
      %4638 = vmatprep.mubr.f32.mxu0 0.0
      %4639 = vmatmul.mubr.f32.gmra.mrb[0].mxu0 %v4350
      %v4640 = vpop.f32.mrb[0].mxu0
      %v4641 = vadd.f32 0.0, %v4640
      %v4642 = vpop.f32.mrb[0].mxu0
      %4643 = vmatprep.mubr.f32.mxu0 0.0
      %4644 = vmatmul.mubr.f32.gmra.mrb[0].mxu0 %v4353
      %v4645 = vpop.f32.mrb[0].mxu0
      %v4646 = vadd.f32 0.0, %v4645
      %v4647 = vpop.f32.mrb[0].mxu0
      %4648 = vmatprep.mubr.f32.mxu0 0.0
      %4649 = vmatmul.mubr.f32.gmra.mrb[0].mxu0 %v4356
      %v4650 = vpop.f32.mrb[0].mxu0
      %v4651 = vadd.f32 0.0, %v4650
      %v4652 = vpop.f32.mrb[0].mxu0
      %4653 = vmatprep.mubr.f32.mxu0 0.0
      %4654 = vmatmul.mubr.f32.gmra.mrb[0].mxu0 %v4359
      %v4655 = vpop.f32.mrb[0].mxu0
      %v4656 = vadd.f32 0.0, %v4655
      %v4657 = vpop.f32.mrb[0].mxu0
      %4658 = vmatprep.mubr.f32.mxu0 0.0
      %4659 = vmatmul.mubr.f32.gmra.mrb[0].mxu0 %v4362
      %v4660 = vpop.f32.mrb[0].mxu0
      %v4661 = vadd.f32 0.0, %v4660
      %v4662 = vpop.f32.mrb[0].mxu0
      %4663 = vmatprep.mubr.f32.mxu0 0.0
      %4664 = vmatmul.mubr.f32.gmra.mrb[0].mxu0 %v4365
      %v4665 = vpop.f32.mrb[0].mxu0
      %v4666 = vadd.f32 0.0, %v4665
      %v4667 = vpop.f32.mrb[0].mxu0
      %4668 = vmatprep.mubr.f32.mxu0 0.0
      %4669 = vmatmul.mubr.f32.gmra.mrb[0].mxu0 %v4368
      %v4670 = vpop.f32.mrb[0].mxu0
      %v4671 = vadd.f32 0.0, %v4670
      %v4672 = vpop.f32.mrb[0].mxu0
      %4673 = vmatprep.mubr.f32.mxu0 0.0
      %4674 = vmatmul.mubr.f32.gmra.mrb[0].mxu0 %v4371
      %v4675 = vpop.f32.mrb[0].mxu0
      %v4676 = vadd.f32 0.0, %v4675
      %v4677 = vpop.f32.mrb[0].mxu0
      %4678 = vmatprep.mubr.f32.mxu0 0.0
      %4679 = vmatmul.mubr.f32.gmra.mrb[0].mxu0 %v4374
      %v4680 = vpop.f32.mrb[0].mxu0
      %v4681 = vadd.f32 0.0, %v4680
      %v4682 = vpop.f32.mrb[0].mxu0
      %4683 = vmatprep.mubr.f32.mxu0 0.0
      %4684 = vmatmul.mubr.f32.gmra.mrb[0].mxu0 %v4377
      %v4685 = vpop.f32.mrb[0].mxu0
      %v4686 = vadd.f32 0.0, %v4685
      %v4687 = vpop.f32.mrb[0].mxu0
      %4688 = vmatprep.mubr.f32.mxu0 0.0
      %4689 = vmatmul.mubr.f32.gmra.mrb[0].mxu0 %v4380
      %v4690 = vpop.f32.mrb[0].mxu0
      %v4691 = vadd.f32 0.0, %v4690
      %v4692 = vpop.f32.mrb[0].mxu0
      %4693 = vmatprep.mubr.f32.mxu0 0.0
      %4694 = vmatmul.mubr.f32.gmra.mrb[0].mxu0 %v4383
      %v4695 = vpop.f32.mrb[0].mxu0
      %v4696 = vadd.f32 0.0, %v4695
      %v4697 = vpop.f32.mrb[0].mxu0
      %4698 = vmatprep.mubr.f32.mxu0 0.0
      %4699 = vmatmul.mubr.f32.gmra.mrb[0].mxu0 %v4386
      %v4700 = vpop.f32.mrb[0].mxu0
      %v4701 = vadd.f32 0.0, %v4700
      %v4702 = vpop.f32.mrb[0].mxu0
      %4703 = vmatprep.mubr.f32.mxu0 0.0
      %4704 = vmatmul.mubr.f32.gmra.mrb[0].mxu0 %v4389
      %v4705 = vpop.f32.mrb[0].mxu0
      %v4706 = vadd.f32 0.0, %v4705
      %v4707 = vpop.f32.mrb[0].mxu0
      %4708 = vmatprep.mubr.f32.mxu0 0.0
      %4709 = vmatmul.mubr.f32.gmra.mrb[0].mxu0 %v4392
      %v4710 = vpop.f32.mrb[0].mxu0
      %v4711 = vadd.f32 0.0, %v4710
      %v4712 = vpop.f32.mrb[0].mxu0
      %4713 = vmatprep.mubr.f32.mxu0 0.0
      %4714 = vmatmul.mubr.f32.gmra.mrb[0].mxu0 %v4395
      %v4715 = vpop.f32.mrb[0].mxu0
      %v4716 = vadd.f32 0.0, %v4715
      %v4717 = vpop.f32.mrb[0].mxu0
      %4718 = vmatprep.mubr.f32.mxu0 0.0
      %4719 = vmatmul.mubr.f32.gmra.mrb[0].mxu0 %v4398
      %v4720 = vpop.f32.mrb[0].mxu0
      %v4721 = vadd.f32 0.0, %v4720
      %v4722 = vpop.f32.mrb[0].mxu0
      %4723 = vmatprep.mubr.f32.mxu0 0.0
      %4724 = vmatmul.mubr.f32.gmra.mrb[0].mxu0 %v4401
      %v4725 = vpop.f32.mrb[0].mxu0
      %v4726 = vadd.f32 0.0, %v4725
      %v4727 = vpop.f32.mrb[0].mxu0
      %4728 = vmatprep.mubr.f32.mxu0 0.0
      %4729 = vmatmul.mubr.f32.gmra.mrb[0].mxu0 %v4404
      %v4730 = vpop.f32.mrb[0].mxu0
      %v4731 = vadd.f32 0.0, %v4730
      %v4732 = vpop.f32.mrb[0].mxu0
      %4733 = vmatprep.mubr.f32.mxu0 0.0
      %4734 = vmatmul.mubr.f32.gmra.mrb[0].mxu0 %v4407
      %v4735 = vpop.f32.mrb[0].mxu0
      %v4736 = vadd.f32 0.0, %v4735
      %v4737 = vpop.f32.mrb[0].mxu0
      %4738 = vmatprep.mubr.f32.mxu0 0.0
      %4739 = vmatmul.mubr.f32.gmra.mrb[0].mxu0 %v4410
      %v4740 = vpop.f32.mrb[0].mxu0
      %v4741 = vadd.f32 0.0, %v4740
      %v4742 = vpop.f32.mrb[0].mxu0
      %4743 = vmatprep.mubr.f32.mxu0 0.0
      %4744 = vmatmul.mubr.f32.gmra.mrb[0].mxu0 %v4413
      %v4745 = vpop.f32.mrb[0].mxu0
      %v4746 = vadd.f32 0.0, %v4745
      %v4747 = vpop.f32.mrb[0].mxu0
      %4748 = vmatprep.mubr.f32.mxu0 0.0
      %4749 = vmatmul.mubr.f32.gmra.mrb[0].mxu0 %v4416
      %v4750 = vpop.f32.mrb[0].mxu0
      %v4751 = vadd.f32 0.0, %v4750
      %v4752 = vpop.f32.mrb[0].mxu0
      %4753 = vmatprep.mubr.f32.mxu0 0.0
      %4754 = vmatmul.mubr.f32.gmra.mrb[0].mxu0 %v4419
      %v4755 = vpop.f32.mrb[0].mxu0
      %v4756 = vadd.f32 0.0, %v4755
      %v4757 = vpop.f32.mrb[0].mxu0
      %4758 = vmatprep.mubr.f32.mxu0 0.0
      %4759 = vmatmul.mubr.f32.gmra.mrb[0].mxu0 %v4422
      %v4760 = vpop.f32.mrb[0].mxu0
      %v4761 = vadd.f32 0.0, %v4760
      %v4762 = vpop.f32.mrb[0].mxu0
      %4763 = vmatprep.mubr.f32.mxu0 0.0
      %4764 = vmatmul.mubr.f32.gmra.mrb[0].mxu0 %v4425
      %v4765 = vpop.f32.mrb[0].mxu0
      %v4766 = vadd.f32 0.0, %v4765
      %v4767 = vpop.f32.mrb[0].mxu0
      %4768 = vmatprep.mubr.f32.mxu0 0.0
      %4769 = vmatmul.mubr.f32.gmra.mrb[0].mxu0 %v4428
      %v4770 = vpop.f32.mrb[0].mxu0
      %v4771 = vadd.f32 0.0, %v4770
      %v4772 = vpop.f32.mrb[0].mxu0
      %4773 = vmatprep.mubr.f32.mxu0 0.0
      %4774 = vmatmul.mubr.f32.gmra.mrb[0].mxu0 %v4431
      %v4775 = vpop.f32.mrb[0].mxu0
      %v4776 = vadd.f32 0.0, %v4775
      %v4777 = vpop.f32.mrb[0].mxu0
      %4778 = vmatprep.mubr.f32.mxu0 0.0
      %4779 = vmatmul.mubr.f32.gmra.mrb[0].mxu0 %v4434
      %v4780 = vpop.f32.mrb[0].mxu0
      %v4781 = vadd.f32 0.0, %v4780
      %v4782 = vpop.f32.mrb[0].mxu0
      %4783 = vmatprep.mubr.f32.mxu0 0.0
      %4784 = vmatmul.mubr.f32.gmra.mrb[0].mxu0 %v4437
      %v4785 = vpop.f32.mrb[0].mxu0
      %v4786 = vadd.f32 0.0, %v4785
      %v4787 = vpop.f32.mrb[0].mxu0
      %4788 = vmatprep.mubr.f32.mxu0 0.0
      %4789 = vmatmul.mubr.f32.gmra.mrb[0].mxu0 %v4440
      %v4790 = vpop.f32.mrb[0].mxu0
      %v4791 = vadd.f32 0.0, %v4790
      %v4792 = vpop.f32.mrb[0].mxu0
      %4793 = vmatprep.mubr.f32.mxu0 0.0
      %4794 = vmatmul.mubr.f32.gmra.mrb[0].mxu0 %v4443
      %v4795 = vpop.f32.mrb[0].mxu0
      %v4796 = vadd.f32 0.0, %v4795
      %v4797 = vpop.f32.mrb[0].mxu0
      %4798 = vmatprep.mubr.f32.mxu0 0.0
      %4799 = vmatmul.mubr.f32.gmra.mrb[0].mxu0 %v4446
      %v4800 = vpop.f32.mrb[0].mxu0
      %v4801 = vadd.f32 0.0, %v4800
      %v4802 = vpop.f32.mrb[0].mxu0
      %4803 = vmatprep.mubr.f32.mxu0 0.0
      %4804 = vmatmul.mubr.f32.gmra.mrb[0].mxu0 %v4449
      %v4805 = vpop.f32.mrb[0].mxu0
      %v4806 = vadd.f32 0.0, %v4805
      %v4807 = vpop.f32.mrb[0].mxu0
      %4808 = vmatprep.mubr.f32.mxu0 0.0
      %4809 = vmatmul.mubr.f32.gmra.mrb[0].mxu0 %v4452
      %v4810 = vpop.f32.mrb[0].mxu0
      %v4811 = vadd.f32 0.0, %v4810
      %v4812 = vpop.f32.mrb[0].mxu0
      %4813 = vmatprep.mubr.f32.mxu0 0.0
      %4814 = vmatmul.mubr.f32.gmra.mrb[0].mxu0 %v4455
      %v4815 = vpop.f32.mrb[0].mxu0
      %v4816 = vadd.f32 0.0, %v4815
      %v4817 = vpop.f32.mrb[0].mxu0
      %4818 = vmatprep.mubr.f32.mxu0 0.0
      %4819 = vmatmul.mubr.f32.gmra.mrb[0].mxu0 %v4458
      %v4820 = vpop.f32.mrb[0].mxu0
      %v4821 = vadd.f32 0.0, %v4820
      %v4822 = vpop.f32.mrb[0].mxu0
      %4823 = vmatprep.mubr.f32.mxu0 0.0
      %4824 = vmatmul.mubr.f32.gmra.mrb[0].mxu0 %v4461
      %v4825 = vpop.f32.mrb[0].mxu0
      %v4826 = vadd.f32 0.0, %v4825
      %v4827 = vpop.f32.mrb[0].mxu0
      %4828 = vmatprep.mubr.f32.mxu0 0.0
      %4829 = vmatmul.mubr.f32.gmra.mrb[0].mxu0 %v4464
      %v4830 = vpop.f32.mrb[0].mxu0
      %v4831 = vadd.f32 0.0, %v4830
      %v4832 = vpop.f32.mrb[0].mxu0
      %4833 = vmatprep.mubr.f32.mxu0 0.0
      %4834 = vmatmul.mubr.f32.gmra.mrb[0].mxu0 %v4467
      %v4835 = vpop.f32.mrb[0].mxu0
      %v4836 = vadd.f32 0.0, %v4835
      %v4837 = vpop.f32.mrb[0].mxu0
      %4838 = vmatprep.mubr.f32.mxu0 0.0
      %4839 = vmatmul.mubr.f32.gmra.mrb[0].mxu0 %v4470
      %v4840 = vpop.f32.mrb[0].mxu0
      %v4841 = vadd.f32 0.0, %v4840
      %v4842 = vpop.f32.mrb[0].mxu0
      %4843 = vmatprep.mubr.f32.mxu0 0.0
      %4844 = vmatmul.mubr.f32.gmra.mrb[0].mxu0 %v4473
      %v4845 = vpop.f32.mrb[0].mxu0
      %v4846 = vadd.f32 0.0, %v4845
      %v4847 = vpop.f32.mrb[0].mxu0
      %4848 = vmatprep.mubr.f32.mxu0 0.0
      %4849 = vmatmul.mubr.f32.gmra.mrb[0].mxu0 %v4476
      %v4850 = vpop.f32.mrb[0].mxu0
      %v4851 = vadd.f32 0.0, %v4850
      %v4852 = vpop.f32.mrb[0].mxu0
      %4853 = vmatprep.mubr.f32.mxu0 0.0
      %4854 = vmatmul.mubr.f32.gmra.mrb[0].mxu0 %v4479
      %v4855 = vpop.f32.mrb[0].mxu0
      %v4856 = vadd.f32 0.0, %v4855
      %v4857 = vpop.f32.mrb[0].mxu0
      %4858 = vmatprep.mubr.f32.mxu0 0.0
      %4859 = vmatmul.mubr.f32.gmra.mrb[0].mxu0 %v4482
      %v4860 = vpop.f32.mrb[0].mxu0
      %v4861 = vadd.f32 0.0, %v4860
      %v4862 = vpop.f32.mrb[0].mxu0
      %4863 = vmatprep.mubr.f32.mxu0 0.0
      %4864 = vmatmul.mubr.f32.gmra.mrb[0].mxu0 %v4485
      %v4865 = vpop.f32.mrb[0].mxu0
      %v4866 = vadd.f32 0.0, %v4865
      %v4867 = vpop.f32.mrb[0].mxu0
      %4868 = vmatprep.mubr.f32.mxu0 0.0
      %4869 = vmatmul.mubr.f32.gmra.mrb[0].mxu0 %v4488
      %v4870 = vpop.f32.mrb[0].mxu0
      %v4871 = vadd.f32 0.0, %v4870
      %v4872 = vpop.f32.mrb[0].mxu0
      %4873 = vmatprep.mubr.f32.mxu0 0.0
      %4874 = vmatmul.mubr.f32.gmra.mrb[0].mxu0 %v4491
      %v4875 = vpop.f32.mrb[0].mxu0
      %v4876 = vadd.f32 0.0, %v4875
      %v4877 = vpop.f32.mrb[0].mxu0
      %4878 = vmatprep.mubr.f32.mxu0 0.0
      %4879 = vmatmul.mubr.f32.gmra.mrb[0].mxu0 %v4494
      %v4880 = vpop.f32.mrb[0].mxu0
      %v4881 = vadd.f32 0.0, %v4880
      %v4882 = vpop.f32.mrb[0].mxu0
      %4883 = vmatprep.mubr.f32.mxu0 0.0
      %4884 = vmatmul.mubr.f32.gmra.mrb[0].mxu0 %v4497
      %v4885 = vpop.f32.mrb[0].mxu0
      %v4886 = vadd.f32 0.0, %v4885
      %v4887 = vpop.f32.mrb[0].mxu0
      %4888 = vmatprep.mubr.f32.mxu0 0.0
      %4889 = vmatmul.mubr.f32.gmra.mrb[0].mxu0 %v4500
      %v4890 = vpop.f32.mrb[0].mxu0
      %v4891 = vadd.f32 0.0, %v4890
      %v4892 = vpop.f32.mrb[0].mxu0
      %4893 = vmatprep.mubr.f32.mxu0 0.0
      %4894 = vmatmul.mubr.f32.gmra.mrb[0].mxu0 %v4503
      %v4895 = vpop.f32.mrb[0].mxu0
      %v4896 = vadd.f32 0.0, %v4895
      %v4897 = vpop.f32.mrb[0].mxu0
      %4898 = vmatprep.mubr.f32.mxu0 0.0
      %4899 = vmatmul.mubr.f32.gmra.mrb[0].mxu0 %v4506
      %v4900 = vpop.f32.mrb[0].mxu0
      %v4901 = vadd.f32 0.0, %v4900
      %v4902 = vpop.f32.mrb[0].mxu0
      %4903 = vmatprep.mubr.f32.mxu0 0.0
      %4904 = vmatmul.mubr.f32.gmra.mrb[0].mxu0 %v4509
      %v4905 = vpop.f32.mrb[0].mxu0
      %v4906 = vadd.f32 0.0, %v4905
      %v4907 = vpop.f32.mrb[0].mxu0
      %4908 = vmatprep.mubr.f32.mxu0 0.0
      %4909 = vmatmul.mubr.f32.gmra.mrb[0].mxu0 %v4512
      %v4910 = vpop.f32.mrb[0].mxu0
      %v4911 = vadd.f32 0.0, %v4910
      %v4912 = vpop.f32.mrb[0].mxu0
      %4913 = vmatprep.mubr.f32.mxu0 0.0
      %4914 = vmatmul.mubr.f32.gmra.mrb[0].mxu0 %v4515
      %v4915 = vpop.f32.mrb[0].mxu0
      %v4916 = vadd.f32 0.0, %v4915
      %v4917 = vpop.f32.mrb[0].mxu0
      %4918 = vmatprep.mubr.f32.mxu0 0.0
      %4919 = vmatmul.mubr.f32.gmra.mrb[0].mxu0 %v4518
      %v4920 = vpop.f32.mrb[0].mxu0
      %v4921 = vadd.f32 0.0, %v4920
      %v4922 = vpop.f32.mrb[0].mxu0
      %4923 = vmatprep.mubr.f32.mxu0 0.0
      %4924 = vmatmul.mubr.f32.gmra.mrb[0].mxu0 %v4521
      %v4925 = vpop.f32.mrb[0].mxu0
      %v4926 = vadd.f32 0.0, %v4925
      %v4927 = vpop.f32.mrb[0].mxu0
      %4928 = vmatprep.mubr.f32.mxu0 0.0
      %4929 = vmatmul.mubr.f32.gmra.mrb[0].mxu0 %v4524
      %v4930 = vpop.f32.mrb[0].mxu0
      %v4931 = vadd.f32 0.0, %v4930
      %v4932 = vpop.f32.mrb[0].mxu0
      %4933 = vmatprep.mubr.f32.mxu0 0.0
      %4934 = vmatmul.mubr.f32.gmra.mrb[0].mxu0 %v4527
      %v4935 = vpop.f32.mrb[0].mxu0
      %v4936 = vadd.f32 0.0, %v4935
      %v4937 = vpop.f32.mrb[0].mxu0
      %4938 = vmatprep.mubr.f32.mxu0 0.0
      %4939 = vmatmul.mubr.f32.gmra.mrb[0].mxu0 %v4530
      %v4940 = vpop.f32.mrb[0].mxu0
      %v4941 = vadd.f32 0.0, %v4940
      %v4942 = vpop.f32.mrb[0].mxu0
      %4943 = vmatprep.mubr.f32.mxu0 0.0
      %4944 = vmatmul.mubr.f32.gmra.mrb[0].mxu0 %v4533
      %v4945 = vpop.f32.mrb[0].mxu0
      %v4946 = vadd.f32 0.0, %v4945
      %v4947 = vpop.f32.mrb[0].mxu0
      %4948 = vmatprep.mubr.f32.mxu0 0.0
      %4949 = vmatmul.mubr.f32.gmra.mrb[0].mxu0 %v4536
      %v4950 = vpop.f32.mrb[0].mxu0
      %v4951 = vadd.f32 0.0, %v4950
      %v4952 = vpop.f32.mrb[0].mxu0
      %4953 = vmatprep.mubr.f32.mxu0 0.0
      %4954 = vmatmul.mubr.f32.gmra.mrb[0].mxu0 %v4539
      %v4955 = vpop.f32.mrb[0].mxu0
      %v4956 = vadd.f32 0.0, %v4955
      %v4957 = vpop.f32.mrb[0].mxu0
      %4958 = vmatprep.mubr.f32.mxu0 0.0
      %4959 = vmatmul.mubr.f32.gmra.mrb[0].mxu0 %v4542
      %v4960 = vpop.f32.mrb[0].mxu0
      %v4961 = vadd.f32 0.0, %v4960
      %v4962 = vpop.f32.mrb[0].mxu0
      %4963 = vmatprep.mubr.f32.mxu0 0.0
      %4964 = vmatmul.mubr.f32.gmra.mrb[0].mxu0 %v4545
      %v4965 = vpop.f32.mrb[0].mxu0
      %v4966 = vadd.f32 0.0, %v4965
      %v4967 = vpop.f32.mrb[0].mxu0
      %4968 = vmatprep.mubr.f32.mxu0 0.0
      %4969 = vmatmul.mubr.f32.gmra.mrb[0].mxu0 %v4548
      %v4970 = vpop.f32.mrb[0].mxu0
      %v4971 = vadd.f32 0.0, %v4970
      %v4972 = vpop.f32.mrb[0].mxu0
      %4973 = vmatprep.mubr.f32.mxu0 0.0
      %4974 = vmatmul.mubr.f32.gmra.mrb[0].mxu0 %v4551
      %v4975 = vpop.f32.mrb[0].mxu0
      %v4976 = vadd.f32 0.0, %v4975
      %v4977 = vpop.f32.mrb[0].mxu0
      %4978 = vmatprep.mubr.f32.mxu0 0.0
      %4979 = vmatmul.mubr.f32.gmra.mrb[0].mxu0 %v4554
      %v4980 = vpop.f32.mrb[0].mxu0
      %v4981 = vadd.f32 0.0, %v4980
      %v4982 = vpop.f32.mrb[0].mxu0
      %4983 = vdwg.mxu0
      %v4984 = vadd.f32 %v4194, %v4626
      %v4985 = vadd.f32 %v4195, %v4631
      %v4986 = vadd.f32 %v4196, %v4636
      %v4987 = vadd.f32 %v4197, %v4641
      %v4988 = vadd.f32 %v4198, %v4646
      %v4989 = vadd.f32 %v4199, %v4651
      %v4990 = vadd.f32 %v4200, %v4656
      %v4991 = vadd.f32 %v4201, %v4661
      %v4992 = vadd.f32 %v4202, %v4666
      %v4993 = vadd.f32 %v4203, %v4671
      %v4994 = vadd.f32 %v4204, %v4676
      %v4995 = vadd.f32 %v4205, %v4681
      %v4996 = vadd.f32 %v4206, %v4686
      %v4997 = vadd.f32 %v4207, %v4691
      %v4998 = vadd.f32 %v4208, %v4696
      %v4999 = vadd.f32 %v4209, %v4701
      %v5000 = vadd.f32 %v4210, %v4706
      %v5001 = vadd.f32 %v4211, %v4711
      %v5002 = vadd.f32 %v4212, %v4716
      %v5003 = vadd.f32 %v4213, %v4721
      %v5004 = vadd.f32 %v4214, %v4726
      %v5005 = vadd.f32 %v4215, %v4731
      %v5006 = vadd.f32 %v4216, %v4736
      %v5007 = vadd.f32 %v4217, %v4741
      %v5008 = vadd.f32 %v4218, %v4746
      %v5009 = vadd.f32 %v4219, %v4751
      %v5010 = vadd.f32 %v4220, %v4756
      %v5011 = vadd.f32 %v4221, %v4761
      %v5012 = vadd.f32 %v4222, %v4766
      %v5013 = vadd.f32 %v4223, %v4771
      %v5014 = vadd.f32 %v4224, %v4776
      %v5015 = vadd.f32 %v4225, %v4781
      %v5016 = vadd.f32 %v4226, %v4786
      %v5017 = vadd.f32 %v4227, %v4791
      %v5018 = vadd.f32 %v4228, %v4796
      %v5019 = vadd.f32 %v4229, %v4801
      %v5020 = vadd.f32 %v4230, %v4806
      %v5021 = vadd.f32 %v4231, %v4811
      %v5022 = vadd.f32 %v4232, %v4816
      %v5023 = vadd.f32 %v4233, %v4821
      %v5024 = vadd.f32 %v4234, %v4826
      %v5025 = vadd.f32 %v4235, %v4831
      %v5026 = vadd.f32 %v4236, %v4836
      %v5027 = vadd.f32 %v4237, %v4841
      %v5028 = vadd.f32 %v4238, %v4846
      %v5029 = vadd.f32 %v4239, %v4851
      %v5030 = vadd.f32 %v4240, %v4856
      %v5031 = vadd.f32 %v4241, %v4861
      %v5032 = vadd.f32 %v4242, %v4866
      %v5033 = vadd.f32 %v4243, %v4871
      %v5034 = vadd.f32 %v4244, %v4876
      %v5035 = vadd.f32 %v4245, %v4881
      %v5036 = vadd.f32 %v4246, %v4886
      %v5037 = vadd.f32 %v4247, %v4891
      %v5038 = vadd.f32 %v4248, %v4896
      %v5039 = vadd.f32 %v4249, %v4901
      %v5040 = vadd.f32 %v4250, %v4906
      %v5041 = vadd.f32 %v4251, %v4911
      %v5042 = vadd.f32 %v4252, %v4916
      %v5043 = vadd.f32 %v4253, %v4921
      %v5044 = vadd.f32 %v4254, %v4926
      %v5045 = vadd.f32 %v4255, %v4931
      %v5046 = vadd.f32 %v4256, %v4936
      %v5047 = vadd.f32 %v4257, %v4941
      %v5048 = vadd.f32 %v4258, %v4946
      %v5049 = vadd.f32 %v4259, %v4951
      %v5050 = vadd.f32 %v4260, %v4956
      %v5051 = vadd.f32 %v4261, %v4961
      %v5052 = vadd.f32 %v4262, %v4966
      %v5053 = vadd.f32 %v4263, %v4971
      %v5054 = vadd.f32 %v4264, %v4976
      %v5055 = vadd.f32 %v4265, %v4981
      %v5056 = vld [vmem:[%s300 + $0x47] sm:$0xff]
      %v5057 = vld [vmem:[%s300 + $0x4f] sm:$0xff]
      %v5058 = vld [vmem:[%s300 + $0x57] sm:$0xff]
      %v5059 = vld [vmem:[%s300 + $0x5f] sm:$0xff]
      %v5060 = vld [vmem:[%s300 + $0x67] sm:$0xff]
      %v5061 = vld [vmem:[%s300 + $0x6f] sm:$0xff]
      %v5062 = vld [vmem:[%s300 + $0x77] sm:$0xff]
      %v5063 = vld [vmem:[%s300 + $0x7f] sm:$0xff]
      %v5064 = vld [vmem:[%s300 + $0x87] sm:$0xff]
      %v5065 = vld [vmem:[%s300 + $0x8f] sm:$0xff]
      %v5066 = vld [vmem:[%s300 + $0x97] sm:$0xff]
      %v5067 = vld [vmem:[%s300 + $0x9f] sm:$0xff]
      %v5068 = vld [vmem:[%s300 + $0xa7] sm:$0xff]
      %v5069 = vld [vmem:[%s300 + $0xaf] sm:$0xff]
      %v5070 = vld [vmem:[%s300 + $0xb7] sm:$0xff]
      %v5071 = vld [vmem:[%s300 + $0xbf] sm:$0xff]
      %v5072 = vld [vmem:[%s300 + $0xc7] sm:$0xff]
      %v5073 = vld [vmem:[%s300 + $0xcf] sm:$0xff]
      %v5074 = vld [vmem:[%s300 + $0xd7] sm:$0xff]
      %v5075 = vld [vmem:[%s300 + $0xdf] sm:$0xff]
      %v5076 = vld [vmem:[%s300 + $0xe7] sm:$0xff]
      %v5077 = vld [vmem:[%s300 + $0xef] sm:$0xff]
      %v5078 = vld [vmem:[%s300 + $0xf7] sm:$0xff]
      %v5079 = vld [vmem:[%s300 + $0xff] sm:$0xff]
      %v5080 = vld [vmem:[%s300 + $0x107] sm:$0xff]
      %v5081 = vld [vmem:[%s300 + $0x10f] sm:$0xff]
      %v5082 = vld [vmem:[%s300 + $0x117] sm:$0xff]
      %v5083 = vld [vmem:[%s300 + $0x11f] sm:$0xff]
      %v5084 = vld [vmem:[%s300 + $0x127] sm:$0xff]
      %v5085 = vld [vmem:[%s300 + $0x12f] sm:$0xff]
      %v5086 = vld [vmem:[%s300 + $0x137] sm:$0xff]
      %v5087 = vld [vmem:[%s300 + $0x13f] sm:$0xff]
      %v5088 = vld [vmem:[%s300 + $0x147] sm:$0xff]
      %v5089 = vld [vmem:[%s300 + $0x14f] sm:$0xff]
      %v5090 = vld [vmem:[%s300 + $0x157] sm:$0xff]
      %v5091 = vld [vmem:[%s300 + $0x15f] sm:$0xff]
      %v5092 = vld [vmem:[%s300 + $0x167] sm:$0xff]
      %v5093 = vld [vmem:[%s300 + $0x16f] sm:$0xff]
      %v5094 = vld [vmem:[%s300 + $0x177] sm:$0xff]
      %v5095 = vld [vmem:[%s300 + $0x17f] sm:$0xff]
      %v5096 = vld [vmem:[%s300 + $0x187] sm:$0xff]
      %v5097 = vld [vmem:[%s300 + $0x18f] sm:$0xff]
      %v5098 = vld [vmem:[%s300 + $0x197] sm:$0xff]
      %v5099 = vld [vmem:[%s300 + $0x19f] sm:$0xff]
      %v5100 = vld [vmem:[%s300 + $0x1a7] sm:$0xff]
      %v5101 = vld [vmem:[%s300 + $0x1af] sm:$0xff]
      %v5102 = vld [vmem:[%s300 + $0x1b7] sm:$0xff]
      %v5103 = vld [vmem:[%s300 + $0x1bf] sm:$0xff]
      %v5104 = vld [vmem:[%s300 + $0x1c7] sm:$0xff]
      %v5105 = vld [vmem:[%s300 + $0x1cf] sm:$0xff]
      %v5106 = vld [vmem:[%s300 + $0x1d7] sm:$0xff]
      %v5107 = vld [vmem:[%s300 + $0x1df] sm:$0xff]
      %v5108 = vld [vmem:[%s300 + $0x1e7] sm:$0xff]
      %v5109 = vld [vmem:[%s300 + $0x1ef] sm:$0xff]
      %v5110 = vld [vmem:[%s300 + $0x1f7] sm:$0xff]
      %v5111 = vld [vmem:[%s300 + $0x1ff] sm:$0xff]
      %v5112 = vld [vmem:[%s300 + $0x207] sm:$0xff]
      %v5113 = vld [vmem:[%s300 + $0x20f] sm:$0xff]
      %v5114 = vld [vmem:[%s300 + $0x217] sm:$0xff]
      %v5115 = vld [vmem:[%s300 + $0x21f] sm:$0xff]
      %v5116 = vld [vmem:[%s300 + $0x227] sm:$0xff]
      %v5117 = vld [vmem:[%s300 + $0x22f] sm:$0xff]
      %v5118 = vld [vmem:[%s300 + $0x237] sm:$0xff]
      %v5119 = vld [vmem:[%s300 + $0x23f] sm:$0xff]
      %v5120 = vld [vmem:[%s300 + $0x247] sm:$0xff]
      %v5121 = vld [vmem:[%s300 + $0x24f] sm:$0xff]
      %v5122 = vld [vmem:[%s300 + $0x257] sm:$0xff]
      %v5123 = vld [vmem:[%s300 + $0x25f] sm:$0xff]
      %v5124 = vld [vmem:[%s300 + $0x267] sm:$0xff]
      %v5125 = vld [vmem:[%s300 + $0x26f] sm:$0xff]
      %v5126 = vld [vmem:[%s300 + $0x277] sm:$0xff]
      %v5127 = vld [vmem:[%s300 + $0x27f] sm:$0xff]
      %s5128 = scalar_lea.vmem %s1, 24
      %v5129 = vld [vmem:[%s5128] sm:$0x7]
      %v5131 = vsel %vm606, %v5056, 0
      %v5134 = vsel %vm606, %v5057, 0
      %v5137 = vsel %vm606, %v5058, 0
      %v5140 = vsel %vm606, %v5059, 0
      %v5143 = vsel %vm606, %v5060, 0
      %v5146 = vsel %vm606, %v5061, 0
      %v5149 = vsel %vm606, %v5062, 0
      %v5152 = vsel %vm606, %v5063, 0
      %v5155 = vsel %vm606, %v5064, 0
      %v5158 = vsel %vm606, %v5065, 0
      %v5161 = vsel %vm606, %v5066, 0
      %v5164 = vsel %vm606, %v5067, 0
      %v5167 = vsel %vm606, %v5068, 0
      %v5170 = vsel %vm606, %v5069, 0
      %v5173 = vsel %vm606, %v5070, 0
      %v5176 = vsel %vm606, %v5071, 0
      %v5179 = vsel %vm606, %v5072, 0
      %v5182 = vsel %vm606, %v5073, 0
      %v5185 = vsel %vm606, %v5074, 0
      %v5188 = vsel %vm606, %v5075, 0
      %v5191 = vsel %vm606, %v5076, 0
      %v5194 = vsel %vm606, %v5077, 0
      %v5197 = vsel %vm606, %v5078, 0
      %v5200 = vsel %vm606, %v5079, 0
      %v5203 = vsel %vm606, %v5080, 0
      %v5206 = vsel %vm606, %v5081, 0
      %v5209 = vsel %vm606, %v5082, 0
      %v5212 = vsel %vm606, %v5083, 0
      %v5215 = vsel %vm606, %v5084, 0
      %v5218 = vsel %vm606, %v5085, 0
      %v5221 = vsel %vm606, %v5086, 0
      %v5224 = vsel %vm606, %v5087, 0
      %v5227 = vsel %vm606, %v5088, 0
      %v5230 = vsel %vm606, %v5089, 0
      %v5233 = vsel %vm606, %v5090, 0
      %v5236 = vsel %vm606, %v5091, 0
      %v5239 = vsel %vm606, %v5092, 0
      %v5242 = vsel %vm606, %v5093, 0
      %v5245 = vsel %vm606, %v5094, 0
      %v5248 = vsel %vm606, %v5095, 0
      %v5251 = vsel %vm606, %v5096, 0
      %v5254 = vsel %vm606, %v5097, 0
      %v5257 = vsel %vm606, %v5098, 0
      %v5260 = vsel %vm606, %v5099, 0
      %v5263 = vsel %vm606, %v5100, 0
      %v5266 = vsel %vm606, %v5101, 0
      %v5269 = vsel %vm606, %v5102, 0
      %v5272 = vsel %vm606, %v5103, 0
      %v5275 = vsel %vm606, %v5104, 0
      %v5278 = vsel %vm606, %v5105, 0
      %v5281 = vsel %vm606, %v5106, 0
      %v5284 = vsel %vm606, %v5107, 0
      %v5287 = vsel %vm606, %v5108, 0
      %v5290 = vsel %vm606, %v5109, 0
      %v5293 = vsel %vm606, %v5110, 0
      %v5296 = vsel %vm606, %v5111, 0
      %v5299 = vsel %vm606, %v5112, 0
      %v5302 = vsel %vm606, %v5113, 0
      %v5305 = vsel %vm606, %v5114, 0
      %v5308 = vsel %vm606, %v5115, 0
      %v5311 = vsel %vm606, %v5116, 0
      %v5314 = vsel %vm606, %v5117, 0
      %v5317 = vsel %vm606, %v5118, 0
      %v5320 = vsel %vm606, %v5119, 0
      %v5323 = vsel %vm606, %v5120, 0
      %v5326 = vsel %vm606, %v5121, 0
      %v5329 = vsel %vm606, %v5122, 0
      %v5332 = vsel %vm606, %v5123, 0
      %v5335 = vsel %vm606, %v5124, 0
      %v5338 = vsel %vm606, %v5125, 0
      %v5341 = vsel %vm606, %v5126, 0
      %v5344 = vsel %vm606, %v5127, 0
      %v5347 = vsel %vm823, %v5129, 0
      %5349 = vmatprep.subr.mxu0 0.0
      %5350 = vmatpush1.msra.mxu0 %v5347
      %5351 = vmatprep.subr.mxu0 0.0
      %5352 = vmatpush1.msra.mxu0 0.0
      %5353 = vmatprep.subr.mxu0 0.0
      %5354 = vmatpush1.msra.mxu0 0.0
      %5355 = vmatprep.subr.mxu0 0.0
      %5356 = vmatpush1.msra.mxu0 0.0
      %5357 = vmatprep.subr.mxu0 0.0
      %5358 = vmatpush1.msra.mxu0 0.0
      %5359 = vmatprep.subr.mxu0 0.0
      %5360 = vmatpush1.msra.mxu0 0.0
      %5361 = vmatprep.subr.mxu0 0.0
      %5362 = vmatpush1.msra.mxu0 0.0
      %5363 = vmatprep.subr.mxu0 0.0
      %5364 = vmatpush1.msra.mxu0 0.0
      %5365 = vmatprep.subr.mxu0 0.0
      %5366 = vmatpush1.msra.mxu0 0.0
      %5367 = vmatprep.subr.mxu0 0.0
      %5368 = vmatpush1.msra.mxu0 0.0
      %5369 = vmatprep.subr.mxu0 0.0
      %5370 = vmatpush1.msra.mxu0 0.0
      %5371 = vmatprep.subr.mxu0 0.0
      %5372 = vmatpush1.msra.mxu0 0.0
      %5373 = vmatprep.subr.mxu0 0.0
      %5374 = vmatpush1.msra.mxu0 0.0
      %5375 = vmatprep.subr.mxu0 0.0
      %5376 = vmatpush1.msra.mxu0 0.0
      %5377 = vmatprep.subr.mxu0 0.0
      %5378 = vmatpush1.msra.mxu0 0.0
      %5379 = vmatprep.subr.mxu0 0.0
      %5380 = vmatpush1.msra.mxu0 0.0
      %5381 = vmatprep.subr.mxu0 0.0
      %5382 = vmatpush1.msra.mxu0 0.0
      %5383 = vmatprep.subr.mxu0 0.0
      %5384 = vmatpush1.msra.mxu0 0.0
      %5385 = vmatprep.subr.mxu0 0.0
      %5386 = vmatpush1.msra.mxu0 0.0
      %5387 = vmatprep.subr.mxu0 0.0
      %5388 = vmatpush1.msra.mxu0 0.0
      %5389 = vmatprep.subr.mxu0 0.0
      %5390 = vmatpush1.msra.mxu0 0.0
      %5391 = vmatprep.subr.mxu0 0.0
      %5392 = vmatpush1.msra.mxu0 0.0
      %5393 = vmatprep.subr.mxu0 0.0
      %5394 = vmatpush1.msra.mxu0 0.0
      %5395 = vmatprep.subr.mxu0 0.0
      %5396 = vmatpush1.msra.mxu0 0.0
      %5397 = vmatprep.subr.mxu0 0.0
      %5398 = vmatpush1.msra.mxu0 0.0
      %5399 = vmatprep.subr.mxu0 0.0
      %5400 = vmatpush1.msra.mxu0 0.0
      %5401 = vmatprep.subr.mxu0 0.0
      %5402 = vmatpush1.msra.mxu0 0.0
      %5403 = vmatprep.subr.mxu0 0.0
      %5404 = vmatpush1.msra.mxu0 0.0
      %5405 = vmatprep.subr.mxu0 0.0
      %5406 = vmatpush1.msra.mxu0 0.0
      %5407 = vmatprep.subr.mxu0 0.0
      %5408 = vmatpush1.msra.mxu0 0.0
      %5409 = vmatprep.subr.mxu0 0.0
      %5410 = vmatpush1.msra.mxu0 0.0
      %5411 = vmatprep.subr.mxu0 0.0
      %5412 = vmatpush1.msra.mxu0 0.0
      %5413 = vmatprep.mubr.f32.mxu0 0.0
      %5414 = vmatmul.mubr.f32.gmra.mrb[0].mxu0 %v5131
      %v5415 = vpop.f32.mrb[0].mxu0
      %v5416 = vadd.f32 0.0, %v5415
      %v5417 = vpop.f32.mrb[0].mxu0
      %5418 = vmatprep.mubr.f32.mxu0 0.0
      %5419 = vmatmul.mubr.f32.gmra.mrb[0].mxu0 %v5134
      %v5420 = vpop.f32.mrb[0].mxu0
      %v5421 = vadd.f32 0.0, %v5420
      %v5422 = vpop.f32.mrb[0].mxu0
      %5423 = vmatprep.mubr.f32.mxu0 0.0
      %5424 = vmatmul.mubr.f32.gmra.mrb[0].mxu0 %v5137
      %v5425 = vpop.f32.mrb[0].mxu0
      %v5426 = vadd.f32 0.0, %v5425
      %v5427 = vpop.f32.mrb[0].mxu0
      %5428 = vmatprep.mubr.f32.mxu0 0.0
      %5429 = vmatmul.mubr.f32.gmra.mrb[0].mxu0 %v5140
      %v5430 = vpop.f32.mrb[0].mxu0
      %v5431 = vadd.f32 0.0, %v5430
      %v5432 = vpop.f32.mrb[0].mxu0
      %5433 = vmatprep.mubr.f32.mxu0 0.0
      %5434 = vmatmul.mubr.f32.gmra.mrb[0].mxu0 %v5143
      %v5435 = vpop.f32.mrb[0].mxu0
      %v5436 = vadd.f32 0.0, %v5435
      %v5437 = vpop.f32.mrb[0].mxu0
      %5438 = vmatprep.mubr.f32.mxu0 0.0
      %5439 = vmatmul.mubr.f32.gmra.mrb[0].mxu0 %v5146
      %v5440 = vpop.f32.mrb[0].mxu0
      %v5441 = vadd.f32 0.0, %v5440
      %v5442 = vpop.f32.mrb[0].mxu0
      %5443 = vmatprep.mubr.f32.mxu0 0.0
      %5444 = vmatmul.mubr.f32.gmra.mrb[0].mxu0 %v5149
      %v5445 = vpop.f32.mrb[0].mxu0
      %v5446 = vadd.f32 0.0, %v5445
      %v5447 = vpop.f32.mrb[0].mxu0
      %5448 = vmatprep.mubr.f32.mxu0 0.0
      %5449 = vmatmul.mubr.f32.gmra.mrb[0].mxu0 %v5152
      %v5450 = vpop.f32.mrb[0].mxu0
      %v5451 = vadd.f32 0.0, %v5450
      %v5452 = vpop.f32.mrb[0].mxu0
      %5453 = vmatprep.mubr.f32.mxu0 0.0
      %5454 = vmatmul.mubr.f32.gmra.mrb[0].mxu0 %v5155
      %v5455 = vpop.f32.mrb[0].mxu0
      %v5456 = vadd.f32 0.0, %v5455
      %v5457 = vpop.f32.mrb[0].mxu0
      %5458 = vmatprep.mubr.f32.mxu0 0.0
      %5459 = vmatmul.mubr.f32.gmra.mrb[0].mxu0 %v5158
      %v5460 = vpop.f32.mrb[0].mxu0
      %v5461 = vadd.f32 0.0, %v5460
      %v5462 = vpop.f32.mrb[0].mxu0
      %5463 = vmatprep.mubr.f32.mxu0 0.0
      %5464 = vmatmul.mubr.f32.gmra.mrb[0].mxu0 %v5161
      %v5465 = vpop.f32.mrb[0].mxu0
      %v5466 = vadd.f32 0.0, %v5465
      %v5467 = vpop.f32.mrb[0].mxu0
      %5468 = vmatprep.mubr.f32.mxu0 0.0
      %5469 = vmatmul.mubr.f32.gmra.mrb[0].mxu0 %v5164
      %v5470 = vpop.f32.mrb[0].mxu0
      %v5471 = vadd.f32 0.0, %v5470
      %v5472 = vpop.f32.mrb[0].mxu0
      %5473 = vmatprep.mubr.f32.mxu0 0.0
      %5474 = vmatmul.mubr.f32.gmra.mrb[0].mxu0 %v5167
      %v5475 = vpop.f32.mrb[0].mxu0
      %v5476 = vadd.f32 0.0, %v5475
      %v5477 = vpop.f32.mrb[0].mxu0
      %5478 = vmatprep.mubr.f32.mxu0 0.0
      %5479 = vmatmul.mubr.f32.gmra.mrb[0].mxu0 %v5170
      %v5480 = vpop.f32.mrb[0].mxu0
      %v5481 = vadd.f32 0.0, %v5480
      %v5482 = vpop.f32.mrb[0].mxu0
      %5483 = vmatprep.mubr.f32.mxu0 0.0
      %5484 = vmatmul.mubr.f32.gmra.mrb[0].mxu0 %v5173
      %v5485 = vpop.f32.mrb[0].mxu0
      %v5486 = vadd.f32 0.0, %v5485
      %v5487 = vpop.f32.mrb[0].mxu0
      %5488 = vmatprep.mubr.f32.mxu0 0.0
      %5489 = vmatmul.mubr.f32.gmra.mrb[0].mxu0 %v5176
      %v5490 = vpop.f32.mrb[0].mxu0
      %v5491 = vadd.f32 0.0, %v5490
      %v5492 = vpop.f32.mrb[0].mxu0
      %5493 = vmatprep.mubr.f32.mxu0 0.0
      %5494 = vmatmul.mubr.f32.gmra.mrb[0].mxu0 %v5179
      %v5495 = vpop.f32.mrb[0].mxu0
      %v5496 = vadd.f32 0.0, %v5495
      %v5497 = vpop.f32.mrb[0].mxu0
      %5498 = vmatprep.mubr.f32.mxu0 0.0
      %5499 = vmatmul.mubr.f32.gmra.mrb[0].mxu0 %v5182
      %v5500 = vpop.f32.mrb[0].mxu0
      %v5501 = vadd.f32 0.0, %v5500
      %v5502 = vpop.f32.mrb[0].mxu0
      %5503 = vmatprep.mubr.f32.mxu0 0.0
      %5504 = vmatmul.mubr.f32.gmra.mrb[0].mxu0 %v5185
      %v5505 = vpop.f32.mrb[0].mxu0
      %v5506 = vadd.f32 0.0, %v5505
      %v5507 = vpop.f32.mrb[0].mxu0
      %5508 = vmatprep.mubr.f32.mxu0 0.0
      %5509 = vmatmul.mubr.f32.gmra.mrb[0].mxu0 %v5188
      %v5510 = vpop.f32.mrb[0].mxu0
      %v5511 = vadd.f32 0.0, %v5510
      %v5512 = vpop.f32.mrb[0].mxu0
      %5513 = vmatprep.mubr.f32.mxu0 0.0
      %5514 = vmatmul.mubr.f32.gmra.mrb[0].mxu0 %v5191
      %v5515 = vpop.f32.mrb[0].mxu0
      %v5516 = vadd.f32 0.0, %v5515
      %v5517 = vpop.f32.mrb[0].mxu0
      %5518 = vmatprep.mubr.f32.mxu0 0.0
      %5519 = vmatmul.mubr.f32.gmra.mrb[0].mxu0 %v5194
      %v5520 = vpop.f32.mrb[0].mxu0
      %v5521 = vadd.f32 0.0, %v5520
      %v5522 = vpop.f32.mrb[0].mxu0
      %5523 = vmatprep.mubr.f32.mxu0 0.0
      %5524 = vmatmul.mubr.f32.gmra.mrb[0].mxu0 %v5197
      %v5525 = vpop.f32.mrb[0].mxu0
      %v5526 = vadd.f32 0.0, %v5525
      %v5527 = vpop.f32.mrb[0].mxu0
      %5528 = vmatprep.mubr.f32.mxu0 0.0
      %5529 = vmatmul.mubr.f32.gmra.mrb[0].mxu0 %v5200
      %v5530 = vpop.f32.mrb[0].mxu0
      %v5531 = vadd.f32 0.0, %v5530
      %v5532 = vpop.f32.mrb[0].mxu0
      %5533 = vmatprep.mubr.f32.mxu0 0.0
      %5534 = vmatmul.mubr.f32.gmra.mrb[0].mxu0 %v5203
      %v5535 = vpop.f32.mrb[0].mxu0
      %v5536 = vadd.f32 0.0, %v5535
      %v5537 = vpop.f32.mrb[0].mxu0
      %5538 = vmatprep.mubr.f32.mxu0 0.0
      %5539 = vmatmul.mubr.f32.gmra.mrb[0].mxu0 %v5206
      %v5540 = vpop.f32.mrb[0].mxu0
      %v5541 = vadd.f32 0.0, %v5540
      %v5542 = vpop.f32.mrb[0].mxu0
      %5543 = vmatprep.mubr.f32.mxu0 0.0
      %5544 = vmatmul.mubr.f32.gmra.mrb[0].mxu0 %v5209
      %v5545 = vpop.f32.mrb[0].mxu0
      %v5546 = vadd.f32 0.0, %v5545
      %v5547 = vpop.f32.mrb[0].mxu0
      %5548 = vmatprep.mubr.f32.mxu0 0.0
      %5549 = vmatmul.mubr.f32.gmra.mrb[0].mxu0 %v5212
      %v5550 = vpop.f32.mrb[0].mxu0
      %v5551 = vadd.f32 0.0, %v5550
      %v5552 = vpop.f32.mrb[0].mxu0
      %5553 = vmatprep.mubr.f32.mxu0 0.0
      %5554 = vmatmul.mubr.f32.gmra.mrb[0].mxu0 %v5215
      %v5555 = vpop.f32.mrb[0].mxu0
      %v5556 = vadd.f32 0.0, %v5555
      %v5557 = vpop.f32.mrb[0].mxu0
      %5558 = vmatprep.mubr.f32.mxu0 0.0
      %5559 = vmatmul.mubr.f32.gmra.mrb[0].mxu0 %v5218
      %v5560 = vpop.f32.mrb[0].mxu0
      %v5561 = vadd.f32 0.0, %v5560
      %v5562 = vpop.f32.mrb[0].mxu0
      %5563 = vmatprep.mubr.f32.mxu0 0.0
      %5564 = vmatmul.mubr.f32.gmra.mrb[0].mxu0 %v5221
      %v5565 = vpop.f32.mrb[0].mxu0
      %v5566 = vadd.f32 0.0, %v5565
      %v5567 = vpop.f32.mrb[0].mxu0
      %5568 = vmatprep.mubr.f32.mxu0 0.0
      %5569 = vmatmul.mubr.f32.gmra.mrb[0].mxu0 %v5224
      %v5570 = vpop.f32.mrb[0].mxu0
      %v5571 = vadd.f32 0.0, %v5570
      %v5572 = vpop.f32.mrb[0].mxu0
      %5573 = vmatprep.mubr.f32.mxu0 0.0
      %5574 = vmatmul.mubr.f32.gmra.mrb[0].mxu0 %v5227
      %v5575 = vpop.f32.mrb[0].mxu0
      %v5576 = vadd.f32 0.0, %v5575
      %v5577 = vpop.f32.mrb[0].mxu0
      %5578 = vmatprep.mubr.f32.mxu0 0.0
      %5579 = vmatmul.mubr.f32.gmra.mrb[0].mxu0 %v5230
      %v5580 = vpop.f32.mrb[0].mxu0
      %v5581 = vadd.f32 0.0, %v5580
      %v5582 = vpop.f32.mrb[0].mxu0
      %5583 = vmatprep.mubr.f32.mxu0 0.0
      %5584 = vmatmul.mubr.f32.gmra.mrb[0].mxu0 %v5233
      %v5585 = vpop.f32.mrb[0].mxu0
      %v5586 = vadd.f32 0.0, %v5585
      %v5587 = vpop.f32.mrb[0].mxu0
      %5588 = vmatprep.mubr.f32.mxu0 0.0
      %5589 = vmatmul.mubr.f32.gmra.mrb[0].mxu0 %v5236
      %v5590 = vpop.f32.mrb[0].mxu0
      %v5591 = vadd.f32 0.0, %v5590
      %v5592 = vpop.f32.mrb[0].mxu0
      %5593 = vmatprep.mubr.f32.mxu0 0.0
      %5594 = vmatmul.mubr.f32.gmra.mrb[0].mxu0 %v5239
      %v5595 = vpop.f32.mrb[0].mxu0
      %v5596 = vadd.f32 0.0, %v5595
      %v5597 = vpop.f32.mrb[0].mxu0
      %5598 = vmatprep.mubr.f32.mxu0 0.0
      %5599 = vmatmul.mubr.f32.gmra.mrb[0].mxu0 %v5242
      %v5600 = vpop.f32.mrb[0].mxu0
      %v5601 = vadd.f32 0.0, %v5600
      %v5602 = vpop.f32.mrb[0].mxu0
      %5603 = vmatprep.mubr.f32.mxu0 0.0
      %5604 = vmatmul.mubr.f32.gmra.mrb[0].mxu0 %v5245
      %v5605 = vpop.f32.mrb[0].mxu0
      %v5606 = vadd.f32 0.0, %v5605
      %v5607 = vpop.f32.mrb[0].mxu0
      %5608 = vmatprep.mubr.f32.mxu0 0.0
      %5609 = vmatmul.mubr.f32.gmra.mrb[0].mxu0 %v5248
      %v5610 = vpop.f32.mrb[0].mxu0
      %v5611 = vadd.f32 0.0, %v5610
      %v5612 = vpop.f32.mrb[0].mxu0
      %5613 = vmatprep.mubr.f32.mxu0 0.0
      %5614 = vmatmul.mubr.f32.gmra.mrb[0].mxu0 %v5251
      %v5615 = vpop.f32.mrb[0].mxu0
      %v5616 = vadd.f32 0.0, %v5615
      %v5617 = vpop.f32.mrb[0].mxu0
      %5618 = vmatprep.mubr.f32.mxu0 0.0
      %5619 = vmatmul.mubr.f32.gmra.mrb[0].mxu0 %v5254
      %v5620 = vpop.f32.mrb[0].mxu0
      %v5621 = vadd.f32 0.0, %v5620
      %v5622 = vpop.f32.mrb[0].mxu0
      %5623 = vmatprep.mubr.f32.mxu0 0.0
      %5624 = vmatmul.mubr.f32.gmra.mrb[0].mxu0 %v5257
      %v5625 = vpop.f32.mrb[0].mxu0
      %v5626 = vadd.f32 0.0, %v5625
      %v5627 = vpop.f32.mrb[0].mxu0
      %5628 = vmatprep.mubr.f32.mxu0 0.0
      %5629 = vmatmul.mubr.f32.gmra.mrb[0].mxu0 %v5260
      %v5630 = vpop.f32.mrb[0].mxu0
      %v5631 = vadd.f32 0.0, %v5630
      %v5632 = vpop.f32.mrb[0].mxu0
      %5633 = vmatprep.mubr.f32.mxu0 0.0
      %5634 = vmatmul.mubr.f32.gmra.mrb[0].mxu0 %v5263
      %v5635 = vpop.f32.mrb[0].mxu0
      %v5636 = vadd.f32 0.0, %v5635
      %v5637 = vpop.f32.mrb[0].mxu0
      %5638 = vmatprep.mubr.f32.mxu0 0.0
      %5639 = vmatmul.mubr.f32.gmra.mrb[0].mxu0 %v5266
      %v5640 = vpop.f32.mrb[0].mxu0
      %v5641 = vadd.f32 0.0, %v5640
      %v5642 = vpop.f32.mrb[0].mxu0
      %5643 = vmatprep.mubr.f32.mxu0 0.0
      %5644 = vmatmul.mubr.f32.gmra.mrb[0].mxu0 %v5269
      %v5645 = vpop.f32.mrb[0].mxu0
      %v5646 = vadd.f32 0.0, %v5645
      %v5647 = vpop.f32.mrb[0].mxu0
      %5648 = vmatprep.mubr.f32.mxu0 0.0
      %5649 = vmatmul.mubr.f32.gmra.mrb[0].mxu0 %v5272
      %v5650 = vpop.f32.mrb[0].mxu0
      %v5651 = vadd.f32 0.0, %v5650
      %v5652 = vpop.f32.mrb[0].mxu0
      %5653 = vmatprep.mubr.f32.mxu0 0.0
      %5654 = vmatmul.mubr.f32.gmra.mrb[0].mxu0 %v5275
      %v5655 = vpop.f32.mrb[0].mxu0
      %v5656 = vadd.f32 0.0, %v5655
      %v5657 = vpop.f32.mrb[0].mxu0
      %5658 = vmatprep.mubr.f32.mxu0 0.0
      %5659 = vmatmul.mubr.f32.gmra.mrb[0].mxu0 %v5278
      %v5660 = vpop.f32.mrb[0].mxu0
      %v5661 = vadd.f32 0.0, %v5660
      %v5662 = vpop.f32.mrb[0].mxu0
      %5663 = vmatprep.mubr.f32.mxu0 0.0
      %5664 = vmatmul.mubr.f32.gmra.mrb[0].mxu0 %v5281
      %v5665 = vpop.f32.mrb[0].mxu0
      %v5666 = vadd.f32 0.0, %v5665
      %v5667 = vpop.f32.mrb[0].mxu0
      %5668 = vmatprep.mubr.f32.mxu0 0.0
      %5669 = vmatmul.mubr.f32.gmra.mrb[0].mxu0 %v5284
      %v5670 = vpop.f32.mrb[0].mxu0
      %v5671 = vadd.f32 0.0, %v5670
      %v5672 = vpop.f32.mrb[0].mxu0
      %5673 = vmatprep.mubr.f32.mxu0 0.0
      %5674 = vmatmul.mubr.f32.gmra.mrb[0].mxu0 %v5287
      %v5675 = vpop.f32.mrb[0].mxu0
      %v5676 = vadd.f32 0.0, %v5675
      %v5677 = vpop.f32.mrb[0].mxu0
      %5678 = vmatprep.mubr.f32.mxu0 0.0
      %5679 = vmatmul.mubr.f32.gmra.mrb[0].mxu0 %v5290
      %v5680 = vpop.f32.mrb[0].mxu0
      %v5681 = vadd.f32 0.0, %v5680
      %v5682 = vpop.f32.mrb[0].mxu0
      %5683 = vmatprep.mubr.f32.mxu0 0.0
      %5684 = vmatmul.mubr.f32.gmra.mrb[0].mxu0 %v5293
      %v5685 = vpop.f32.mrb[0].mxu0
      %v5686 = vadd.f32 0.0, %v5685
      %v5687 = vpop.f32.mrb[0].mxu0
      %5688 = vmatprep.mubr.f32.mxu0 0.0
      %5689 = vmatmul.mubr.f32.gmra.mrb[0].mxu0 %v5296
      %v5690 = vpop.f32.mrb[0].mxu0
      %v5691 = vadd.f32 0.0, %v5690
      %v5692 = vpop.f32.mrb[0].mxu0
      %5693 = vmatprep.mubr.f32.mxu0 0.0
      %5694 = vmatmul.mubr.f32.gmra.mrb[0].mxu0 %v5299
      %v5695 = vpop.f32.mrb[0].mxu0
      %v5696 = vadd.f32 0.0, %v5695
      %v5697 = vpop.f32.mrb[0].mxu0
      %5698 = vmatprep.mubr.f32.mxu0 0.0
      %5699 = vmatmul.mubr.f32.gmra.mrb[0].mxu0 %v5302
      %v5700 = vpop.f32.mrb[0].mxu0
      %v5701 = vadd.f32 0.0, %v5700
      %v5702 = vpop.f32.mrb[0].mxu0
      %5703 = vmatprep.mubr.f32.mxu0 0.0
      %5704 = vmatmul.mubr.f32.gmra.mrb[0].mxu0 %v5305
      %v5705 = vpop.f32.mrb[0].mxu0
      %v5706 = vadd.f32 0.0, %v5705
      %v5707 = vpop.f32.mrb[0].mxu0
      %5708 = vmatprep.mubr.f32.mxu0 0.0
      %5709 = vmatmul.mubr.f32.gmra.mrb[0].mxu0 %v5308
      %v5710 = vpop.f32.mrb[0].mxu0
      %v5711 = vadd.f32 0.0, %v5710
      %v5712 = vpop.f32.mrb[0].mxu0
      %5713 = vmatprep.mubr.f32.mxu0 0.0
      %5714 = vmatmul.mubr.f32.gmra.mrb[0].mxu0 %v5311
      %v5715 = vpop.f32.mrb[0].mxu0
      %v5716 = vadd.f32 0.0, %v5715
      %v5717 = vpop.f32.mrb[0].mxu0
      %5718 = vmatprep.mubr.f32.mxu0 0.0
      %5719 = vmatmul.mubr.f32.gmra.mrb[0].mxu0 %v5314
      %v5720 = vpop.f32.mrb[0].mxu0
      %v5721 = vadd.f32 0.0, %v5720
      %v5722 = vpop.f32.mrb[0].mxu0
      %5723 = vmatprep.mubr.f32.mxu0 0.0
      %5724 = vmatmul.mubr.f32.gmra.mrb[0].mxu0 %v5317
      %v5725 = vpop.f32.mrb[0].mxu0
      %v5726 = vadd.f32 0.0, %v5725
      %v5727 = vpop.f32.mrb[0].mxu0
      %5728 = vmatprep.mubr.f32.mxu0 0.0
      %5729 = vmatmul.mubr.f32.gmra.mrb[0].mxu0 %v5320
      %v5730 = vpop.f32.mrb[0].mxu0
      %v5731 = vadd.f32 0.0, %v5730
      %v5732 = vpop.f32.mrb[0].mxu0
      %5733 = vmatprep.mubr.f32.mxu0 0.0
      %5734 = vmatmul.mubr.f32.gmra.mrb[0].mxu0 %v5323
      %v5735 = vpop.f32.mrb[0].mxu0
      %v5736 = vadd.f32 0.0, %v5735
      %v5737 = vpop.f32.mrb[0].mxu0
      %5738 = vmatprep.mubr.f32.mxu0 0.0
      %5739 = vmatmul.mubr.f32.gmra.mrb[0].mxu0 %v5326
      %v5740 = vpop.f32.mrb[0].mxu0
      %v5741 = vadd.f32 0.0, %v5740
      %v5742 = vpop.f32.mrb[0].mxu0
      %5743 = vmatprep.mubr.f32.mxu0 0.0
      %5744 = vmatmul.mubr.f32.gmra.mrb[0].mxu0 %v5329
      %v5745 = vpop.f32.mrb[0].mxu0
      %v5746 = vadd.f32 0.0, %v5745
      %v5747 = vpop.f32.mrb[0].mxu0
      %5748 = vmatprep.mubr.f32.mxu0 0.0
      %5749 = vmatmul.mubr.f32.gmra.mrb[0].mxu0 %v5332
      %v5750 = vpop.f32.mrb[0].mxu0
      %v5751 = vadd.f32 0.0, %v5750
      %v5752 = vpop.f32.mrb[0].mxu0
      %5753 = vmatprep.mubr.f32.mxu0 0.0
      %5754 = vmatmul.mubr.f32.gmra.mrb[0].mxu0 %v5335
      %v5755 = vpop.f32.mrb[0].mxu0
      %v5756 = vadd.f32 0.0, %v5755
      %v5757 = vpop.f32.mrb[0].mxu0
      %5758 = vmatprep.mubr.f32.mxu0 0.0
      %5759 = vmatmul.mubr.f32.gmra.mrb[0].mxu0 %v5338
      %v5760 = vpop.f32.mrb[0].mxu0
      %v5761 = vadd.f32 0.0, %v5760
      %v5762 = vpop.f32.mrb[0].mxu0
      %5763 = vmatprep.mubr.f32.mxu0 0.0
      %5764 = vmatmul.mubr.f32.gmra.mrb[0].mxu0 %v5341
      %v5765 = vpop.f32.mrb[0].mxu0
      %v5766 = vadd.f32 0.0, %v5765
      %v5767 = vpop.f32.mrb[0].mxu0
      %5768 = vmatprep.mubr.f32.mxu0 0.0
      %5769 = vmatmul.mubr.f32.gmra.mrb[0].mxu0 %v5344
      %v5770 = vpop.f32.mrb[0].mxu0
      %v5771 = vadd.f32 0.0, %v5770
      %v5772 = vpop.f32.mrb[0].mxu0
      %5773 = vdwg.mxu0
      %v5774 = vadd.f32 %v4984, %v5416
      %v5775 = vadd.f32 %v4985, %v5421
      %v5776 = vadd.f32 %v4986, %v5426
      %v5777 = vadd.f32 %v4987, %v5431
      %v5778 = vadd.f32 %v4988, %v5436
      %v5779 = vadd.f32 %v4989, %v5441
      %v5780 = vadd.f32 %v4990, %v5446
      %v5781 = vadd.f32 %v4991, %v5451
      %v5782 = vadd.f32 %v4992, %v5456
      %v5783 = vadd.f32 %v4993, %v5461
      %v5784 = vadd.f32 %v4994, %v5466
      %v5785 = vadd.f32 %v4995, %v5471
      %v5786 = vadd.f32 %v4996, %v5476
      %v5787 = vadd.f32 %v4997, %v5481
      %v5788 = vadd.f32 %v4998, %v5486
      %v5789 = vadd.f32 %v4999, %v5491
      %v5790 = vadd.f32 %v5000, %v5496
      %v5791 = vadd.f32 %v5001, %v5501
      %v5792 = vadd.f32 %v5002, %v5506
      %v5793 = vadd.f32 %v5003, %v5511
      %v5794 = vadd.f32 %v5004, %v5516
      %v5795 = vadd.f32 %v5005, %v5521
      %v5796 = vadd.f32 %v5006, %v5526
      %v5797 = vadd.f32 %v5007, %v5531
      %v5798 = vadd.f32 %v5008, %v5536
      %v5799 = vadd.f32 %v5009, %v5541
      %v5800 = vadd.f32 %v5010, %v5546
      %v5801 = vadd.f32 %v5011, %v5551
      %v5802 = vadd.f32 %v5012, %v5556
      %v5803 = vadd.f32 %v5013, %v5561
      %v5804 = vadd.f32 %v5014, %v5566
      %v5805 = vadd.f32 %v5015, %v5571
      %v5806 = vadd.f32 %v5016, %v5576
      %v5807 = vadd.f32 %v5017, %v5581
      %v5808 = vadd.f32 %v5018, %v5586
      %v5809 = vadd.f32 %v5019, %v5591
      %v5810 = vadd.f32 %v5020, %v5596
      %v5811 = vadd.f32 %v5021, %v5601
      %v5812 = vadd.f32 %v5022, %v5606
      %v5813 = vadd.f32 %v5023, %v5611
      %v5814 = vadd.f32 %v5024, %v5616
      %v5815 = vadd.f32 %v5025, %v5621
      %v5816 = vadd.f32 %v5026, %v5626
      %v5817 = vadd.f32 %v5027, %v5631
      %v5818 = vadd.f32 %v5028, %v5636
      %v5819 = vadd.f32 %v5029, %v5641
      %v5820 = vadd.f32 %v5030, %v5646
      %v5821 = vadd.f32 %v5031, %v5651
      %v5822 = vadd.f32 %v5032, %v5656
      %v5823 = vadd.f32 %v5033, %v5661
      %v5824 = vadd.f32 %v5034, %v5666
      %v5825 = vadd.f32 %v5035, %v5671
      %v5826 = vadd.f32 %v5036, %v5676
      %v5827 = vadd.f32 %v5037, %v5681
      %v5828 = vadd.f32 %v5038, %v5686
      %v5829 = vadd.f32 %v5039, %v5691
      %v5830 = vadd.f32 %v5040, %v5696
      %v5831 = vadd.f32 %v5041, %v5701
      %v5832 = vadd.f32 %v5042, %v5706
      %v5833 = vadd.f32 %v5043, %v5711
      %v5834 = vadd.f32 %v5044, %v5716
      %v5835 = vadd.f32 %v5045, %v5721
      %v5836 = vadd.f32 %v5046, %v5726
      %v5837 = vadd.f32 %v5047, %v5731
      %v5838 = vadd.f32 %v5048, %v5736
      %v5839 = vadd.f32 %v5049, %v5741
      %v5840 = vadd.f32 %v5050, %v5746
      %v5841 = vadd.f32 %v5051, %v5751
      %v5842 = vadd.f32 %v5052, %v5756
      %v5843 = vadd.f32 %v5053, %v5761
      %v5844 = vadd.f32 %v5054, %v5766
      %v5845 = vadd.f32 %v5055, %v5771
      %v5846 = vld [vmem:[%s300 + $0x48] sm:$0xff]
      %v5847 = vld [vmem:[%s300 + $0x50] sm:$0xff]
      %v5848 = vld [vmem:[%s300 + $0x58] sm:$0xff]
      %v5849 = vld [vmem:[%s300 + $0x60] sm:$0xff]
      %v5850 = vld [vmem:[%s300 + $0x68] sm:$0xff]
      %v5851 = vld [vmem:[%s300 + $0x70] sm:$0xff]
      %v5852 = vld [vmem:[%s300 + $0x78] sm:$0xff]
      %v5853 = vld [vmem:[%s300 + $0x80] sm:$0xff]
      %v5854 = vld [vmem:[%s300 + $0x88] sm:$0xff]
      %v5855 = vld [vmem:[%s300 + $0x90] sm:$0xff]
      %v5856 = vld [vmem:[%s300 + $0x98] sm:$0xff]
      %v5857 = vld [vmem:[%s300 + $0xa0] sm:$0xff]
      %v5858 = vld [vmem:[%s300 + $0xa8] sm:$0xff]
      %v5859 = vld [vmem:[%s300 + $0xb0] sm:$0xff]
      %v5860 = vld [vmem:[%s300 + $0xb8] sm:$0xff]
      %v5861 = vld [vmem:[%s300 + $0xc0] sm:$0xff]
      %v5862 = vld [vmem:[%s300 + $0xc8] sm:$0xff]
      %v5863 = vld [vmem:[%s300 + $0xd0] sm:$0xff]
      %v5864 = vld [vmem:[%s300 + $0xd8] sm:$0xff]
      %v5865 = vld [vmem:[%s300 + $0xe0] sm:$0xff]
      %v5866 = vld [vmem:[%s300 + $0xe8] sm:$0xff]
      %v5867 = vld [vmem:[%s300 + $0xf0] sm:$0xff]
      %v5868 = vld [vmem:[%s300 + $0xf8] sm:$0xff]
      %v5869 = vld [vmem:[%s300 + $0x100] sm:$0xff]
      %v5870 = vld [vmem:[%s300 + $0x108] sm:$0xff]
      %v5871 = vld [vmem:[%s300 + $0x110] sm:$0xff]
      %v5872 = vld [vmem:[%s300 + $0x118] sm:$0xff]
      %v5873 = vld [vmem:[%s300 + $0x120] sm:$0xff]
      %v5874 = vld [vmem:[%s300 + $0x128] sm:$0xff]
      %v5875 = vld [vmem:[%s300 + $0x130] sm:$0xff]
      %v5876 = vld [vmem:[%s300 + $0x138] sm:$0xff]
      %v5877 = vld [vmem:[%s300 + $0x140] sm:$0xff]
      %v5878 = vld [vmem:[%s300 + $0x148] sm:$0xff]
      %v5879 = vld [vmem:[%s300 + $0x150] sm:$0xff]
      %v5880 = vld [vmem:[%s300 + $0x158] sm:$0xff]
      %v5881 = vld [vmem:[%s300 + $0x160] sm:$0xff]
      %v5882 = vld [vmem:[%s300 + $0x168] sm:$0xff]
      %v5883 = vld [vmem:[%s300 + $0x170] sm:$0xff]
      %v5884 = vld [vmem:[%s300 + $0x178] sm:$0xff]
      %v5885 = vld [vmem:[%s300 + $0x180] sm:$0xff]
      %v5886 = vld [vmem:[%s300 + $0x188] sm:$0xff]
      %v5887 = vld [vmem:[%s300 + $0x190] sm:$0xff]
      %v5888 = vld [vmem:[%s300 + $0x198] sm:$0xff]
      %v5889 = vld [vmem:[%s300 + $0x1a0] sm:$0xff]
      %v5890 = vld [vmem:[%s300 + $0x1a8] sm:$0xff]
      %v5891 = vld [vmem:[%s300 + $0x1b0] sm:$0xff]
      %v5892 = vld [vmem:[%s300 + $0x1b8] sm:$0xff]
      %v5893 = vld [vmem:[%s300 + $0x1c0] sm:$0xff]
      %v5894 = vld [vmem:[%s300 + $0x1c8] sm:$0xff]
      %v5895 = vld [vmem:[%s300 + $0x1d0] sm:$0xff]
      %v5896 = vld [vmem:[%s300 + $0x1d8] sm:$0xff]
      %v5897 = vld [vmem:[%s300 + $0x1e0] sm:$0xff]
      %v5898 = vld [vmem:[%s300 + $0x1e8] sm:$0xff]
      %v5899 = vld [vmem:[%s300 + $0x1f0] sm:$0xff]
      %v5900 = vld [vmem:[%s300 + $0x1f8] sm:$0xff]
      %v5901 = vld [vmem:[%s300 + $0x200] sm:$0xff]
      %v5902 = vld [vmem:[%s300 + $0x208] sm:$0xff]
      %v5903 = vld [vmem:[%s300 + $0x210] sm:$0xff]
      %v5904 = vld [vmem:[%s300 + $0x218] sm:$0xff]
      %v5905 = vld [vmem:[%s300 + $0x220] sm:$0xff]
      %v5906 = vld [vmem:[%s300 + $0x228] sm:$0xff]
      %v5907 = vld [vmem:[%s300 + $0x230] sm:$0xff]
      %v5908 = vld [vmem:[%s300 + $0x238] sm:$0xff]
      %v5909 = vld [vmem:[%s300 + $0x240] sm:$0xff]
      %v5910 = vld [vmem:[%s300 + $0x248] sm:$0xff]
      %v5911 = vld [vmem:[%s300 + $0x250] sm:$0xff]
      %v5912 = vld [vmem:[%s300 + $0x258] sm:$0xff]
      %v5913 = vld [vmem:[%s300 + $0x260] sm:$0xff]
      %v5914 = vld [vmem:[%s300 + $0x268] sm:$0xff]
      %v5915 = vld [vmem:[%s300 + $0x270] sm:$0xff]
      %v5916 = vld [vmem:[%s300 + $0x278] sm:$0xff]
      %v5917 = vld [vmem:[%s300 + $0x280] sm:$0xff]
      %s5918 = scalar_lea.vmem %s1, 28
      %v5919 = vld [vmem:[%s5918] sm:$0x7]
      %v5921 = vsel %vm606, %v5846, 0
      %v5924 = vsel %vm606, %v5847, 0
      %v5927 = vsel %vm606, %v5848, 0
      %v5930 = vsel %vm606, %v5849, 0
      %v5933 = vsel %vm606, %v5850, 0
      %v5936 = vsel %vm606, %v5851, 0
      %v5939 = vsel %vm606, %v5852, 0
      %v5942 = vsel %vm606, %v5853, 0
      %v5945 = vsel %vm606, %v5854, 0
      %v5948 = vsel %vm606, %v5855, 0
      %v5951 = vsel %vm606, %v5856, 0
      %v5954 = vsel %vm606, %v5857, 0
      %v5957 = vsel %vm606, %v5858, 0
      %v5960 = vsel %vm606, %v5859, 0
      %v5963 = vsel %vm606, %v5860, 0
      %v5966 = vsel %vm606, %v5861, 0
      %v5969 = vsel %vm606, %v5862, 0
      %v5972 = vsel %vm606, %v5863, 0
      %v5975 = vsel %vm606, %v5864, 0
      %v5978 = vsel %vm606, %v5865, 0
      %v5981 = vsel %vm606, %v5866, 0
      %v5984 = vsel %vm606, %v5867, 0
      %v5987 = vsel %vm606, %v5868, 0
      %v5990 = vsel %vm606, %v5869, 0
      %v5993 = vsel %vm606, %v5870, 0
      %v5996 = vsel %vm606, %v5871, 0
      %v5999 = vsel %vm606, %v5872, 0
      %v6002 = vsel %vm606, %v5873, 0
      %v6005 = vsel %vm606, %v5874, 0
      %v6008 = vsel %vm606, %v5875, 0
      %v6011 = vsel %vm606, %v5876, 0
      %v6014 = vsel %vm606, %v5877, 0
      %v6017 = vsel %vm606, %v5878, 0
      %v6020 = vsel %vm606, %v5879, 0
      %v6023 = vsel %vm606, %v5880, 0
      %v6026 = vsel %vm606, %v5881, 0
      %v6029 = vsel %vm606, %v5882, 0
      %v6032 = vsel %vm606, %v5883, 0
      %v6035 = vsel %vm606, %v5884, 0
      %v6038 = vsel %vm606, %v5885, 0
      %v6041 = vsel %vm606, %v5886, 0
      %v6044 = vsel %vm606, %v5887, 0
      %v6047 = vsel %vm606, %v5888, 0
      %v6050 = vsel %vm606, %v5889, 0
      %v6053 = vsel %vm606, %v5890, 0
      %v6056 = vsel %vm606, %v5891, 0
      %v6059 = vsel %vm606, %v5892, 0
      %v6062 = vsel %vm606, %v5893, 0
      %v6065 = vsel %vm606, %v5894, 0
      %v6068 = vsel %vm606, %v5895, 0
      %v6071 = vsel %vm606, %v5896, 0
      %v6074 = vsel %vm606, %v5897, 0
      %v6077 = vsel %vm606, %v5898, 0
      %v6080 = vsel %vm606, %v5899, 0
      %v6083 = vsel %vm606, %v5900, 0
      %v6086 = vsel %vm606, %v5901, 0
      %v6089 = vsel %vm606, %v5902, 0
      %v6092 = vsel %vm606, %v5903, 0
      %v6095 = vsel %vm606, %v5904, 0
      %v6098 = vsel %vm606, %v5905, 0
      %v6101 = vsel %vm606, %v5906, 0
      %v6104 = vsel %vm606, %v5907, 0
      %v6107 = vsel %vm606, %v5908, 0
      %v6110 = vsel %vm606, %v5909, 0
      %v6113 = vsel %vm606, %v5910, 0
      %v6116 = vsel %vm606, %v5911, 0
      %v6119 = vsel %vm606, %v5912, 0
      %v6122 = vsel %vm606, %v5913, 0
      %v6125 = vsel %vm606, %v5914, 0
      %v6128 = vsel %vm606, %v5915, 0
      %v6131 = vsel %vm606, %v5916, 0
      %v6134 = vsel %vm606, %v5917, 0
      %v6137 = vsel %vm823, %v5919, 0
      %6139 = vmatprep.subr.mxu0 0.0
      %6140 = vmatpush1.msra.mxu0 %v6137
      %6141 = vmatprep.subr.mxu0 0.0
      %6142 = vmatpush1.msra.mxu0 0.0
      %6143 = vmatprep.subr.mxu0 0.0
      %6144 = vmatpush1.msra.mxu0 0.0
      %6145 = vmatprep.subr.mxu0 0.0
      %6146 = vmatpush1.msra.mxu0 0.0
      %6147 = vmatprep.subr.mxu0 0.0
      %6148 = vmatpush1.msra.mxu0 0.0
      %6149 = vmatprep.subr.mxu0 0.0
      %6150 = vmatpush1.msra.mxu0 0.0
      %6151 = vmatprep.subr.mxu0 0.0
      %6152 = vmatpush1.msra.mxu0 0.0
      %6153 = vmatprep.subr.mxu0 0.0
      %6154 = vmatpush1.msra.mxu0 0.0
      %6155 = vmatprep.subr.mxu0 0.0
      %6156 = vmatpush1.msra.mxu0 0.0
      %6157 = vmatprep.subr.mxu0 0.0
      %6158 = vmatpush1.msra.mxu0 0.0
      %6159 = vmatprep.subr.mxu0 0.0
      %6160 = vmatpush1.msra.mxu0 0.0
      %6161 = vmatprep.subr.mxu0 0.0
      %6162 = vmatpush1.msra.mxu0 0.0
      %6163 = vmatprep.subr.mxu0 0.0
      %6164 = vmatpush1.msra.mxu0 0.0
      %6165 = vmatprep.subr.mxu0 0.0
      %6166 = vmatpush1.msra.mxu0 0.0
      %6167 = vmatprep.subr.mxu0 0.0
      %6168 = vmatpush1.msra.mxu0 0.0
      %6169 = vmatprep.subr.mxu0 0.0
      %6170 = vmatpush1.msra.mxu0 0.0
      %6171 = vmatprep.subr.mxu0 0.0
      %6172 = vmatpush1.msra.mxu0 0.0
      %6173 = vmatprep.subr.mxu0 0.0
      %6174 = vmatpush1.msra.mxu0 0.0
      %6175 = vmatprep.subr.mxu0 0.0
      %6176 = vmatpush1.msra.mxu0 0.0
      %6177 = vmatprep.subr.mxu0 0.0
      %6178 = vmatpush1.msra.mxu0 0.0
      %6179 = vmatprep.subr.mxu0 0.0
      %6180 = vmatpush1.msra.mxu0 0.0
      %6181 = vmatprep.subr.mxu0 0.0
      %6182 = vmatpush1.msra.mxu0 0.0
      %6183 = vmatprep.subr.mxu0 0.0
      %6184 = vmatpush1.msra.mxu0 0.0
      %6185 = vmatprep.subr.mxu0 0.0
      %6186 = vmatpush1.msra.mxu0 0.0
      %6187 = vmatprep.subr.mxu0 0.0
      %6188 = vmatpush1.msra.mxu0 0.0
      %6189 = vmatprep.subr.mxu0 0.0
      %6190 = vmatpush1.msra.mxu0 0.0
      %6191 = vmatprep.subr.mxu0 0.0
      %6192 = vmatpush1.msra.mxu0 0.0
      %6193 = vmatprep.subr.mxu0 0.0
      %6194 = vmatpush1.msra.mxu0 0.0
      %6195 = vmatprep.subr.mxu0 0.0
      %6196 = vmatpush1.msra.mxu0 0.0
      %6197 = vmatprep.subr.mxu0 0.0
      %6198 = vmatpush1.msra.mxu0 0.0
      %6199 = vmatprep.subr.mxu0 0.0
      %6200 = vmatpush1.msra.mxu0 0.0
      %6201 = vmatprep.subr.mxu0 0.0
      %6202 = vmatpush1.msra.mxu0 0.0
      %6203 = vmatprep.mubr.f32.mxu0 0.0
      %6204 = vmatmul.mubr.f32.gmra.mrb[0].mxu0 %v5921
      %v6205 = vpop.f32.mrb[0].mxu0
      %v6206 = vadd.f32 0.0, %v6205
      %v6207 = vpop.f32.mrb[0].mxu0
      %6208 = vmatprep.mubr.f32.mxu0 0.0
      %6209 = vmatmul.mubr.f32.gmra.mrb[0].mxu0 %v5924
      %v6210 = vpop.f32.mrb[0].mxu0
      %v6211 = vadd.f32 0.0, %v6210
      %v6212 = vpop.f32.mrb[0].mxu0
      %6213 = vmatprep.mubr.f32.mxu0 0.0
      %6214 = vmatmul.mubr.f32.gmra.mrb[0].mxu0 %v5927
      %v6215 = vpop.f32.mrb[0].mxu0
      %v6216 = vadd.f32 0.0, %v6215
      %v6217 = vpop.f32.mrb[0].mxu0
      %6218 = vmatprep.mubr.f32.mxu0 0.0
      %6219 = vmatmul.mubr.f32.gmra.mrb[0].mxu0 %v5930
      %v6220 = vpop.f32.mrb[0].mxu0
      %v6221 = vadd.f32 0.0, %v6220
      %v6222 = vpop.f32.mrb[0].mxu0
      %6223 = vmatprep.mubr.f32.mxu0 0.0
      %6224 = vmatmul.mubr.f32.gmra.mrb[0].mxu0 %v5933
      %v6225 = vpop.f32.mrb[0].mxu0
      %v6226 = vadd.f32 0.0, %v6225
      %v6227 = vpop.f32.mrb[0].mxu0
      %6228 = vmatprep.mubr.f32.mxu0 0.0
      %6229 = vmatmul.mubr.f32.gmra.mrb[0].mxu0 %v5936
      %v6230 = vpop.f32.mrb[0].mxu0
      %v6231 = vadd.f32 0.0, %v6230
      %v6232 = vpop.f32.mrb[0].mxu0
      %6233 = vmatprep.mubr.f32.mxu0 0.0
      %6234 = vmatmul.mubr.f32.gmra.mrb[0].mxu0 %v5939
      %v6235 = vpop.f32.mrb[0].mxu0
      %v6236 = vadd.f32 0.0, %v6235
      %v6237 = vpop.f32.mrb[0].mxu0
      %6238 = vmatprep.mubr.f32.mxu0 0.0
      %6239 = vmatmul.mubr.f32.gmra.mrb[0].mxu0 %v5942
      %v6240 = vpop.f32.mrb[0].mxu0
      %v6241 = vadd.f32 0.0, %v6240
      %v6242 = vpop.f32.mrb[0].mxu0
      %6243 = vmatprep.mubr.f32.mxu0 0.0
      %6244 = vmatmul.mubr.f32.gmra.mrb[0].mxu0 %v5945
      %v6245 = vpop.f32.mrb[0].mxu0
      %v6246 = vadd.f32 0.0, %v6245
      %v6247 = vpop.f32.mrb[0].mxu0
      %6248 = vmatprep.mubr.f32.mxu0 0.0
      %6249 = vmatmul.mubr.f32.gmra.mrb[0].mxu0 %v5948
      %v6250 = vpop.f32.mrb[0].mxu0
      %v6251 = vadd.f32 0.0, %v6250
      %v6252 = vpop.f32.mrb[0].mxu0
      %6253 = vmatprep.mubr.f32.mxu0 0.0
      %6254 = vmatmul.mubr.f32.gmra.mrb[0].mxu0 %v5951
      %v6255 = vpop.f32.mrb[0].mxu0
      %v6256 = vadd.f32 0.0, %v6255
      %v6257 = vpop.f32.mrb[0].mxu0
      %6258 = vmatprep.mubr.f32.mxu0 0.0
      %6259 = vmatmul.mubr.f32.gmra.mrb[0].mxu0 %v5954
      %v6260 = vpop.f32.mrb[0].mxu0
      %v6261 = vadd.f32 0.0, %v6260
      %v6262 = vpop.f32.mrb[0].mxu0
      %6263 = vmatprep.mubr.f32.mxu0 0.0
      %6264 = vmatmul.mubr.f32.gmra.mrb[0].mxu0 %v5957
      %v6265 = vpop.f32.mrb[0].mxu0
      %v6266 = vadd.f32 0.0, %v6265
      %v6267 = vpop.f32.mrb[0].mxu0
      %6268 = vmatprep.mubr.f32.mxu0 0.0
      %6269 = vmatmul.mubr.f32.gmra.mrb[0].mxu0 %v5960
      %v6270 = vpop.f32.mrb[0].mxu0
      %v6271 = vadd.f32 0.0, %v6270
      %v6272 = vpop.f32.mrb[0].mxu0
      %6273 = vmatprep.mubr.f32.mxu0 0.0
      %6274 = vmatmul.mubr.f32.gmra.mrb[0].mxu0 %v5963
      %v6275 = vpop.f32.mrb[0].mxu0
      %v6276 = vadd.f32 0.0, %v6275
      %v6277 = vpop.f32.mrb[0].mxu0
      %6278 = vmatprep.mubr.f32.mxu0 0.0
      %6279 = vmatmul.mubr.f32.gmra.mrb[0].mxu0 %v5966
      %v6280 = vpop.f32.mrb[0].mxu0
      %v6281 = vadd.f32 0.0, %v6280
      %v6282 = vpop.f32.mrb[0].mxu0
      %6283 = vmatprep.mubr.f32.mxu0 0.0
      %6284 = vmatmul.mubr.f32.gmra.mrb[0].mxu0 %v5969
      %v6285 = vpop.f32.mrb[0].mxu0
      %v6286 = vadd.f32 0.0, %v6285
      %v6287 = vpop.f32.mrb[0].mxu0
      %6288 = vmatprep.mubr.f32.mxu0 0.0
      %6289 = vmatmul.mubr.f32.gmra.mrb[0].mxu0 %v5972
      %v6290 = vpop.f32.mrb[0].mxu0
      %v6291 = vadd.f32 0.0, %v6290
      %v6292 = vpop.f32.mrb[0].mxu0
      %6293 = vmatprep.mubr.f32.mxu0 0.0
      %6294 = vmatmul.mubr.f32.gmra.mrb[0].mxu0 %v5975
      %v6295 = vpop.f32.mrb[0].mxu0
      %v6296 = vadd.f32 0.0, %v6295
      %v6297 = vpop.f32.mrb[0].mxu0
      %6298 = vmatprep.mubr.f32.mxu0 0.0
      %6299 = vmatmul.mubr.f32.gmra.mrb[0].mxu0 %v5978
      %v6300 = vpop.f32.mrb[0].mxu0
      %v6301 = vadd.f32 0.0, %v6300
      %v6302 = vpop.f32.mrb[0].mxu0
      %6303 = vmatprep.mubr.f32.mxu0 0.0
      %6304 = vmatmul.mubr.f32.gmra.mrb[0].mxu0 %v5981
      %v6305 = vpop.f32.mrb[0].mxu0
      %v6306 = vadd.f32 0.0, %v6305
      %v6307 = vpop.f32.mrb[0].mxu0
      %6308 = vmatprep.mubr.f32.mxu0 0.0
      %6309 = vmatmul.mubr.f32.gmra.mrb[0].mxu0 %v5984
      %v6310 = vpop.f32.mrb[0].mxu0
      %v6311 = vadd.f32 0.0, %v6310
      %v6312 = vpop.f32.mrb[0].mxu0
      %6313 = vmatprep.mubr.f32.mxu0 0.0
      %6314 = vmatmul.mubr.f32.gmra.mrb[0].mxu0 %v5987
      %v6315 = vpop.f32.mrb[0].mxu0
      %v6316 = vadd.f32 0.0, %v6315
      %v6317 = vpop.f32.mrb[0].mxu0
      %6318 = vmatprep.mubr.f32.mxu0 0.0
      %6319 = vmatmul.mubr.f32.gmra.mrb[0].mxu0 %v5990
      %v6320 = vpop.f32.mrb[0].mxu0
      %v6321 = vadd.f32 0.0, %v6320
      %v6322 = vpop.f32.mrb[0].mxu0
      %6323 = vmatprep.mubr.f32.mxu0 0.0
      %6324 = vmatmul.mubr.f32.gmra.mrb[0].mxu0 %v5993
      %v6325 = vpop.f32.mrb[0].mxu0
      %v6326 = vadd.f32 0.0, %v6325
      %v6327 = vpop.f32.mrb[0].mxu0
      %6328 = vmatprep.mubr.f32.mxu0 0.0
      %6329 = vmatmul.mubr.f32.gmra.mrb[0].mxu0 %v5996
      %v6330 = vpop.f32.mrb[0].mxu0
      %v6331 = vadd.f32 0.0, %v6330
      %v6332 = vpop.f32.mrb[0].mxu0
      %6333 = vmatprep.mubr.f32.mxu0 0.0
      %6334 = vmatmul.mubr.f32.gmra.mrb[0].mxu0 %v5999
      %v6335 = vpop.f32.mrb[0].mxu0
      %v6336 = vadd.f32 0.0, %v6335
      %v6337 = vpop.f32.mrb[0].mxu0
      %6338 = vmatprep.mubr.f32.mxu0 0.0
      %6339 = vmatmul.mubr.f32.gmra.mrb[0].mxu0 %v6002
      %v6340 = vpop.f32.mrb[0].mxu0
      %v6341 = vadd.f32 0.0, %v6340
      %v6342 = vpop.f32.mrb[0].mxu0
      %6343 = vmatprep.mubr.f32.mxu0 0.0
      %6344 = vmatmul.mubr.f32.gmra.mrb[0].mxu0 %v6005
      %v6345 = vpop.f32.mrb[0].mxu0
      %v6346 = vadd.f32 0.0, %v6345
      %v6347 = vpop.f32.mrb[0].mxu0
      %6348 = vmatprep.mubr.f32.mxu0 0.0
      %6349 = vmatmul.mubr.f32.gmra.mrb[0].mxu0 %v6008
      %v6350 = vpop.f32.mrb[0].mxu0
      %v6351 = vadd.f32 0.0, %v6350
      %v6352 = vpop.f32.mrb[0].mxu0
      %6353 = vmatprep.mubr.f32.mxu0 0.0
      %6354 = vmatmul.mubr.f32.gmra.mrb[0].mxu0 %v6011
      %v6355 = vpop.f32.mrb[0].mxu0
      %v6356 = vadd.f32 0.0, %v6355
      %v6357 = vpop.f32.mrb[0].mxu0
      %6358 = vmatprep.mubr.f32.mxu0 0.0
      %6359 = vmatmul.mubr.f32.gmra.mrb[0].mxu0 %v6014
      %v6360 = vpop.f32.mrb[0].mxu0
      %v6361 = vadd.f32 0.0, %v6360
      %v6362 = vpop.f32.mrb[0].mxu0
      %6363 = vmatprep.mubr.f32.mxu0 0.0
      %6364 = vmatmul.mubr.f32.gmra.mrb[0].mxu0 %v6017
      %v6365 = vpop.f32.mrb[0].mxu0
      %v6366 = vadd.f32 0.0, %v6365
      %v6367 = vpop.f32.mrb[0].mxu0
      %6368 = vmatprep.mubr.f32.mxu0 0.0
      %6369 = vmatmul.mubr.f32.gmra.mrb[0].mxu0 %v6020
      %v6370 = vpop.f32.mrb[0].mxu0
      %v6371 = vadd.f32 0.0, %v6370
      %v6372 = vpop.f32.mrb[0].mxu0
      %6373 = vmatprep.mubr.f32.mxu0 0.0
      %6374 = vmatmul.mubr.f32.gmra.mrb[0].mxu0 %v6023
      %v6375 = vpop.f32.mrb[0].mxu0
      %v6376 = vadd.f32 0.0, %v6375
      %v6377 = vpop.f32.mrb[0].mxu0
      %6378 = vmatprep.mubr.f32.mxu0 0.0
      %6379 = vmatmul.mubr.f32.gmra.mrb[0].mxu0 %v6026
      %v6380 = vpop.f32.mrb[0].mxu0
      %v6381 = vadd.f32 0.0, %v6380
      %v6382 = vpop.f32.mrb[0].mxu0
      %6383 = vmatprep.mubr.f32.mxu0 0.0
      %6384 = vmatmul.mubr.f32.gmra.mrb[0].mxu0 %v6029
      %v6385 = vpop.f32.mrb[0].mxu0
      %v6386 = vadd.f32 0.0, %v6385
      %v6387 = vpop.f32.mrb[0].mxu0
      %6388 = vmatprep.mubr.f32.mxu0 0.0
      %6389 = vmatmul.mubr.f32.gmra.mrb[0].mxu0 %v6032
      %v6390 = vpop.f32.mrb[0].mxu0
      %v6391 = vadd.f32 0.0, %v6390
      %v6392 = vpop.f32.mrb[0].mxu0
      %6393 = vmatprep.mubr.f32.mxu0 0.0
      %6394 = vmatmul.mubr.f32.gmra.mrb[0].mxu0 %v6035
      %v6395 = vpop.f32.mrb[0].mxu0
      %v6396 = vadd.f32 0.0, %v6395
      %v6397 = vpop.f32.mrb[0].mxu0
      %6398 = vmatprep.mubr.f32.mxu0 0.0
      %6399 = vmatmul.mubr.f32.gmra.mrb[0].mxu0 %v6038
      %v6400 = vpop.f32.mrb[0].mxu0
      %v6401 = vadd.f32 0.0, %v6400
      %v6402 = vpop.f32.mrb[0].mxu0
      %6403 = vmatprep.mubr.f32.mxu0 0.0
      %6404 = vmatmul.mubr.f32.gmra.mrb[0].mxu0 %v6041
      %v6405 = vpop.f32.mrb[0].mxu0
      %v6406 = vadd.f32 0.0, %v6405
      %v6407 = vpop.f32.mrb[0].mxu0
      %6408 = vmatprep.mubr.f32.mxu0 0.0
      %6409 = vmatmul.mubr.f32.gmra.mrb[0].mxu0 %v6044
      %v6410 = vpop.f32.mrb[0].mxu0
      %v6411 = vadd.f32 0.0, %v6410
      %v6412 = vpop.f32.mrb[0].mxu0
      %6413 = vmatprep.mubr.f32.mxu0 0.0
      %6414 = vmatmul.mubr.f32.gmra.mrb[0].mxu0 %v6047
      %v6415 = vpop.f32.mrb[0].mxu0
      %v6416 = vadd.f32 0.0, %v6415
      %v6417 = vpop.f32.mrb[0].mxu0
      %6418 = vmatprep.mubr.f32.mxu0 0.0
      %6419 = vmatmul.mubr.f32.gmra.mrb[0].mxu0 %v6050
      %v6420 = vpop.f32.mrb[0].mxu0
      %v6421 = vadd.f32 0.0, %v6420
      %v6422 = vpop.f32.mrb[0].mxu0
      %6423 = vmatprep.mubr.f32.mxu0 0.0
      %6424 = vmatmul.mubr.f32.gmra.mrb[0].mxu0 %v6053
      %v6425 = vpop.f32.mrb[0].mxu0
      %v6426 = vadd.f32 0.0, %v6425
      %v6427 = vpop.f32.mrb[0].mxu0
      %6428 = vmatprep.mubr.f32.mxu0 0.0
      %6429 = vmatmul.mubr.f32.gmra.mrb[0].mxu0 %v6056
      %v6430 = vpop.f32.mrb[0].mxu0
      %v6431 = vadd.f32 0.0, %v6430
      %v6432 = vpop.f32.mrb[0].mxu0
      %6433 = vmatprep.mubr.f32.mxu0 0.0
      %6434 = vmatmul.mubr.f32.gmra.mrb[0].mxu0 %v6059
      %v6435 = vpop.f32.mrb[0].mxu0
      %v6436 = vadd.f32 0.0, %v6435
      %v6437 = vpop.f32.mrb[0].mxu0
      %6438 = vmatprep.mubr.f32.mxu0 0.0
      %6439 = vmatmul.mubr.f32.gmra.mrb[0].mxu0 %v6062
      %v6440 = vpop.f32.mrb[0].mxu0
      %v6441 = vadd.f32 0.0, %v6440
      %v6442 = vpop.f32.mrb[0].mxu0
      %6443 = vmatprep.mubr.f32.mxu0 0.0
      %6444 = vmatmul.mubr.f32.gmra.mrb[0].mxu0 %v6065
      %v6445 = vpop.f32.mrb[0].mxu0
      %v6446 = vadd.f32 0.0, %v6445
      %v6447 = vpop.f32.mrb[0].mxu0
      %6448 = vmatprep.mubr.f32.mxu0 0.0
      %6449 = vmatmul.mubr.f32.gmra.mrb[0].mxu0 %v6068
      %v6450 = vpop.f32.mrb[0].mxu0
      %v6451 = vadd.f32 0.0, %v6450
      %v6452 = vpop.f32.mrb[0].mxu0
      %6453 = vmatprep.mubr.f32.mxu0 0.0
      %6454 = vmatmul.mubr.f32.gmra.mrb[0].mxu0 %v6071
      %v6455 = vpop.f32.mrb[0].mxu0
      %v6456 = vadd.f32 0.0, %v6455
      %v6457 = vpop.f32.mrb[0].mxu0
      %6458 = vmatprep.mubr.f32.mxu0 0.0
      %6459 = vmatmul.mubr.f32.gmra.mrb[0].mxu0 %v6074
      %v6460 = vpop.f32.mrb[0].mxu0
      %v6461 = vadd.f32 0.0, %v6460
      %v6462 = vpop.f32.mrb[0].mxu0
      %6463 = vmatprep.mubr.f32.mxu0 0.0
      %6464 = vmatmul.mubr.f32.gmra.mrb[0].mxu0 %v6077
      %v6465 = vpop.f32.mrb[0].mxu0
      %v6466 = vadd.f32 0.0, %v6465
      %v6467 = vpop.f32.mrb[0].mxu0
      %6468 = vmatprep.mubr.f32.mxu0 0.0
      %6469 = vmatmul.mubr.f32.gmra.mrb[0].mxu0 %v6080
      %v6470 = vpop.f32.mrb[0].mxu0
      %v6471 = vadd.f32 0.0, %v6470
      %v6472 = vpop.f32.mrb[0].mxu0
      %6473 = vmatprep.mubr.f32.mxu0 0.0
      %6474 = vmatmul.mubr.f32.gmra.mrb[0].mxu0 %v6083
      %v6475 = vpop.f32.mrb[0].mxu0
      %v6476 = vadd.f32 0.0, %v6475
      %v6477 = vpop.f32.mrb[0].mxu0
      %6478 = vmatprep.mubr.f32.mxu0 0.0
      %6479 = vmatmul.mubr.f32.gmra.mrb[0].mxu0 %v6086
      %v6480 = vpop.f32.mrb[0].mxu0
      %v6481 = vadd.f32 0.0, %v6480
      %v6482 = vpop.f32.mrb[0].mxu0
      %6483 = vmatprep.mubr.f32.mxu0 0.0
      %6484 = vmatmul.mubr.f32.gmra.mrb[0].mxu0 %v6089
      %v6485 = vpop.f32.mrb[0].mxu0
      %v6486 = vadd.f32 0.0, %v6485
      %v6487 = vpop.f32.mrb[0].mxu0
      %6488 = vmatprep.mubr.f32.mxu0 0.0
      %6489 = vmatmul.mubr.f32.gmra.mrb[0].mxu0 %v6092
      %v6490 = vpop.f32.mrb[0].mxu0
      %v6491 = vadd.f32 0.0, %v6490
      %v6492 = vpop.f32.mrb[0].mxu0
      %6493 = vmatprep.mubr.f32.mxu0 0.0
      %6494 = vmatmul.mubr.f32.gmra.mrb[0].mxu0 %v6095
      %v6495 = vpop.f32.mrb[0].mxu0
      %v6496 = vadd.f32 0.0, %v6495
      %v6497 = vpop.f32.mrb[0].mxu0
      %6498 = vmatprep.mubr.f32.mxu0 0.0
      %6499 = vmatmul.mubr.f32.gmra.mrb[0].mxu0 %v6098
      %v6500 = vpop.f32.mrb[0].mxu0
      %v6501 = vadd.f32 0.0, %v6500
      %v6502 = vpop.f32.mrb[0].mxu0
      %6503 = vmatprep.mubr.f32.mxu0 0.0
      %6504 = vmatmul.mubr.f32.gmra.mrb[0].mxu0 %v6101
      %v6505 = vpop.f32.mrb[0].mxu0
      %v6506 = vadd.f32 0.0, %v6505
      %v6507 = vpop.f32.mrb[0].mxu0
      %6508 = vmatprep.mubr.f32.mxu0 0.0
      %6509 = vmatmul.mubr.f32.gmra.mrb[0].mxu0 %v6104
      %v6510 = vpop.f32.mrb[0].mxu0
      %v6511 = vadd.f32 0.0, %v6510
      %v6512 = vpop.f32.mrb[0].mxu0
      %6513 = vmatprep.mubr.f32.mxu0 0.0
      %6514 = vmatmul.mubr.f32.gmra.mrb[0].mxu0 %v6107
      %v6515 = vpop.f32.mrb[0].mxu0
      %v6516 = vadd.f32 0.0, %v6515
      %v6517 = vpop.f32.mrb[0].mxu0
      %6518 = vmatprep.mubr.f32.mxu0 0.0
      %6519 = vmatmul.mubr.f32.gmra.mrb[0].mxu0 %v6110
      %v6520 = vpop.f32.mrb[0].mxu0
      %v6521 = vadd.f32 0.0, %v6520
      %v6522 = vpop.f32.mrb[0].mxu0
      %6523 = vmatprep.mubr.f32.mxu0 0.0
      %6524 = vmatmul.mubr.f32.gmra.mrb[0].mxu0 %v6113
      %v6525 = vpop.f32.mrb[0].mxu0
      %v6526 = vadd.f32 0.0, %v6525
      %v6527 = vpop.f32.mrb[0].mxu0
      %6528 = vmatprep.mubr.f32.mxu0 0.0
      %6529 = vmatmul.mubr.f32.gmra.mrb[0].mxu0 %v6116
      %v6530 = vpop.f32.mrb[0].mxu0
      %v6531 = vadd.f32 0.0, %v6530
      %v6532 = vpop.f32.mrb[0].mxu0
      %6533 = vmatprep.mubr.f32.mxu0 0.0
      %6534 = vmatmul.mubr.f32.gmra.mrb[0].mxu0 %v6119
      %v6535 = vpop.f32.mrb[0].mxu0
      %v6536 = vadd.f32 0.0, %v6535
      %v6537 = vpop.f32.mrb[0].mxu0
      %6538 = vmatprep.mubr.f32.mxu0 0.0
      %6539 = vmatmul.mubr.f32.gmra.mrb[0].mxu0 %v6122
      %v6540 = vpop.f32.mrb[0].mxu0
      %v6541 = vadd.f32 0.0, %v6540
      %v6542 = vpop.f32.mrb[0].mxu0
      %6543 = vmatprep.mubr.f32.mxu0 0.0
      %6544 = vmatmul.mubr.f32.gmra.mrb[0].mxu0 %v6125
      %v6545 = vpop.f32.mrb[0].mxu0
      %v6546 = vadd.f32 0.0, %v6545
      %v6547 = vpop.f32.mrb[0].mxu0
      %6548 = vmatprep.mubr.f32.mxu0 0.0
      %6549 = vmatmul.mubr.f32.gmra.mrb[0].mxu0 %v6128
      %v6550 = vpop.f32.mrb[0].mxu0
      %v6551 = vadd.f32 0.0, %v6550
      %v6552 = vpop.f32.mrb[0].mxu0
      %6553 = vmatprep.mubr.f32.mxu0 0.0
      %6554 = vmatmul.mubr.f32.gmra.mrb[0].mxu0 %v6131
      %v6555 = vpop.f32.mrb[0].mxu0
      %v6556 = vadd.f32 0.0, %v6555
      %v6557 = vpop.f32.mrb[0].mxu0
      %6558 = vmatprep.mubr.f32.mxu0 0.0
      %6559 = vmatmul.mubr.f32.gmra.mrb[0].mxu0 %v6134
      %v6560 = vpop.f32.mrb[0].mxu0
      %v6561 = vadd.f32 0.0, %v6560
      %v6562 = vpop.f32.mrb[0].mxu0
      %6563 = vdwg.mxu0
      %v6564 = vadd.f32 %v5774, %v6206
      %v6565 = vadd.f32 %v5775, %v6211
      %v6566 = vadd.f32 %v5776, %v6216
      %v6567 = vadd.f32 %v5777, %v6221
      %v6568 = vadd.f32 %v5778, %v6226
      %v6569 = vadd.f32 %v5779, %v6231
      %v6570 = vadd.f32 %v5780, %v6236
      %v6571 = vadd.f32 %v5781, %v6241
      %v6572 = vadd.f32 %v5782, %v6246
      %v6573 = vadd.f32 %v5783, %v6251
      %v6574 = vadd.f32 %v5784, %v6256
      %v6575 = vadd.f32 %v5785, %v6261
      %v6576 = vadd.f32 %v5786, %v6266
      %v6577 = vadd.f32 %v5787, %v6271
      %v6578 = vadd.f32 %v5788, %v6276
      %v6579 = vadd.f32 %v5789, %v6281
      %v6580 = vadd.f32 %v5790, %v6286
      %v6581 = vadd.f32 %v5791, %v6291
      %v6582 = vadd.f32 %v5792, %v6296
      %v6583 = vadd.f32 %v5793, %v6301
      %v6584 = vadd.f32 %v5794, %v6306
      %v6585 = vadd.f32 %v5795, %v6311
      %v6586 = vadd.f32 %v5796, %v6316
      %v6587 = vadd.f32 %v5797, %v6321
      %v6588 = vadd.f32 %v5798, %v6326
      %v6589 = vadd.f32 %v5799, %v6331
      %v6590 = vadd.f32 %v5800, %v6336
      %v6591 = vadd.f32 %v5801, %v6341
      %v6592 = vadd.f32 %v5802, %v6346
      %v6593 = vadd.f32 %v5803, %v6351
      %v6594 = vadd.f32 %v5804, %v6356
      %v6595 = vadd.f32 %v5805, %v6361
      %v6596 = vadd.f32 %v5806, %v6366
      %v6597 = vadd.f32 %v5807, %v6371
      %v6598 = vadd.f32 %v5808, %v6376
      %v6599 = vadd.f32 %v5809, %v6381
      %v6600 = vadd.f32 %v5810, %v6386
      %v6601 = vadd.f32 %v5811, %v6391
      %v6602 = vadd.f32 %v5812, %v6396
      %v6603 = vadd.f32 %v5813, %v6401
      %v6604 = vadd.f32 %v5814, %v6406
      %v6605 = vadd.f32 %v5815, %v6411
      %v6606 = vadd.f32 %v5816, %v6416
      %v6607 = vadd.f32 %v5817, %v6421
      %v6608 = vadd.f32 %v5818, %v6426
      %v6609 = vadd.f32 %v5819, %v6431
      %v6610 = vadd.f32 %v5820, %v6436
      %v6611 = vadd.f32 %v5821, %v6441
      %v6612 = vadd.f32 %v5822, %v6446
      %v6613 = vadd.f32 %v5823, %v6451
      %v6614 = vadd.f32 %v5824, %v6456
      %v6615 = vadd.f32 %v5825, %v6461
      %v6616 = vadd.f32 %v5826, %v6466
      %v6617 = vadd.f32 %v5827, %v6471
      %v6618 = vadd.f32 %v5828, %v6476
      %v6619 = vadd.f32 %v5829, %v6481
      %v6620 = vadd.f32 %v5830, %v6486
      %v6621 = vadd.f32 %v5831, %v6491
      %v6622 = vadd.f32 %v5832, %v6496
      %v6623 = vadd.f32 %v5833, %v6501
      %v6624 = vadd.f32 %v5834, %v6506
      %v6625 = vadd.f32 %v5835, %v6511
      %v6626 = vadd.f32 %v5836, %v6516
      %v6627 = vadd.f32 %v5837, %v6521
      %v6628 = vadd.f32 %v5838, %v6526
      %v6629 = vadd.f32 %v5839, %v6531
      %v6630 = vadd.f32 %v5840, %v6536
      %v6631 = vadd.f32 %v5841, %v6541
      %v6632 = vadd.f32 %v5842, %v6546
      %v6633 = vadd.f32 %v5843, %v6551
      %v6634 = vadd.f32 %v5844, %v6556
      %v6635 = vadd.f32 %v5845, %v6561
      %v6636 = vld [vmem:[%s300 + $0x49] sm:$0xff]
      %v6637 = vld [vmem:[%s300 + $0x51] sm:$0xff]
      %v6638 = vld [vmem:[%s300 + $0x59] sm:$0xff]
      %v6639 = vld [vmem:[%s300 + $0x61] sm:$0xff]
      %v6640 = vld [vmem:[%s300 + $0x69] sm:$0xff]
      %v6641 = vld [vmem:[%s300 + $0x71] sm:$0xff]
      %v6642 = vld [vmem:[%s300 + $0x79] sm:$0xff]
      %v6643 = vld [vmem:[%s300 + $0x81] sm:$0xff]
      %v6644 = vld [vmem:[%s300 + $0x89] sm:$0xff]
      %v6645 = vld [vmem:[%s300 + $0x91] sm:$0xff]
      %v6646 = vld [vmem:[%s300 + $0x99] sm:$0xff]
      %v6647 = vld [vmem:[%s300 + $0xa1] sm:$0xff]
      %v6648 = vld [vmem:[%s300 + $0xa9] sm:$0xff]
      %v6649 = vld [vmem:[%s300 + $0xb1] sm:$0xff]
      %v6650 = vld [vmem:[%s300 + $0xb9] sm:$0xff]
      %v6651 = vld [vmem:[%s300 + $0xc1] sm:$0xff]
      %v6652 = vld [vmem:[%s300 + $0xc9] sm:$0xff]
      %v6653 = vld [vmem:[%s300 + $0xd1] sm:$0xff]
      %v6654 = vld [vmem:[%s300 + $0xd9] sm:$0xff]
      %v6655 = vld [vmem:[%s300 + $0xe1] sm:$0xff]
      %v6656 = vld [vmem:[%s300 + $0xe9] sm:$0xff]
      %v6657 = vld [vmem:[%s300 + $0xf1] sm:$0xff]
      %v6658 = vld [vmem:[%s300 + $0xf9] sm:$0xff]
      %v6659 = vld [vmem:[%s300 + $0x101] sm:$0xff]
      %v6660 = vld [vmem:[%s300 + $0x109] sm:$0xff]
      %v6661 = vld [vmem:[%s300 + $0x111] sm:$0xff]
      %v6662 = vld [vmem:[%s300 + $0x119] sm:$0xff]
      %v6663 = vld [vmem:[%s300 + $0x121] sm:$0xff]
      %v6664 = vld [vmem:[%s300 + $0x129] sm:$0xff]
      %v6665 = vld [vmem:[%s300 + $0x131] sm:$0xff]
      %v6666 = vld [vmem:[%s300 + $0x139] sm:$0xff]
      %v6667 = vld [vmem:[%s300 + $0x141] sm:$0xff]
      %v6668 = vld [vmem:[%s300 + $0x149] sm:$0xff]
      %v6669 = vld [vmem:[%s300 + $0x151] sm:$0xff]
      %v6670 = vld [vmem:[%s300 + $0x159] sm:$0xff]
      %v6671 = vld [vmem:[%s300 + $0x161] sm:$0xff]
      %v6672 = vld [vmem:[%s300 + $0x169] sm:$0xff]
      %v6673 = vld [vmem:[%s300 + $0x171] sm:$0xff]
      %v6674 = vld [vmem:[%s300 + $0x179] sm:$0xff]
      %v6675 = vld [vmem:[%s300 + $0x181] sm:$0xff]
      %v6676 = vld [vmem:[%s300 + $0x189] sm:$0xff]
      %v6677 = vld [vmem:[%s300 + $0x191] sm:$0xff]
      %v6678 = vld [vmem:[%s300 + $0x199] sm:$0xff]
      %v6679 = vld [vmem:[%s300 + $0x1a1] sm:$0xff]
      %v6680 = vld [vmem:[%s300 + $0x1a9] sm:$0xff]
      %v6681 = vld [vmem:[%s300 + $0x1b1] sm:$0xff]
      %v6682 = vld [vmem:[%s300 + $0x1b9] sm:$0xff]
      %v6683 = vld [vmem:[%s300 + $0x1c1] sm:$0xff]
      %v6684 = vld [vmem:[%s300 + $0x1c9] sm:$0xff]
      %v6685 = vld [vmem:[%s300 + $0x1d1] sm:$0xff]
      %v6686 = vld [vmem:[%s300 + $0x1d9] sm:$0xff]
      %v6687 = vld [vmem:[%s300 + $0x1e1] sm:$0xff]
      %v6688 = vld [vmem:[%s300 + $0x1e9] sm:$0xff]
      %v6689 = vld [vmem:[%s300 + $0x1f1] sm:$0xff]
      %v6690 = vld [vmem:[%s300 + $0x1f9] sm:$0xff]
      %v6691 = vld [vmem:[%s300 + $0x201] sm:$0xff]
      %v6692 = vld [vmem:[%s300 + $0x209] sm:$0xff]
      %v6693 = vld [vmem:[%s300 + $0x211] sm:$0xff]
      %v6694 = vld [vmem:[%s300 + $0x219] sm:$0xff]
      %v6695 = vld [vmem:[%s300 + $0x221] sm:$0xff]
      %v6696 = vld [vmem:[%s300 + $0x229] sm:$0xff]
      %v6697 = vld [vmem:[%s300 + $0x231] sm:$0xff]
      %v6698 = vld [vmem:[%s300 + $0x239] sm:$0xff]
      %v6699 = vld [vmem:[%s300 + $0x241] sm:$0xff]
      %v6700 = vld [vmem:[%s300 + $0x249] sm:$0xff]
      %v6701 = vld [vmem:[%s300 + $0x251] sm:$0xff]
      %v6702 = vld [vmem:[%s300 + $0x259] sm:$0xff]
      %v6703 = vld [vmem:[%s300 + $0x261] sm:$0xff]
      %v6704 = vld [vmem:[%s300 + $0x269] sm:$0xff]
      %v6705 = vld [vmem:[%s300 + $0x271] sm:$0xff]
      %v6706 = vld [vmem:[%s300 + $0x279] sm:$0xff]
      %v6707 = vld [vmem:[%s300 + $0x281] sm:$0xff]
      %s6708 = scalar_lea.vmem %s1, 32
      %v6709 = vld [vmem:[%s6708] sm:$0x7]
      %v6711 = vsel %vm606, %v6636, 0
      %v6714 = vsel %vm606, %v6637, 0
      %v6717 = vsel %vm606, %v6638, 0
      %v6720 = vsel %vm606, %v6639, 0
      %v6723 = vsel %vm606, %v6640, 0
      %v6726 = vsel %vm606, %v6641, 0
      %v6729 = vsel %vm606, %v6642, 0
      %v6732 = vsel %vm606, %v6643, 0
      %v6735 = vsel %vm606, %v6644, 0
      %v6738 = vsel %vm606, %v6645, 0
      %v6741 = vsel %vm606, %v6646, 0
      %v6744 = vsel %vm606, %v6647, 0
      %v6747 = vsel %vm606, %v6648, 0
      %v6750 = vsel %vm606, %v6649, 0
      %v6753 = vsel %vm606, %v6650, 0
      %v6756 = vsel %vm606, %v6651, 0
      %v6759 = vsel %vm606, %v6652, 0
      %v6762 = vsel %vm606, %v6653, 0
      %v6765 = vsel %vm606, %v6654, 0
      %v6768 = vsel %vm606, %v6655, 0
      %v6771 = vsel %vm606, %v6656, 0
      %v6774 = vsel %vm606, %v6657, 0
      %v6777 = vsel %vm606, %v6658, 0
      %v6780 = vsel %vm606, %v6659, 0
      %v6783 = vsel %vm606, %v6660, 0
      %v6786 = vsel %vm606, %v6661, 0
      %v6789 = vsel %vm606, %v6662, 0
      %v6792 = vsel %vm606, %v6663, 0
      %v6795 = vsel %vm606, %v6664, 0
      %v6798 = vsel %vm606, %v6665, 0
      %v6801 = vsel %vm606, %v6666, 0
      %v6804 = vsel %vm606, %v6667, 0
      %v6807 = vsel %vm606, %v6668, 0
      %v6810 = vsel %vm606, %v6669, 0
      %v6813 = vsel %vm606, %v6670, 0
      %v6816 = vsel %vm606, %v6671, 0
      %v6819 = vsel %vm606, %v6672, 0
      %v6822 = vsel %vm606, %v6673, 0
      %v6825 = vsel %vm606, %v6674, 0
      %v6828 = vsel %vm606, %v6675, 0
      %v6831 = vsel %vm606, %v6676, 0
      %v6834 = vsel %vm606, %v6677, 0
      %v6837 = vsel %vm606, %v6678, 0
      %v6840 = vsel %vm606, %v6679, 0
      %v6843 = vsel %vm606, %v6680, 0
      %v6846 = vsel %vm606, %v6681, 0
      %v6849 = vsel %vm606, %v6682, 0
      %v6852 = vsel %vm606, %v6683, 0
      %v6855 = vsel %vm606, %v6684, 0
      %v6858 = vsel %vm606, %v6685, 0
      %v6861 = vsel %vm606, %v6686, 0
      %v6864 = vsel %vm606, %v6687, 0
      %v6867 = vsel %vm606, %v6688, 0
      %v6870 = vsel %vm606, %v6689, 0
      %v6873 = vsel %vm606, %v6690, 0
      %v6876 = vsel %vm606, %v6691, 0
      %v6879 = vsel %vm606, %v6692, 0
      %v6882 = vsel %vm606, %v6693, 0
      %v6885 = vsel %vm606, %v6694, 0
      %v6888 = vsel %vm606, %v6695, 0
      %v6891 = vsel %vm606, %v6696, 0
      %v6894 = vsel %vm606, %v6697, 0
      %v6897 = vsel %vm606, %v6698, 0
      %v6900 = vsel %vm606, %v6699, 0
      %v6903 = vsel %vm606, %v6700, 0
      %v6906 = vsel %vm606, %v6701, 0
      %v6909 = vsel %vm606, %v6702, 0
      %v6912 = vsel %vm606, %v6703, 0
      %v6915 = vsel %vm606, %v6704, 0
      %v6918 = vsel %vm606, %v6705, 0
      %v6921 = vsel %vm606, %v6706, 0
      %v6924 = vsel %vm606, %v6707, 0
      %v6927 = vsel %vm823, %v6709, 0
      %6929 = vmatprep.subr.mxu0 0.0
      %6930 = vmatpush1.msra.mxu0 %v6927
      %6931 = vmatprep.subr.mxu0 0.0
      %6932 = vmatpush1.msra.mxu0 0.0
      %6933 = vmatprep.subr.mxu0 0.0
      %6934 = vmatpush1.msra.mxu0 0.0
      %6935 = vmatprep.subr.mxu0 0.0
      %6936 = vmatpush1.msra.mxu0 0.0
      %6937 = vmatprep.subr.mxu0 0.0
      %6938 = vmatpush1.msra.mxu0 0.0
      %6939 = vmatprep.subr.mxu0 0.0
      %6940 = vmatpush1.msra.mxu0 0.0
      %6941 = vmatprep.subr.mxu0 0.0
      %6942 = vmatpush1.msra.mxu0 0.0
      %6943 = vmatprep.subr.mxu0 0.0
      %6944 = vmatpush1.msra.mxu0 0.0
      %6945 = vmatprep.subr.mxu0 0.0
      %6946 = vmatpush1.msra.mxu0 0.0
      %6947 = vmatprep.subr.mxu0 0.0
      %6948 = vmatpush1.msra.mxu0 0.0
      %6949 = vmatprep.subr.mxu0 0.0
      %6950 = vmatpush1.msra.mxu0 0.0
      %6951 = vmatprep.subr.mxu0 0.0
      %6952 = vmatpush1.msra.mxu0 0.0
      %6953 = vmatprep.subr.mxu0 0.0
      %6954 = vmatpush1.msra.mxu0 0.0
      %6955 = vmatprep.subr.mxu0 0.0
      %6956 = vmatpush1.msra.mxu0 0.0
      %6957 = vmatprep.subr.mxu0 0.0
      %6958 = vmatpush1.msra.mxu0 0.0
      %6959 = vmatprep.subr.mxu0 0.0
      %6960 = vmatpush1.msra.mxu0 0.0
      %6961 = vmatprep.subr.mxu0 0.0
      %6962 = vmatpush1.msra.mxu0 0.0
      %6963 = vmatprep.subr.mxu0 0.0
      %6964 = vmatpush1.msra.mxu0 0.0
      %6965 = vmatprep.subr.mxu0 0.0
      %6966 = vmatpush1.msra.mxu0 0.0
      %6967 = vmatprep.subr.mxu0 0.0
      %6968 = vmatpush1.msra.mxu0 0.0
      %6969 = vmatprep.subr.mxu0 0.0
      %6970 = vmatpush1.msra.mxu0 0.0
      %6971 = vmatprep.subr.mxu0 0.0
      %6972 = vmatpush1.msra.mxu0 0.0
      %6973 = vmatprep.subr.mxu0 0.0
      %6974 = vmatpush1.msra.mxu0 0.0
      %6975 = vmatprep.subr.mxu0 0.0
      %6976 = vmatpush1.msra.mxu0 0.0
      %6977 = vmatprep.subr.mxu0 0.0
      %6978 = vmatpush1.msra.mxu0 0.0
      %6979 = vmatprep.subr.mxu0 0.0
      %6980 = vmatpush1.msra.mxu0 0.0
      %6981 = vmatprep.subr.mxu0 0.0
      %6982 = vmatpush1.msra.mxu0 0.0
      %6983 = vmatprep.subr.mxu0 0.0
      %6984 = vmatpush1.msra.mxu0 0.0
      %6985 = vmatprep.subr.mxu0 0.0
      %6986 = vmatpush1.msra.mxu0 0.0
      %6987 = vmatprep.subr.mxu0 0.0
      %6988 = vmatpush1.msra.mxu0 0.0
      %6989 = vmatprep.subr.mxu0 0.0
      %6990 = vmatpush1.msra.mxu0 0.0
      %6991 = vmatprep.subr.mxu0 0.0
      %6992 = vmatpush1.msra.mxu0 0.0
      %6993 = vmatprep.mubr.f32.mxu0 0.0
      %6994 = vmatmul.mubr.f32.gmra.mrb[0].mxu0 %v6711
      %v6995 = vpop.f32.mrb[0].mxu0
      %v6996 = vadd.f32 0.0, %v6995
      %v6997 = vpop.f32.mrb[0].mxu0
      %6998 = vmatprep.mubr.f32.mxu0 0.0
      %6999 = vmatmul.mubr.f32.gmra.mrb[0].mxu0 %v6714
      %v7000 = vpop.f32.mrb[0].mxu0
      %v7001 = vadd.f32 0.0, %v7000
      %v7002 = vpop.f32.mrb[0].mxu0
      %7003 = vmatprep.mubr.f32.mxu0 0.0
      %7004 = vmatmul.mubr.f32.gmra.mrb[0].mxu0 %v6717
      %v7005 = vpop.f32.mrb[0].mxu0
      %v7006 = vadd.f32 0.0, %v7005
      %v7007 = vpop.f32.mrb[0].mxu0
      %7008 = vmatprep.mubr.f32.mxu0 0.0
      %7009 = vmatmul.mubr.f32.gmra.mrb[0].mxu0 %v6720
      %v7010 = vpop.f32.mrb[0].mxu0
      %v7011 = vadd.f32 0.0, %v7010
      %v7012 = vpop.f32.mrb[0].mxu0
      %7013 = vmatprep.mubr.f32.mxu0 0.0
      %7014 = vmatmul.mubr.f32.gmra.mrb[0].mxu0 %v6723
      %v7015 = vpop.f32.mrb[0].mxu0
      %v7016 = vadd.f32 0.0, %v7015
      %v7017 = vpop.f32.mrb[0].mxu0
      %7018 = vmatprep.mubr.f32.mxu0 0.0
      %7019 = vmatmul.mubr.f32.gmra.mrb[0].mxu0 %v6726
      %v7020 = vpop.f32.mrb[0].mxu0
      %v7021 = vadd.f32 0.0, %v7020
      %v7022 = vpop.f32.mrb[0].mxu0
      %7023 = vmatprep.mubr.f32.mxu0 0.0
      %7024 = vmatmul.mubr.f32.gmra.mrb[0].mxu0 %v6729
      %v7025 = vpop.f32.mrb[0].mxu0
      %v7026 = vadd.f32 0.0, %v7025
      %v7027 = vpop.f32.mrb[0].mxu0
      %7028 = vmatprep.mubr.f32.mxu0 0.0
      %7029 = vmatmul.mubr.f32.gmra.mrb[0].mxu0 %v6732
      %v7030 = vpop.f32.mrb[0].mxu0
      %v7031 = vadd.f32 0.0, %v7030
      %v7032 = vpop.f32.mrb[0].mxu0
      %7033 = vmatprep.mubr.f32.mxu0 0.0
      %7034 = vmatmul.mubr.f32.gmra.mrb[0].mxu0 %v6735
      %v7035 = vpop.f32.mrb[0].mxu0
      %v7036 = vadd.f32 0.0, %v7035
      %v7037 = vpop.f32.mrb[0].mxu0
      %7038 = vmatprep.mubr.f32.mxu0 0.0
      %7039 = vmatmul.mubr.f32.gmra.mrb[0].mxu0 %v6738
      %v7040 = vpop.f32.mrb[0].mxu0
      %v7041 = vadd.f32 0.0, %v7040
      %v7042 = vpop.f32.mrb[0].mxu0
      %7043 = vmatprep.mubr.f32.mxu0 0.0
      %7044 = vmatmul.mubr.f32.gmra.mrb[0].mxu0 %v6741
      %v7045 = vpop.f32.mrb[0].mxu0
      %v7046 = vadd.f32 0.0, %v7045
      %v7047 = vpop.f32.mrb[0].mxu0
      %7048 = vmatprep.mubr.f32.mxu0 0.0
      %7049 = vmatmul.mubr.f32.gmra.mrb[0].mxu0 %v6744
      %v7050 = vpop.f32.mrb[0].mxu0
      %v7051 = vadd.f32 0.0, %v7050
      %v7052 = vpop.f32.mrb[0].mxu0
      %7053 = vmatprep.mubr.f32.mxu0 0.0
      %7054 = vmatmul.mubr.f32.gmra.mrb[0].mxu0 %v6747
      %v7055 = vpop.f32.mrb[0].mxu0
      %v7056 = vadd.f32 0.0, %v7055
      %v7057 = vpop.f32.mrb[0].mxu0
      %7058 = vmatprep.mubr.f32.mxu0 0.0
      %7059 = vmatmul.mubr.f32.gmra.mrb[0].mxu0 %v6750
      %v7060 = vpop.f32.mrb[0].mxu0
      %v7061 = vadd.f32 0.0, %v7060
      %v7062 = vpop.f32.mrb[0].mxu0
      %7063 = vmatprep.mubr.f32.mxu0 0.0
      %7064 = vmatmul.mubr.f32.gmra.mrb[0].mxu0 %v6753
      %v7065 = vpop.f32.mrb[0].mxu0
      %v7066 = vadd.f32 0.0, %v7065
      %v7067 = vpop.f32.mrb[0].mxu0
      %7068 = vmatprep.mubr.f32.mxu0 0.0
      %7069 = vmatmul.mubr.f32.gmra.mrb[0].mxu0 %v6756
      %v7070 = vpop.f32.mrb[0].mxu0
      %v7071 = vadd.f32 0.0, %v7070
      %v7072 = vpop.f32.mrb[0].mxu0
      %7073 = vmatprep.mubr.f32.mxu0 0.0
      %7074 = vmatmul.mubr.f32.gmra.mrb[0].mxu0 %v6759
      %v7075 = vpop.f32.mrb[0].mxu0
      %v7076 = vadd.f32 0.0, %v7075
      %v7077 = vpop.f32.mrb[0].mxu0
      %7078 = vmatprep.mubr.f32.mxu0 0.0
      %7079 = vmatmul.mubr.f32.gmra.mrb[0].mxu0 %v6762
      %v7080 = vpop.f32.mrb[0].mxu0
      %v7081 = vadd.f32 0.0, %v7080
      %v7082 = vpop.f32.mrb[0].mxu0
      %7083 = vmatprep.mubr.f32.mxu0 0.0
      %7084 = vmatmul.mubr.f32.gmra.mrb[0].mxu0 %v6765
      %v7085 = vpop.f32.mrb[0].mxu0
      %v7086 = vadd.f32 0.0, %v7085
      %v7087 = vpop.f32.mrb[0].mxu0
      %7088 = vmatprep.mubr.f32.mxu0 0.0
      %7089 = vmatmul.mubr.f32.gmra.mrb[0].mxu0 %v6768
      %v7090 = vpop.f32.mrb[0].mxu0
      %v7091 = vadd.f32 0.0, %v7090
      %v7092 = vpop.f32.mrb[0].mxu0
      %7093 = vmatprep.mubr.f32.mxu0 0.0
      %7094 = vmatmul.mubr.f32.gmra.mrb[0].mxu0 %v6771
      %v7095 = vpop.f32.mrb[0].mxu0
      %v7096 = vadd.f32 0.0, %v7095
      %v7097 = vpop.f32.mrb[0].mxu0
      %7098 = vmatprep.mubr.f32.mxu0 0.0
      %7099 = vmatmul.mubr.f32.gmra.mrb[0].mxu0 %v6774
      %v7100 = vpop.f32.mrb[0].mxu0
      %v7101 = vadd.f32 0.0, %v7100
      %v7102 = vpop.f32.mrb[0].mxu0
      %7103 = vmatprep.mubr.f32.mxu0 0.0
      %7104 = vmatmul.mubr.f32.gmra.mrb[0].mxu0 %v6777
      %v7105 = vpop.f32.mrb[0].mxu0
      %v7106 = vadd.f32 0.0, %v7105
      %v7107 = vpop.f32.mrb[0].mxu0
      %7108 = vmatprep.mubr.f32.mxu0 0.0
      %7109 = vmatmul.mubr.f32.gmra.mrb[0].mxu0 %v6780
      %v7110 = vpop.f32.mrb[0].mxu0
      %v7111 = vadd.f32 0.0, %v7110
      %v7112 = vpop.f32.mrb[0].mxu0
      %7113 = vmatprep.mubr.f32.mxu0 0.0
      %7114 = vmatmul.mubr.f32.gmra.mrb[0].mxu0 %v6783
      %v7115 = vpop.f32.mrb[0].mxu0
      %v7116 = vadd.f32 0.0, %v7115
      %v7117 = vpop.f32.mrb[0].mxu0
      %7118 = vmatprep.mubr.f32.mxu0 0.0
      %7119 = vmatmul.mubr.f32.gmra.mrb[0].mxu0 %v6786
      %v7120 = vpop.f32.mrb[0].mxu0
      %v7121 = vadd.f32 0.0, %v7120
      %v7122 = vpop.f32.mrb[0].mxu0
      %7123 = vmatprep.mubr.f32.mxu0 0.0
      %7124 = vmatmul.mubr.f32.gmra.mrb[0].mxu0 %v6789
      %v7125 = vpop.f32.mrb[0].mxu0
      %v7126 = vadd.f32 0.0, %v7125
      %v7127 = vpop.f32.mrb[0].mxu0
      %7128 = vmatprep.mubr.f32.mxu0 0.0
      %7129 = vmatmul.mubr.f32.gmra.mrb[0].mxu0 %v6792
      %v7130 = vpop.f32.mrb[0].mxu0
      %v7131 = vadd.f32 0.0, %v7130
      %v7132 = vpop.f32.mrb[0].mxu0
      %7133 = vmatprep.mubr.f32.mxu0 0.0
      %7134 = vmatmul.mubr.f32.gmra.mrb[0].mxu0 %v6795
      %v7135 = vpop.f32.mrb[0].mxu0
      %v7136 = vadd.f32 0.0, %v7135
      %v7137 = vpop.f32.mrb[0].mxu0
      %7138 = vmatprep.mubr.f32.mxu0 0.0
      %7139 = vmatmul.mubr.f32.gmra.mrb[0].mxu0 %v6798
      %v7140 = vpop.f32.mrb[0].mxu0
      %v7141 = vadd.f32 0.0, %v7140
      %v7142 = vpop.f32.mrb[0].mxu0
      %7143 = vmatprep.mubr.f32.mxu0 0.0
      %7144 = vmatmul.mubr.f32.gmra.mrb[0].mxu0 %v6801
      %v7145 = vpop.f32.mrb[0].mxu0
      %v7146 = vadd.f32 0.0, %v7145
      %v7147 = vpop.f32.mrb[0].mxu0
      %7148 = vmatprep.mubr.f32.mxu0 0.0
      %7149 = vmatmul.mubr.f32.gmra.mrb[0].mxu0 %v6804
      %v7150 = vpop.f32.mrb[0].mxu0
      %v7151 = vadd.f32 0.0, %v7150
      %v7152 = vpop.f32.mrb[0].mxu0
      %7153 = vmatprep.mubr.f32.mxu0 0.0
      %7154 = vmatmul.mubr.f32.gmra.mrb[0].mxu0 %v6807
      %v7155 = vpop.f32.mrb[0].mxu0
      %v7156 = vadd.f32 0.0, %v7155
      %v7157 = vpop.f32.mrb[0].mxu0
      %7158 = vmatprep.mubr.f32.mxu0 0.0
      %7159 = vmatmul.mubr.f32.gmra.mrb[0].mxu0 %v6810
      %v7160 = vpop.f32.mrb[0].mxu0
      %v7161 = vadd.f32 0.0, %v7160
      %v7162 = vpop.f32.mrb[0].mxu0
      %7163 = vmatprep.mubr.f32.mxu0 0.0
      %7164 = vmatmul.mubr.f32.gmra.mrb[0].mxu0 %v6813
      %v7165 = vpop.f32.mrb[0].mxu0
      %v7166 = vadd.f32 0.0, %v7165
      %v7167 = vpop.f32.mrb[0].mxu0
      %7168 = vmatprep.mubr.f32.mxu0 0.0
      %7169 = vmatmul.mubr.f32.gmra.mrb[0].mxu0 %v6816
      %v7170 = vpop.f32.mrb[0].mxu0
      %v7171 = vadd.f32 0.0, %v7170
      %v7172 = vpop.f32.mrb[0].mxu0
      %7173 = vmatprep.mubr.f32.mxu0 0.0
      %7174 = vmatmul.mubr.f32.gmra.mrb[0].mxu0 %v6819
      %v7175 = vpop.f32.mrb[0].mxu0
      %v7176 = vadd.f32 0.0, %v7175
      %v7177 = vpop.f32.mrb[0].mxu0
      %7178 = vmatprep.mubr.f32.mxu0 0.0
      %7179 = vmatmul.mubr.f32.gmra.mrb[0].mxu0 %v6822
      %v7180 = vpop.f32.mrb[0].mxu0
      %v7181 = vadd.f32 0.0, %v7180
      %v7182 = vpop.f32.mrb[0].mxu0
      %7183 = vmatprep.mubr.f32.mxu0 0.0
      %7184 = vmatmul.mubr.f32.gmra.mrb[0].mxu0 %v6825
      %v7185 = vpop.f32.mrb[0].mxu0
      %v7186 = vadd.f32 0.0, %v7185
      %v7187 = vpop.f32.mrb[0].mxu0
      %7188 = vmatprep.mubr.f32.mxu0 0.0
      %7189 = vmatmul.mubr.f32.gmra.mrb[0].mxu0 %v6828
      %v7190 = vpop.f32.mrb[0].mxu0
      %v7191 = vadd.f32 0.0, %v7190
      %v7192 = vpop.f32.mrb[0].mxu0
      %7193 = vmatprep.mubr.f32.mxu0 0.0
      %7194 = vmatmul.mubr.f32.gmra.mrb[0].mxu0 %v6831
      %v7195 = vpop.f32.mrb[0].mxu0
      %v7196 = vadd.f32 0.0, %v7195
      %v7197 = vpop.f32.mrb[0].mxu0
      %7198 = vmatprep.mubr.f32.mxu0 0.0
      %7199 = vmatmul.mubr.f32.gmra.mrb[0].mxu0 %v6834
      %v7200 = vpop.f32.mrb[0].mxu0
      %v7201 = vadd.f32 0.0, %v7200
      %v7202 = vpop.f32.mrb[0].mxu0
      %7203 = vmatprep.mubr.f32.mxu0 0.0
      %7204 = vmatmul.mubr.f32.gmra.mrb[0].mxu0 %v6837
      %v7205 = vpop.f32.mrb[0].mxu0
      %v7206 = vadd.f32 0.0, %v7205
      %v7207 = vpop.f32.mrb[0].mxu0
      %7208 = vmatprep.mubr.f32.mxu0 0.0
      %7209 = vmatmul.mubr.f32.gmra.mrb[0].mxu0 %v6840
      %v7210 = vpop.f32.mrb[0].mxu0
      %v7211 = vadd.f32 0.0, %v7210
      %v7212 = vpop.f32.mrb[0].mxu0
      %7213 = vmatprep.mubr.f32.mxu0 0.0
      %7214 = vmatmul.mubr.f32.gmra.mrb[0].mxu0 %v6843
      %v7215 = vpop.f32.mrb[0].mxu0
      %v7216 = vadd.f32 0.0, %v7215
      %v7217 = vpop.f32.mrb[0].mxu0
      %7218 = vmatprep.mubr.f32.mxu0 0.0
      %7219 = vmatmul.mubr.f32.gmra.mrb[0].mxu0 %v6846
      %v7220 = vpop.f32.mrb[0].mxu0
      %v7221 = vadd.f32 0.0, %v7220
      %v7222 = vpop.f32.mrb[0].mxu0
      %7223 = vmatprep.mubr.f32.mxu0 0.0
      %7224 = vmatmul.mubr.f32.gmra.mrb[0].mxu0 %v6849
      %v7225 = vpop.f32.mrb[0].mxu0
      %v7226 = vadd.f32 0.0, %v7225
      %v7227 = vpop.f32.mrb[0].mxu0
      %7228 = vmatprep.mubr.f32.mxu0 0.0
      %7229 = vmatmul.mubr.f32.gmra.mrb[0].mxu0 %v6852
      %v7230 = vpop.f32.mrb[0].mxu0
      %v7231 = vadd.f32 0.0, %v7230
      %v7232 = vpop.f32.mrb[0].mxu0
      %7233 = vmatprep.mubr.f32.mxu0 0.0
      %7234 = vmatmul.mubr.f32.gmra.mrb[0].mxu0 %v6855
      %v7235 = vpop.f32.mrb[0].mxu0
      %v7236 = vadd.f32 0.0, %v7235
      %v7237 = vpop.f32.mrb[0].mxu0
      %7238 = vmatprep.mubr.f32.mxu0 0.0
      %7239 = vmatmul.mubr.f32.gmra.mrb[0].mxu0 %v6858
      %v7240 = vpop.f32.mrb[0].mxu0
      %v7241 = vadd.f32 0.0, %v7240
      %v7242 = vpop.f32.mrb[0].mxu0
      %7243 = vmatprep.mubr.f32.mxu0 0.0
      %7244 = vmatmul.mubr.f32.gmra.mrb[0].mxu0 %v6861
      %v7245 = vpop.f32.mrb[0].mxu0
      %v7246 = vadd.f32 0.0, %v7245
      %v7247 = vpop.f32.mrb[0].mxu0
      %7248 = vmatprep.mubr.f32.mxu0 0.0
      %7249 = vmatmul.mubr.f32.gmra.mrb[0].mxu0 %v6864
      %v7250 = vpop.f32.mrb[0].mxu0
      %v7251 = vadd.f32 0.0, %v7250
      %v7252 = vpop.f32.mrb[0].mxu0
      %7253 = vmatprep.mubr.f32.mxu0 0.0
      %7254 = vmatmul.mubr.f32.gmra.mrb[0].mxu0 %v6867
      %v7255 = vpop.f32.mrb[0].mxu0
      %v7256 = vadd.f32 0.0, %v7255
      %v7257 = vpop.f32.mrb[0].mxu0
      %7258 = vmatprep.mubr.f32.mxu0 0.0
      %7259 = vmatmul.mubr.f32.gmra.mrb[0].mxu0 %v6870
      %v7260 = vpop.f32.mrb[0].mxu0
      %v7261 = vadd.f32 0.0, %v7260
      %v7262 = vpop.f32.mrb[0].mxu0
      %7263 = vmatprep.mubr.f32.mxu0 0.0
      %7264 = vmatmul.mubr.f32.gmra.mrb[0].mxu0 %v6873
      %v7265 = vpop.f32.mrb[0].mxu0
      %v7266 = vadd.f32 0.0, %v7265
      %v7267 = vpop.f32.mrb[0].mxu0
      %7268 = vmatprep.mubr.f32.mxu0 0.0
      %7269 = vmatmul.mubr.f32.gmra.mrb[0].mxu0 %v6876
      %v7270 = vpop.f32.mrb[0].mxu0
      %v7271 = vadd.f32 0.0, %v7270
      %v7272 = vpop.f32.mrb[0].mxu0
      %7273 = vmatprep.mubr.f32.mxu0 0.0
      %7274 = vmatmul.mubr.f32.gmra.mrb[0].mxu0 %v6879
      %v7275 = vpop.f32.mrb[0].mxu0
      %v7276 = vadd.f32 0.0, %v7275
      %v7277 = vpop.f32.mrb[0].mxu0
      %7278 = vmatprep.mubr.f32.mxu0 0.0
      %7279 = vmatmul.mubr.f32.gmra.mrb[0].mxu0 %v6882
      %v7280 = vpop.f32.mrb[0].mxu0
      %v7281 = vadd.f32 0.0, %v7280
      %v7282 = vpop.f32.mrb[0].mxu0
      %7283 = vmatprep.mubr.f32.mxu0 0.0
      %7284 = vmatmul.mubr.f32.gmra.mrb[0].mxu0 %v6885
      %v7285 = vpop.f32.mrb[0].mxu0
      %v7286 = vadd.f32 0.0, %v7285
      %v7287 = vpop.f32.mrb[0].mxu0
      %7288 = vmatprep.mubr.f32.mxu0 0.0
      %7289 = vmatmul.mubr.f32.gmra.mrb[0].mxu0 %v6888
      %v7290 = vpop.f32.mrb[0].mxu0
      %v7291 = vadd.f32 0.0, %v7290
      %v7292 = vpop.f32.mrb[0].mxu0
      %7293 = vmatprep.mubr.f32.mxu0 0.0
      %7294 = vmatmul.mubr.f32.gmra.mrb[0].mxu0 %v6891
      %v7295 = vpop.f32.mrb[0].mxu0
      %v7296 = vadd.f32 0.0, %v7295
      %v7297 = vpop.f32.mrb[0].mxu0
      %7298 = vmatprep.mubr.f32.mxu0 0.0
      %7299 = vmatmul.mubr.f32.gmra.mrb[0].mxu0 %v6894
      %v7300 = vpop.f32.mrb[0].mxu0
      %v7301 = vadd.f32 0.0, %v7300
      %v7302 = vpop.f32.mrb[0].mxu0
      %7303 = vmatprep.mubr.f32.mxu0 0.0
      %7304 = vmatmul.mubr.f32.gmra.mrb[0].mxu0 %v6897
      %v7305 = vpop.f32.mrb[0].mxu0
      %v7306 = vadd.f32 0.0, %v7305
      %v7307 = vpop.f32.mrb[0].mxu0
      %7308 = vmatprep.mubr.f32.mxu0 0.0
      %7309 = vmatmul.mubr.f32.gmra.mrb[0].mxu0 %v6900
      %v7310 = vpop.f32.mrb[0].mxu0
      %v7311 = vadd.f32 0.0, %v7310
      %v7312 = vpop.f32.mrb[0].mxu0
      %7313 = vmatprep.mubr.f32.mxu0 0.0
      %7314 = vmatmul.mubr.f32.gmra.mrb[0].mxu0 %v6903
      %v7315 = vpop.f32.mrb[0].mxu0
      %v7316 = vadd.f32 0.0, %v7315
      %v7317 = vpop.f32.mrb[0].mxu0
      %7318 = vmatprep.mubr.f32.mxu0 0.0
      %7319 = vmatmul.mubr.f32.gmra.mrb[0].mxu0 %v6906
      %v7320 = vpop.f32.mrb[0].mxu0
      %v7321 = vadd.f32 0.0, %v7320
      %v7322 = vpop.f32.mrb[0].mxu0
      %7323 = vmatprep.mubr.f32.mxu0 0.0
      %7324 = vmatmul.mubr.f32.gmra.mrb[0].mxu0 %v6909
      %v7325 = vpop.f32.mrb[0].mxu0
      %v7326 = vadd.f32 0.0, %v7325
      %v7327 = vpop.f32.mrb[0].mxu0
      %7328 = vmatprep.mubr.f32.mxu0 0.0
      %7329 = vmatmul.mubr.f32.gmra.mrb[0].mxu0 %v6912
      %v7330 = vpop.f32.mrb[0].mxu0
      %v7331 = vadd.f32 0.0, %v7330
      %v7332 = vpop.f32.mrb[0].mxu0
      %7333 = vmatprep.mubr.f32.mxu0 0.0
      %7334 = vmatmul.mubr.f32.gmra.mrb[0].mxu0 %v6915
      %v7335 = vpop.f32.mrb[0].mxu0
      %v7336 = vadd.f32 0.0, %v7335
      %v7337 = vpop.f32.mrb[0].mxu0
      %7338 = vmatprep.mubr.f32.mxu0 0.0
      %7339 = vmatmul.mubr.f32.gmra.mrb[0].mxu0 %v6918
      %v7340 = vpop.f32.mrb[0].mxu0
      %v7341 = vadd.f32 0.0, %v7340
      %v7342 = vpop.f32.mrb[0].mxu0
      %7343 = vmatprep.mubr.f32.mxu0 0.0
      %7344 = vmatmul.mubr.f32.gmra.mrb[0].mxu0 %v6921
      %v7345 = vpop.f32.mrb[0].mxu0
      %v7346 = vadd.f32 0.0, %v7345
      %v7347 = vpop.f32.mrb[0].mxu0
      %7348 = vmatprep.mubr.f32.mxu0 0.0
      %7349 = vmatmul.mubr.f32.gmra.mrb[0].mxu0 %v6924
      %v7350 = vpop.f32.mrb[0].mxu0
      %v7351 = vadd.f32 0.0, %v7350
      %v7352 = vpop.f32.mrb[0].mxu0
      %7353 = vdwg.mxu0
      %v7354 = vadd.f32 %v6564, %v6996
      %v7355 = vadd.f32 %v6565, %v7001
      %v7356 = vadd.f32 %v6566, %v7006
      %v7357 = vadd.f32 %v6567, %v7011
      %v7358 = vadd.f32 %v6568, %v7016
      %v7359 = vadd.f32 %v6569, %v7021
      %v7360 = vadd.f32 %v6570, %v7026
      %v7361 = vadd.f32 %v6571, %v7031
      %v7362 = vadd.f32 %v6572, %v7036
      %v7363 = vadd.f32 %v6573, %v7041
      %v7364 = vadd.f32 %v6574, %v7046
      %v7365 = vadd.f32 %v6575, %v7051
      %v7366 = vadd.f32 %v6576, %v7056
      %v7367 = vadd.f32 %v6577, %v7061
      %v7368 = vadd.f32 %v6578, %v7066
      %v7369 = vadd.f32 %v6579, %v7071
      %v7370 = vadd.f32 %v6580, %v7076
      %v7371 = vadd.f32 %v6581, %v7081
      %v7372 = vadd.f32 %v6582, %v7086
      %v7373 = vadd.f32 %v6583, %v7091
      %v7374 = vadd.f32 %v6584, %v7096
      %v7375 = vadd.f32 %v6585, %v7101
      %v7376 = vadd.f32 %v6586, %v7106
      %v7377 = vadd.f32 %v6587, %v7111
      %v7378 = vadd.f32 %v6588, %v7116
      %v7379 = vadd.f32 %v6589, %v7121
      %v7380 = vadd.f32 %v6590, %v7126
      %v7381 = vadd.f32 %v6591, %v7131
      %v7382 = vadd.f32 %v6592, %v7136
      %v7383 = vadd.f32 %v6593, %v7141
      %v7384 = vadd.f32 %v6594, %v7146
      %v7385 = vadd.f32 %v6595, %v7151
      %v7386 = vadd.f32 %v6596, %v7156
      %v7387 = vadd.f32 %v6597, %v7161
      %v7388 = vadd.f32 %v6598, %v7166
      %v7389 = vadd.f32 %v6599, %v7171
      %v7390 = vadd.f32 %v6600, %v7176
      %v7391 = vadd.f32 %v6601, %v7181
      %v7392 = vadd.f32 %v6602, %v7186
      %v7393 = vadd.f32 %v6603, %v7191
      %v7394 = vadd.f32 %v6604, %v7196
      %v7395 = vadd.f32 %v6605, %v7201
      %v7396 = vadd.f32 %v6606, %v7206
      %v7397 = vadd.f32 %v6607, %v7211
      %v7398 = vadd.f32 %v6608, %v7216
      %v7399 = vadd.f32 %v6609, %v7221
      %v7400 = vadd.f32 %v6610, %v7226
      %v7401 = vadd.f32 %v6611, %v7231
      %v7402 = vadd.f32 %v6612, %v7236
      %v7403 = vadd.f32 %v6613, %v7241
      %v7404 = vadd.f32 %v6614, %v7246
      %v7405 = vadd.f32 %v6615, %v7251
      %v7406 = vadd.f32 %v6616, %v7256
      %v7407 = vadd.f32 %v6617, %v7261
      %v7408 = vadd.f32 %v6618, %v7266
      %v7409 = vadd.f32 %v6619, %v7271
      %v7410 = vadd.f32 %v6620, %v7276
      %v7411 = vadd.f32 %v6621, %v7281
      %v7412 = vadd.f32 %v6622, %v7286
      %v7413 = vadd.f32 %v6623, %v7291
      %v7414 = vadd.f32 %v6624, %v7296
      %v7415 = vadd.f32 %v6625, %v7301
      %v7416 = vadd.f32 %v6626, %v7306
      %v7417 = vadd.f32 %v6627, %v7311
      %v7418 = vadd.f32 %v6628, %v7316
      %v7419 = vadd.f32 %v6629, %v7321
      %v7420 = vadd.f32 %v6630, %v7326
      %v7421 = vadd.f32 %v6631, %v7331
      %v7422 = vadd.f32 %v6632, %v7336
      %v7423 = vadd.f32 %v6633, %v7341
      %v7424 = vadd.f32 %v6634, %v7346
      %v7425 = vadd.f32 %v6635, %v7351
      %v7426 = vld [vmem:[%s2] sm:$0x1]
      %v7428 = vlaneseq
      %v7429 = vshrl.u32 %v7428, 7
      %v7430 = vsub.s32 0, %v7429
      %v7431 = vrot.slane %v7426, %v7430
      %v7433 = vadd.f32 %v7354, %v7431
      %v7434 = vadd.f32 %v7355, %v7431
      %v7435 = vadd.f32 %v7356, %v7431
      %v7436 = vadd.f32 %v7357, %v7431
      %v7437 = vadd.f32 %v7358, %v7431
      %v7438 = vadd.f32 %v7359, %v7431
      %v7439 = vadd.f32 %v7360, %v7431
      %v7440 = vadd.f32 %v7361, %v7431
      %v7441 = vadd.f32 %v7362, %v7431
      %v7442 = vadd.f32 %v7363, %v7431
      %v7443 = vadd.f32 %v7364, %v7431
      %v7444 = vadd.f32 %v7365, %v7431
      %v7445 = vadd.f32 %v7366, %v7431
      %v7446 = vadd.f32 %v7367, %v7431
      %v7447 = vadd.f32 %v7368, %v7431
      %v7448 = vadd.f32 %v7369, %v7431
      %v7449 = vadd.f32 %v7370, %v7431
      %v7450 = vadd.f32 %v7371, %v7431
      %v7451 = vadd.f32 %v7372, %v7431
      %v7452 = vadd.f32 %v7373, %v7431
      %v7453 = vadd.f32 %v7374, %v7431
      %v7454 = vadd.f32 %v7375, %v7431
      %v7455 = vadd.f32 %v7376, %v7431
      %v7456 = vadd.f32 %v7377, %v7431
      %v7457 = vadd.f32 %v7378, %v7431
      %v7458 = vadd.f32 %v7379, %v7431
      %v7459 = vadd.f32 %v7380, %v7431
      %v7460 = vadd.f32 %v7381, %v7431
      %v7461 = vadd.f32 %v7382, %v7431
      %v7462 = vadd.f32 %v7383, %v7431
      %v7463 = vadd.f32 %v7384, %v7431
      %v7464 = vadd.f32 %v7385, %v7431
      %v7465 = vadd.f32 %v7386, %v7431
      %v7466 = vadd.f32 %v7387, %v7431
      %v7467 = vadd.f32 %v7388, %v7431
      %v7468 = vadd.f32 %v7389, %v7431
      %v7469 = vadd.f32 %v7390, %v7431
      %v7470 = vadd.f32 %v7391, %v7431
      %v7471 = vadd.f32 %v7392, %v7431
      %v7472 = vadd.f32 %v7393, %v7431
      %v7473 = vadd.f32 %v7394, %v7431
      %v7474 = vadd.f32 %v7395, %v7431
      %v7475 = vadd.f32 %v7396, %v7431
      %v7476 = vadd.f32 %v7397, %v7431
      %v7477 = vadd.f32 %v7398, %v7431
      %v7478 = vadd.f32 %v7399, %v7431
      %v7479 = vadd.f32 %v7400, %v7431
      %v7480 = vadd.f32 %v7401, %v7431
      %v7481 = vadd.f32 %v7402, %v7431
      %v7482 = vadd.f32 %v7403, %v7431
      %v7483 = vadd.f32 %v7404, %v7431
      %v7484 = vadd.f32 %v7405, %v7431
      %v7485 = vadd.f32 %v7406, %v7431
      %v7486 = vadd.f32 %v7407, %v7431
      %v7487 = vadd.f32 %v7408, %v7431
      %v7488 = vadd.f32 %v7409, %v7431
      %v7489 = vadd.f32 %v7410, %v7431
      %v7490 = vadd.f32 %v7411, %v7431
      %v7491 = vadd.f32 %v7412, %v7431
      %v7492 = vadd.f32 %v7413, %v7431
      %v7493 = vadd.f32 %v7414, %v7431
      %v7494 = vadd.f32 %v7415, %v7431
      %v7495 = vadd.f32 %v7416, %v7431
      %v7496 = vadd.f32 %v7417, %v7431
      %v7497 = vadd.f32 %v7418, %v7431
      %v7498 = vadd.f32 %v7419, %v7431
      %v7499 = vadd.f32 %v7420, %v7431
      %v7500 = vadd.f32 %v7421, %v7431
      %v7501 = vadd.f32 %v7422, %v7431
      %v7502 = vadd.f32 %v7423, %v7431
      %v7503 = vadd.f32 %v7424, %v7431
      %v7504 = vadd.f32 %v7425, %v7431
      %v7505 = vmax.f32 %v7433, 0.0
      %v7506 = vmax.f32 %v7434, 0.0
      %v7507 = vmax.f32 %v7435, 0.0
      %v7508 = vmax.f32 %v7436, 0.0
      %v7509 = vmax.f32 %v7437, 0.0
      %v7510 = vmax.f32 %v7438, 0.0
      %v7511 = vmax.f32 %v7439, 0.0
      %v7512 = vmax.f32 %v7440, 0.0
      %v7513 = vmax.f32 %v7441, 0.0
      %v7514 = vmax.f32 %v7442, 0.0
      %v7515 = vmax.f32 %v7443, 0.0
      %v7516 = vmax.f32 %v7444, 0.0
      %v7517 = vmax.f32 %v7445, 0.0
      %v7518 = vmax.f32 %v7446, 0.0
      %v7519 = vmax.f32 %v7447, 0.0
      %v7520 = vmax.f32 %v7448, 0.0
      %v7521 = vmax.f32 %v7449, 0.0
      %v7522 = vmax.f32 %v7450, 0.0
      %v7523 = vmax.f32 %v7451, 0.0
      %v7524 = vmax.f32 %v7452, 0.0
      %v7525 = vmax.f32 %v7453, 0.0
      %v7526 = vmax.f32 %v7454, 0.0
      %v7527 = vmax.f32 %v7455, 0.0
      %v7528 = vmax.f32 %v7456, 0.0
      %v7529 = vmax.f32 %v7457, 0.0
      %v7530 = vmax.f32 %v7458, 0.0
      %v7531 = vmax.f32 %v7459, 0.0
      %v7532 = vmax.f32 %v7460, 0.0
      %v7533 = vmax.f32 %v7461, 0.0
      %v7534 = vmax.f32 %v7462, 0.0
      %v7535 = vmax.f32 %v7463, 0.0
      %v7536 = vmax.f32 %v7464, 0.0
      %v7537 = vmax.f32 %v7465, 0.0
      %v7538 = vmax.f32 %v7466, 0.0
      %v7539 = vmax.f32 %v7467, 0.0
      %v7540 = vmax.f32 %v7468, 0.0
      %v7541 = vmax.f32 %v7469, 0.0
      %v7542 = vmax.f32 %v7470, 0.0
      %v7543 = vmax.f32 %v7471, 0.0
      %v7544 = vmax.f32 %v7472, 0.0
      %v7545 = vmax.f32 %v7473, 0.0
      %v7546 = vmax.f32 %v7474, 0.0
      %v7547 = vmax.f32 %v7475, 0.0
      %v7548 = vmax.f32 %v7476, 0.0
      %v7549 = vmax.f32 %v7477, 0.0
      %v7550 = vmax.f32 %v7478, 0.0
      %v7551 = vmax.f32 %v7479, 0.0
      %v7552 = vmax.f32 %v7480, 0.0
      %v7553 = vmax.f32 %v7481, 0.0
      %v7554 = vmax.f32 %v7482, 0.0
      %v7555 = vmax.f32 %v7483, 0.0
      %v7556 = vmax.f32 %v7484, 0.0
      %v7557 = vmax.f32 %v7485, 0.0
      %v7558 = vmax.f32 %v7486, 0.0
      %v7559 = vmax.f32 %v7487, 0.0
      %v7560 = vmax.f32 %v7488, 0.0
      %v7561 = vmax.f32 %v7489, 0.0
      %v7562 = vmax.f32 %v7490, 0.0
      %v7563 = vmax.f32 %v7491, 0.0
      %v7564 = vmax.f32 %v7492, 0.0
      %v7565 = vmax.f32 %v7493, 0.0
      %v7566 = vmax.f32 %v7494, 0.0
      %v7567 = vmax.f32 %v7495, 0.0
      %v7568 = vmax.f32 %v7496, 0.0
      %v7569 = vmax.f32 %v7497, 0.0
      %v7570 = vmax.f32 %v7498, 0.0
      %v7571 = vmax.f32 %v7499, 0.0
      %v7572 = vmax.f32 %v7500, 0.0
      %v7573 = vmax.f32 %v7501, 0.0
      %v7574 = vmax.f32 %v7502, 0.0
      %v7575 = vmax.f32 %v7503, 0.0
      %v7576 = vmax.f32 %v7504, 0.0
      %v7577 = vsel %vm379, 1, 0
      %v7578 = vsel %vm380, 1, 0
      %v7579 = vsel %vm381, 1, 0
      %v7580 = vsel %vm382, 1, 0
      %v7581 = vsel %vm383, 1, 0
      %v7582 = vsel %vm384, 1, 0
      %v7583 = vsel %vm385, 1, 0
      %v7584 = vsel %vm386, 1, 0
      %v7585 = vsel %vm387, 1, 0
      %v7586 = vsel %vm388, 1, 0
      %v7587 = vsel %vm389, 1, 0
      %v7588 = vsel %vm390, 1, 0
      %v7589 = vsel %vm391, 1, 0
      %v7590 = vsel %vm392, 1, 0
      %v7591 = vsel %vm393, 1, 0
      %v7592 = vsel %vm394, 1, 0
      %v7593 = vsel %vm395, 1, 0
      %v7594 = vsel %vm396, 1, 0
      %v7595 = vsel %vm397, 1, 0
      %v7596 = vsel %vm398, 1, 0
      %v7597 = vsel %vm399, 1, 0
      %v7598 = vsel %vm400, 1, 0
      %v7599 = vsel %vm401, 1, 0
      %v7600 = vsel %vm402, 1, 0
      %v7601 = vsel %vm403, 1, 0
      %v7602 = vsel %vm404, 1, 0
      %v7603 = vsel %vm405, 1, 0
      %v7604 = vsel %vm406, 1, 0
      %v7605 = vsel %vm407, 1, 0
      %v7606 = vsel %vm408, 1, 0
      %v7607 = vsel %vm409, 1, 0
      %v7608 = vsel %vm410, 1, 0
      %v7609 = vsel %vm411, 1, 0
      %v7610 = vsel %vm412, 1, 0
      %v7611 = vsel %vm413, 1, 0
      %v7612 = vsel %vm414, 1, 0
      %v7613 = vsel %vm415, 1, 0
      %v7614 = vsel %vm416, 1, 0
      %v7615 = vsel %vm417, 1, 0
      %v7616 = vsel %vm418, 1, 0
      %v7617 = vsel %vm419, 1, 0
      %v7618 = vsel %vm420, 1, 0
      %v7619 = vsel %vm421, 1, 0
      %v7620 = vsel %vm422, 1, 0
      %v7621 = vsel %vm423, 1, 0
      %v7622 = vsel %vm424, 1, 0
      %v7623 = vsel %vm425, 1, 0
      %v7624 = vsel %vm426, 1, 0
      %v7625 = vsel %vm427, 1, 0
      %v7626 = vsel %vm428, 1, 0
      %v7627 = vsel %vm429, 1, 0
      %v7628 = vsel %vm430, 1, 0
      %v7629 = vsel %vm431, 1, 0
      %v7630 = vsel %vm432, 1, 0
      %v7631 = vsel %vm433, 1, 0
      %v7632 = vsel %vm434, 1, 0
      %v7633 = vsel %vm435, 1, 0
      %v7634 = vsel %vm436, 1, 0
      %v7635 = vsel %vm437, 1, 0
      %v7636 = vsel %vm438, 1, 0
      %v7637 = vsel %vm439, 1, 0
      %v7638 = vsel %vm440, 1, 0
      %v7639 = vsel %vm441, 1, 0
      %v7640 = vsel %vm442, 1, 0
      %v7641 = vsel %vm443, 1, 0
      %v7642 = vsel %vm444, 1, 0
      %v7643 = vsel %vm445, 1, 0
      %v7644 = vsel %vm446, 1, 0
      %v7645 = vsel %vm447, 1, 0
      %v7646 = vsel %vm448, 1, 0
      %v7647 = vsel %vm449, 1, 0
      %v7648 = vsel %vm450, 1, 0
      %7649 = vset.pattern.permute.xlu0 0
      %7650 = vperm.xlu0 %7649, %v7577
      %v7651 = vpop.permute.xlu0 %7650
      %7652 = vset.pattern.permute.xlu0 0
      %7653 = vperm.xlu0 %7652, %v7578
      %v7654 = vpop.permute.xlu0 %7653
      %7655 = vset.pattern.permute.xlu0 0
      %7656 = vperm.xlu0 %7655, %v7579
      %v7657 = vpop.permute.xlu0 %7656
      %7658 = vset.pattern.permute.xlu0 0
      %7659 = vperm.xlu0 %7658, %v7580
      %v7660 = vpop.permute.xlu0 %7659
      %7661 = vset.pattern.permute.xlu0 0
      %7662 = vperm.xlu0 %7661, %v7581
      %v7663 = vpop.permute.xlu0 %7662
      %7664 = vset.pattern.permute.xlu0 0
      %7665 = vperm.xlu0 %7664, %v7582
      %v7666 = vpop.permute.xlu0 %7665
      %7667 = vset.pattern.permute.xlu0 0
      %7668 = vperm.xlu0 %7667, %v7583
      %v7669 = vpop.permute.xlu0 %7668
      %7670 = vset.pattern.permute.xlu0 0
      %7671 = vperm.xlu0 %7670, %v7584
      %v7672 = vpop.permute.xlu0 %7671
      %7673 = vset.pattern.permute.xlu0 0
      %7674 = vperm.xlu0 %7673, %v7585
      %v7675 = vpop.permute.xlu0 %7674
      %7676 = vset.pattern.permute.xlu0 0
      %7677 = vperm.xlu0 %7676, %v7586
      %v7678 = vpop.permute.xlu0 %7677
      %7679 = vset.pattern.permute.xlu0 0
      %7680 = vperm.xlu0 %7679, %v7587
      %v7681 = vpop.permute.xlu0 %7680
      %7682 = vset.pattern.permute.xlu0 0
      %7683 = vperm.xlu0 %7682, %v7588
      %v7684 = vpop.permute.xlu0 %7683
      %7685 = vset.pattern.permute.xlu0 0
      %7686 = vperm.xlu0 %7685, %v7589
      %v7687 = vpop.permute.xlu0 %7686
      %7688 = vset.pattern.permute.xlu0 0
      %7689 = vperm.xlu0 %7688, %v7590
      %v7690 = vpop.permute.xlu0 %7689
      %7691 = vset.pattern.permute.xlu0 0
      %7692 = vperm.xlu0 %7691, %v7591
      %v7693 = vpop.permute.xlu0 %7692
      %7694 = vset.pattern.permute.xlu0 0
      %7695 = vperm.xlu0 %7694, %v7592
      %v7696 = vpop.permute.xlu0 %7695
      %7697 = vset.pattern.permute.xlu0 0
      %7698 = vperm.xlu0 %7697, %v7593
      %v7699 = vpop.permute.xlu0 %7698
      %7700 = vset.pattern.permute.xlu0 0
      %7701 = vperm.xlu0 %7700, %v7594
      %v7702 = vpop.permute.xlu0 %7701
      %7703 = vset.pattern.permute.xlu0 0
      %7704 = vperm.xlu0 %7703, %v7595
      %v7705 = vpop.permute.xlu0 %7704
      %7706 = vset.pattern.permute.xlu0 0
      %7707 = vperm.xlu0 %7706, %v7596
      %v7708 = vpop.permute.xlu0 %7707
      %7709 = vset.pattern.permute.xlu0 0
      %7710 = vperm.xlu0 %7709, %v7597
      %v7711 = vpop.permute.xlu0 %7710
      %7712 = vset.pattern.permute.xlu0 0
      %7713 = vperm.xlu0 %7712, %v7598
      %v7714 = vpop.permute.xlu0 %7713
      %7715 = vset.pattern.permute.xlu0 0
      %7716 = vperm.xlu0 %7715, %v7599
      %v7717 = vpop.permute.xlu0 %7716
      %7718 = vset.pattern.permute.xlu0 0
      %7719 = vperm.xlu0 %7718, %v7600
      %v7720 = vpop.permute.xlu0 %7719
      %7721 = vset.pattern.permute.xlu0 0
      %7722 = vperm.xlu0 %7721, %v7601
      %v7723 = vpop.permute.xlu0 %7722
      %7724 = vset.pattern.permute.xlu0 0
      %7725 = vperm.xlu0 %7724, %v7602
      %v7726 = vpop.permute.xlu0 %7725
      %7727 = vset.pattern.permute.xlu0 0
      %7728 = vperm.xlu0 %7727, %v7603
      %v7729 = vpop.permute.xlu0 %7728
      %7730 = vset.pattern.permute.xlu0 0
      %7731 = vperm.xlu0 %7730, %v7604
      %v7732 = vpop.permute.xlu0 %7731
      %7733 = vset.pattern.permute.xlu0 0
      %7734 = vperm.xlu0 %7733, %v7605
      %v7735 = vpop.permute.xlu0 %7734
      %7736 = vset.pattern.permute.xlu0 0
      %7737 = vperm.xlu0 %7736, %v7606
      %v7738 = vpop.permute.xlu0 %7737
      %7739 = vset.pattern.permute.xlu0 0
      %7740 = vperm.xlu0 %7739, %v7607
      %v7741 = vpop.permute.xlu0 %7740
      %7742 = vset.pattern.permute.xlu0 0
      %7743 = vperm.xlu0 %7742, %v7608
      %v7744 = vpop.permute.xlu0 %7743
      %7745 = vset.pattern.permute.xlu0 0
      %7746 = vperm.xlu0 %7745, %v7609
      %v7747 = vpop.permute.xlu0 %7746
      %7748 = vset.pattern.permute.xlu0 0
      %7749 = vperm.xlu0 %7748, %v7610
      %v7750 = vpop.permute.xlu0 %7749
      %7751 = vset.pattern.permute.xlu0 0
      %7752 = vperm.xlu0 %7751, %v7611
      %v7753 = vpop.permute.xlu0 %7752
      %7754 = vset.pattern.permute.xlu0 0
      %7755 = vperm.xlu0 %7754, %v7612
      %v7756 = vpop.permute.xlu0 %7755
      %7757 = vset.pattern.permute.xlu0 0
      %7758 = vperm.xlu0 %7757, %v7613
      %v7759 = vpop.permute.xlu0 %7758
      %7760 = vset.pattern.permute.xlu0 0
      %7761 = vperm.xlu0 %7760, %v7614
      %v7762 = vpop.permute.xlu0 %7761
      %7763 = vset.pattern.permute.xlu0 0
      %7764 = vperm.xlu0 %7763, %v7615
      %v7765 = vpop.permute.xlu0 %7764
      %7766 = vset.pattern.permute.xlu0 0
      %7767 = vperm.xlu0 %7766, %v7616
      %v7768 = vpop.permute.xlu0 %7767
      %7769 = vset.pattern.permute.xlu0 0
      %7770 = vperm.xlu0 %7769, %v7617
      %v7771 = vpop.permute.xlu0 %7770
      %7772 = vset.pattern.permute.xlu0 0
      %7773 = vperm.xlu0 %7772, %v7618
      %v7774 = vpop.permute.xlu0 %7773
      %7775 = vset.pattern.permute.xlu0 0
      %7776 = vperm.xlu0 %7775, %v7619
      %v7777 = vpop.permute.xlu0 %7776
      %7778 = vset.pattern.permute.xlu0 0
      %7779 = vperm.xlu0 %7778, %v7620
      %v7780 = vpop.permute.xlu0 %7779
      %7781 = vset.pattern.permute.xlu0 0
      %7782 = vperm.xlu0 %7781, %v7621
      %v7783 = vpop.permute.xlu0 %7782
      %7784 = vset.pattern.permute.xlu0 0
      %7785 = vperm.xlu0 %7784, %v7622
      %v7786 = vpop.permute.xlu0 %7785
      %7787 = vset.pattern.permute.xlu0 0
      %7788 = vperm.xlu0 %7787, %v7623
      %v7789 = vpop.permute.xlu0 %7788
      %7790 = vset.pattern.permute.xlu0 0
      %7791 = vperm.xlu0 %7790, %v7624
      %v7792 = vpop.permute.xlu0 %7791
      %7793 = vset.pattern.permute.xlu0 0
      %7794 = vperm.xlu0 %7793, %v7625
      %v7795 = vpop.permute.xlu0 %7794
      %7796 = vset.pattern.permute.xlu0 0
      %7797 = vperm.xlu0 %7796, %v7626
      %v7798 = vpop.permute.xlu0 %7797
      %7799 = vset.pattern.permute.xlu0 0
      %7800 = vperm.xlu0 %7799, %v7627
      %v7801 = vpop.permute.xlu0 %7800
      %7802 = vset.pattern.permute.xlu0 0
      %7803 = vperm.xlu0 %7802, %v7628
      %v7804 = vpop.permute.xlu0 %7803
      %7805 = vset.pattern.permute.xlu0 0
      %7806 = vperm.xlu0 %7805, %v7629
      %v7807 = vpop.permute.xlu0 %7806
      %7808 = vset.pattern.permute.xlu0 0
      %7809 = vperm.xlu0 %7808, %v7630
      %v7810 = vpop.permute.xlu0 %7809
      %7811 = vset.pattern.permute.xlu0 0
      %7812 = vperm.xlu0 %7811, %v7631
      %v7813 = vpop.permute.xlu0 %7812
      %7814 = vset.pattern.permute.xlu0 0
      %7815 = vperm.xlu0 %7814, %v7632
      %v7816 = vpop.permute.xlu0 %7815
      %7817 = vset.pattern.permute.xlu0 0
      %7818 = vperm.xlu0 %7817, %v7633
      %v7819 = vpop.permute.xlu0 %7818
      %7820 = vset.pattern.permute.xlu0 0
      %7821 = vperm.xlu0 %7820, %v7634
      %v7822 = vpop.permute.xlu0 %7821
      %7823 = vset.pattern.permute.xlu0 0
      %7824 = vperm.xlu0 %7823, %v7635
      %v7825 = vpop.permute.xlu0 %7824
      %7826 = vset.pattern.permute.xlu0 0
      %7827 = vperm.xlu0 %7826, %v7636
      %v7828 = vpop.permute.xlu0 %7827
      %7829 = vset.pattern.permute.xlu0 0
      %7830 = vperm.xlu0 %7829, %v7637
      %v7831 = vpop.permute.xlu0 %7830
      %7832 = vset.pattern.permute.xlu0 0
      %7833 = vperm.xlu0 %7832, %v7638
      %v7834 = vpop.permute.xlu0 %7833
      %7835 = vset.pattern.permute.xlu0 0
      %7836 = vperm.xlu0 %7835, %v7639
      %v7837 = vpop.permute.xlu0 %7836
      %7838 = vset.pattern.permute.xlu0 0
      %7839 = vperm.xlu0 %7838, %v7640
      %v7840 = vpop.permute.xlu0 %7839
      %7841 = vset.pattern.permute.xlu0 0
      %7842 = vperm.xlu0 %7841, %v7641
      %v7843 = vpop.permute.xlu0 %7842
      %7844 = vset.pattern.permute.xlu0 0
      %7845 = vperm.xlu0 %7844, %v7642
      %v7846 = vpop.permute.xlu0 %7845
      %7847 = vset.pattern.permute.xlu0 0
      %7848 = vperm.xlu0 %7847, %v7643
      %v7849 = vpop.permute.xlu0 %7848
      %7850 = vset.pattern.permute.xlu0 0
      %7851 = vperm.xlu0 %7850, %v7644
      %v7852 = vpop.permute.xlu0 %7851
      %7853 = vset.pattern.permute.xlu0 0
      %7854 = vperm.xlu0 %7853, %v7645
      %v7855 = vpop.permute.xlu0 %7854
      %7856 = vset.pattern.permute.xlu0 0
      %7857 = vperm.xlu0 %7856, %v7646
      %v7858 = vpop.permute.xlu0 %7857
      %7859 = vset.pattern.permute.xlu0 0
      %7860 = vperm.xlu0 %7859, %v7647
      %v7861 = vpop.permute.xlu0 %7860
      %7862 = vset.pattern.permute.xlu0 0
      %7863 = vperm.xlu0 %7862, %v7648
      %v7864 = vpop.permute.xlu0 %7863
      %vm7865 = vcmp.eq.s32.totalorder %v7651, 1
      %vm7866 = vcmp.eq.s32.totalorder %v7654, 1
      %vm7867 = vcmp.eq.s32.totalorder %v7657, 1
      %vm7868 = vcmp.eq.s32.totalorder %v7660, 1
      %vm7869 = vcmp.eq.s32.totalorder %v7663, 1
      %vm7870 = vcmp.eq.s32.totalorder %v7666, 1
      %vm7871 = vcmp.eq.s32.totalorder %v7669, 1
      %vm7872 = vcmp.eq.s32.totalorder %v7672, 1
      %vm7873 = vcmp.eq.s32.totalorder %v7675, 1
      %vm7874 = vcmp.eq.s32.totalorder %v7678, 1
      %vm7875 = vcmp.eq.s32.totalorder %v7681, 1
      %vm7876 = vcmp.eq.s32.totalorder %v7684, 1
      %vm7877 = vcmp.eq.s32.totalorder %v7687, 1
      %vm7878 = vcmp.eq.s32.totalorder %v7690, 1
      %vm7879 = vcmp.eq.s32.totalorder %v7693, 1
      %vm7880 = vcmp.eq.s32.totalorder %v7696, 1
      %vm7881 = vcmp.eq.s32.totalorder %v7699, 1
      %vm7882 = vcmp.eq.s32.totalorder %v7702, 1
      %vm7883 = vcmp.eq.s32.totalorder %v7705, 1
      %vm7884 = vcmp.eq.s32.totalorder %v7708, 1
      %vm7885 = vcmp.eq.s32.totalorder %v7711, 1
      %vm7886 = vcmp.eq.s32.totalorder %v7714, 1
      %vm7887 = vcmp.eq.s32.totalorder %v7717, 1
      %vm7888 = vcmp.eq.s32.totalorder %v7720, 1
      %vm7889 = vcmp.eq.s32.totalorder %v7723, 1
      %vm7890 = vcmp.eq.s32.totalorder %v7726, 1
      %vm7891 = vcmp.eq.s32.totalorder %v7729, 1
      %vm7892 = vcmp.eq.s32.totalorder %v7732, 1
      %vm7893 = vcmp.eq.s32.totalorder %v7735, 1
      %vm7894 = vcmp.eq.s32.totalorder %v7738, 1
      %vm7895 = vcmp.eq.s32.totalorder %v7741, 1
      %vm7896 = vcmp.eq.s32.totalorder %v7744, 1
      %vm7897 = vcmp.eq.s32.totalorder %v7747, 1
      %vm7898 = vcmp.eq.s32.totalorder %v7750, 1
      %vm7899 = vcmp.eq.s32.totalorder %v7753, 1
      %vm7900 = vcmp.eq.s32.totalorder %v7756, 1
      %vm7901 = vcmp.eq.s32.totalorder %v7759, 1
      %vm7902 = vcmp.eq.s32.totalorder %v7762, 1
      %vm7903 = vcmp.eq.s32.totalorder %v7765, 1
      %vm7904 = vcmp.eq.s32.totalorder %v7768, 1
      %vm7905 = vcmp.eq.s32.totalorder %v7771, 1
      %vm7906 = vcmp.eq.s32.totalorder %v7774, 1
      %vm7907 = vcmp.eq.s32.totalorder %v7777, 1
      %vm7908 = vcmp.eq.s32.totalorder %v7780, 1
      %vm7909 = vcmp.eq.s32.totalorder %v7783, 1
      %vm7910 = vcmp.eq.s32.totalorder %v7786, 1
      %vm7911 = vcmp.eq.s32.totalorder %v7789, 1
      %vm7912 = vcmp.eq.s32.totalorder %v7792, 1
      %vm7913 = vcmp.eq.s32.totalorder %v7795, 1
      %vm7914 = vcmp.eq.s32.totalorder %v7798, 1
      %vm7915 = vcmp.eq.s32.totalorder %v7801, 1
      %vm7916 = vcmp.eq.s32.totalorder %v7804, 1
      %vm7917 = vcmp.eq.s32.totalorder %v7807, 1
      %vm7918 = vcmp.eq.s32.totalorder %v7810, 1
      %vm7919 = vcmp.eq.s32.totalorder %v7813, 1
      %vm7920 = vcmp.eq.s32.totalorder %v7816, 1
      %vm7921 = vcmp.eq.s32.totalorder %v7819, 1
      %vm7922 = vcmp.eq.s32.totalorder %v7822, 1
      %vm7923 = vcmp.eq.s32.totalorder %v7825, 1
      %vm7924 = vcmp.eq.s32.totalorder %v7828, 1
      %vm7925 = vcmp.eq.s32.totalorder %v7831, 1
      %vm7926 = vcmp.eq.s32.totalorder %v7834, 1
      %vm7927 = vcmp.eq.s32.totalorder %v7837, 1
      %vm7928 = vcmp.eq.s32.totalorder %v7840, 1
      %vm7929 = vcmp.eq.s32.totalorder %v7843, 1
      %vm7930 = vcmp.eq.s32.totalorder %v7846, 1
      %vm7931 = vcmp.eq.s32.totalorder %v7849, 1
      %vm7932 = vcmp.eq.s32.totalorder %v7852, 1
      %vm7933 = vcmp.eq.s32.totalorder %v7855, 1
      %vm7934 = vcmp.eq.s32.totalorder %v7858, 1
      %vm7935 = vcmp.eq.s32.totalorder %v7861, 1
      %vm7936 = vcmp.eq.s32.totalorder %v7864, 1
      %v7937 = vsel %vm7865, %v7505, 0.0
      %v7938 = vsel %vm7866, %v7506, 0.0
      %v7939 = vsel %vm7867, %v7507, 0.0
      %v7940 = vsel %vm7868, %v7508, 0.0
      %v7941 = vsel %vm7869, %v7509, 0.0
      %v7942 = vsel %vm7870, %v7510, 0.0
      %v7943 = vsel %vm7871, %v7511, 0.0
      %v7944 = vsel %vm7872, %v7512, 0.0
      %v7945 = vsel %vm7873, %v7513, 0.0
      %v7946 = vsel %vm7874, %v7514, 0.0
      %v7947 = vsel %vm7875, %v7515, 0.0
      %v7948 = vsel %vm7876, %v7516, 0.0
      %v7949 = vsel %vm7877, %v7517, 0.0
      %v7950 = vsel %vm7878, %v7518, 0.0
      %v7951 = vsel %vm7879, %v7519, 0.0
      %v7952 = vsel %vm7880, %v7520, 0.0
      %v7953 = vsel %vm7881, %v7521, 0.0
      %v7954 = vsel %vm7882, %v7522, 0.0
      %v7955 = vsel %vm7883, %v7523, 0.0
      %v7956 = vsel %vm7884, %v7524, 0.0
      %v7957 = vsel %vm7885, %v7525, 0.0
      %v7958 = vsel %vm7886, %v7526, 0.0
      %v7959 = vsel %vm7887, %v7527, 0.0
      %v7960 = vsel %vm7888, %v7528, 0.0
      %v7961 = vsel %vm7889, %v7529, 0.0
      %v7962 = vsel %vm7890, %v7530, 0.0
      %v7963 = vsel %vm7891, %v7531, 0.0
      %v7964 = vsel %vm7892, %v7532, 0.0
      %v7965 = vsel %vm7893, %v7533, 0.0
      %v7966 = vsel %vm7894, %v7534, 0.0
      %v7967 = vsel %vm7895, %v7535, 0.0
      %v7968 = vsel %vm7896, %v7536, 0.0
      %v7969 = vsel %vm7897, %v7537, 0.0
      %v7970 = vsel %vm7898, %v7538, 0.0
      %v7971 = vsel %vm7899, %v7539, 0.0
      %v7972 = vsel %vm7900, %v7540, 0.0
      %v7973 = vsel %vm7901, %v7541, 0.0
      %v7974 = vsel %vm7902, %v7542, 0.0
      %v7975 = vsel %vm7903, %v7543, 0.0
      %v7976 = vsel %vm7904, %v7544, 0.0
      %v7977 = vsel %vm7905, %v7545, 0.0
      %v7978 = vsel %vm7906, %v7546, 0.0
      %v7979 = vsel %vm7907, %v7547, 0.0
      %v7980 = vsel %vm7908, %v7548, 0.0
      %v7981 = vsel %vm7909, %v7549, 0.0
      %v7982 = vsel %vm7910, %v7550, 0.0
      %v7983 = vsel %vm7911, %v7551, 0.0
      %v7984 = vsel %vm7912, %v7552, 0.0
      %v7985 = vsel %vm7913, %v7553, 0.0
      %v7986 = vsel %vm7914, %v7554, 0.0
      %v7987 = vsel %vm7915, %v7555, 0.0
      %v7988 = vsel %vm7916, %v7556, 0.0
      %v7989 = vsel %vm7917, %v7557, 0.0
      %v7990 = vsel %vm7918, %v7558, 0.0
      %v7991 = vsel %vm7919, %v7559, 0.0
      %v7992 = vsel %vm7920, %v7560, 0.0
      %v7993 = vsel %vm7921, %v7561, 0.0
      %v7994 = vsel %vm7922, %v7562, 0.0
      %v7995 = vsel %vm7923, %v7563, 0.0
      %v7996 = vsel %vm7924, %v7564, 0.0
      %v7997 = vsel %vm7925, %v7565, 0.0
      %v7998 = vsel %vm7926, %v7566, 0.0
      %v7999 = vsel %vm7927, %v7567, 0.0
      %v8000 = vsel %vm7928, %v7568, 0.0
      %v8001 = vsel %vm7929, %v7569, 0.0
      %v8002 = vsel %vm7930, %v7570, 0.0
      %v8003 = vsel %vm7931, %v7571, 0.0
      %v8004 = vsel %vm7932, %v7572, 0.0
      %v8005 = vsel %vm7933, %v7573, 0.0
      %v8006 = vsel %vm7934, %v7574, 0.0
      %v8007 = vsel %vm7935, %v7575, 0.0
      %v8008 = vsel %vm7936, %v7576, 0.0
      %8009 = vst.msk [vmem:[#allocation2 + $0x8] sm:$0xff] %vm451, %v7937
      %8010 = vst.msk [vmem:[#allocation2 + $0x10] sm:$0xff] %vm451, %v7938
      %8011 = vst.msk [vmem:[#allocation2 + $0x18] sm:$0xff] %vm451, %v7939
      %8012 = vst.msk [vmem:[#allocation2 + $0x20] sm:$0xff] %vm451, %v7940
      %8013 = vst.msk [vmem:[#allocation2 + $0x28] sm:$0xff] %vm451, %v7941
      %8014 = vst.msk [vmem:[#allocation2 + $0x30] sm:$0xff] %vm451, %v7942
      %8015 = vst.msk [vmem:[#allocation2 + $0x38] sm:$0xff] %vm451, %v7943
      %8016 = vst.msk [vmem:[#allocation2 + $0x40] sm:$0xff] %vm451, %v7944
      %8017 = vst.msk [vmem:[#allocation2 + $0x48] sm:$0xff] %vm451, %v7945
      %8018 = vst.msk [vmem:[#allocation2 + $0x50] sm:$0xff] %vm451, %v7946
      %8019 = vst.msk [vmem:[#allocation2 + $0x58] sm:$0xff] %vm451, %v7947
      %8020 = vst.msk [vmem:[#allocation2 + $0x60] sm:$0xff] %vm451, %v7948
      %8021 = vst.msk [vmem:[#allocation2 + $0x68] sm:$0xff] %vm451, %v7949
      %8022 = vst.msk [vmem:[#allocation2 + $0x70] sm:$0xff] %vm451, %v7950
      %8023 = vst.msk [vmem:[#allocation2 + $0x78] sm:$0xff] %vm451, %v7951
      %8024 = vst.msk [vmem:[#allocation2 + $0x80] sm:$0xff] %vm451, %v7952
      %8025 = vst.msk [vmem:[#allocation2 + $0x88] sm:$0xff] %vm451, %v7953
      %8026 = vst.msk [vmem:[#allocation2 + $0x90] sm:$0xff] %vm451, %v7954
      %8027 = vst.msk [vmem:[#allocation2 + $0x98] sm:$0xff] %vm451, %v7955
      %8028 = vst.msk [vmem:[#allocation2 + $0xa0] sm:$0xff] %vm451, %v7956
      %8029 = vst.msk [vmem:[#allocation2 + $0xa8] sm:$0xff] %vm451, %v7957
      %8030 = vst.msk [vmem:[#allocation2 + $0xb0] sm:$0xff] %vm451, %v7958
      %8031 = vst.msk [vmem:[#allocation2 + $0xb8] sm:$0xff] %vm451, %v7959
      %8032 = vst.msk [vmem:[#allocation2 + $0xc0] sm:$0xff] %vm451, %v7960
      %8033 = vst.msk [vmem:[#allocation2 + $0xc8] sm:$0xff] %vm451, %v7961
      %8034 = vst.msk [vmem:[#allocation2 + $0xd0] sm:$0xff] %vm451, %v7962
      %8035 = vst.msk [vmem:[#allocation2 + $0xd8] sm:$0xff] %vm451, %v7963
      %8036 = vst.msk [vmem:[#allocation2 + $0xe0] sm:$0xff] %vm451, %v7964
      %8037 = vst.msk [vmem:[#allocation2 + $0xe8] sm:$0xff] %vm451, %v7965
      %8038 = vst.msk [vmem:[#allocation2 + $0xf0] sm:$0xff] %vm451, %v7966
      %8039 = vst.msk [vmem:[#allocation2 + $0xf8] sm:$0xff] %vm451, %v7967
      %8040 = vst.msk [vmem:[#allocation2 + $0x100] sm:$0xff] %vm451, %v7968
      %8041 = vst.msk [vmem:[#allocation2 + $0x108] sm:$0xff] %vm451, %v7969
      %8042 = vst.msk [vmem:[#allocation2 + $0x110] sm:$0xff] %vm451, %v7970
      %8043 = vst.msk [vmem:[#allocation2 + $0x118] sm:$0xff] %vm451, %v7971
      %8044 = vst.msk [vmem:[#allocation2 + $0x120] sm:$0xff] %vm451, %v7972
      %8045 = vst.msk [vmem:[#allocation2 + $0x128] sm:$0xff] %vm451, %v7973
      %8046 = vst.msk [vmem:[#allocation2 + $0x130] sm:$0xff] %vm451, %v7974
      %8047 = vst.msk [vmem:[#allocation2 + $0x138] sm:$0xff] %vm451, %v7975
      %8048 = vst.msk [vmem:[#allocation2 + $0x140] sm:$0xff] %vm451, %v7976
      %8049 = vst.msk [vmem:[#allocation2 + $0x148] sm:$0xff] %vm451, %v7977
      %8050 = vst.msk [vmem:[#allocation2 + $0x150] sm:$0xff] %vm451, %v7978
      %8051 = vst.msk [vmem:[#allocation2 + $0x158] sm:$0xff] %vm451, %v7979
      %8052 = vst.msk [vmem:[#allocation2 + $0x160] sm:$0xff] %vm451, %v7980
      %8053 = vst.msk [vmem:[#allocation2 + $0x168] sm:$0xff] %vm451, %v7981
      %8054 = vst.msk [vmem:[#allocation2 + $0x170] sm:$0xff] %vm451, %v7982
      %8055 = vst.msk [vmem:[#allocation2 + $0x178] sm:$0xff] %vm451, %v7983
      %8056 = vst.msk [vmem:[#allocation2 + $0x180] sm:$0xff] %vm451, %v7984
      %8057 = vst.msk [vmem:[#allocation2 + $0x188] sm:$0xff] %vm451, %v7985
      %8058 = vst.msk [vmem:[#allocation2 + $0x190] sm:$0xff] %vm451, %v7986
      %8059 = vst.msk [vmem:[#allocation2 + $0x198] sm:$0xff] %vm451, %v7987
      %8060 = vst.msk [vmem:[#allocation2 + $0x1a0] sm:$0xff] %vm451, %v7988
      %8061 = vst.msk [vmem:[#allocation2 + $0x1a8] sm:$0xff] %vm451, %v7989
      %8062 = vst.msk [vmem:[#allocation2 + $0x1b0] sm:$0xff] %vm451, %v7990
      %8063 = vst.msk [vmem:[#allocation2 + $0x1b8] sm:$0xff] %vm451, %v7991
      %8064 = vst.msk [vmem:[#allocation2 + $0x1c0] sm:$0xff] %vm451, %v7992
      %8065 = vst.msk [vmem:[#allocation2 + $0x1c8] sm:$0xff] %vm451, %v7993
      %8066 = vst.msk [vmem:[#allocation2 + $0x1d0] sm:$0xff] %vm451, %v7994
      %8067 = vst.msk [vmem:[#allocation2 + $0x1d8] sm:$0xff] %vm451, %v7995
      %8068 = vst.msk [vmem:[#allocation2 + $0x1e0] sm:$0xff] %vm451, %v7996
      %8069 = vst.msk [vmem:[#allocation2 + $0x1e8] sm:$0xff] %vm451, %v7997
      %8070 = vst.msk [vmem:[#allocation2 + $0x1f0] sm:$0xff] %vm451, %v7998
      %8071 = vst.msk [vmem:[#allocation2 + $0x1f8] sm:$0xff] %vm451, %v7999
      %8072 = vst.msk [vmem:[#allocation2 + $0x200] sm:$0xff] %vm451, %v8000
      %8073 = vst.msk [vmem:[#allocation2 + $0x208] sm:$0xff] %vm451, %v8001
      %8074 = vst.msk [vmem:[#allocation2 + $0x210] sm:$0xff] %vm451, %v8002
      %8075 = vst.msk [vmem:[#allocation2 + $0x218] sm:$0xff] %vm451, %v8003
      %8076 = vst.msk [vmem:[#allocation2 + $0x220] sm:$0xff] %vm451, %v8004
      %8077 = vst.msk [vmem:[#allocation2 + $0x228] sm:$0xff] %vm451, %v8005
      %8078 = vst.msk [vmem:[#allocation2 + $0x230] sm:$0xff] %vm451, %v8006
      %8079 = vst.msk [vmem:[#allocation2 + $0x238] sm:$0xff] %vm451, %v8007
      %8080 = vst.msk [vmem:[#allocation2 + $0x240] sm:$0xff] %vm451, %v8008
      loop: start=0, step=1, limit=3
      $region53: #{tpu_custom_call.1} parent=51 // loop_pre_header
        _
      $region54: #{tpu_custom_call.1} parent=51 // loop_header
        %s8082 = sphi 0, %s8086
        %p8083 = scmp.ge.s32.totalorder %s8082, 3
      $region55: #{tpu_custom_call.1} parent=51 // loop_header_branch
        %8085 = sbr.rel (%p8083) target = $region59
      $region56: #{tpu_custom_call.1} parent=51 // loop_body
        %v8087 = vld [vmem:[#allocation2 + $0x7] sm:$0xff]
        %v8088 = vld [vmem:[#allocation2 + $0xf] sm:$0xff]
        %v8089 = vld [vmem:[#allocation2 + $0x17] sm:$0xff]
        %v8090 = vld [vmem:[#allocation2 + $0x1f] sm:$0xff]
        %v8091 = vld [vmem:[#allocation2 + $0x27] sm:$0xff]
        %v8092 = vld [vmem:[#allocation2 + $0x2f] sm:$0xff]
        %v8093 = vld [vmem:[#allocation2 + $0x37] sm:$0xff]
        %v8094 = vld [vmem:[#allocation2 + $0x3f] sm:$0xff]
        %v8095 = vld [vmem:[#allocation2 + $0x47] sm:$0xff]
        %v8096 = vld [vmem:[#allocation2 + $0x4f] sm:$0xff]
        %v8097 = vld [vmem:[#allocation2 + $0x57] sm:$0xff]
        %v8098 = vld [vmem:[#allocation2 + $0x5f] sm:$0xff]
        %v8099 = vld [vmem:[#allocation2 + $0x67] sm:$0xff]
        %v8100 = vld [vmem:[#allocation2 + $0x6f] sm:$0xff]
        %v8101 = vld [vmem:[#allocation2 + $0x77] sm:$0xff]
        %v8102 = vld [vmem:[#allocation2 + $0x7f] sm:$0xff]
        %v8103 = vld [vmem:[#allocation2 + $0x87] sm:$0xff]
        %v8104 = vld [vmem:[#allocation2 + $0x8f] sm:$0xff]
        %v8105 = vld [vmem:[#allocation2 + $0x97] sm:$0xff]
        %v8106 = vld [vmem:[#allocation2 + $0x9f] sm:$0xff]
        %v8107 = vld [vmem:[#allocation2 + $0xa7] sm:$0xff]
        %v8108 = vld [vmem:[#allocation2 + $0xaf] sm:$0xff]
        %v8109 = vld [vmem:[#allocation2 + $0xb7] sm:$0xff]
        %v8110 = vld [vmem:[#allocation2 + $0xbf] sm:$0xff]
        %v8111 = vld [vmem:[#allocation2 + $0xc7] sm:$0xff]
        %v8112 = vld [vmem:[#allocation2 + $0xcf] sm:$0xff]
        %v8113 = vld [vmem:[#allocation2 + $0xd7] sm:$0xff]
        %v8114 = vld [vmem:[#allocation2 + $0xdf] sm:$0xff]
        %v8115 = vld [vmem:[#allocation2 + $0xe7] sm:$0xff]
        %v8116 = vld [vmem:[#allocation2 + $0xef] sm:$0xff]
        %v8117 = vld [vmem:[#allocation2 + $0xf7] sm:$0xff]
        %v8118 = vld [vmem:[#allocation2 + $0xff] sm:$0xff]
        %v8119 = vld [vmem:[#allocation2 + $0x107] sm:$0xff]
        %v8120 = vld [vmem:[#allocation2 + $0x10f] sm:$0xff]
        %v8121 = vld [vmem:[#allocation2 + $0x117] sm:$0xff]
        %v8122 = vld [vmem:[#allocation2 + $0x11f] sm:$0xff]
        %v8123 = vld [vmem:[#allocation2 + $0x127] sm:$0xff]
        %v8124 = vld [vmem:[#allocation2 + $0x12f] sm:$0xff]
        %v8125 = vld [vmem:[#allocation2 + $0x137] sm:$0xff]
        %v8126 = vld [vmem:[#allocation2 + $0x13f] sm:$0xff]
        %v8127 = vld [vmem:[#allocation2 + $0x147] sm:$0xff]
        %v8128 = vld [vmem:[#allocation2 + $0x14f] sm:$0xff]
        %v8129 = vld [vmem:[#allocation2 + $0x157] sm:$0xff]
        %v8130 = vld [vmem:[#allocation2 + $0x15f] sm:$0xff]
        %v8131 = vld [vmem:[#allocation2 + $0x167] sm:$0xff]
        %v8132 = vld [vmem:[#allocation2 + $0x16f] sm:$0xff]
        %v8133 = vld [vmem:[#allocation2 + $0x177] sm:$0xff]
        %v8134 = vld [vmem:[#allocation2 + $0x17f] sm:$0xff]
        %v8135 = vld [vmem:[#allocation2 + $0x187] sm:$0xff]
        %v8136 = vld [vmem:[#allocation2 + $0x18f] sm:$0xff]
        %v8137 = vld [vmem:[#allocation2 + $0x197] sm:$0xff]
        %v8138 = vld [vmem:[#allocation2 + $0x19f] sm:$0xff]
        %v8139 = vld [vmem:[#allocation2 + $0x1a7] sm:$0xff]
        %v8140 = vld [vmem:[#allocation2 + $0x1af] sm:$0xff]
        %v8141 = vld [vmem:[#allocation2 + $0x1b7] sm:$0xff]
        %v8142 = vld [vmem:[#allocation2 + $0x1bf] sm:$0xff]
        %v8143 = vld [vmem:[#allocation2 + $0x1c7] sm:$0xff]
        %v8144 = vld [vmem:[#allocation2 + $0x1cf] sm:$0xff]
        %v8145 = vld [vmem:[#allocation2 + $0x1d7] sm:$0xff]
        %v8146 = vld [vmem:[#allocation2 + $0x1df] sm:$0xff]
        %v8147 = vld [vmem:[#allocation2 + $0x1e7] sm:$0xff]
        %v8148 = vld [vmem:[#allocation2 + $0x1ef] sm:$0xff]
        %v8149 = vld [vmem:[#allocation2 + $0x1f7] sm:$0xff]
        %v8150 = vld [vmem:[#allocation2 + $0x1ff] sm:$0xff]
        %v8151 = vld [vmem:[#allocation2 + $0x207] sm:$0xff]
        %v8152 = vld [vmem:[#allocation2 + $0x20f] sm:$0xff]
        %v8153 = vld [vmem:[#allocation2 + $0x217] sm:$0xff]
        %v8154 = vld [vmem:[#allocation2 + $0x21f] sm:$0xff]
        %v8155 = vld [vmem:[#allocation2 + $0x227] sm:$0xff]
        %v8156 = vld [vmem:[#allocation2 + $0x22f] sm:$0xff]
        %v8157 = vld [vmem:[#allocation2 + $0x237] sm:$0xff]
        %v8158 = vld [vmem:[#allocation2 + $0x23f] sm:$0xff]
        %v8159 = vpack.c.bf16 %v8088, %v8087
        %v8160 = vpack.c.bf16 %v8090, %v8089
        %v8161 = vpack.c.bf16 %v8092, %v8091
        %v8162 = vpack.c.bf16 %v8094, %v8093
        %v8163 = vpack.c.bf16 %v8096, %v8095
        %v8164 = vpack.c.bf16 %v8098, %v8097
        %v8165 = vpack.c.bf16 %v8100, %v8099
        %v8166 = vpack.c.bf16 %v8102, %v8101
        %v8167 = vpack.c.bf16 %v8104, %v8103
        %v8168 = vpack.c.bf16 %v8106, %v8105
        %v8169 = vpack.c.bf16 %v8108, %v8107
        %v8170 = vpack.c.bf16 %v8110, %v8109
        %v8171 = vpack.c.bf16 %v8112, %v8111
        %v8172 = vpack.c.bf16 %v8114, %v8113
        %v8173 = vpack.c.bf16 %v8116, %v8115
        %v8174 = vpack.c.bf16 %v8118, %v8117
        %v8175 = vpack.c.bf16 %v8120, %v8119
        %v8176 = vpack.c.bf16 %v8122, %v8121
        %v8177 = vpack.c.bf16 %v8124, %v8123
        %v8178 = vpack.c.bf16 %v8126, %v8125
        %v8179 = vpack.c.bf16 %v8128, %v8127
        %v8180 = vpack.c.bf16 %v8130, %v8129
        %v8181 = vpack.c.bf16 %v8132, %v8131
        %v8182 = vpack.c.bf16 %v8134, %v8133
        %v8183 = vpack.c.bf16 %v8136, %v8135
        %v8184 = vpack.c.bf16 %v8138, %v8137
        %v8185 = vpack.c.bf16 %v8140, %v8139
        %v8186 = vpack.c.bf16 %v8142, %v8141
        %v8187 = vpack.c.bf16 %v8144, %v8143
        %v8188 = vpack.c.bf16 %v8146, %v8145
        %v8189 = vpack.c.bf16 %v8148, %v8147
        %v8190 = vpack.c.bf16 %v8150, %v8149
        %v8191 = vpack.c.bf16 %v8152, %v8151
        %v8192 = vpack.c.bf16 %v8154, %v8153
        %v8193 = vpack.c.bf16 %v8156, %v8155
        %v8194 = vpack.c.bf16 %v8158, %v8157
        %8195 = vst.msk [vmem:[#allocation3 + $0x10] sm:$0xff] %vm451, %v8159
        %8196 = vst.msk [vmem:[#allocation3 + $0x18] sm:$0xff] %vm451, %v8160
        %8197 = vst.msk [vmem:[#allocation3 + $0x20] sm:$0xff] %vm451, %v8161
        %8198 = vst.msk [vmem:[#allocation3 + $0x28] sm:$0xff] %vm451, %v8162
        %8199 = vst.msk [vmem:[#allocation3 + $0x30] sm:$0xff] %vm451, %v8163
        %8200 = vst.msk [vmem:[#allocation3 + $0x38] sm:$0xff] %vm451, %v8164
        %8201 = vst.msk [vmem:[#allocation3 + $0x40] sm:$0xff] %vm451, %v8165
        %8202 = vst.msk [vmem:[#allocation3 + $0x48] sm:$0xff] %vm451, %v8166
        %8203 = vst.msk [vmem:[#allocation3 + $0x50] sm:$0xff] %vm451, %v8167
        %8204 = vst.msk [vmem:[#allocation3 + $0x58] sm:$0xff] %vm451, %v8168
        %8205 = vst.msk [vmem:[#allocation3 + $0x60] sm:$0xff] %vm451, %v8169
        %8206 = vst.msk [vmem:[#allocation3 + $0x68] sm:$0xff] %vm451, %v8170
        %8207 = vst.msk [vmem:[#allocation3 + $0x70] sm:$0xff] %vm451, %v8171
        %8208 = vst.msk [vmem:[#allocation3 + $0x78] sm:$0xff] %vm451, %v8172
        %8209 = vst.msk [vmem:[#allocation3 + $0x80] sm:$0xff] %vm451, %v8173
        %8210 = vst.msk [vmem:[#allocation3 + $0x88] sm:$0xff] %vm451, %v8174
        %8211 = vst.msk [vmem:[#allocation3 + $0x90] sm:$0xff] %vm451, %v8175
        %8212 = vst.msk [vmem:[#allocation3 + $0x98] sm:$0xff] %vm451, %v8176
        %8213 = vst.msk [vmem:[#allocation3 + $0xa0] sm:$0xff] %vm451, %v8177
        %8214 = vst.msk [vmem:[#allocation3 + $0xa8] sm:$0xff] %vm451, %v8178
        %8215 = vst.msk [vmem:[#allocation3 + $0xb0] sm:$0xff] %vm451, %v8179
        %8216 = vst.msk [vmem:[#allocation3 + $0xb8] sm:$0xff] %vm451, %v8180
        %8217 = vst.msk [vmem:[#allocation3 + $0xc0] sm:$0xff] %vm451, %v8181
        %8218 = vst.msk [vmem:[#allocation3 + $0xc8] sm:$0xff] %vm451, %v8182
        %8219 = vst.msk [vmem:[#allocation3 + $0xd0] sm:$0xff] %vm451, %v8183
        %8220 = vst.msk [vmem:[#allocation3 + $0xd8] sm:$0xff] %vm451, %v8184
        %8221 = vst.msk [vmem:[#allocation3 + $0xe0] sm:$0xff] %vm451, %v8185
        %8222 = vst.msk [vmem:[#allocation3 + $0xe8] sm:$0xff] %vm451, %v8186
        %8223 = vst.msk [vmem:[#allocation3 + $0xf0] sm:$0xff] %vm451, %v8187
        %8224 = vst.msk [vmem:[#allocation3 + $0xf8] sm:$0xff] %vm451, %v8188
        %8225 = vst.msk [vmem:[#allocation3 + $0x100] sm:$0xff] %vm451, %v8189
        %8226 = vst.msk [vmem:[#allocation3 + $0x108] sm:$0xff] %vm451, %v8190
        %8227 = vst.msk [vmem:[#allocation3 + $0x110] sm:$0xff] %vm451, %v8191
        %8228 = vst.msk [vmem:[#allocation3 + $0x118] sm:$0xff] %vm451, %v8192
        %8229 = vst.msk [vmem:[#allocation3 + $0x120] sm:$0xff] %vm451, %v8193
        %8230 = vst.msk [vmem:[#allocation3 + $0x128] sm:$0xff] %vm451, %v8194
        %v8231 = vld [vmem:[#allocation2 + $0x8] sm:$0xff]
        %v8232 = vld [vmem:[#allocation2 + $0x10] sm:$0xff]
        %v8233 = vld [vmem:[#allocation2 + $0x18] sm:$0xff]
        %v8234 = vld [vmem:[#allocation2 + $0x20] sm:$0xff]
        %v8235 = vld [vmem:[#allocation2 + $0x28] sm:$0xff]
        %v8236 = vld [vmem:[#allocation2 + $0x30] sm:$0xff]
        %v8237 = vld [vmem:[#allocation2 + $0x38] sm:$0xff]
        %v8238 = vld [vmem:[#allocation2 + $0x40] sm:$0xff]
        %v8239 = vld [vmem:[#allocation2 + $0x48] sm:$0xff]
        %v8240 = vld [vmem:[#allocation2 + $0x50] sm:$0xff]
        %v8241 = vld [vmem:[#allocation2 + $0x58] sm:$0xff]
        %v8242 = vld [vmem:[#allocation2 + $0x60] sm:$0xff]
        %v8243 = vld [vmem:[#allocation2 + $0x68] sm:$0xff]
        %v8244 = vld [vmem:[#allocation2 + $0x70] sm:$0xff]
        %v8245 = vld [vmem:[#allocation2 + $0x78] sm:$0xff]
        %v8246 = vld [vmem:[#allocation2 + $0x80] sm:$0xff]
        %v8247 = vld [vmem:[#allocation2 + $0x88] sm:$0xff]
        %v8248 = vld [vmem:[#allocation2 + $0x90] sm:$0xff]
        %v8249 = vld [vmem:[#allocation2 + $0x98] sm:$0xff]
        %v8250 = vld [vmem:[#allocation2 + $0xa0] sm:$0xff]
        %v8251 = vld [vmem:[#allocation2 + $0xa8] sm:$0xff]
        %v8252 = vld [vmem:[#allocation2 + $0xb0] sm:$0xff]
        %v8253 = vld [vmem:[#allocation2 + $0xb8] sm:$0xff]
        %v8254 = vld [vmem:[#allocation2 + $0xc0] sm:$0xff]
        %v8255 = vld [vmem:[#allocation2 + $0xc8] sm:$0xff]
        %v8256 = vld [vmem:[#allocation2 + $0xd0] sm:$0xff]
        %v8257 = vld [vmem:[#allocation2 + $0xd8] sm:$0xff]
        %v8258 = vld [vmem:[#allocation2 + $0xe0] sm:$0xff]
        %v8259 = vld [vmem:[#allocation2 + $0xe8] sm:$0xff]
        %v8260 = vld [vmem:[#allocation2 + $0xf0] sm:$0xff]
        %v8261 = vld [vmem:[#allocation2 + $0xf8] sm:$0xff]
        %v8262 = vld [vmem:[#allocation2 + $0x100] sm:$0xff]
        %v8263 = vld [vmem:[#allocation2 + $0x108] sm:$0xff]
        %v8264 = vld [vmem:[#allocation2 + $0x110] sm:$0xff]
        %v8265 = vld [vmem:[#allocation2 + $0x118] sm:$0xff]
        %v8266 = vld [vmem:[#allocation2 + $0x120] sm:$0xff]
        %v8267 = vld [vmem:[#allocation2 + $0x128] sm:$0xff]
        %v8268 = vld [vmem:[#allocation2 + $0x130] sm:$0xff]
        %v8269 = vld [vmem:[#allocation2 + $0x138] sm:$0xff]
        %v8270 = vld [vmem:[#allocation2 + $0x140] sm:$0xff]
        %v8271 = vld [vmem:[#allocation2 + $0x148] sm:$0xff]
        %v8272 = vld [vmem:[#allocation2 + $0x150] sm:$0xff]
        %v8273 = vld [vmem:[#allocation2 + $0x158] sm:$0xff]
        %v8274 = vld [vmem:[#allocation2 + $0x160] sm:$0xff]
        %v8275 = vld [vmem:[#allocation2 + $0x168] sm:$0xff]
        %v8276 = vld [vmem:[#allocation2 + $0x170] sm:$0xff]
        %v8277 = vld [vmem:[#allocation2 + $0x178] sm:$0xff]
        %v8278 = vld [vmem:[#allocation2 + $0x180] sm:$0xff]
        %v8279 = vld [vmem:[#allocation2 + $0x188] sm:$0xff]
        %v8280 = vld [vmem:[#allocation2 + $0x190] sm:$0xff]
        %v8281 = vld [vmem:[#allocation2 + $0x198] sm:$0xff]
        %v8282 = vld [vmem:[#allocation2 + $0x1a0] sm:$0xff]
        %v8283 = vld [vmem:[#allocation2 + $0x1a8] sm:$0xff]
        %v8284 = vld [vmem:[#allocation2 + $0x1b0] sm:$0xff]
        %v8285 = vld [vmem:[#allocation2 + $0x1b8] sm:$0xff]
        %v8286 = vld [vmem:[#allocation2 + $0x1c0] sm:$0xff]
        %v8287 = vld [vmem:[#allocation2 + $0x1c8] sm:$0xff]
        %v8288 = vld [vmem:[#allocation2 + $0x1d0] sm:$0xff]
        %v8289 = vld [vmem:[#allocation2 + $0x1d8] sm:$0xff]
        %v8290 = vld [vmem:[#allocation2 + $0x1e0] sm:$0xff]
        %v8291 = vld [vmem:[#allocation2 + $0x1e8] sm:$0xff]
        %v8292 = vld [vmem:[#allocation2 + $0x1f0] sm:$0xff]
        %v8293 = vld [vmem:[#allocation2 + $0x1f8] sm:$0xff]
        %v8294 = vld [vmem:[#allocation2 + $0x200] sm:$0xff]
        %v8295 = vld [vmem:[#allocation2 + $0x208] sm:$0xff]
        %v8296 = vld [vmem:[#allocation2 + $0x210] sm:$0xff]
        %v8297 = vld [vmem:[#allocation2 + $0x218] sm:$0xff]
        %v8298 = vld [vmem:[#allocation2 + $0x220] sm:$0xff]
        %v8299 = vld [vmem:[#allocation2 + $0x228] sm:$0xff]
        %v8300 = vld [vmem:[#allocation2 + $0x230] sm:$0xff]
        %v8301 = vld [vmem:[#allocation2 + $0x238] sm:$0xff]
        %v8302 = vld [vmem:[#allocation2 + $0x240] sm:$0xff]
        %v8303 = vpack.c.bf16 %v8232, %v8231
        %v8304 = vpack.c.bf16 %v8234, %v8233
        %v8305 = vpack.c.bf16 %v8236, %v8235
        %v8306 = vpack.c.bf16 %v8238, %v8237
        %v8307 = vpack.c.bf16 %v8240, %v8239
        %v8308 = vpack.c.bf16 %v8242, %v8241
        %v8309 = vpack.c.bf16 %v8244, %v8243
        %v8310 = vpack.c.bf16 %v8246, %v8245
        %v8311 = vpack.c.bf16 %v8248, %v8247
        %v8312 = vpack.c.bf16 %v8250, %v8249
        %v8313 = vpack.c.bf16 %v8252, %v8251
        %v8314 = vpack.c.bf16 %v8254, %v8253
        %v8315 = vpack.c.bf16 %v8256, %v8255
        %v8316 = vpack.c.bf16 %v8258, %v8257
        %v8317 = vpack.c.bf16 %v8260, %v8259
        %v8318 = vpack.c.bf16 %v8262, %v8261
        %v8319 = vpack.c.bf16 %v8264, %v8263
        %v8320 = vpack.c.bf16 %v8266, %v8265
        %v8321 = vpack.c.bf16 %v8268, %v8267
        %v8322 = vpack.c.bf16 %v8270, %v8269
        %v8323 = vpack.c.bf16 %v8272, %v8271
        %v8324 = vpack.c.bf16 %v8274, %v8273
        %v8325 = vpack.c.bf16 %v8276, %v8275
        %v8326 = vpack.c.bf16 %v8278, %v8277
        %v8327 = vpack.c.bf16 %v8280, %v8279
        %v8328 = vpack.c.bf16 %v8282, %v8281
        %v8329 = vpack.c.bf16 %v8284, %v8283
        %v8330 = vpack.c.bf16 %v8286, %v8285
        %v8331 = vpack.c.bf16 %v8288, %v8287
        %v8332 = vpack.c.bf16 %v8290, %v8289
        %v8333 = vpack.c.bf16 %v8292, %v8291
        %v8334 = vpack.c.bf16 %v8294, %v8293
        %v8335 = vpack.c.bf16 %v8296, %v8295
        %v8336 = vpack.c.bf16 %v8298, %v8297
        %v8337 = vpack.c.bf16 %v8300, %v8299
        %v8338 = vpack.c.bf16 %v8302, %v8301
        %8375 = vrot.lane.b32.xlu0 %v8303, 32
        %v8376 = vpop.permute.xlu0 %8375
        %8377 = vrot.lane.b32.xlu0 %v8304, 32
        %v8378 = vpop.permute.xlu0 %8377
        %8379 = vrot.lane.b32.xlu0 %v8305, 32
        %v8380 = vpop.permute.xlu0 %8379
        %8381 = vrot.lane.b32.xlu0 %v8306, 32
        %v8382 = vpop.permute.xlu0 %8381
        %8383 = vrot.lane.b32.xlu0 %v8307, 32
        %v8384 = vpop.permute.xlu0 %8383
        %8385 = vrot.lane.b32.xlu0 %v8308, 32
        %v8386 = vpop.permute.xlu0 %8385
        %8387 = vrot.lane.b32.xlu0 %v8309, 32
        %v8388 = vpop.permute.xlu0 %8387
        %8389 = vrot.lane.b32.xlu0 %v8310, 32
        %v8390 = vpop.permute.xlu0 %8389
        %8391 = vrot.lane.b32.xlu0 %v8311, 32
        %v8392 = vpop.permute.xlu0 %8391
        %8393 = vrot.lane.b32.xlu0 %v8312, 32
        %v8394 = vpop.permute.xlu0 %8393
        %8395 = vrot.lane.b32.xlu0 %v8313, 32
        %v8396 = vpop.permute.xlu0 %8395
        %8397 = vrot.lane.b32.xlu0 %v8314, 32
        %v8398 = vpop.permute.xlu0 %8397
        %8399 = vrot.lane.b32.xlu0 %v8315, 32
        %v8400 = vpop.permute.xlu0 %8399
        %8401 = vrot.lane.b32.xlu0 %v8316, 32
        %v8402 = vpop.permute.xlu0 %8401
        %8403 = vrot.lane.b32.xlu0 %v8317, 32
        %v8404 = vpop.permute.xlu0 %8403
        %8405 = vrot.lane.b32.xlu0 %v8318, 32
        %v8406 = vpop.permute.xlu0 %8405
        %8407 = vrot.lane.b32.xlu0 %v8319, 32
        %v8408 = vpop.permute.xlu0 %8407
        %8409 = vrot.lane.b32.xlu0 %v8320, 32
        %v8410 = vpop.permute.xlu0 %8409
        %8411 = vrot.lane.b32.xlu0 %v8321, 32
        %v8412 = vpop.permute.xlu0 %8411
        %8413 = vrot.lane.b32.xlu0 %v8322, 32
        %v8414 = vpop.permute.xlu0 %8413
        %8415 = vrot.lane.b32.xlu0 %v8323, 32
        %v8416 = vpop.permute.xlu0 %8415
        %8417 = vrot.lane.b32.xlu0 %v8324, 32
        %v8418 = vpop.permute.xlu0 %8417
        %8419 = vrot.lane.b32.xlu0 %v8325, 32
        %v8420 = vpop.permute.xlu0 %8419
        %8421 = vrot.lane.b32.xlu0 %v8326, 32
        %v8422 = vpop.permute.xlu0 %8421
        %8423 = vrot.lane.b32.xlu0 %v8327, 32
        %v8424 = vpop.permute.xlu0 %8423
        %8425 = vrot.lane.b32.xlu0 %v8328, 32
        %v8426 = vpop.permute.xlu0 %8425
        %8427 = vrot.lane.b32.xlu0 %v8329, 32
        %v8428 = vpop.permute.xlu0 %8427
        %8429 = vrot.lane.b32.xlu0 %v8330, 32
        %v8430 = vpop.permute.xlu0 %8429
        %8431 = vrot.lane.b32.xlu0 %v8331, 32
        %v8432 = vpop.permute.xlu0 %8431
        %8433 = vrot.lane.b32.xlu0 %v8332, 32
        %v8434 = vpop.permute.xlu0 %8433
        %8435 = vrot.lane.b32.xlu0 %v8333, 32
        %v8436 = vpop.permute.xlu0 %8435
        %8437 = vrot.lane.b32.xlu0 %v8334, 32
        %v8438 = vpop.permute.xlu0 %8437
        %8439 = vrot.lane.b32.xlu0 %v8335, 32
        %v8440 = vpop.permute.xlu0 %8439
        %8441 = vrot.lane.b32.xlu0 %v8336, 32
        %v8442 = vpop.permute.xlu0 %8441
        %8443 = vrot.lane.b32.xlu0 %v8337, 32
        %v8444 = vpop.permute.xlu0 %8443
        %8445 = vrot.lane.b32.xlu0 %v8338, 32
        %v8446 = vpop.permute.xlu0 %8445
        %vm8483 = vcmask 523520
        %8484 = vst.msk [vmem:[#allocation3 + $0x10] sm:$0xff] %vm8483, %v8376
        %8485 = vst.msk [vmem:[#allocation3 + $0x18] sm:$0xff] %vm8483, %v8378
        %8486 = vst.msk [vmem:[#allocation3 + $0x20] sm:$0xff] %vm8483, %v8380
        %8487 = vst.msk [vmem:[#allocation3 + $0x28] sm:$0xff] %vm8483, %v8382
        %8488 = vst.msk [vmem:[#allocation3 + $0x30] sm:$0xff] %vm8483, %v8384
        %8489 = vst.msk [vmem:[#allocation3 + $0x38] sm:$0xff] %vm8483, %v8386
        %8490 = vst.msk [vmem:[#allocation3 + $0x40] sm:$0xff] %vm8483, %v8388
        %8491 = vst.msk [vmem:[#allocation3 + $0x48] sm:$0xff] %vm8483, %v8390
        %8492 = vst.msk [vmem:[#allocation3 + $0x50] sm:$0xff] %vm8483, %v8392
        %8493 = vst.msk [vmem:[#allocation3 + $0x58] sm:$0xff] %vm8483, %v8394
        %8494 = vst.msk [vmem:[#allocation3 + $0x60] sm:$0xff] %vm8483, %v8396
        %8495 = vst.msk [vmem:[#allocation3 + $0x68] sm:$0xff] %vm8483, %v8398
        %8496 = vst.msk [vmem:[#allocation3 + $0x70] sm:$0xff] %vm8483, %v8400
        %8497 = vst.msk [vmem:[#allocation3 + $0x78] sm:$0xff] %vm8483, %v8402
        %8498 = vst.msk [vmem:[#allocation3 + $0x80] sm:$0xff] %vm8483, %v8404
        %8499 = vst.msk [vmem:[#allocation3 + $0x88] sm:$0xff] %vm8483, %v8406
        %8500 = vst.msk [vmem:[#allocation3 + $0x90] sm:$0xff] %vm8483, %v8408
        %8501 = vst.msk [vmem:[#allocation3 + $0x98] sm:$0xff] %vm8483, %v8410
        %8502 = vst.msk [vmem:[#allocation3 + $0xa0] sm:$0xff] %vm8483, %v8412
        %8503 = vst.msk [vmem:[#allocation3 + $0xa8] sm:$0xff] %vm8483, %v8414
        %8504 = vst.msk [vmem:[#allocation3 + $0xb0] sm:$0xff] %vm8483, %v8416
        %8505 = vst.msk [vmem:[#allocation3 + $0xb8] sm:$0xff] %vm8483, %v8418
        %8506 = vst.msk [vmem:[#allocation3 + $0xc0] sm:$0xff] %vm8483, %v8420
        %8507 = vst.msk [vmem:[#allocation3 + $0xc8] sm:$0xff] %vm8483, %v8422
        %8508 = vst.msk [vmem:[#allocation3 + $0xd0] sm:$0xff] %vm8483, %v8424
        %8509 = vst.msk [vmem:[#allocation3 + $0xd8] sm:$0xff] %vm8483, %v8426
        %8510 = vst.msk [vmem:[#allocation3 + $0xe0] sm:$0xff] %vm8483, %v8428
        %8511 = vst.msk [vmem:[#allocation3 + $0xe8] sm:$0xff] %vm8483, %v8430
        %8512 = vst.msk [vmem:[#allocation3 + $0xf0] sm:$0xff] %vm8483, %v8432
        %8513 = vst.msk [vmem:[#allocation3 + $0xf8] sm:$0xff] %vm8483, %v8434
        %8514 = vst.msk [vmem:[#allocation3 + $0x100] sm:$0xff] %vm8483, %v8436
        %8515 = vst.msk [vmem:[#allocation3 + $0x108] sm:$0xff] %vm8483, %v8438
        %8516 = vst.msk [vmem:[#allocation3 + $0x110] sm:$0xff] %vm8483, %v8440
        %8517 = vst.msk [vmem:[#allocation3 + $0x118] sm:$0xff] %vm8483, %v8442
        %8518 = vst.msk [vmem:[#allocation3 + $0x120] sm:$0xff] %vm8483, %v8444
        %8519 = vst.msk [vmem:[#allocation3 + $0x128] sm:$0xff] %vm8483, %v8446
        %v8520 = vld [vmem:[#allocation2 + $0x9] sm:$0xff]
        %v8521 = vld [vmem:[#allocation2 + $0x11] sm:$0xff]
        %v8522 = vld [vmem:[#allocation2 + $0x19] sm:$0xff]
        %v8523 = vld [vmem:[#allocation2 + $0x21] sm:$0xff]
        %v8524 = vld [vmem:[#allocation2 + $0x29] sm:$0xff]
        %v8525 = vld [vmem:[#allocation2 + $0x31] sm:$0xff]
        %v8526 = vld [vmem:[#allocation2 + $0x39] sm:$0xff]
        %v8527 = vld [vmem:[#allocation2 + $0x41] sm:$0xff]
        %v8528 = vld [vmem:[#allocation2 + $0x49] sm:$0xff]
        %v8529 = vld [vmem:[#allocation2 + $0x51] sm:$0xff]
        %v8530 = vld [vmem:[#allocation2 + $0x59] sm:$0xff]
        %v8531 = vld [vmem:[#allocation2 + $0x61] sm:$0xff]
        %v8532 = vld [vmem:[#allocation2 + $0x69] sm:$0xff]
        %v8533 = vld [vmem:[#allocation2 + $0x71] sm:$0xff]
        %v8534 = vld [vmem:[#allocation2 + $0x79] sm:$0xff]
        %v8535 = vld [vmem:[#allocation2 + $0x81] sm:$0xff]
        %v8536 = vld [vmem:[#allocation2 + $0x89] sm:$0xff]
        %v8537 = vld [vmem:[#allocation2 + $0x91] sm:$0xff]
        %v8538 = vld [vmem:[#allocation2 + $0x99] sm:$0xff]
        %v8539 = vld [vmem:[#allocation2 + $0xa1] sm:$0xff]
        %v8540 = vld [vmem:[#allocation2 + $0xa9] sm:$0xff]
        %v8541 = vld [vmem:[#allocation2 + $0xb1] sm:$0xff]
        %v8542 = vld [vmem:[#allocation2 + $0xb9] sm:$0xff]
        %v8543 = vld [vmem:[#allocation2 + $0xc1] sm:$0xff]
        %v8544 = vld [vmem:[#allocation2 + $0xc9] sm:$0xff]
        %v8545 = vld [vmem:[#allocation2 + $0xd1] sm:$0xff]
        %v8546 = vld [vmem:[#allocation2 + $0xd9] sm:$0xff]
        %v8547 = vld [vmem:[#allocation2 + $0xe1] sm:$0xff]
        %v8548 = vld [vmem:[#allocation2 + $0xe9] sm:$0xff]
        %v8549 = vld [vmem:[#allocation2 + $0xf1] sm:$0xff]
        %v8550 = vld [vmem:[#allocation2 + $0xf9] sm:$0xff]
        %v8551 = vld [vmem:[#allocation2 + $0x101] sm:$0xff]
        %v8552 = vld [vmem:[#allocation2 + $0x109] sm:$0xff]
        %v8553 = vld [vmem:[#allocation2 + $0x111] sm:$0xff]
        %v8554 = vld [vmem:[#allocation2 + $0x119] sm:$0xff]
        %v8555 = vld [vmem:[#allocation2 + $0x121] sm:$0xff]
        %v8556 = vld [vmem:[#allocation2 + $0x129] sm:$0xff]
        %v8557 = vld [vmem:[#allocation2 + $0x131] sm:$0xff]
        %v8558 = vld [vmem:[#allocation2 + $0x139] sm:$0xff]
        %v8559 = vld [vmem:[#allocation2 + $0x141] sm:$0xff]
        %v8560 = vld [vmem:[#allocation2 + $0x149] sm:$0xff]
        %v8561 = vld [vmem:[#allocation2 + $0x151] sm:$0xff]
        %v8562 = vld [vmem:[#allocation2 + $0x159] sm:$0xff]
        %v8563 = vld [vmem:[#allocation2 + $0x161] sm:$0xff]
        %v8564 = vld [vmem:[#allocation2 + $0x169] sm:$0xff]
        %v8565 = vld [vmem:[#allocation2 + $0x171] sm:$0xff]
        %v8566 = vld [vmem:[#allocation2 + $0x179] sm:$0xff]
        %v8567 = vld [vmem:[#allocation2 + $0x181] sm:$0xff]
        %v8568 = vld [vmem:[#allocation2 + $0x189] sm:$0xff]
        %v8569 = vld [vmem:[#allocation2 + $0x191] sm:$0xff]
        %v8570 = vld [vmem:[#allocation2 + $0x199] sm:$0xff]
        %v8571 = vld [vmem:[#allocation2 + $0x1a1] sm:$0xff]
        %v8572 = vld [vmem:[#allocation2 + $0x1a9] sm:$0xff]
        %v8573 = vld [vmem:[#allocation2 + $0x1b1] sm:$0xff]
        %v8574 = vld [vmem:[#allocation2 + $0x1b9] sm:$0xff]
        %v8575 = vld [vmem:[#allocation2 + $0x1c1] sm:$0xff]
        %v8576 = vld [vmem:[#allocation2 + $0x1c9] sm:$0xff]
        %v8577 = vld [vmem:[#allocation2 + $0x1d1] sm:$0xff]
        %v8578 = vld [vmem:[#allocation2 + $0x1d9] sm:$0xff]
        %v8579 = vld [vmem:[#allocation2 + $0x1e1] sm:$0xff]
        %v8580 = vld [vmem:[#allocation2 + $0x1e9] sm:$0xff]
        %v8581 = vld [vmem:[#allocation2 + $0x1f1] sm:$0xff]
        %v8582 = vld [vmem:[#allocation2 + $0x1f9] sm:$0xff]
        %v8583 = vld [vmem:[#allocation2 + $0x201] sm:$0xff]
        %v8584 = vld [vmem:[#allocation2 + $0x209] sm:$0xff]
        %v8585 = vld [vmem:[#allocation2 + $0x211] sm:$0xff]
        %v8586 = vld [vmem:[#allocation2 + $0x219] sm:$0xff]
        %v8587 = vld [vmem:[#allocation2 + $0x221] sm:$0xff]
        %v8588 = vld [vmem:[#allocation2 + $0x229] sm:$0xff]
        %v8589 = vld [vmem:[#allocation2 + $0x231] sm:$0xff]
        %v8590 = vld [vmem:[#allocation2 + $0x239] sm:$0xff]
        %v8591 = vld [vmem:[#allocation2 + $0x241] sm:$0xff]
        %v8592 = vpack.c.bf16 %v8521, %v8520
        %v8593 = vpack.c.bf16 %v8523, %v8522
        %v8594 = vpack.c.bf16 %v8525, %v8524
        %v8595 = vpack.c.bf16 %v8527, %v8526
        %v8596 = vpack.c.bf16 %v8529, %v8528
        %v8597 = vpack.c.bf16 %v8531, %v8530
        %v8598 = vpack.c.bf16 %v8533, %v8532
        %v8599 = vpack.c.bf16 %v8535, %v8534
        %v8600 = vpack.c.bf16 %v8537, %v8536
        %v8601 = vpack.c.bf16 %v8539, %v8538
        %v8602 = vpack.c.bf16 %v8541, %v8540
        %v8603 = vpack.c.bf16 %v8543, %v8542
        %v8604 = vpack.c.bf16 %v8545, %v8544
        %v8605 = vpack.c.bf16 %v8547, %v8546
        %v8606 = vpack.c.bf16 %v8549, %v8548
        %v8607 = vpack.c.bf16 %v8551, %v8550
        %v8608 = vpack.c.bf16 %v8553, %v8552
        %v8609 = vpack.c.bf16 %v8555, %v8554
        %v8610 = vpack.c.bf16 %v8557, %v8556
        %v8611 = vpack.c.bf16 %v8559, %v8558
        %v8612 = vpack.c.bf16 %v8561, %v8560
        %v8613 = vpack.c.bf16 %v8563, %v8562
        %v8614 = vpack.c.bf16 %v8565, %v8564
        %v8615 = vpack.c.bf16 %v8567, %v8566
        %v8616 = vpack.c.bf16 %v8569, %v8568
        %v8617 = vpack.c.bf16 %v8571, %v8570
        %v8618 = vpack.c.bf16 %v8573, %v8572
        %v8619 = vpack.c.bf16 %v8575, %v8574
        %v8620 = vpack.c.bf16 %v8577, %v8576
        %v8621 = vpack.c.bf16 %v8579, %v8578
        %v8622 = vpack.c.bf16 %v8581, %v8580
        %v8623 = vpack.c.bf16 %v8583, %v8582
        %v8624 = vpack.c.bf16 %v8585, %v8584
        %v8625 = vpack.c.bf16 %v8587, %v8586
        %v8626 = vpack.c.bf16 %v8589, %v8588
        %v8627 = vpack.c.bf16 %v8591, %v8590
        %8664 = vrot.lane.b32.xlu0 %v8592, 64
        %v8665 = vpop.permute.xlu0 %8664
        %8666 = vrot.lane.b32.xlu0 %v8593, 64
        %v8667 = vpop.permute.xlu0 %8666
        %8668 = vrot.lane.b32.xlu0 %v8594, 64
        %v8669 = vpop.permute.xlu0 %8668
        %8670 = vrot.lane.b32.xlu0 %v8595, 64
        %v8671 = vpop.permute.xlu0 %8670
        %8672 = vrot.lane.b32.xlu0 %v8596, 64
        %v8673 = vpop.permute.xlu0 %8672
        %8674 = vrot.lane.b32.xlu0 %v8597, 64
        %v8675 = vpop.permute.xlu0 %8674
        %8676 = vrot.lane.b32.xlu0 %v8598, 64
        %v8677 = vpop.permute.xlu0 %8676
        %8678 = vrot.lane.b32.xlu0 %v8599, 64
        %v8679 = vpop.permute.xlu0 %8678
        %8680 = vrot.lane.b32.xlu0 %v8600, 64
        %v8681 = vpop.permute.xlu0 %8680
        %8682 = vrot.lane.b32.xlu0 %v8601, 64
        %v8683 = vpop.permute.xlu0 %8682
        %8684 = vrot.lane.b32.xlu0 %v8602, 64
        %v8685 = vpop.permute.xlu0 %8684
        %8686 = vrot.lane.b32.xlu0 %v8603, 64
        %v8687 = vpop.permute.xlu0 %8686
        %8688 = vrot.lane.b32.xlu0 %v8604, 64
        %v8689 = vpop.permute.xlu0 %8688
        %8690 = vrot.lane.b32.xlu0 %v8605, 64
        %v8691 = vpop.permute.xlu0 %8690
        %8692 = vrot.lane.b32.xlu0 %v8606, 64
        %v8693 = vpop.permute.xlu0 %8692
        %8694 = vrot.lane.b32.xlu0 %v8607, 64
        %v8695 = vpop.permute.xlu0 %8694
        %8696 = vrot.lane.b32.xlu0 %v8608, 64
        %v8697 = vpop.permute.xlu0 %8696
        %8698 = vrot.lane.b32.xlu0 %v8609, 64
        %v8699 = vpop.permute.xlu0 %8698
        %8700 = vrot.lane.b32.xlu0 %v8610, 64
        %v8701 = vpop.permute.xlu0 %8700
        %8702 = vrot.lane.b32.xlu0 %v8611, 64
        %v8703 = vpop.permute.xlu0 %8702
        %8704 = vrot.lane.b32.xlu0 %v8612, 64
        %v8705 = vpop.permute.xlu0 %8704
        %8706 = vrot.lane.b32.xlu0 %v8613, 64
        %v8707 = vpop.permute.xlu0 %8706
        %8708 = vrot.lane.b32.xlu0 %v8614, 64
        %v8709 = vpop.permute.xlu0 %8708
        %8710 = vrot.lane.b32.xlu0 %v8615, 64
        %v8711 = vpop.permute.xlu0 %8710
        %8712 = vrot.lane.b32.xlu0 %v8616, 64
        %v8713 = vpop.permute.xlu0 %8712
        %8714 = vrot.lane.b32.xlu0 %v8617, 64
        %v8715 = vpop.permute.xlu0 %8714
        %8716 = vrot.lane.b32.xlu0 %v8618, 64
        %v8717 = vpop.permute.xlu0 %8716
        %8718 = vrot.lane.b32.xlu0 %v8619, 64
        %v8719 = vpop.permute.xlu0 %8718
        %8720 = vrot.lane.b32.xlu0 %v8620, 64
        %v8721 = vpop.permute.xlu0 %8720
        %8722 = vrot.lane.b32.xlu0 %v8621, 64
        %v8723 = vpop.permute.xlu0 %8722
        %8724 = vrot.lane.b32.xlu0 %v8622, 64
        %v8725 = vpop.permute.xlu0 %8724
        %8726 = vrot.lane.b32.xlu0 %v8623, 64
        %v8727 = vpop.permute.xlu0 %8726
        %8728 = vrot.lane.b32.xlu0 %v8624, 64
        %v8729 = vpop.permute.xlu0 %8728
        %8730 = vrot.lane.b32.xlu0 %v8625, 64
        %v8731 = vpop.permute.xlu0 %8730
        %8732 = vrot.lane.b32.xlu0 %v8626, 64
        %v8733 = vpop.permute.xlu0 %8732
        %8734 = vrot.lane.b32.xlu0 %v8627, 64
        %v8735 = vpop.permute.xlu0 %8734
        %vm8772 = vcmask 785920
        %8773 = vst.msk [vmem:[#allocation3 + $0x10] sm:$0xff] %vm8772, %v8665
        %8774 = vst.msk [vmem:[#allocation3 + $0x18] sm:$0xff] %vm8772, %v8667
        %8775 = vst.msk [vmem:[#allocation3 + $0x20] sm:$0xff] %vm8772, %v8669
        %8776 = vst.msk [vmem:[#allocation3 + $0x28] sm:$0xff] %vm8772, %v8671
        %8777 = vst.msk [vmem:[#allocation3 + $0x30] sm:$0xff] %vm8772, %v8673
        %8778 = vst.msk [vmem:[#allocation3 + $0x38] sm:$0xff] %vm8772, %v8675
        %8779 = vst.msk [vmem:[#allocation3 + $0x40] sm:$0xff] %vm8772, %v8677
        %8780 = vst.msk [vmem:[#allocation3 + $0x48] sm:$0xff] %vm8772, %v8679
        %8781 = vst.msk [vmem:[#allocation3 + $0x50] sm:$0xff] %vm8772, %v8681
        %8782 = vst.msk [vmem:[#allocation3 + $0x58] sm:$0xff] %vm8772, %v8683
        %8783 = vst.msk [vmem:[#allocation3 + $0x60] sm:$0xff] %vm8772, %v8685
        %8784 = vst.msk [vmem:[#allocation3 + $0x68] sm:$0xff] %vm8772, %v8687
        %8785 = vst.msk [vmem:[#allocation3 + $0x70] sm:$0xff] %vm8772, %v8689
        %8786 = vst.msk [vmem:[#allocation3 + $0x78] sm:$0xff] %vm8772, %v8691
        %8787 = vst.msk [vmem:[#allocation3 + $0x80] sm:$0xff] %vm8772, %v8693
        %8788 = vst.msk [vmem:[#allocation3 + $0x88] sm:$0xff] %vm8772, %v8695
        %8789 = vst.msk [vmem:[#allocation3 + $0x90] sm:$0xff] %vm8772, %v8697
        %8790 = vst.msk [vmem:[#allocation3 + $0x98] sm:$0xff] %vm8772, %v8699
        %8791 = vst.msk [vmem:[#allocation3 + $0xa0] sm:$0xff] %vm8772, %v8701
        %8792 = vst.msk [vmem:[#allocation3 + $0xa8] sm:$0xff] %vm8772, %v8703
        %8793 = vst.msk [vmem:[#allocation3 + $0xb0] sm:$0xff] %vm8772, %v8705
        %8794 = vst.msk [vmem:[#allocation3 + $0xb8] sm:$0xff] %vm8772, %v8707
        %8795 = vst.msk [vmem:[#allocation3 + $0xc0] sm:$0xff] %vm8772, %v8709
        %8796 = vst.msk [vmem:[#allocation3 + $0xc8] sm:$0xff] %vm8772, %v8711
        %8797 = vst.msk [vmem:[#allocation3 + $0xd0] sm:$0xff] %vm8772, %v8713
        %8798 = vst.msk [vmem:[#allocation3 + $0xd8] sm:$0xff] %vm8772, %v8715
        %8799 = vst.msk [vmem:[#allocation3 + $0xe0] sm:$0xff] %vm8772, %v8717
        %8800 = vst.msk [vmem:[#allocation3 + $0xe8] sm:$0xff] %vm8772, %v8719
        %8801 = vst.msk [vmem:[#allocation3 + $0xf0] sm:$0xff] %vm8772, %v8721
        %8802 = vst.msk [vmem:[#allocation3 + $0xf8] sm:$0xff] %vm8772, %v8723
        %8803 = vst.msk [vmem:[#allocation3 + $0x100] sm:$0xff] %vm8772, %v8725
        %8804 = vst.msk [vmem:[#allocation3 + $0x108] sm:$0xff] %vm8772, %v8727
        %8805 = vst.msk [vmem:[#allocation3 + $0x110] sm:$0xff] %vm8772, %v8729
        %8806 = vst.msk [vmem:[#allocation3 + $0x118] sm:$0xff] %vm8772, %v8731
        %8807 = vst.msk [vmem:[#allocation3 + $0x120] sm:$0xff] %vm8772, %v8733
        %8808 = vst.msk [vmem:[#allocation3 + $0x128] sm:$0xff] %vm8772, %v8735
        %v8809 = vld [vmem:[#allocation3] sm:$0xff]
        %v8810 = vld [vmem:[#allocation3 + $0x8] sm:$0xff]
        %v8811 = vld [vmem:[#allocation3 + $0x10] sm:$0xff]
        %v8812 = vld [vmem:[#allocation3 + $0x18] sm:$0xff]
        %v8813 = vld [vmem:[#allocation3 + $0x20] sm:$0xff]
        %v8814 = vld [vmem:[#allocation3 + $0x28] sm:$0xff]
        %v8815 = vld [vmem:[#allocation3 + $0x30] sm:$0xff]
        %v8816 = vld [vmem:[#allocation3 + $0x38] sm:$0xff]
        %v8817 = vld [vmem:[#allocation3 + $0x40] sm:$0xff]
        %v8818 = vld [vmem:[#allocation3 + $0x48] sm:$0xff]
        %v8819 = vld [vmem:[#allocation3 + $0x50] sm:$0xff]
        %v8820 = vld [vmem:[#allocation3 + $0x58] sm:$0xff]
        %v8821 = vld [vmem:[#allocation3 + $0x60] sm:$0xff]
        %v8822 = vld [vmem:[#allocation3 + $0x68] sm:$0xff]
        %v8823 = vld [vmem:[#allocation3 + $0x70] sm:$0xff]
        %v8824 = vld [vmem:[#allocation3 + $0x78] sm:$0xff]
        %v8825 = vld [vmem:[#allocation3 + $0x80] sm:$0xff]
        %v8826 = vld [vmem:[#allocation3 + $0x88] sm:$0xff]
        %v8827 = vld [vmem:[#allocation3 + $0x90] sm:$0xff]
        %v8828 = vld [vmem:[#allocation3 + $0x98] sm:$0xff]
        %v8829 = vld [vmem:[#allocation3 + $0xa0] sm:$0xff]
        %v8830 = vld [vmem:[#allocation3 + $0xa8] sm:$0xff]
        %v8831 = vld [vmem:[#allocation3 + $0xb0] sm:$0xff]
        %v8832 = vld [vmem:[#allocation3 + $0xb8] sm:$0xff]
        %v8833 = vld [vmem:[#allocation3 + $0xc0] sm:$0xff]
        %v8834 = vld [vmem:[#allocation3 + $0xc8] sm:$0xff]
        %v8835 = vld [vmem:[#allocation3 + $0xd0] sm:$0xff]
        %v8836 = vld [vmem:[#allocation3 + $0xd8] sm:$0xff]
        %v8837 = vld [vmem:[#allocation3 + $0xe0] sm:$0xff]
        %v8838 = vld [vmem:[#allocation3 + $0xe8] sm:$0xff]
        %v8839 = vld [vmem:[#allocation3 + $0xf0] sm:$0xff]
        %v8840 = vld [vmem:[#allocation3 + $0xf8] sm:$0xff]
        %v8841 = vld [vmem:[#allocation3 + $0x100] sm:$0xff]
        %v8842 = vld [vmem:[#allocation3 + $0x108] sm:$0xff]
        %v8843 = vld [vmem:[#allocation3 + $0x110] sm:$0xff]
        %v8844 = vld [vmem:[#allocation3 + $0x118] sm:$0xff]
        %s8845 = smul.u32 %s8082, 3
        %s8846 = smul.u32 %s8845, 12
        %s8847 = smul.addr %s8846, 4
        %s8848 = scalar_lea.vmem %s3, %s8847
        %v8849 = vld [vmem:[%s8848] sm:$0xf]
        %v8850 = vld [vmem:[%s8848 + $0x4] sm:$0xf]
        %v8851 = vld [vmem:[%s8848 + $0x8] sm:$0xf]
        %v8852 = vld [vmem:[%s8848 + $0xc] sm:$0xf]
        %v8853 = vld [vmem:[%s8848 + $0x10] sm:$0xf]
        %v8854 = vld [vmem:[%s8848 + $0x14] sm:$0xf]
        %v8855 = vld [vmem:[%s8848 + $0x18] sm:$0xf]
        %v8856 = vld [vmem:[%s8848 + $0x1c] sm:$0xf]
        %v8857 = vld [vmem:[%s8848 + $0x20] sm:$0xf]
        %v8858 = vld [vmem:[%s8848 + $0x24] sm:$0xf]
        %v8859 = vld [vmem:[%s8848 + $0x28] sm:$0xf]
        %v8860 = vld [vmem:[%s8848 + $0x2c] sm:$0xf]
        %v8861 = vld [vmem:[#allocation3 + $0x120] sm:$0xff]
        %v8862 = vld [vmem:[#allocation3 + $0x128] sm:$0xff]
        %s8863 = sadd.s32 %s8845, 1
        %s8864 = smul.u32 %s8863, 12
        %s8865 = smul.addr %s8864, 4
        %s8866 = scalar_lea.vmem %s3, %s8865
        %v8867 = vld [vmem:[%s8866] sm:$0xf]
        %v8868 = vld [vmem:[%s8866 + $0x4] sm:$0xf]
        %v8869 = vld [vmem:[%s8866 + $0x8] sm:$0xf]
        %v8870 = vld [vmem:[%s8866 + $0xc] sm:$0xf]
        %v8871 = vld [vmem:[%s8866 + $0x10] sm:$0xf]
        %v8872 = vld [vmem:[%s8866 + $0x14] sm:$0xf]
        %v8873 = vld [vmem:[%s8866 + $0x18] sm:$0xf]
        %v8874 = vld [vmem:[%s8866 + $0x1c] sm:$0xf]
        %v8875 = vld [vmem:[%s8866 + $0x20] sm:$0xf]
        %v8876 = vld [vmem:[%s8866 + $0x24] sm:$0xf]
        %v8877 = vld [vmem:[%s8866 + $0x28] sm:$0xf]
        %v8878 = vld [vmem:[%s8866 + $0x2c] sm:$0xf]
        %v8891 = vunpack.c.l.b16 %v8867
        %v8892 = vunpack.c.l.b16 %v8868
        %v8893 = vunpack.c.l.b16 %v8869
        %v8894 = vunpack.c.l.b16 %v8870
        %v8895 = vunpack.c.l.b16 %v8871
        %v8896 = vunpack.c.l.b16 %v8872
        %v8897 = vunpack.c.l.b16 %v8873
        %v8898 = vunpack.c.l.b16 %v8874
        %v8899 = vunpack.c.l.b16 %v8875
        %v8900 = vunpack.c.l.b16 %v8876
        %v8901 = vunpack.c.l.b16 %v8877
        %v8902 = vunpack.c.l.b16 %v8878
        %v8903 = vpack.c.b16 %v8892, %v8891
        %v8904 = vpack.c.b16 %v8894, %v8893
        %v8905 = vpack.c.b16 %v8896, %v8895
        %v8906 = vpack.c.b16 %v8898, %v8897
        %v8907 = vpack.c.b16 %v8900, %v8899
        %v8908 = vpack.c.b16 %v8902, %v8901
        %v8916 = vsel %vm454, %v8811, 0
        %v8919 = vsel %vm454, %v8812, 0
        %v8922 = vsel %vm454, %v8813, 0
        %v8925 = vsel %vm454, %v8814, 0
        %v8928 = vsel %vm454, %v8815, 0
        %v8931 = vsel %vm454, %v8816, 0
        %v8934 = vsel %vm454, %v8817, 0
        %v8937 = vsel %vm454, %v8818, 0
        %v8940 = vsel %vm454, %v8819, 0
        %v8943 = vsel %vm454, %v8820, 0
        %v8946 = vsel %vm454, %v8821, 0
        %v8949 = vsel %vm454, %v8822, 0
        %v8952 = vsel %vm454, %v8823, 0
        %v8955 = vsel %vm454, %v8824, 0
        %v8958 = vsel %vm454, %v8825, 0
        %v8961 = vsel %vm454, %v8826, 0
        %v8964 = vsel %vm454, %v8827, 0
        %v8967 = vsel %vm454, %v8828, 0
        %v8970 = vsel %vm454, %v8829, 0
        %v8973 = vsel %vm454, %v8830, 0
        %v8976 = vsel %vm454, %v8831, 0
        %v8979 = vsel %vm454, %v8832, 0
        %v8982 = vsel %vm454, %v8833, 0
        %v8985 = vsel %vm454, %v8834, 0
        %v8988 = vsel %vm454, %v8835, 0
        %v8991 = vsel %vm454, %v8836, 0
        %v8994 = vsel %vm454, %v8837, 0
        %v8997 = vsel %vm454, %v8838, 0
        %v9000 = vsel %vm454, %v8839, 0
        %v9003 = vsel %vm454, %v8840, 0
        %v9006 = vsel %vm454, %v8841, 0
        %v9009 = vsel %vm454, %v8842, 0
        %v9012 = vsel %vm454, %v8843, 0
        %v9015 = vsel %vm454, %v8844, 0
        %v9018 = vsel %vm454, %v8861, 0
        %v9021 = vsel %vm454, %v8862, 0
        %9023 = vmatprep.subr.bf16.mxu0 0
        %9024 = vmatpush1.bf16.msra.mxu0 %v8903
        %9025 = vmatprep.subr.bf16.mxu0 0
        %9026 = vmatpush1.bf16.msra.mxu0 %v8904
        %9027 = vmatprep.subr.bf16.mxu0 0
        %9028 = vmatpush1.bf16.msra.mxu0 %v8905
        %9029 = vmatprep.subr.bf16.mxu0 0
        %9030 = vmatpush1.bf16.msra.mxu0 %v8906
        %9031 = vmatprep.subr.bf16.mxu0 0
        %9032 = vmatpush1.bf16.msra.mxu0 %v8907
        %9033 = vmatprep.subr.bf16.mxu0 0
        %9034 = vmatpush1.bf16.msra.mxu0 %v8908
        %9035 = vmatprep.subr.bf16.mxu0 0
        %9036 = vmatpush1.bf16.msra.mxu0 0
        %9037 = vmatprep.subr.bf16.mxu0 0
        %9038 = vmatpush1.bf16.msra.mxu0 0
        %9039 = vmatprep.subr.bf16.mxu0 0
        %9040 = vmatpush1.bf16.msra.mxu0 0
        %9041 = vmatprep.subr.bf16.mxu0 0
        %9042 = vmatpush1.bf16.msra.mxu0 0
        %9043 = vmatprep.subr.bf16.mxu0 0
        %9044 = vmatpush1.bf16.msra.mxu0 0
        %9045 = vmatprep.subr.bf16.mxu0 0
        %9046 = vmatpush1.bf16.msra.mxu0 0
        %9047 = vmatprep.subr.bf16.mxu0 0
        %9048 = vmatpush1.bf16.msra.mxu0 0
        %9049 = vmatprep.subr.bf16.mxu0 0
        %9050 = vmatpush1.bf16.msra.mxu0 0
        %9051 = vmatprep.subr.bf16.mxu0 0
        %9052 = vmatpush1.bf16.msra.mxu0 0
        %9053 = vmatprep.subr.bf16.mxu0 0
        %9054 = vmatpush1.bf16.msra.mxu0 0
        %9055 = vmatprep.mubr.bf16.mxu0 0
        %9056 = vmatmul.mubr.bf16.gmra.mrb[0].mxu0 %v8916
        %v9057 = vpop.f32.mrb[0].mxu0
        %v9058 = vadd.f32 0.0, %v9057
        %v9059 = vpop.f32.mrb[0].mxu0
        %v9060 = vpop.f32.mrb[0].mxu0
        %v9061 = vadd.f32 0.0, %v9060
        %v9062 = vpop.f32.mrb[0].mxu0
        %9063 = vmatprep.mubr.bf16.mxu0 0
        %9064 = vmatmul.mubr.bf16.gmra.mrb[0].mxu0 %v8919
        %v9065 = vpop.f32.mrb[0].mxu0
        %v9066 = vadd.f32 0.0, %v9065
        %v9067 = vpop.f32.mrb[0].mxu0
        %v9068 = vpop.f32.mrb[0].mxu0
        %v9069 = vadd.f32 0.0, %v9068
        %v9070 = vpop.f32.mrb[0].mxu0
        %9071 = vmatprep.mubr.bf16.mxu0 0
        %9072 = vmatmul.mubr.bf16.gmra.mrb[0].mxu0 %v8922
        %v9073 = vpop.f32.mrb[0].mxu0
        %v9074 = vadd.f32 0.0, %v9073
        %v9075 = vpop.f32.mrb[0].mxu0
        %v9076 = vpop.f32.mrb[0].mxu0
        %v9077 = vadd.f32 0.0, %v9076
        %v9078 = vpop.f32.mrb[0].mxu0
        %9079 = vmatprep.mubr.bf16.mxu0 0
        %9080 = vmatmul.mubr.bf16.gmra.mrb[0].mxu0 %v8925
        %v9081 = vpop.f32.mrb[0].mxu0
        %v9082 = vadd.f32 0.0, %v9081
        %v9083 = vpop.f32.mrb[0].mxu0
        %v9084 = vpop.f32.mrb[0].mxu0
        %v9085 = vadd.f32 0.0, %v9084
        %v9086 = vpop.f32.mrb[0].mxu0
        %9087 = vmatprep.mubr.bf16.mxu0 0
        %9088 = vmatmul.mubr.bf16.gmra.mrb[0].mxu0 %v8928
        %v9089 = vpop.f32.mrb[0].mxu0
        %v9090 = vadd.f32 0.0, %v9089
        %v9091 = vpop.f32.mrb[0].mxu0
        %v9092 = vpop.f32.mrb[0].mxu0
        %v9093 = vadd.f32 0.0, %v9092
        %v9094 = vpop.f32.mrb[0].mxu0
        %9095 = vmatprep.mubr.bf16.mxu0 0
        %9096 = vmatmul.mubr.bf16.gmra.mrb[0].mxu0 %v8931
        %v9097 = vpop.f32.mrb[0].mxu0
        %v9098 = vadd.f32 0.0, %v9097
        %v9099 = vpop.f32.mrb[0].mxu0
        %v9100 = vpop.f32.mrb[0].mxu0
        %v9101 = vadd.f32 0.0, %v9100
        %v9102 = vpop.f32.mrb[0].mxu0
        %9103 = vmatprep.mubr.bf16.mxu0 0
        %9104 = vmatmul.mubr.bf16.gmra.mrb[0].mxu0 %v8934
        %v9105 = vpop.f32.mrb[0].mxu0
        %v9106 = vadd.f32 0.0, %v9105
        %v9107 = vpop.f32.mrb[0].mxu0
        %v9108 = vpop.f32.mrb[0].mxu0
        %v9109 = vadd.f32 0.0, %v9108
        %v9110 = vpop.f32.mrb[0].mxu0
        %9111 = vmatprep.mubr.bf16.mxu0 0
        %9112 = vmatmul.mubr.bf16.gmra.mrb[0].mxu0 %v8937
        %v9113 = vpop.f32.mrb[0].mxu0
        %v9114 = vadd.f32 0.0, %v9113
        %v9115 = vpop.f32.mrb[0].mxu0
        %v9116 = vpop.f32.mrb[0].mxu0
        %v9117 = vadd.f32 0.0, %v9116
        %v9118 = vpop.f32.mrb[0].mxu0
        %9119 = vmatprep.mubr.bf16.mxu0 0
        %9120 = vmatmul.mubr.bf16.gmra.mrb[0].mxu0 %v8940
        %v9121 = vpop.f32.mrb[0].mxu0
        %v9122 = vadd.f32 0.0, %v9121
        %v9123 = vpop.f32.mrb[0].mxu0
        %v9124 = vpop.f32.mrb[0].mxu0
        %v9125 = vadd.f32 0.0, %v9124
        %v9126 = vpop.f32.mrb[0].mxu0
        %9127 = vmatprep.mubr.bf16.mxu0 0
        %9128 = vmatmul.mubr.bf16.gmra.mrb[0].mxu0 %v8943
        %v9129 = vpop.f32.mrb[0].mxu0
        %v9130 = vadd.f32 0.0, %v9129
        %v9131 = vpop.f32.mrb[0].mxu0
        %v9132 = vpop.f32.mrb[0].mxu0
        %v9133 = vadd.f32 0.0, %v9132
        %v9134 = vpop.f32.mrb[0].mxu0
        %9135 = vmatprep.mubr.bf16.mxu0 0
        %9136 = vmatmul.mubr.bf16.gmra.mrb[0].mxu0 %v8946
        %v9137 = vpop.f32.mrb[0].mxu0
        %v9138 = vadd.f32 0.0, %v9137
        %v9139 = vpop.f32.mrb[0].mxu0
        %v9140 = vpop.f32.mrb[0].mxu0
        %v9141 = vadd.f32 0.0, %v9140
        %v9142 = vpop.f32.mrb[0].mxu0
        %9143 = vmatprep.mubr.bf16.mxu0 0
        %9144 = vmatmul.mubr.bf16.gmra.mrb[0].mxu0 %v8949
        %v9145 = vpop.f32.mrb[0].mxu0
        %v9146 = vadd.f32 0.0, %v9145
        %v9147 = vpop.f32.mrb[0].mxu0
        %v9148 = vpop.f32.mrb[0].mxu0
        %v9149 = vadd.f32 0.0, %v9148
        %v9150 = vpop.f32.mrb[0].mxu0
        %9151 = vmatprep.mubr.bf16.mxu0 0
        %9152 = vmatmul.mubr.bf16.gmra.mrb[0].mxu0 %v8952
        %v9153 = vpop.f32.mrb[0].mxu0
        %v9154 = vadd.f32 0.0, %v9153
        %v9155 = vpop.f32.mrb[0].mxu0
        %v9156 = vpop.f32.mrb[0].mxu0
        %v9157 = vadd.f32 0.0, %v9156
        %v9158 = vpop.f32.mrb[0].mxu0
        %9159 = vmatprep.mubr.bf16.mxu0 0
        %9160 = vmatmul.mubr.bf16.gmra.mrb[0].mxu0 %v8955
        %v9161 = vpop.f32.mrb[0].mxu0
        %v9162 = vadd.f32 0.0, %v9161
        %v9163 = vpop.f32.mrb[0].mxu0
        %v9164 = vpop.f32.mrb[0].mxu0
        %v9165 = vadd.f32 0.0, %v9164
        %v9166 = vpop.f32.mrb[0].mxu0
        %9167 = vmatprep.mubr.bf16.mxu0 0
        %9168 = vmatmul.mubr.bf16.gmra.mrb[0].mxu0 %v8958
        %v9169 = vpop.f32.mrb[0].mxu0
        %v9170 = vadd.f32 0.0, %v9169
        %v9171 = vpop.f32.mrb[0].mxu0
        %v9172 = vpop.f32.mrb[0].mxu0
        %v9173 = vadd.f32 0.0, %v9172
        %v9174 = vpop.f32.mrb[0].mxu0
        %9175 = vmatprep.mubr.bf16.mxu0 0
        %9176 = vmatmul.mubr.bf16.gmra.mrb[0].mxu0 %v8961
        %v9177 = vpop.f32.mrb[0].mxu0
        %v9178 = vadd.f32 0.0, %v9177
        %v9179 = vpop.f32.mrb[0].mxu0
        %v9180 = vpop.f32.mrb[0].mxu0
        %v9181 = vadd.f32 0.0, %v9180
        %v9182 = vpop.f32.mrb[0].mxu0
        %9183 = vmatprep.mubr.bf16.mxu0 0
        %9184 = vmatmul.mubr.bf16.gmra.mrb[0].mxu0 %v8964
        %v9185 = vpop.f32.mrb[0].mxu0
        %v9186 = vadd.f32 0.0, %v9185
        %v9187 = vpop.f32.mrb[0].mxu0
        %v9188 = vpop.f32.mrb[0].mxu0
        %v9189 = vadd.f32 0.0, %v9188
        %v9190 = vpop.f32.mrb[0].mxu0
        %9191 = vmatprep.mubr.bf16.mxu0 0
        %9192 = vmatmul.mubr.bf16.gmra.mrb[0].mxu0 %v8967
        %v9193 = vpop.f32.mrb[0].mxu0
        %v9194 = vadd.f32 0.0, %v9193
        %v9195 = vpop.f32.mrb[0].mxu0
        %v9196 = vpop.f32.mrb[0].mxu0
        %v9197 = vadd.f32 0.0, %v9196
        %v9198 = vpop.f32.mrb[0].mxu0
        %9199 = vmatprep.mubr.bf16.mxu0 0
        %9200 = vmatmul.mubr.bf16.gmra.mrb[0].mxu0 %v8970
        %v9201 = vpop.f32.mrb[0].mxu0
        %v9202 = vadd.f32 0.0, %v9201
        %v9203 = vpop.f32.mrb[0].mxu0
        %v9204 = vpop.f32.mrb[0].mxu0
        %v9205 = vadd.f32 0.0, %v9204
        %v9206 = vpop.f32.mrb[0].mxu0
        %9207 = vmatprep.mubr.bf16.mxu0 0
        %9208 = vmatmul.mubr.bf16.gmra.mrb[0].mxu0 %v8973
        %v9209 = vpop.f32.mrb[0].mxu0
        %v9210 = vadd.f32 0.0, %v9209
        %v9211 = vpop.f32.mrb[0].mxu0
        %v9212 = vpop.f32.mrb[0].mxu0
        %v9213 = vadd.f32 0.0, %v9212
        %v9214 = vpop.f32.mrb[0].mxu0
        %9215 = vmatprep.mubr.bf16.mxu0 0
        %9216 = vmatmul.mubr.bf16.gmra.mrb[0].mxu0 %v8976
        %v9217 = vpop.f32.mrb[0].mxu0
        %v9218 = vadd.f32 0.0, %v9217
        %v9219 = vpop.f32.mrb[0].mxu0
        %v9220 = vpop.f32.mrb[0].mxu0
        %v9221 = vadd.f32 0.0, %v9220
        %v9222 = vpop.f32.mrb[0].mxu0
        %9223 = vmatprep.mubr.bf16.mxu0 0
        %9224 = vmatmul.mubr.bf16.gmra.mrb[0].mxu0 %v8979
        %v9225 = vpop.f32.mrb[0].mxu0
        %v9226 = vadd.f32 0.0, %v9225
        %v9227 = vpop.f32.mrb[0].mxu0
        %v9228 = vpop.f32.mrb[0].mxu0
        %v9229 = vadd.f32 0.0, %v9228
        %v9230 = vpop.f32.mrb[0].mxu0
        %9231 = vmatprep.mubr.bf16.mxu0 0
        %9232 = vmatmul.mubr.bf16.gmra.mrb[0].mxu0 %v8982
        %v9233 = vpop.f32.mrb[0].mxu0
        %v9234 = vadd.f32 0.0, %v9233
        %v9235 = vpop.f32.mrb[0].mxu0
        %v9236 = vpop.f32.mrb[0].mxu0
        %v9237 = vadd.f32 0.0, %v9236
        %v9238 = vpop.f32.mrb[0].mxu0
        %9239 = vmatprep.mubr.bf16.mxu0 0
        %9240 = vmatmul.mubr.bf16.gmra.mrb[0].mxu0 %v8985
        %v9241 = vpop.f32.mrb[0].mxu0
        %v9242 = vadd.f32 0.0, %v9241
        %v9243 = vpop.f32.mrb[0].mxu0
        %v9244 = vpop.f32.mrb[0].mxu0
        %v9245 = vadd.f32 0.0, %v9244
        %v9246 = vpop.f32.mrb[0].mxu0
        %9247 = vmatprep.mubr.bf16.mxu0 0
        %9248 = vmatmul.mubr.bf16.gmra.mrb[0].mxu0 %v8988
        %v9249 = vpop.f32.mrb[0].mxu0
        %v9250 = vadd.f32 0.0, %v9249
        %v9251 = vpop.f32.mrb[0].mxu0
        %v9252 = vpop.f32.mrb[0].mxu0
        %v9253 = vadd.f32 0.0, %v9252
        %v9254 = vpop.f32.mrb[0].mxu0
        %9255 = vmatprep.mubr.bf16.mxu0 0
        %9256 = vmatmul.mubr.bf16.gmra.mrb[0].mxu0 %v8991
        %v9257 = vpop.f32.mrb[0].mxu0
        %v9258 = vadd.f32 0.0, %v9257
        %v9259 = vpop.f32.mrb[0].mxu0
        %v9260 = vpop.f32.mrb[0].mxu0
        %v9261 = vadd.f32 0.0, %v9260
        %v9262 = vpop.f32.mrb[0].mxu0
        %9263 = vmatprep.mubr.bf16.mxu0 0
        %9264 = vmatmul.mubr.bf16.gmra.mrb[0].mxu0 %v8994
        %v9265 = vpop.f32.mrb[0].mxu0
        %v9266 = vadd.f32 0.0, %v9265
        %v9267 = vpop.f32.mrb[0].mxu0
        %v9268 = vpop.f32.mrb[0].mxu0
        %v9269 = vadd.f32 0.0, %v9268
        %v9270 = vpop.f32.mrb[0].mxu0
        %9271 = vmatprep.mubr.bf16.mxu0 0
        %9272 = vmatmul.mubr.bf16.gmra.mrb[0].mxu0 %v8997
        %v9273 = vpop.f32.mrb[0].mxu0
        %v9274 = vadd.f32 0.0, %v9273
        %v9275 = vpop.f32.mrb[0].mxu0
        %v9276 = vpop.f32.mrb[0].mxu0
        %v9277 = vadd.f32 0.0, %v9276
        %v9278 = vpop.f32.mrb[0].mxu0
        %9279 = vmatprep.mubr.bf16.mxu0 0
        %9280 = vmatmul.mubr.bf16.gmra.mrb[0].mxu0 %v9000
        %v9281 = vpop.f32.mrb[0].mxu0
        %v9282 = vadd.f32 0.0, %v9281
        %v9283 = vpop.f32.mrb[0].mxu0
        %v9284 = vpop.f32.mrb[0].mxu0
        %v9285 = vadd.f32 0.0, %v9284
        %v9286 = vpop.f32.mrb[0].mxu0
        %9287 = vmatprep.mubr.bf16.mxu0 0
        %9288 = vmatmul.mubr.bf16.gmra.mrb[0].mxu0 %v9003
        %v9289 = vpop.f32.mrb[0].mxu0
        %v9290 = vadd.f32 0.0, %v9289
        %v9291 = vpop.f32.mrb[0].mxu0
        %v9292 = vpop.f32.mrb[0].mxu0
        %v9293 = vadd.f32 0.0, %v9292
        %v9294 = vpop.f32.mrb[0].mxu0
        %9295 = vmatprep.mubr.bf16.mxu0 0
        %9296 = vmatmul.mubr.bf16.gmra.mrb[0].mxu0 %v9006
        %v9297 = vpop.f32.mrb[0].mxu0
        %v9298 = vadd.f32 0.0, %v9297
        %v9299 = vpop.f32.mrb[0].mxu0
        %v9300 = vpop.f32.mrb[0].mxu0
        %v9301 = vadd.f32 0.0, %v9300
        %v9302 = vpop.f32.mrb[0].mxu0
        %9303 = vmatprep.mubr.bf16.mxu0 0
        %9304 = vmatmul.mubr.bf16.gmra.mrb[0].mxu0 %v9009
        %v9305 = vpop.f32.mrb[0].mxu0
        %v9306 = vadd.f32 0.0, %v9305
        %v9307 = vpop.f32.mrb[0].mxu0
        %v9308 = vpop.f32.mrb[0].mxu0
        %v9309 = vadd.f32 0.0, %v9308
        %v9310 = vpop.f32.mrb[0].mxu0
        %9311 = vmatprep.mubr.bf16.mxu0 0
        %9312 = vmatmul.mubr.bf16.gmra.mrb[0].mxu0 %v9012
        %v9313 = vpop.f32.mrb[0].mxu0
        %v9314 = vadd.f32 0.0, %v9313
        %v9315 = vpop.f32.mrb[0].mxu0
        %v9316 = vpop.f32.mrb[0].mxu0
        %v9317 = vadd.f32 0.0, %v9316
        %v9318 = vpop.f32.mrb[0].mxu0
        %9319 = vmatprep.mubr.bf16.mxu0 0
        %9320 = vmatmul.mubr.bf16.gmra.mrb[0].mxu0 %v9015
        %v9321 = vpop.f32.mrb[0].mxu0
        %v9322 = vadd.f32 0.0, %v9321
        %v9323 = vpop.f32.mrb[0].mxu0
        %v9324 = vpop.f32.mrb[0].mxu0
        %v9325 = vadd.f32 0.0, %v9324
        %v9326 = vpop.f32.mrb[0].mxu0
        %9327 = vmatprep.mubr.bf16.mxu0 0
        %9328 = vmatmul.mubr.bf16.gmra.mrb[0].mxu0 %v9018
        %v9329 = vpop.f32.mrb[0].mxu0
        %v9330 = vadd.f32 0.0, %v9329
        %v9331 = vpop.f32.mrb[0].mxu0
        %v9332 = vpop.f32.mrb[0].mxu0
        %v9333 = vadd.f32 0.0, %v9332
        %v9334 = vpop.f32.mrb[0].mxu0
        %9335 = vmatprep.mubr.bf16.mxu0 0
        %9336 = vmatmul.mubr.bf16.gmra.mrb[0].mxu0 %v9021
        %v9337 = vpop.f32.mrb[0].mxu0
        %v9338 = vadd.f32 0.0, %v9337
        %v9339 = vpop.f32.mrb[0].mxu0
        %v9340 = vpop.f32.mrb[0].mxu0
        %v9341 = vadd.f32 0.0, %v9340
        %v9342 = vpop.f32.mrb[0].mxu0
        %9343 = vdwg.mxu0
        %v9356 = vunpack.c.l.b16 %v8849
        %v9357 = vunpack.c.l.b16 %v8850
        %v9358 = vunpack.c.l.b16 %v8851
        %v9359 = vunpack.c.l.b16 %v8852
        %v9360 = vunpack.c.l.b16 %v8853
        %v9361 = vunpack.c.l.b16 %v8854
        %v9362 = vunpack.c.l.b16 %v8855
        %v9363 = vunpack.c.l.b16 %v8856
        %v9364 = vunpack.c.l.b16 %v8857
        %v9365 = vunpack.c.l.b16 %v8858
        %v9366 = vunpack.c.l.b16 %v8859
        %v9367 = vunpack.c.l.b16 %v8860
        %v9368 = vpack.c.b16 %v9357, %v9356
        %v9369 = vpack.c.b16 %v9359, %v9358
        %v9370 = vpack.c.b16 %v9361, %v9360
        %v9371 = vpack.c.b16 %v9363, %v9362
        %v9372 = vpack.c.b16 %v9365, %v9364
        %v9373 = vpack.c.b16 %v9367, %v9366
        %v9381 = vsel %vm454, %v8809, 0
        %v9384 = vsel %vm454, %v8810, 0
        %9386 = vmatprep.subr.bf16.mxu0 0
        %9387 = vmatpush1.bf16.msra.mxu0 %v9368
        %9388 = vmatprep.subr.bf16.mxu0 0
        %9389 = vmatpush1.bf16.msra.mxu0 %v9369
        %9390 = vmatprep.subr.bf16.mxu0 0
        %9391 = vmatpush1.bf16.msra.mxu0 %v9370
        %9392 = vmatprep.subr.bf16.mxu0 0
        %9393 = vmatpush1.bf16.msra.mxu0 %v9371
        %9394 = vmatprep.subr.bf16.mxu0 0
        %9395 = vmatpush1.bf16.msra.mxu0 %v9372
        %9396 = vmatprep.subr.bf16.mxu0 0
        %9397 = vmatpush1.bf16.msra.mxu0 %v9373
        %9398 = vmatprep.subr.bf16.mxu0 0
        %9399 = vmatpush1.bf16.msra.mxu0 0
        %9400 = vmatprep.subr.bf16.mxu0 0
        %9401 = vmatpush1.bf16.msra.mxu0 0
        %9402 = vmatprep.subr.bf16.mxu0 0
        %9403 = vmatpush1.bf16.msra.mxu0 0
        %9404 = vmatprep.subr.bf16.mxu0 0
        %9405 = vmatpush1.bf16.msra.mxu0 0
        %9406 = vmatprep.subr.bf16.mxu0 0
        %9407 = vmatpush1.bf16.msra.mxu0 0
        %9408 = vmatprep.subr.bf16.mxu0 0
        %9409 = vmatpush1.bf16.msra.mxu0 0
        %9410 = vmatprep.subr.bf16.mxu0 0
        %9411 = vmatpush1.bf16.msra.mxu0 0
        %9412 = vmatprep.subr.bf16.mxu0 0
        %9413 = vmatpush1.bf16.msra.mxu0 0
        %9414 = vmatprep.subr.bf16.mxu0 0
        %9415 = vmatpush1.bf16.msra.mxu0 0
        %9416 = vmatprep.subr.bf16.mxu0 0
        %9417 = vmatpush1.bf16.msra.mxu0 0
        %9418 = vmatprep.mubr.bf16.mxu0 0
        %9419 = vmatmul.mubr.bf16.gmra.mrb[0].mxu0 %v9381
        %v9420 = vpop.f32.mrb[0].mxu0
        %v9421 = vadd.f32 %v9058, %v9420
        %v9422 = vpop.f32.mrb[0].mxu0
        %v9423 = vpop.f32.mrb[0].mxu0
        %v9424 = vadd.f32 %v9061, %v9423
        %v9425 = vpop.f32.mrb[0].mxu0
        %9426 = vmatprep.mubr.bf16.mxu0 0
        %9427 = vmatmul.mubr.bf16.gmra.mrb[0].mxu0 %v9384
        %v9428 = vpop.f32.mrb[0].mxu0
        %v9429 = vadd.f32 %v9066, %v9428
        %v9430 = vpop.f32.mrb[0].mxu0
        %v9431 = vpop.f32.mrb[0].mxu0
        %v9432 = vadd.f32 %v9069, %v9431
        %v9433 = vpop.f32.mrb[0].mxu0
        %9434 = vmatprep.mubr.bf16.mxu0 0
        %9435 = vmatmul.mubr.bf16.gmra.mrb[0].mxu0 %v8916
        %v9436 = vpop.f32.mrb[0].mxu0
        %v9437 = vadd.f32 %v9074, %v9436
        %v9438 = vpop.f32.mrb[0].mxu0
        %v9439 = vpop.f32.mrb[0].mxu0
        %v9440 = vadd.f32 %v9077, %v9439
        %v9441 = vpop.f32.mrb[0].mxu0
        %9442 = vmatprep.mubr.bf16.mxu0 0
        %9443 = vmatmul.mubr.bf16.gmra.mrb[0].mxu0 %v8919
        %v9444 = vpop.f32.mrb[0].mxu0
        %v9445 = vadd.f32 %v9082, %v9444
        %v9446 = vpop.f32.mrb[0].mxu0
        %v9447 = vpop.f32.mrb[0].mxu0
        %v9448 = vadd.f32 %v9085, %v9447
        %v9449 = vpop.f32.mrb[0].mxu0
        %9450 = vmatprep.mubr.bf16.mxu0 0
        %9451 = vmatmul.mubr.bf16.gmra.mrb[0].mxu0 %v8922
        %v9452 = vpop.f32.mrb[0].mxu0
        %v9453 = vadd.f32 %v9090, %v9452
        %v9454 = vpop.f32.mrb[0].mxu0
        %v9455 = vpop.f32.mrb[0].mxu0
        %v9456 = vadd.f32 %v9093, %v9455
        %v9457 = vpop.f32.mrb[0].mxu0
        %9458 = vmatprep.mubr.bf16.mxu0 0
        %9459 = vmatmul.mubr.bf16.gmra.mrb[0].mxu0 %v8925
        %v9460 = vpop.f32.mrb[0].mxu0
        %v9461 = vadd.f32 %v9098, %v9460
        %v9462 = vpop.f32.mrb[0].mxu0
        %v9463 = vpop.f32.mrb[0].mxu0
        %v9464 = vadd.f32 %v9101, %v9463
        %v9465 = vpop.f32.mrb[0].mxu0
        %9466 = vmatprep.mubr.bf16.mxu0 0
        %9467 = vmatmul.mubr.bf16.gmra.mrb[0].mxu0 %v8928
        %v9468 = vpop.f32.mrb[0].mxu0
        %v9469 = vadd.f32 %v9106, %v9468
        %v9470 = vpop.f32.mrb[0].mxu0
        %v9471 = vpop.f32.mrb[0].mxu0
        %v9472 = vadd.f32 %v9109, %v9471
        %v9473 = vpop.f32.mrb[0].mxu0
        %9474 = vmatprep.mubr.bf16.mxu0 0
        %9475 = vmatmul.mubr.bf16.gmra.mrb[0].mxu0 %v8931
        %v9476 = vpop.f32.mrb[0].mxu0
        %v9477 = vadd.f32 %v9114, %v9476
        %v9478 = vpop.f32.mrb[0].mxu0
        %v9479 = vpop.f32.mrb[0].mxu0
        %v9480 = vadd.f32 %v9117, %v9479
        %v9481 = vpop.f32.mrb[0].mxu0
        %9482 = vmatprep.mubr.bf16.mxu0 0
        %9483 = vmatmul.mubr.bf16.gmra.mrb[0].mxu0 %v8934
        %v9484 = vpop.f32.mrb[0].mxu0
        %v9485 = vadd.f32 %v9122, %v9484
        %v9486 = vpop.f32.mrb[0].mxu0
        %v9487 = vpop.f32.mrb[0].mxu0
        %v9488 = vadd.f32 %v9125, %v9487
        %v9489 = vpop.f32.mrb[0].mxu0
        %9490 = vmatprep.mubr.bf16.mxu0 0
        %9491 = vmatmul.mubr.bf16.gmra.mrb[0].mxu0 %v8937
        %v9492 = vpop.f32.mrb[0].mxu0
        %v9493 = vadd.f32 %v9130, %v9492
        %v9494 = vpop.f32.mrb[0].mxu0
        %v9495 = vpop.f32.mrb[0].mxu0
        %v9496 = vadd.f32 %v9133, %v9495
        %v9497 = vpop.f32.mrb[0].mxu0
        %9498 = vmatprep.mubr.bf16.mxu0 0
        %9499 = vmatmul.mubr.bf16.gmra.mrb[0].mxu0 %v8940
        %v9500 = vpop.f32.mrb[0].mxu0
        %v9501 = vadd.f32 %v9138, %v9500
        %v9502 = vpop.f32.mrb[0].mxu0
        %v9503 = vpop.f32.mrb[0].mxu0
        %v9504 = vadd.f32 %v9141, %v9503
        %v9505 = vpop.f32.mrb[0].mxu0
        %9506 = vmatprep.mubr.bf16.mxu0 0
        %9507 = vmatmul.mubr.bf16.gmra.mrb[0].mxu0 %v8943
        %v9508 = vpop.f32.mrb[0].mxu0
        %v9509 = vadd.f32 %v9146, %v9508
        %v9510 = vpop.f32.mrb[0].mxu0
        %v9511 = vpop.f32.mrb[0].mxu0
        %v9512 = vadd.f32 %v9149, %v9511
        %v9513 = vpop.f32.mrb[0].mxu0
        %9514 = vmatprep.mubr.bf16.mxu0 0
        %9515 = vmatmul.mubr.bf16.gmra.mrb[0].mxu0 %v8946
        %v9516 = vpop.f32.mrb[0].mxu0
        %v9517 = vadd.f32 %v9154, %v9516
        %v9518 = vpop.f32.mrb[0].mxu0
        %v9519 = vpop.f32.mrb[0].mxu0
        %v9520 = vadd.f32 %v9157, %v9519
        %v9521 = vpop.f32.mrb[0].mxu0
        %9522 = vmatprep.mubr.bf16.mxu0 0
        %9523 = vmatmul.mubr.bf16.gmra.mrb[0].mxu0 %v8949
        %v9524 = vpop.f32.mrb[0].mxu0
        %v9525 = vadd.f32 %v9162, %v9524
        %v9526 = vpop.f32.mrb[0].mxu0
        %v9527 = vpop.f32.mrb[0].mxu0
        %v9528 = vadd.f32 %v9165, %v9527
        %v9529 = vpop.f32.mrb[0].mxu0
        %9530 = vmatprep.mubr.bf16.mxu0 0
        %9531 = vmatmul.mubr.bf16.gmra.mrb[0].mxu0 %v8952
        %v9532 = vpop.f32.mrb[0].mxu0
        %v9533 = vadd.f32 %v9170, %v9532
        %v9534 = vpop.f32.mrb[0].mxu0
        %v9535 = vpop.f32.mrb[0].mxu0
        %v9536 = vadd.f32 %v9173, %v9535
        %v9537 = vpop.f32.mrb[0].mxu0
        %9538 = vmatprep.mubr.bf16.mxu0 0
        %9539 = vmatmul.mubr.bf16.gmra.mrb[0].mxu0 %v8955
        %v9540 = vpop.f32.mrb[0].mxu0
        %v9541 = vadd.f32 %v9178, %v9540
        %v9542 = vpop.f32.mrb[0].mxu0
        %v9543 = vpop.f32.mrb[0].mxu0
        %v9544 = vadd.f32 %v9181, %v9543
        %v9545 = vpop.f32.mrb[0].mxu0
        %9546 = vmatprep.mubr.bf16.mxu0 0
        %9547 = vmatmul.mubr.bf16.gmra.mrb[0].mxu0 %v8958
        %v9548 = vpop.f32.mrb[0].mxu0
        %v9549 = vadd.f32 %v9186, %v9548
        %v9550 = vpop.f32.mrb[0].mxu0
        %v9551 = vpop.f32.mrb[0].mxu0
        %v9552 = vadd.f32 %v9189, %v9551
        %v9553 = vpop.f32.mrb[0].mxu0
        %9554 = vmatprep.mubr.bf16.mxu0 0
        %9555 = vmatmul.mubr.bf16.gmra.mrb[0].mxu0 %v8961
        %v9556 = vpop.f32.mrb[0].mxu0
        %v9557 = vadd.f32 %v9194, %v9556
        %v9558 = vpop.f32.mrb[0].mxu0
        %v9559 = vpop.f32.mrb[0].mxu0
        %v9560 = vadd.f32 %v9197, %v9559
        %v9561 = vpop.f32.mrb[0].mxu0
        %9562 = vmatprep.mubr.bf16.mxu0 0
        %9563 = vmatmul.mubr.bf16.gmra.mrb[0].mxu0 %v8964
        %v9564 = vpop.f32.mrb[0].mxu0
        %v9565 = vadd.f32 %v9202, %v9564
        %v9566 = vpop.f32.mrb[0].mxu0
        %v9567 = vpop.f32.mrb[0].mxu0
        %v9568 = vadd.f32 %v9205, %v9567
        %v9569 = vpop.f32.mrb[0].mxu0
        %9570 = vmatprep.mubr.bf16.mxu0 0
        %9571 = vmatmul.mubr.bf16.gmra.mrb[0].mxu0 %v8967
        %v9572 = vpop.f32.mrb[0].mxu0
        %v9573 = vadd.f32 %v9210, %v9572
        %v9574 = vpop.f32.mrb[0].mxu0
        %v9575 = vpop.f32.mrb[0].mxu0
        %v9576 = vadd.f32 %v9213, %v9575
        %v9577 = vpop.f32.mrb[0].mxu0
        %9578 = vmatprep.mubr.bf16.mxu0 0
        %9579 = vmatmul.mubr.bf16.gmra.mrb[0].mxu0 %v8970
        %v9580 = vpop.f32.mrb[0].mxu0
        %v9581 = vadd.f32 %v9218, %v9580
        %v9582 = vpop.f32.mrb[0].mxu0
        %v9583 = vpop.f32.mrb[0].mxu0
        %v9584 = vadd.f32 %v9221, %v9583
        %v9585 = vpop.f32.mrb[0].mxu0
        %9586 = vmatprep.mubr.bf16.mxu0 0
        %9587 = vmatmul.mubr.bf16.gmra.mrb[0].mxu0 %v8973
        %v9588 = vpop.f32.mrb[0].mxu0
        %v9589 = vadd.f32 %v9226, %v9588
        %v9590 = vpop.f32.mrb[0].mxu0
        %v9591 = vpop.f32.mrb[0].mxu0
        %v9592 = vadd.f32 %v9229, %v9591
        %v9593 = vpop.f32.mrb[0].mxu0
        %9594 = vmatprep.mubr.bf16.mxu0 0
        %9595 = vmatmul.mubr.bf16.gmra.mrb[0].mxu0 %v8976
        %v9596 = vpop.f32.mrb[0].mxu0
        %v9597 = vadd.f32 %v9234, %v9596
        %v9598 = vpop.f32.mrb[0].mxu0
        %v9599 = vpop.f32.mrb[0].mxu0
        %v9600 = vadd.f32 %v9237, %v9599
        %v9601 = vpop.f32.mrb[0].mxu0
        %9602 = vmatprep.mubr.bf16.mxu0 0
        %9603 = vmatmul.mubr.bf16.gmra.mrb[0].mxu0 %v8979
        %v9604 = vpop.f32.mrb[0].mxu0
        %v9605 = vadd.f32 %v9242, %v9604
        %v9606 = vpop.f32.mrb[0].mxu0
        %v9607 = vpop.f32.mrb[0].mxu0
        %v9608 = vadd.f32 %v9245, %v9607
        %v9609 = vpop.f32.mrb[0].mxu0
        %9610 = vmatprep.mubr.bf16.mxu0 0
        %9611 = vmatmul.mubr.bf16.gmra.mrb[0].mxu0 %v8982
        %v9612 = vpop.f32.mrb[0].mxu0
        %v9613 = vadd.f32 %v9250, %v9612
        %v9614 = vpop.f32.mrb[0].mxu0
        %v9615 = vpop.f32.mrb[0].mxu0
        %v9616 = vadd.f32 %v9253, %v9615
        %v9617 = vpop.f32.mrb[0].mxu0
        %9618 = vmatprep.mubr.bf16.mxu0 0
        %9619 = vmatmul.mubr.bf16.gmra.mrb[0].mxu0 %v8985
        %v9620 = vpop.f32.mrb[0].mxu0
        %v9621 = vadd.f32 %v9258, %v9620
        %v9622 = vpop.f32.mrb[0].mxu0
        %v9623 = vpop.f32.mrb[0].mxu0
        %v9624 = vadd.f32 %v9261, %v9623
        %v9625 = vpop.f32.mrb[0].mxu0
        %9626 = vmatprep.mubr.bf16.mxu0 0
        %9627 = vmatmul.mubr.bf16.gmra.mrb[0].mxu0 %v8988
        %v9628 = vpop.f32.mrb[0].mxu0
        %v9629 = vadd.f32 %v9266, %v9628
        %v9630 = vpop.f32.mrb[0].mxu0
        %v9631 = vpop.f32.mrb[0].mxu0
        %v9632 = vadd.f32 %v9269, %v9631
        %v9633 = vpop.f32.mrb[0].mxu0
        %9634 = vmatprep.mubr.bf16.mxu0 0
        %9635 = vmatmul.mubr.bf16.gmra.mrb[0].mxu0 %v8991
        %v9636 = vpop.f32.mrb[0].mxu0
        %v9637 = vadd.f32 %v9274, %v9636
        %v9638 = vpop.f32.mrb[0].mxu0
        %v9639 = vpop.f32.mrb[0].mxu0
        %v9640 = vadd.f32 %v9277, %v9639
        %v9641 = vpop.f32.mrb[0].mxu0
        %9642 = vmatprep.mubr.bf16.mxu0 0
        %9643 = vmatmul.mubr.bf16.gmra.mrb[0].mxu0 %v8994
        %v9644 = vpop.f32.mrb[0].mxu0
        %v9645 = vadd.f32 %v9282, %v9644
        %v9646 = vpop.f32.mrb[0].mxu0
        %v9647 = vpop.f32.mrb[0].mxu0
        %v9648 = vadd.f32 %v9285, %v9647
        %v9649 = vpop.f32.mrb[0].mxu0
        %9650 = vmatprep.mubr.bf16.mxu0 0
        %9651 = vmatmul.mubr.bf16.gmra.mrb[0].mxu0 %v8997
        %v9652 = vpop.f32.mrb[0].mxu0
        %v9653 = vadd.f32 %v9290, %v9652
        %v9654 = vpop.f32.mrb[0].mxu0
        %v9655 = vpop.f32.mrb[0].mxu0
        %v9656 = vadd.f32 %v9293, %v9655
        %v9657 = vpop.f32.mrb[0].mxu0
        %9658 = vmatprep.mubr.bf16.mxu0 0
        %9659 = vmatmul.mubr.bf16.gmra.mrb[0].mxu0 %v9000
        %v9660 = vpop.f32.mrb[0].mxu0
        %v9661 = vadd.f32 %v9298, %v9660
        %v9662 = vpop.f32.mrb[0].mxu0
        %v9663 = vpop.f32.mrb[0].mxu0
        %v9664 = vadd.f32 %v9301, %v9663
        %v9665 = vpop.f32.mrb[0].mxu0
        %9666 = vmatprep.mubr.bf16.mxu0 0
        %9667 = vmatmul.mubr.bf16.gmra.mrb[0].mxu0 %v9003
        %v9668 = vpop.f32.mrb[0].mxu0
        %v9669 = vadd.f32 %v9306, %v9668
        %v9670 = vpop.f32.mrb[0].mxu0
        %v9671 = vpop.f32.mrb[0].mxu0
        %v9672 = vadd.f32 %v9309, %v9671
        %v9673 = vpop.f32.mrb[0].mxu0
        %9674 = vmatprep.mubr.bf16.mxu0 0
        %9675 = vmatmul.mubr.bf16.gmra.mrb[0].mxu0 %v9006
        %v9676 = vpop.f32.mrb[0].mxu0
        %v9677 = vadd.f32 %v9314, %v9676
        %v9678 = vpop.f32.mrb[0].mxu0
        %v9679 = vpop.f32.mrb[0].mxu0
        %v9680 = vadd.f32 %v9317, %v9679
        %v9681 = vpop.f32.mrb[0].mxu0
        %9682 = vmatprep.mubr.bf16.mxu0 0
        %9683 = vmatmul.mubr.bf16.gmra.mrb[0].mxu0 %v9009
        %v9684 = vpop.f32.mrb[0].mxu0
        %v9685 = vadd.f32 %v9322, %v9684
        %v9686 = vpop.f32.mrb[0].mxu0
        %v9687 = vpop.f32.mrb[0].mxu0
        %v9688 = vadd.f32 %v9325, %v9687
        %v9689 = vpop.f32.mrb[0].mxu0
        %9690 = vmatprep.mubr.bf16.mxu0 0
        %9691 = vmatmul.mubr.bf16.gmra.mrb[0].mxu0 %v9012
        %v9692 = vpop.f32.mrb[0].mxu0
        %v9693 = vadd.f32 %v9330, %v9692
        %v9694 = vpop.f32.mrb[0].mxu0
        %v9695 = vpop.f32.mrb[0].mxu0
        %v9696 = vadd.f32 %v9333, %v9695
        %v9697 = vpop.f32.mrb[0].mxu0
        %9698 = vmatprep.mubr.bf16.mxu0 0
        %9699 = vmatmul.mubr.bf16.gmra.mrb[0].mxu0 %v9015
        %v9700 = vpop.f32.mrb[0].mxu0
        %v9701 = vadd.f32 %v9338, %v9700
        %v9702 = vpop.f32.mrb[0].mxu0
        %v9703 = vpop.f32.mrb[0].mxu0
        %v9704 = vadd.f32 %v9341, %v9703
        %v9705 = vpop.f32.mrb[0].mxu0
        %9706 = vdwg.mxu0
        %v9707 = vld [vmem:[#allocation3 + $0x20] sm:$0xff]
        %v9708 = vld [vmem:[#allocation3 + $0x28] sm:$0xff]
        %v9709 = vld [vmem:[#allocation3 + $0x30] sm:$0xff]
        %v9710 = vld [vmem:[#allocation3 + $0x38] sm:$0xff]
        %v9711 = vld [vmem:[#allocation3 + $0x40] sm:$0xff]
        %v9712 = vld [vmem:[#allocation3 + $0x48] sm:$0xff]
        %v9713 = vld [vmem:[#allocation3 + $0x50] sm:$0xff]
        %v9714 = vld [vmem:[#allocation3 + $0x58] sm:$0xff]
        %v9715 = vld [vmem:[#allocation3 + $0x60] sm:$0xff]
        %v9716 = vld [vmem:[#allocation3 + $0x68] sm:$0xff]
        %v9717 = vld [vmem:[#allocation3 + $0x70] sm:$0xff]
        %v9718 = vld [vmem:[#allocation3 + $0x78] sm:$0xff]
        %v9719 = vld [vmem:[#allocation3 + $0x80] sm:$0xff]
        %v9720 = vld [vmem:[#allocation3 + $0x88] sm:$0xff]
        %v9721 = vld [vmem:[#allocation3 + $0x90] sm:$0xff]
        %v9722 = vld [vmem:[#allocation3 + $0x98] sm:$0xff]
        %v9723 = vld [vmem:[#allocation3 + $0xa0] sm:$0xff]
        %v9724 = vld [vmem:[#allocation3 + $0xa8] sm:$0xff]
        %v9725 = vld [vmem:[#allocation3 + $0xb0] sm:$0xff]
        %v9726 = vld [vmem:[#allocation3 + $0xb8] sm:$0xff]
        %v9727 = vld [vmem:[#allocation3 + $0xc0] sm:$0xff]
        %v9728 = vld [vmem:[#allocation3 + $0xc8] sm:$0xff]
        %v9729 = vld [vmem:[#allocation3 + $0xd0] sm:$0xff]
        %v9730 = vld [vmem:[#allocation3 + $0xd8] sm:$0xff]
        %v9731 = vld [vmem:[#allocation3 + $0xe0] sm:$0xff]
        %v9732 = vld [vmem:[#allocation3 + $0xe8] sm:$0xff]
        %v9733 = vld [vmem:[#allocation3 + $0xf0] sm:$0xff]
        %v9734 = vld [vmem:[#allocation3 + $0xf8] sm:$0xff]
        %v9735 = vld [vmem:[#allocation3 + $0x100] sm:$0xff]
        %v9736 = vld [vmem:[#allocation3 + $0x108] sm:$0xff]
        %v9737 = vld [vmem:[#allocation3 + $0x110] sm:$0xff]
        %v9738 = vld [vmem:[#allocation3 + $0x118] sm:$0xff]
        %v9739 = vld [vmem:[#allocation3 + $0x120] sm:$0xff]
        %v9740 = vld [vmem:[#allocation3 + $0x128] sm:$0xff]
        %v9741 = vld [vmem:[#allocation3 + $0x130] sm:$0xff]
        %v9742 = vld [vmem:[#allocation3 + $0x138] sm:$0xff]
        %s9743 = sadd.s32 %s8845, 2
        %s9744 = smul.u32 %s9743, 12
        %s9745 = smul.addr %s9744, 4
        %s9746 = scalar_lea.vmem %s3, %s9745
        %v9747 = vld [vmem:[%s9746] sm:$0xf]
        %v9748 = vld [vmem:[%s9746 + $0x4] sm:$0xf]
        %v9749 = vld [vmem:[%s9746 + $0x8] sm:$0xf]
        %v9750 = vld [vmem:[%s9746 + $0xc] sm:$0xf]
        %v9751 = vld [vmem:[%s9746 + $0x10] sm:$0xf]
        %v9752 = vld [vmem:[%s9746 + $0x14] sm:$0xf]
        %v9753 = vld [vmem:[%s9746 + $0x18] sm:$0xf]
        %v9754 = vld [vmem:[%s9746 + $0x1c] sm:$0xf]
        %v9755 = vld [vmem:[%s9746 + $0x20] sm:$0xf]
        %v9756 = vld [vmem:[%s9746 + $0x24] sm:$0xf]
        %v9757 = vld [vmem:[%s9746 + $0x28] sm:$0xf]
        %v9758 = vld [vmem:[%s9746 + $0x2c] sm:$0xf]
        %v9771 = vunpack.c.l.b16 %v9747
        %v9772 = vunpack.c.l.b16 %v9748
        %v9773 = vunpack.c.l.b16 %v9749
        %v9774 = vunpack.c.l.b16 %v9750
        %v9775 = vunpack.c.l.b16 %v9751
        %v9776 = vunpack.c.l.b16 %v9752
        %v9777 = vunpack.c.l.b16 %v9753
        %v9778 = vunpack.c.l.b16 %v9754
        %v9779 = vunpack.c.l.b16 %v9755
        %v9780 = vunpack.c.l.b16 %v9756
        %v9781 = vunpack.c.l.b16 %v9757
        %v9782 = vunpack.c.l.b16 %v9758
        %v9783 = vpack.c.b16 %v9772, %v9771
        %v9784 = vpack.c.b16 %v9774, %v9773
        %v9785 = vpack.c.b16 %v9776, %v9775
        %v9786 = vpack.c.b16 %v9778, %v9777
        %v9787 = vpack.c.b16 %v9780, %v9779
        %v9788 = vpack.c.b16 %v9782, %v9781
        %v9796 = vsel %vm454, %v9707, 0
        %v9799 = vsel %vm454, %v9708, 0
        %v9802 = vsel %vm454, %v9709, 0
        %v9805 = vsel %vm454, %v9710, 0
        %v9808 = vsel %vm454, %v9711, 0
        %v9811 = vsel %vm454, %v9712, 0
        %v9814 = vsel %vm454, %v9713, 0
        %v9817 = vsel %vm454, %v9714, 0
        %v9820 = vsel %vm454, %v9715, 0
        %v9823 = vsel %vm454, %v9716, 0
        %v9826 = vsel %vm454, %v9717, 0
        %v9829 = vsel %vm454, %v9718, 0
        %v9832 = vsel %vm454, %v9719, 0
        %v9835 = vsel %vm454, %v9720, 0
        %v9838 = vsel %vm454, %v9721, 0
        %v9841 = vsel %vm454, %v9722, 0
        %v9844 = vsel %vm454, %v9723, 0
        %v9847 = vsel %vm454, %v9724, 0
        %v9850 = vsel %vm454, %v9725, 0
        %v9853 = vsel %vm454, %v9726, 0
        %v9856 = vsel %vm454, %v9727, 0
        %v9859 = vsel %vm454, %v9728, 0
        %v9862 = vsel %vm454, %v9729, 0
        %v9865 = vsel %vm454, %v9730, 0
        %v9868 = vsel %vm454, %v9731, 0
        %v9871 = vsel %vm454, %v9732, 0
        %v9874 = vsel %vm454, %v9733, 0
        %v9877 = vsel %vm454, %v9734, 0
        %v9880 = vsel %vm454, %v9735, 0
        %v9883 = vsel %vm454, %v9736, 0
        %v9886 = vsel %vm454, %v9737, 0
        %v9889 = vsel %vm454, %v9738, 0
        %v9892 = vsel %vm454, %v9739, 0
        %v9895 = vsel %vm454, %v9740, 0
        %v9898 = vsel %vm454, %v9741, 0
        %v9901 = vsel %vm454, %v9742, 0
        %9903 = vmatprep.subr.bf16.mxu0 0
        %9904 = vmatpush1.bf16.msra.mxu0 %v9783
        %9905 = vmatprep.subr.bf16.mxu0 0
        %9906 = vmatpush1.bf16.msra.mxu0 %v9784
        %9907 = vmatprep.subr.bf16.mxu0 0
        %9908 = vmatpush1.bf16.msra.mxu0 %v9785
        %9909 = vmatprep.subr.bf16.mxu0 0
        %9910 = vmatpush1.bf16.msra.mxu0 %v9786
        %9911 = vmatprep.subr.bf16.mxu0 0
        %9912 = vmatpush1.bf16.msra.mxu0 %v9787
        %9913 = vmatprep.subr.bf16.mxu0 0
        %9914 = vmatpush1.bf16.msra.mxu0 %v9788
        %9915 = vmatprep.subr.bf16.mxu0 0
        %9916 = vmatpush1.bf16.msra.mxu0 0
        %9917 = vmatprep.subr.bf16.mxu0 0
        %9918 = vmatpush1.bf16.msra.mxu0 0
        %9919 = vmatprep.subr.bf16.mxu0 0
        %9920 = vmatpush1.bf16.msra.mxu0 0
        %9921 = vmatprep.subr.bf16.mxu0 0
        %9922 = vmatpush1.bf16.msra.mxu0 0
        %9923 = vmatprep.subr.bf16.mxu0 0
        %9924 = vmatpush1.bf16.msra.mxu0 0
        %9925 = vmatprep.subr.bf16.mxu0 0
        %9926 = vmatpush1.bf16.msra.mxu0 0
        %9927 = vmatprep.subr.bf16.mxu0 0
        %9928 = vmatpush1.bf16.msra.mxu0 0
        %9929 = vmatprep.subr.bf16.mxu0 0
        %9930 = vmatpush1.bf16.msra.mxu0 0
        %9931 = vmatprep.subr.bf16.mxu0 0
        %9932 = vmatpush1.bf16.msra.mxu0 0
        %9933 = vmatprep.subr.bf16.mxu0 0
        %9934 = vmatpush1.bf16.msra.mxu0 0
        %9935 = vmatprep.mubr.bf16.mxu0 0
        %9936 = vmatmul.mubr.bf16.gmra.mrb[0].mxu0 %v9796
        %v9937 = vpop.f32.mrb[0].mxu0
        %v9938 = vadd.f32 0.0, %v9937
        %v9939 = vpop.f32.mrb[0].mxu0
        %v9940 = vpop.f32.mrb[0].mxu0
        %v9941 = vadd.f32 0.0, %v9940
        %v9942 = vpop.f32.mrb[0].mxu0
        %9943 = vmatprep.mubr.bf16.mxu0 0
        %9944 = vmatmul.mubr.bf16.gmra.mrb[0].mxu0 %v9799
        %v9945 = vpop.f32.mrb[0].mxu0
        %v9946 = vadd.f32 0.0, %v9945
        %v9947 = vpop.f32.mrb[0].mxu0
        %v9948 = vpop.f32.mrb[0].mxu0
        %v9949 = vadd.f32 0.0, %v9948
        %v9950 = vpop.f32.mrb[0].mxu0
        %9951 = vmatprep.mubr.bf16.mxu0 0
        %9952 = vmatmul.mubr.bf16.gmra.mrb[0].mxu0 %v9802
        %v9953 = vpop.f32.mrb[0].mxu0
        %v9954 = vadd.f32 0.0, %v9953
        %v9955 = vpop.f32.mrb[0].mxu0
        %v9956 = vpop.f32.mrb[0].mxu0
        %v9957 = vadd.f32 0.0, %v9956
        %v9958 = vpop.f32.mrb[0].mxu0
        %9959 = vmatprep.mubr.bf16.mxu0 0
        %9960 = vmatmul.mubr.bf16.gmra.mrb[0].mxu0 %v9805
        %v9961 = vpop.f32.mrb[0].mxu0
        %v9962 = vadd.f32 0.0, %v9961
        %v9963 = vpop.f32.mrb[0].mxu0
        %v9964 = vpop.f32.mrb[0].mxu0
        %v9965 = vadd.f32 0.0, %v9964
        %v9966 = vpop.f32.mrb[0].mxu0
        %9967 = vmatprep.mubr.bf16.mxu0 0
        %9968 = vmatmul.mubr.bf16.gmra.mrb[0].mxu0 %v9808
        %v9969 = vpop.f32.mrb[0].mxu0
        %v9970 = vadd.f32 0.0, %v9969
        %v9971 = vpop.f32.mrb[0].mxu0
        %v9972 = vpop.f32.mrb[0].mxu0
        %v9973 = vadd.f32 0.0, %v9972
        %v9974 = vpop.f32.mrb[0].mxu0
        %9975 = vmatprep.mubr.bf16.mxu0 0
        %9976 = vmatmul.mubr.bf16.gmra.mrb[0].mxu0 %v9811
        %v9977 = vpop.f32.mrb[0].mxu0
        %v9978 = vadd.f32 0.0, %v9977
        %v9979 = vpop.f32.mrb[0].mxu0
        %v9980 = vpop.f32.mrb[0].mxu0
        %v9981 = vadd.f32 0.0, %v9980
        %v9982 = vpop.f32.mrb[0].mxu0
        %9983 = vmatprep.mubr.bf16.mxu0 0
        %9984 = vmatmul.mubr.bf16.gmra.mrb[0].mxu0 %v9814
        %v9985 = vpop.f32.mrb[0].mxu0
        %v9986 = vadd.f32 0.0, %v9985
        %v9987 = vpop.f32.mrb[0].mxu0
        %v9988 = vpop.f32.mrb[0].mxu0
        %v9989 = vadd.f32 0.0, %v9988
        %v9990 = vpop.f32.mrb[0].mxu0
        %9991 = vmatprep.mubr.bf16.mxu0 0
        %9992 = vmatmul.mubr.bf16.gmra.mrb[0].mxu0 %v9817
        %v9993 = vpop.f32.mrb[0].mxu0
        %v9994 = vadd.f32 0.0, %v9993
        %v9995 = vpop.f32.mrb[0].mxu0
        %v9996 = vpop.f32.mrb[0].mxu0
        %v9997 = vadd.f32 0.0, %v9996
        %v9998 = vpop.f32.mrb[0].mxu0
        %9999 = vmatprep.mubr.bf16.mxu0 0
        %10000 = vmatmul.mubr.bf16.gmra.mrb[0].mxu0 %v9820
        %v10001 = vpop.f32.mrb[0].mxu0
        %v10002 = vadd.f32 0.0, %v10001
        %v10003 = vpop.f32.mrb[0].mxu0
        %v10004 = vpop.f32.mrb[0].mxu0
        %v10005 = vadd.f32 0.0, %v10004
        %v10006 = vpop.f32.mrb[0].mxu0
        %10007 = vmatprep.mubr.bf16.mxu0 0
        %10008 = vmatmul.mubr.bf16.gmra.mrb[0].mxu0 %v9823
        %v10009 = vpop.f32.mrb[0].mxu0
        %v10010 = vadd.f32 0.0, %v10009
        %v10011 = vpop.f32.mrb[0].mxu0
        %v10012 = vpop.f32.mrb[0].mxu0
        %v10013 = vadd.f32 0.0, %v10012
        %v10014 = vpop.f32.mrb[0].mxu0
        %10015 = vmatprep.mubr.bf16.mxu0 0
        %10016 = vmatmul.mubr.bf16.gmra.mrb[0].mxu0 %v9826
        %v10017 = vpop.f32.mrb[0].mxu0
        %v10018 = vadd.f32 0.0, %v10017
        %v10019 = vpop.f32.mrb[0].mxu0
        %v10020 = vpop.f32.mrb[0].mxu0
        %v10021 = vadd.f32 0.0, %v10020
        %v10022 = vpop.f32.mrb[0].mxu0
        %10023 = vmatprep.mubr.bf16.mxu0 0
        %10024 = vmatmul.mubr.bf16.gmra.mrb[0].mxu0 %v9829
        %v10025 = vpop.f32.mrb[0].mxu0
        %v10026 = vadd.f32 0.0, %v10025
        %v10027 = vpop.f32.mrb[0].mxu0
        %v10028 = vpop.f32.mrb[0].mxu0
        %v10029 = vadd.f32 0.0, %v10028
        %v10030 = vpop.f32.mrb[0].mxu0
        %10031 = vmatprep.mubr.bf16.mxu0 0
        %10032 = vmatmul.mubr.bf16.gmra.mrb[0].mxu0 %v9832
        %v10033 = vpop.f32.mrb[0].mxu0
        %v10034 = vadd.f32 0.0, %v10033
        %v10035 = vpop.f32.mrb[0].mxu0
        %v10036 = vpop.f32.mrb[0].mxu0
        %v10037 = vadd.f32 0.0, %v10036
        %v10038 = vpop.f32.mrb[0].mxu0
        %10039 = vmatprep.mubr.bf16.mxu0 0
        %10040 = vmatmul.mubr.bf16.gmra.mrb[0].mxu0 %v9835
        %v10041 = vpop.f32.mrb[0].mxu0
        %v10042 = vadd.f32 0.0, %v10041
        %v10043 = vpop.f32.mrb[0].mxu0
        %v10044 = vpop.f32.mrb[0].mxu0
        %v10045 = vadd.f32 0.0, %v10044
        %v10046 = vpop.f32.mrb[0].mxu0
        %10047 = vmatprep.mubr.bf16.mxu0 0
        %10048 = vmatmul.mubr.bf16.gmra.mrb[0].mxu0 %v9838
        %v10049 = vpop.f32.mrb[0].mxu0
        %v10050 = vadd.f32 0.0, %v10049
        %v10051 = vpop.f32.mrb[0].mxu0
        %v10052 = vpop.f32.mrb[0].mxu0
        %v10053 = vadd.f32 0.0, %v10052
        %v10054 = vpop.f32.mrb[0].mxu0
        %10055 = vmatprep.mubr.bf16.mxu0 0
        %10056 = vmatmul.mubr.bf16.gmra.mrb[0].mxu0 %v9841
        %v10057 = vpop.f32.mrb[0].mxu0
        %v10058 = vadd.f32 0.0, %v10057
        %v10059 = vpop.f32.mrb[0].mxu0
        %v10060 = vpop.f32.mrb[0].mxu0
        %v10061 = vadd.f32 0.0, %v10060
        %v10062 = vpop.f32.mrb[0].mxu0
        %10063 = vmatprep.mubr.bf16.mxu0 0
        %10064 = vmatmul.mubr.bf16.gmra.mrb[0].mxu0 %v9844
        %v10065 = vpop.f32.mrb[0].mxu0
        %v10066 = vadd.f32 0.0, %v10065
        %v10067 = vpop.f32.mrb[0].mxu0
        %v10068 = vpop.f32.mrb[0].mxu0
        %v10069 = vadd.f32 0.0, %v10068
        %v10070 = vpop.f32.mrb[0].mxu0
        %10071 = vmatprep.mubr.bf16.mxu0 0
        %10072 = vmatmul.mubr.bf16.gmra.mrb[0].mxu0 %v9847
        %v10073 = vpop.f32.mrb[0].mxu0
        %v10074 = vadd.f32 0.0, %v10073
        %v10075 = vpop.f32.mrb[0].mxu0
        %v10076 = vpop.f32.mrb[0].mxu0
        %v10077 = vadd.f32 0.0, %v10076
        %v10078 = vpop.f32.mrb[0].mxu0
        %10079 = vmatprep.mubr.bf16.mxu0 0
        %10080 = vmatmul.mubr.bf16.gmra.mrb[0].mxu0 %v9850
        %v10081 = vpop.f32.mrb[0].mxu0
        %v10082 = vadd.f32 0.0, %v10081
        %v10083 = vpop.f32.mrb[0].mxu0
        %v10084 = vpop.f32.mrb[0].mxu0
        %v10085 = vadd.f32 0.0, %v10084
        %v10086 = vpop.f32.mrb[0].mxu0
        %10087 = vmatprep.mubr.bf16.mxu0 0
        %10088 = vmatmul.mubr.bf16.gmra.mrb[0].mxu0 %v9853
        %v10089 = vpop.f32.mrb[0].mxu0
        %v10090 = vadd.f32 0.0, %v10089
        %v10091 = vpop.f32.mrb[0].mxu0
        %v10092 = vpop.f32.mrb[0].mxu0
        %v10093 = vadd.f32 0.0, %v10092
        %v10094 = vpop.f32.mrb[0].mxu0
        %10095 = vmatprep.mubr.bf16.mxu0 0
        %10096 = vmatmul.mubr.bf16.gmra.mrb[0].mxu0 %v9856
        %v10097 = vpop.f32.mrb[0].mxu0
        %v10098 = vadd.f32 0.0, %v10097
        %v10099 = vpop.f32.mrb[0].mxu0
        %v10100 = vpop.f32.mrb[0].mxu0
        %v10101 = vadd.f32 0.0, %v10100
        %v10102 = vpop.f32.mrb[0].mxu0
        %10103 = vmatprep.mubr.bf16.mxu0 0
        %10104 = vmatmul.mubr.bf16.gmra.mrb[0].mxu0 %v9859
        %v10105 = vpop.f32.mrb[0].mxu0
        %v10106 = vadd.f32 0.0, %v10105
        %v10107 = vpop.f32.mrb[0].mxu0
        %v10108 = vpop.f32.mrb[0].mxu0
        %v10109 = vadd.f32 0.0, %v10108
        %v10110 = vpop.f32.mrb[0].mxu0
        %10111 = vmatprep.mubr.bf16.mxu0 0
        %10112 = vmatmul.mubr.bf16.gmra.mrb[0].mxu0 %v9862
        %v10113 = vpop.f32.mrb[0].mxu0
        %v10114 = vadd.f32 0.0, %v10113
        %v10115 = vpop.f32.mrb[0].mxu0
        %v10116 = vpop.f32.mrb[0].mxu0
        %v10117 = vadd.f32 0.0, %v10116
        %v10118 = vpop.f32.mrb[0].mxu0
        %10119 = vmatprep.mubr.bf16.mxu0 0
        %10120 = vmatmul.mubr.bf16.gmra.mrb[0].mxu0 %v9865
        %v10121 = vpop.f32.mrb[0].mxu0
        %v10122 = vadd.f32 0.0, %v10121
        %v10123 = vpop.f32.mrb[0].mxu0
        %v10124 = vpop.f32.mrb[0].mxu0
        %v10125 = vadd.f32 0.0, %v10124
        %v10126 = vpop.f32.mrb[0].mxu0
        %10127 = vmatprep.mubr.bf16.mxu0 0
        %10128 = vmatmul.mubr.bf16.gmra.mrb[0].mxu0 %v9868
        %v10129 = vpop.f32.mrb[0].mxu0
        %v10130 = vadd.f32 0.0, %v10129
        %v10131 = vpop.f32.mrb[0].mxu0
        %v10132 = vpop.f32.mrb[0].mxu0
        %v10133 = vadd.f32 0.0, %v10132
        %v10134 = vpop.f32.mrb[0].mxu0
        %10135 = vmatprep.mubr.bf16.mxu0 0
        %10136 = vmatmul.mubr.bf16.gmra.mrb[0].mxu0 %v9871
        %v10137 = vpop.f32.mrb[0].mxu0
        %v10138 = vadd.f32 0.0, %v10137
        %v10139 = vpop.f32.mrb[0].mxu0
        %v10140 = vpop.f32.mrb[0].mxu0
        %v10141 = vadd.f32 0.0, %v10140
        %v10142 = vpop.f32.mrb[0].mxu0
        %10143 = vmatprep.mubr.bf16.mxu0 0
        %10144 = vmatmul.mubr.bf16.gmra.mrb[0].mxu0 %v9874
        %v10145 = vpop.f32.mrb[0].mxu0
        %v10146 = vadd.f32 0.0, %v10145
        %v10147 = vpop.f32.mrb[0].mxu0
        %v10148 = vpop.f32.mrb[0].mxu0
        %v10149 = vadd.f32 0.0, %v10148
        %v10150 = vpop.f32.mrb[0].mxu0
        %10151 = vmatprep.mubr.bf16.mxu0 0
        %10152 = vmatmul.mubr.bf16.gmra.mrb[0].mxu0 %v9877
        %v10153 = vpop.f32.mrb[0].mxu0
        %v10154 = vadd.f32 0.0, %v10153
        %v10155 = vpop.f32.mrb[0].mxu0
        %v10156 = vpop.f32.mrb[0].mxu0
        %v10157 = vadd.f32 0.0, %v10156
        %v10158 = vpop.f32.mrb[0].mxu0
        %10159 = vmatprep.mubr.bf16.mxu0 0
        %10160 = vmatmul.mubr.bf16.gmra.mrb[0].mxu0 %v9880
        %v10161 = vpop.f32.mrb[0].mxu0
        %v10162 = vadd.f32 0.0, %v10161
        %v10163 = vpop.f32.mrb[0].mxu0
        %v10164 = vpop.f32.mrb[0].mxu0
        %v10165 = vadd.f32 0.0, %v10164
        %v10166 = vpop.f32.mrb[0].mxu0
        %10167 = vmatprep.mubr.bf16.mxu0 0
        %10168 = vmatmul.mubr.bf16.gmra.mrb[0].mxu0 %v9883
        %v10169 = vpop.f32.mrb[0].mxu0
        %v10170 = vadd.f32 0.0, %v10169
        %v10171 = vpop.f32.mrb[0].mxu0
        %v10172 = vpop.f32.mrb[0].mxu0
        %v10173 = vadd.f32 0.0, %v10172
        %v10174 = vpop.f32.mrb[0].mxu0
        %10175 = vmatprep.mubr.bf16.mxu0 0
        %10176 = vmatmul.mubr.bf16.gmra.mrb[0].mxu0 %v9886
        %v10177 = vpop.f32.mrb[0].mxu0
        %v10178 = vadd.f32 0.0, %v10177
        %v10179 = vpop.f32.mrb[0].mxu0
        %v10180 = vpop.f32.mrb[0].mxu0
        %v10181 = vadd.f32 0.0, %v10180
        %v10182 = vpop.f32.mrb[0].mxu0
        %10183 = vmatprep.mubr.bf16.mxu0 0
        %10184 = vmatmul.mubr.bf16.gmra.mrb[0].mxu0 %v9889
        %v10185 = vpop.f32.mrb[0].mxu0
        %v10186 = vadd.f32 0.0, %v10185
        %v10187 = vpop.f32.mrb[0].mxu0
        %v10188 = vpop.f32.mrb[0].mxu0
        %v10189 = vadd.f32 0.0, %v10188
        %v10190 = vpop.f32.mrb[0].mxu0
        %10191 = vmatprep.mubr.bf16.mxu0 0
        %10192 = vmatmul.mubr.bf16.gmra.mrb[0].mxu0 %v9892
        %v10193 = vpop.f32.mrb[0].mxu0
        %v10194 = vadd.f32 0.0, %v10193
        %v10195 = vpop.f32.mrb[0].mxu0
        %v10196 = vpop.f32.mrb[0].mxu0
        %v10197 = vadd.f32 0.0, %v10196
        %v10198 = vpop.f32.mrb[0].mxu0
        %10199 = vmatprep.mubr.bf16.mxu0 0
        %10200 = vmatmul.mubr.bf16.gmra.mrb[0].mxu0 %v9895
        %v10201 = vpop.f32.mrb[0].mxu0
        %v10202 = vadd.f32 0.0, %v10201
        %v10203 = vpop.f32.mrb[0].mxu0
        %v10204 = vpop.f32.mrb[0].mxu0
        %v10205 = vadd.f32 0.0, %v10204
        %v10206 = vpop.f32.mrb[0].mxu0
        %10207 = vmatprep.mubr.bf16.mxu0 0
        %10208 = vmatmul.mubr.bf16.gmra.mrb[0].mxu0 %v9898
        %v10209 = vpop.f32.mrb[0].mxu0
        %v10210 = vadd.f32 0.0, %v10209
        %v10211 = vpop.f32.mrb[0].mxu0
        %v10212 = vpop.f32.mrb[0].mxu0
        %v10213 = vadd.f32 0.0, %v10212
        %v10214 = vpop.f32.mrb[0].mxu0
        %10215 = vmatprep.mubr.bf16.mxu0 0
        %10216 = vmatmul.mubr.bf16.gmra.mrb[0].mxu0 %v9901
        %v10217 = vpop.f32.mrb[0].mxu0
        %v10218 = vadd.f32 0.0, %v10217
        %v10219 = vpop.f32.mrb[0].mxu0
        %v10220 = vpop.f32.mrb[0].mxu0
        %v10221 = vadd.f32 0.0, %v10220
        %v10222 = vpop.f32.mrb[0].mxu0
        %10223 = vdwg.mxu0
        %v10224 = vadd.f32 %v9421, %v9938
        %v10225 = vadd.f32 %v9424, %v9941
        %v10226 = vadd.f32 %v9429, %v9946
        %v10227 = vadd.f32 %v9432, %v9949
        %v10228 = vadd.f32 %v9437, %v9954
        %v10229 = vadd.f32 %v9440, %v9957
        %v10230 = vadd.f32 %v9445, %v9962
        %v10231 = vadd.f32 %v9448, %v9965
        %v10232 = vadd.f32 %v9453, %v9970
        %v10233 = vadd.f32 %v9456, %v9973
        %v10234 = vadd.f32 %v9461, %v9978
        %v10235 = vadd.f32 %v9464, %v9981
        %v10236 = vadd.f32 %v9469, %v9986
        %v10237 = vadd.f32 %v9472, %v9989
        %v10238 = vadd.f32 %v9477, %v9994
        %v10239 = vadd.f32 %v9480, %v9997
        %v10240 = vadd.f32 %v9485, %v10002
        %v10241 = vadd.f32 %v9488, %v10005
        %v10242 = vadd.f32 %v9493, %v10010
        %v10243 = vadd.f32 %v9496, %v10013
        %v10244 = vadd.f32 %v9501, %v10018
        %v10245 = vadd.f32 %v9504, %v10021
        %v10246 = vadd.f32 %v9509, %v10026
        %v10247 = vadd.f32 %v9512, %v10029
        %v10248 = vadd.f32 %v9517, %v10034
        %v10249 = vadd.f32 %v9520, %v10037
        %v10250 = vadd.f32 %v9525, %v10042
        %v10251 = vadd.f32 %v9528, %v10045
        %v10252 = vadd.f32 %v9533, %v10050
        %v10253 = vadd.f32 %v9536, %v10053
        %v10254 = vadd.f32 %v9541, %v10058
        %v10255 = vadd.f32 %v9544, %v10061
        %v10256 = vadd.f32 %v9549, %v10066
        %v10257 = vadd.f32 %v9552, %v10069
        %v10258 = vadd.f32 %v9557, %v10074
        %v10259 = vadd.f32 %v9560, %v10077
        %v10260 = vadd.f32 %v9565, %v10082
        %v10261 = vadd.f32 %v9568, %v10085
        %v10262 = vadd.f32 %v9573, %v10090
        %v10263 = vadd.f32 %v9576, %v10093
        %v10264 = vadd.f32 %v9581, %v10098
        %v10265 = vadd.f32 %v9584, %v10101
        %v10266 = vadd.f32 %v9589, %v10106
        %v10267 = vadd.f32 %v9592, %v10109
        %v10268 = vadd.f32 %v9597, %v10114
        %v10269 = vadd.f32 %v9600, %v10117
        %v10270 = vadd.f32 %v9605, %v10122
        %v10271 = vadd.f32 %v9608, %v10125
        %v10272 = vadd.f32 %v9613, %v10130
        %v10273 = vadd.f32 %v9616, %v10133
        %v10274 = vadd.f32 %v9621, %v10138
        %v10275 = vadd.f32 %v9624, %v10141
        %v10276 = vadd.f32 %v9629, %v10146
        %v10277 = vadd.f32 %v9632, %v10149
        %v10278 = vadd.f32 %v9637, %v10154
        %v10279 = vadd.f32 %v9640, %v10157
        %v10280 = vadd.f32 %v9645, %v10162
        %v10281 = vadd.f32 %v9648, %v10165
        %v10282 = vadd.f32 %v9653, %v10170
        %v10283 = vadd.f32 %v9656, %v10173
        %v10284 = vadd.f32 %v9661, %v10178
        %v10285 = vadd.f32 %v9664, %v10181
        %v10286 = vadd.f32 %v9669, %v10186
        %v10287 = vadd.f32 %v9672, %v10189
        %v10288 = vadd.f32 %v9677, %v10194
        %v10289 = vadd.f32 %v9680, %v10197
        %v10290 = vadd.f32 %v9685, %v10202
        %v10291 = vadd.f32 %v9688, %v10205
        %v10292 = vadd.f32 %v9693, %v10210
        %v10293 = vadd.f32 %v9696, %v10213
        %v10294 = vadd.f32 %v9701, %v10218
        %v10295 = vadd.f32 %v9704, %v10221
        %s10296 = scalar_lea.vmem %s4, %s8082
        %v10297 = vld [vmem:[%s10296] sm:$0x1]
        %v10299 = vlaneseq
        %v10300 = vshrl.u32 %v10299, 7
        %v10301 = vsub.s32 0, %v10300
        %v10302 = vrot.slane %v10297, %v10301
        %v10304 = vadd.f32 %v10224, %v10302
        %v10305 = vadd.f32 %v10225, %v10302
        %v10306 = vadd.f32 %v10226, %v10302
        %v10307 = vadd.f32 %v10227, %v10302
        %v10308 = vadd.f32 %v10228, %v10302
        %v10309 = vadd.f32 %v10229, %v10302
        %v10310 = vadd.f32 %v10230, %v10302
        %v10311 = vadd.f32 %v10231, %v10302
        %v10312 = vadd.f32 %v10232, %v10302
        %v10313 = vadd.f32 %v10233, %v10302
        %v10314 = vadd.f32 %v10234, %v10302
        %v10315 = vadd.f32 %v10235, %v10302
        %v10316 = vadd.f32 %v10236, %v10302
        %v10317 = vadd.f32 %v10237, %v10302
        %v10318 = vadd.f32 %v10238, %v10302
        %v10319 = vadd.f32 %v10239, %v10302
        %v10320 = vadd.f32 %v10240, %v10302
        %v10321 = vadd.f32 %v10241, %v10302
        %v10322 = vadd.f32 %v10242, %v10302
        %v10323 = vadd.f32 %v10243, %v10302
        %v10324 = vadd.f32 %v10244, %v10302
        %v10325 = vadd.f32 %v10245, %v10302
        %v10326 = vadd.f32 %v10246, %v10302
        %v10327 = vadd.f32 %v10247, %v10302
        %v10328 = vadd.f32 %v10248, %v10302
        %v10329 = vadd.f32 %v10249, %v10302
        %v10330 = vadd.f32 %v10250, %v10302
        %v10331 = vadd.f32 %v10251, %v10302
        %v10332 = vadd.f32 %v10252, %v10302
        %v10333 = vadd.f32 %v10253, %v10302
        %v10334 = vadd.f32 %v10254, %v10302
        %v10335 = vadd.f32 %v10255, %v10302
        %v10336 = vadd.f32 %v10256, %v10302
        %v10337 = vadd.f32 %v10257, %v10302
        %v10338 = vadd.f32 %v10258, %v10302
        %v10339 = vadd.f32 %v10259, %v10302
        %v10340 = vadd.f32 %v10260, %v10302
        %v10341 = vadd.f32 %v10261, %v10302
        %v10342 = vadd.f32 %v10262, %v10302
        %v10343 = vadd.f32 %v10263, %v10302
        %v10344 = vadd.f32 %v10264, %v10302
        %v10345 = vadd.f32 %v10265, %v10302
        %v10346 = vadd.f32 %v10266, %v10302
        %v10347 = vadd.f32 %v10267, %v10302
        %v10348 = vadd.f32 %v10268, %v10302
        %v10349 = vadd.f32 %v10269, %v10302
        %v10350 = vadd.f32 %v10270, %v10302
        %v10351 = vadd.f32 %v10271, %v10302
        %v10352 = vadd.f32 %v10272, %v10302
        %v10353 = vadd.f32 %v10273, %v10302
        %v10354 = vadd.f32 %v10274, %v10302
        %v10355 = vadd.f32 %v10275, %v10302
        %v10356 = vadd.f32 %v10276, %v10302
        %v10357 = vadd.f32 %v10277, %v10302
        %v10358 = vadd.f32 %v10278, %v10302
        %v10359 = vadd.f32 %v10279, %v10302
        %v10360 = vadd.f32 %v10280, %v10302
        %v10361 = vadd.f32 %v10281, %v10302
        %v10362 = vadd.f32 %v10282, %v10302
        %v10363 = vadd.f32 %v10283, %v10302
        %v10364 = vadd.f32 %v10284, %v10302
        %v10365 = vadd.f32 %v10285, %v10302
        %v10366 = vadd.f32 %v10286, %v10302
        %v10367 = vadd.f32 %v10287, %v10302
        %v10368 = vadd.f32 %v10288, %v10302
        %v10369 = vadd.f32 %v10289, %v10302
        %v10370 = vadd.f32 %v10290, %v10302
        %v10371 = vadd.f32 %v10291, %v10302
        %v10372 = vadd.f32 %v10292, %v10302
        %v10373 = vadd.f32 %v10293, %v10302
        %v10374 = vadd.f32 %v10294, %v10302
        %v10375 = vadd.f32 %v10295, %v10302
        %v10376 = vmax.f32 %v10304, 0.0
        %v10377 = vmax.f32 %v10305, 0.0
        %v10378 = vmax.f32 %v10306, 0.0
        %v10379 = vmax.f32 %v10307, 0.0
        %v10380 = vmax.f32 %v10308, 0.0
        %v10381 = vmax.f32 %v10309, 0.0
        %v10382 = vmax.f32 %v10310, 0.0
        %v10383 = vmax.f32 %v10311, 0.0
        %v10384 = vmax.f32 %v10312, 0.0
        %v10385 = vmax.f32 %v10313, 0.0
        %v10386 = vmax.f32 %v10314, 0.0
        %v10387 = vmax.f32 %v10315, 0.0
        %v10388 = vmax.f32 %v10316, 0.0
        %v10389 = vmax.f32 %v10317, 0.0
        %v10390 = vmax.f32 %v10318, 0.0
        %v10391 = vmax.f32 %v10319, 0.0
        %v10392 = vmax.f32 %v10320, 0.0
        %v10393 = vmax.f32 %v10321, 0.0
        %v10394 = vmax.f32 %v10322, 0.0
        %v10395 = vmax.f32 %v10323, 0.0
        %v10396 = vmax.f32 %v10324, 0.0
        %v10397 = vmax.f32 %v10325, 0.0
        %v10398 = vmax.f32 %v10326, 0.0
        %v10399 = vmax.f32 %v10327, 0.0
        %v10400 = vmax.f32 %v10328, 0.0
        %v10401 = vmax.f32 %v10329, 0.0
        %v10402 = vmax.f32 %v10330, 0.0
        %v10403 = vmax.f32 %v10331, 0.0
        %v10404 = vmax.f32 %v10332, 0.0
        %v10405 = vmax.f32 %v10333, 0.0
        %v10406 = vmax.f32 %v10334, 0.0
        %v10407 = vmax.f32 %v10335, 0.0
        %v10408 = vmax.f32 %v10336, 0.0
        %v10409 = vmax.f32 %v10337, 0.0
        %v10410 = vmax.f32 %v10338, 0.0
        %v10411 = vmax.f32 %v10339, 0.0
        %v10412 = vmax.f32 %v10340, 0.0
        %v10413 = vmax.f32 %v10341, 0.0
        %v10414 = vmax.f32 %v10342, 0.0
        %v10415 = vmax.f32 %v10343, 0.0
        %v10416 = vmax.f32 %v10344, 0.0
        %v10417 = vmax.f32 %v10345, 0.0
        %v10418 = vmax.f32 %v10346, 0.0
        %v10419 = vmax.f32 %v10347, 0.0
        %v10420 = vmax.f32 %v10348, 0.0
        %v10421 = vmax.f32 %v10349, 0.0
        %v10422 = vmax.f32 %v10350, 0.0
        %v10423 = vmax.f32 %v10351, 0.0
        %v10424 = vmax.f32 %v10352, 0.0
        %v10425 = vmax.f32 %v10353, 0.0
        %v10426 = vmax.f32 %v10354, 0.0
        %v10427 = vmax.f32 %v10355, 0.0
        %v10428 = vmax.f32 %v10356, 0.0
        %v10429 = vmax.f32 %v10357, 0.0
        %v10430 = vmax.f32 %v10358, 0.0
        %v10431 = vmax.f32 %v10359, 0.0
        %v10432 = vmax.f32 %v10360, 0.0
        %v10433 = vmax.f32 %v10361, 0.0
        %v10434 = vmax.f32 %v10362, 0.0
        %v10435 = vmax.f32 %v10363, 0.0
        %v10436 = vmax.f32 %v10364, 0.0
        %v10437 = vmax.f32 %v10365, 0.0
        %v10438 = vmax.f32 %v10366, 0.0
        %v10439 = vmax.f32 %v10367, 0.0
        %v10440 = vmax.f32 %v10368, 0.0
        %v10441 = vmax.f32 %v10369, 0.0
        %v10442 = vmax.f32 %v10370, 0.0
        %v10443 = vmax.f32 %v10371, 0.0
        %v10444 = vmax.f32 %v10372, 0.0
        %v10445 = vmax.f32 %v10373, 0.0
        %v10446 = vmax.f32 %v10374, 0.0
        %v10447 = vmax.f32 %v10375, 0.0
        %v10448 = vsel %vm7865, %v10376, 0.0
        %v10449 = vsel %vm7866, %v10377, 0.0
        %v10450 = vsel %vm7867, %v10378, 0.0
        %v10451 = vsel %vm7868, %v10379, 0.0
        %v10452 = vsel %vm7869, %v10380, 0.0
        %v10453 = vsel %vm7870, %v10381, 0.0
        %v10454 = vsel %vm7871, %v10382, 0.0
        %v10455 = vsel %vm7872, %v10383, 0.0
        %v10456 = vsel %vm7873, %v10384, 0.0
        %v10457 = vsel %vm7874, %v10385, 0.0
        %v10458 = vsel %vm7875, %v10386, 0.0
        %v10459 = vsel %vm7876, %v10387, 0.0
        %v10460 = vsel %vm7877, %v10388, 0.0
        %v10461 = vsel %vm7878, %v10389, 0.0
        %v10462 = vsel %vm7879, %v10390, 0.0
        %v10463 = vsel %vm7880, %v10391, 0.0
        %v10464 = vsel %vm7881, %v10392, 0.0
        %v10465 = vsel %vm7882, %v10393, 0.0
        %v10466 = vsel %vm7883, %v10394, 0.0
        %v10467 = vsel %vm7884, %v10395, 0.0
        %v10468 = vsel %vm7885, %v10396, 0.0
        %v10469 = vsel %vm7886, %v10397, 0.0
        %v10470 = vsel %vm7887, %v10398, 0.0
        %v10471 = vsel %vm7888, %v10399, 0.0
        %v10472 = vsel %vm7889, %v10400, 0.0
        %v10473 = vsel %vm7890, %v10401, 0.0
        %v10474 = vsel %vm7891, %v10402, 0.0
        %v10475 = vsel %vm7892, %v10403, 0.0
        %v10476 = vsel %vm7893, %v10404, 0.0
        %v10477 = vsel %vm7894, %v10405, 0.0
        %v10478 = vsel %vm7895, %v10406, 0.0
        %v10479 = vsel %vm7896, %v10407, 0.0
        %v10480 = vsel %vm7897, %v10408, 0.0
        %v10481 = vsel %vm7898, %v10409, 0.0
        %v10482 = vsel %vm7899, %v10410, 0.0
        %v10483 = vsel %vm7900, %v10411, 0.0
        %v10484 = vsel %vm7901, %v10412, 0.0
        %v10485 = vsel %vm7902, %v10413, 0.0
        %v10486 = vsel %vm7903, %v10414, 0.0
        %v10487 = vsel %vm7904, %v10415, 0.0
        %v10488 = vsel %vm7905, %v10416, 0.0
        %v10489 = vsel %vm7906, %v10417, 0.0
        %v10490 = vsel %vm7907, %v10418, 0.0
        %v10491 = vsel %vm7908, %v10419, 0.0
        %v10492 = vsel %vm7909, %v10420, 0.0
        %v10493 = vsel %vm7910, %v10421, 0.0
        %v10494 = vsel %vm7911, %v10422, 0.0
        %v10495 = vsel %vm7912, %v10423, 0.0
        %v10496 = vsel %vm7913, %v10424, 0.0
        %v10497 = vsel %vm7914, %v10425, 0.0
        %v10498 = vsel %vm7915, %v10426, 0.0
        %v10499 = vsel %vm7916, %v10427, 0.0
        %v10500 = vsel %vm7917, %v10428, 0.0
        %v10501 = vsel %vm7918, %v10429, 0.0
        %v10502 = vsel %vm7919, %v10430, 0.0
        %v10503 = vsel %vm7920, %v10431, 0.0
        %v10504 = vsel %vm7921, %v10432, 0.0
        %v10505 = vsel %vm7922, %v10433, 0.0
        %v10506 = vsel %vm7923, %v10434, 0.0
        %v10507 = vsel %vm7924, %v10435, 0.0
        %v10508 = vsel %vm7925, %v10436, 0.0
        %v10509 = vsel %vm7926, %v10437, 0.0
        %v10510 = vsel %vm7927, %v10438, 0.0
        %v10511 = vsel %vm7928, %v10439, 0.0
        %v10512 = vsel %vm7929, %v10440, 0.0
        %v10513 = vsel %vm7930, %v10441, 0.0
        %v10514 = vsel %vm7931, %v10442, 0.0
        %v10515 = vsel %vm7932, %v10443, 0.0
        %v10516 = vsel %vm7933, %v10444, 0.0
        %v10517 = vsel %vm7934, %v10445, 0.0
        %v10518 = vsel %vm7935, %v10446, 0.0
        %v10519 = vsel %vm7936, %v10447, 0.0
        %10520 = vst.msk [vmem:[#allocation2 + $0x8] sm:$0xff] %vm451, %v10448
        %10521 = vst.msk [vmem:[#allocation2 + $0x10] sm:$0xff] %vm451, %v10449
        %10522 = vst.msk [vmem:[#allocation2 + $0x18] sm:$0xff] %vm451, %v10450
        %10523 = vst.msk [vmem:[#allocation2 + $0x20] sm:$0xff] %vm451, %v10451
        %10524 = vst.msk [vmem:[#allocation2 + $0x28] sm:$0xff] %vm451, %v10452
        %10525 = vst.msk [vmem:[#allocation2 + $0x30] sm:$0xff] %vm451, %v10453
        %10526 = vst.msk [vmem:[#allocation2 + $0x38] sm:$0xff] %vm451, %v10454
        %10527 = vst.msk [vmem:[#allocation2 + $0x40] sm:$0xff] %vm451, %v10455
        %10528 = vst.msk [vmem:[#allocation2 + $0x48] sm:$0xff] %vm451, %v10456
        %10529 = vst.msk [vmem:[#allocation2 + $0x50] sm:$0xff] %vm451, %v10457
        %10530 = vst.msk [vmem:[#allocation2 + $0x58] sm:$0xff] %vm451, %v10458
        %10531 = vst.msk [vmem:[#allocation2 + $0x60] sm:$0xff] %vm451, %v10459
        %10532 = vst.msk [vmem:[#allocation2 + $0x68] sm:$0xff] %vm451, %v10460
        %10533 = vst.msk [vmem:[#allocation2 + $0x70] sm:$0xff] %vm451, %v10461
        %10534 = vst.msk [vmem:[#allocation2 + $0x78] sm:$0xff] %vm451, %v10462
        %10535 = vst.msk [vmem:[#allocation2 + $0x80] sm:$0xff] %vm451, %v10463
        %10536 = vst.msk [vmem:[#allocation2 + $0x88] sm:$0xff] %vm451, %v10464
        %10537 = vst.msk [vmem:[#allocation2 + $0x90] sm:$0xff] %vm451, %v10465
        %10538 = vst.msk [vmem:[#allocation2 + $0x98] sm:$0xff] %vm451, %v10466
        %10539 = vst.msk [vmem:[#allocation2 + $0xa0] sm:$0xff] %vm451, %v10467
        %10540 = vst.msk [vmem:[#allocation2 + $0xa8] sm:$0xff] %vm451, %v10468
        %10541 = vst.msk [vmem:[#allocation2 + $0xb0] sm:$0xff] %vm451, %v10469
        %10542 = vst.msk [vmem:[#allocation2 + $0xb8] sm:$0xff] %vm451, %v10470
        %10543 = vst.msk [vmem:[#allocation2 + $0xc0] sm:$0xff] %vm451, %v10471
        %10544 = vst.msk [vmem:[#allocation2 + $0xc8] sm:$0xff] %vm451, %v10472
        %10545 = vst.msk [vmem:[#allocation2 + $0xd0] sm:$0xff] %vm451, %v10473
        %10546 = vst.msk [vmem:[#allocation2 + $0xd8] sm:$0xff] %vm451, %v10474
        %10547 = vst.msk [vmem:[#allocation2 + $0xe0] sm:$0xff] %vm451, %v10475
        %10548 = vst.msk [vmem:[#allocation2 + $0xe8] sm:$0xff] %vm451, %v10476
        %10549 = vst.msk [vmem:[#allocation2 + $0xf0] sm:$0xff] %vm451, %v10477
        %10550 = vst.msk [vmem:[#allocation2 + $0xf8] sm:$0xff] %vm451, %v10478
        %10551 = vst.msk [vmem:[#allocation2 + $0x100] sm:$0xff] %vm451, %v10479
        %10552 = vst.msk [vmem:[#allocation2 + $0x108] sm:$0xff] %vm451, %v10480
        %10553 = vst.msk [vmem:[#allocation2 + $0x110] sm:$0xff] %vm451, %v10481
        %10554 = vst.msk [vmem:[#allocation2 + $0x118] sm:$0xff] %vm451, %v10482
        %10555 = vst.msk [vmem:[#allocation2 + $0x120] sm:$0xff] %vm451, %v10483
        %10556 = vst.msk [vmem:[#allocation2 + $0x128] sm:$0xff] %vm451, %v10484
        %10557 = vst.msk [vmem:[#allocation2 + $0x130] sm:$0xff] %vm451, %v10485
        %10558 = vst.msk [vmem:[#allocation2 + $0x138] sm:$0xff] %vm451, %v10486
        %10559 = vst.msk [vmem:[#allocation2 + $0x140] sm:$0xff] %vm451, %v10487
        %10560 = vst.msk [vmem:[#allocation2 + $0x148] sm:$0xff] %vm451, %v10488
        %10561 = vst.msk [vmem:[#allocation2 + $0x150] sm:$0xff] %vm451, %v10489
        %10562 = vst.msk [vmem:[#allocation2 + $0x158] sm:$0xff] %vm451, %v10490
        %10563 = vst.msk [vmem:[#allocation2 + $0x160] sm:$0xff] %vm451, %v10491
        %10564 = vst.msk [vmem:[#allocation2 + $0x168] sm:$0xff] %vm451, %v10492
        %10565 = vst.msk [vmem:[#allocation2 + $0x170] sm:$0xff] %vm451, %v10493
        %10566 = vst.msk [vmem:[#allocation2 + $0x178] sm:$0xff] %vm451, %v10494
        %10567 = vst.msk [vmem:[#allocation2 + $0x180] sm:$0xff] %vm451, %v10495
        %10568 = vst.msk [vmem:[#allocation2 + $0x188] sm:$0xff] %vm451, %v10496
        %10569 = vst.msk [vmem:[#allocation2 + $0x190] sm:$0xff] %vm451, %v10497
        %10570 = vst.msk [vmem:[#allocation2 + $0x198] sm:$0xff] %vm451, %v10498
        %10571 = vst.msk [vmem:[#allocation2 + $0x1a0] sm:$0xff] %vm451, %v10499
        %10572 = vst.msk [vmem:[#allocation2 + $0x1a8] sm:$0xff] %vm451, %v10500
        %10573 = vst.msk [vmem:[#allocation2 + $0x1b0] sm:$0xff] %vm451, %v10501
        %10574 = vst.msk [vmem:[#allocation2 + $0x1b8] sm:$0xff] %vm451, %v10502
        %10575 = vst.msk [vmem:[#allocation2 + $0x1c0] sm:$0xff] %vm451, %v10503
        %10576 = vst.msk [vmem:[#allocation2 + $0x1c8] sm:$0xff] %vm451, %v10504
        %10577 = vst.msk [vmem:[#allocation2 + $0x1d0] sm:$0xff] %vm451, %v10505
        %10578 = vst.msk [vmem:[#allocation2 + $0x1d8] sm:$0xff] %vm451, %v10506
        %10579 = vst.msk [vmem:[#allocation2 + $0x1e0] sm:$0xff] %vm451, %v10507
        %10580 = vst.msk [vmem:[#allocation2 + $0x1e8] sm:$0xff] %vm451, %v10508
        %10581 = vst.msk [vmem:[#allocation2 + $0x1f0] sm:$0xff] %vm451, %v10509
        %10582 = vst.msk [vmem:[#allocation2 + $0x1f8] sm:$0xff] %vm451, %v10510
        %10583 = vst.msk [vmem:[#allocation2 + $0x200] sm:$0xff] %vm451, %v10511
        %10584 = vst.msk [vmem:[#allocation2 + $0x208] sm:$0xff] %vm451, %v10512
        %10585 = vst.msk [vmem:[#allocation2 + $0x210] sm:$0xff] %vm451, %v10513
        %10586 = vst.msk [vmem:[#allocation2 + $0x218] sm:$0xff] %vm451, %v10514
        %10587 = vst.msk [vmem:[#allocation2 + $0x220] sm:$0xff] %vm451, %v10515
        %10588 = vst.msk [vmem:[#allocation2 + $0x228] sm:$0xff] %vm451, %v10516
        %10589 = vst.msk [vmem:[#allocation2 + $0x230] sm:$0xff] %vm451, %v10517
        %10590 = vst.msk [vmem:[#allocation2 + $0x238] sm:$0xff] %vm451, %v10518
        %10591 = vst.msk [vmem:[#allocation2 + $0x240] sm:$0xff] %vm451, %v10519
      $region57: #{tpu_custom_call.1} parent=51 // loop_footer
        %s8086 = sadd.s32 1, %s8082
      $region58: #{tpu_custom_call.1} parent=51 // loop_footer_branch
        %8081 = sbr.rel target = $region54
      $region59: #{tpu_custom_call.1} parent=51 // loop_exit
        _
      %v10592 = vld [vmem:[#allocation2 + $0x8] sm:$0xff]
      %v10593 = vld [vmem:[#allocation2 + $0x10] sm:$0xff]
      %v10594 = vld [vmem:[#allocation2 + $0x18] sm:$0xff]
      %v10595 = vld [vmem:[#allocation2 + $0x20] sm:$0xff]
      %v10596 = vld [vmem:[#allocation2 + $0x28] sm:$0xff]
      %v10597 = vld [vmem:[#allocation2 + $0x30] sm:$0xff]
      %v10598 = vld [vmem:[#allocation2 + $0x38] sm:$0xff]
      %v10599 = vld [vmem:[#allocation2 + $0x40] sm:$0xff]
      %v10600 = vld [vmem:[#allocation2 + $0x48] sm:$0xff]
      %v10601 = vld [vmem:[#allocation2 + $0x50] sm:$0xff]
      %v10602 = vld [vmem:[#allocation2 + $0x58] sm:$0xff]
      %v10603 = vld [vmem:[#allocation2 + $0x60] sm:$0xff]
      %v10604 = vld [vmem:[#allocation2 + $0x68] sm:$0xff]
      %v10605 = vld [vmem:[#allocation2 + $0x70] sm:$0xff]
      %v10606 = vld [vmem:[#allocation2 + $0x78] sm:$0xff]
      %v10607 = vld [vmem:[#allocation2 + $0x80] sm:$0xff]
      %v10608 = vld [vmem:[#allocation2 + $0x88] sm:$0xff]
      %v10609 = vld [vmem:[#allocation2 + $0x90] sm:$0xff]
      %v10610 = vld [vmem:[#allocation2 + $0x98] sm:$0xff]
      %v10611 = vld [vmem:[#allocation2 + $0xa0] sm:$0xff]
      %v10612 = vld [vmem:[#allocation2 + $0xa8] sm:$0xff]
      %v10613 = vld [vmem:[#allocation2 + $0xb0] sm:$0xff]
      %v10614 = vld [vmem:[#allocation2 + $0xb8] sm:$0xff]
      %v10615 = vld [vmem:[#allocation2 + $0xc0] sm:$0xff]
      %v10616 = vld [vmem:[#allocation2 + $0xc8] sm:$0xff]
      %v10617 = vld [vmem:[#allocation2 + $0xd0] sm:$0xff]
      %v10618 = vld [vmem:[#allocation2 + $0xd8] sm:$0xff]
      %v10619 = vld [vmem:[#allocation2 + $0xe0] sm:$0xff]
      %v10620 = vld [vmem:[#allocation2 + $0xe8] sm:$0xff]
      %v10621 = vld [vmem:[#allocation2 + $0xf0] sm:$0xff]
      %v10622 = vld [vmem:[#allocation2 + $0xf8] sm:$0xff]
      %v10623 = vld [vmem:[#allocation2 + $0x100] sm:$0xff]
      %v10624 = vld [vmem:[#allocation2 + $0x108] sm:$0xff]
      %v10625 = vld [vmem:[#allocation2 + $0x110] sm:$0xff]
      %v10626 = vld [vmem:[#allocation2 + $0x118] sm:$0xff]
      %v10627 = vld [vmem:[#allocation2 + $0x120] sm:$0xff]
      %v10628 = vld [vmem:[#allocation2 + $0x128] sm:$0xff]
      %v10629 = vld [vmem:[#allocation2 + $0x130] sm:$0xff]
      %v10630 = vld [vmem:[#allocation2 + $0x138] sm:$0xff]
      %v10631 = vld [vmem:[#allocation2 + $0x140] sm:$0xff]
      %v10632 = vld [vmem:[#allocation2 + $0x148] sm:$0xff]
      %v10633 = vld [vmem:[#allocation2 + $0x150] sm:$0xff]
      %v10634 = vld [vmem:[#allocation2 + $0x158] sm:$0xff]
      %v10635 = vld [vmem:[#allocation2 + $0x160] sm:$0xff]
      %v10636 = vld [vmem:[#allocation2 + $0x168] sm:$0xff]
      %v10637 = vld [vmem:[#allocation2 + $0x170] sm:$0xff]
      %v10638 = vld [vmem:[#allocation2 + $0x178] sm:$0xff]
      %v10639 = vld [vmem:[#allocation2 + $0x180] sm:$0xff]
      %v10640 = vld [vmem:[#allocation2 + $0x188] sm:$0xff]
      %v10641 = vld [vmem:[#allocation2 + $0x190] sm:$0xff]
      %v10642 = vld [vmem:[#allocation2 + $0x198] sm:$0xff]
      %v10643 = vld [vmem:[#allocation2 + $0x1a0] sm:$0xff]
      %v10644 = vld [vmem:[#allocation2 + $0x1a8] sm:$0xff]
      %v10645 = vld [vmem:[#allocation2 + $0x1b0] sm:$0xff]
      %v10646 = vld [vmem:[#allocation2 + $0x1b8] sm:$0xff]
      %v10647 = vld [vmem:[#allocation2 + $0x1c0] sm:$0xff]
      %v10648 = vld [vmem:[#allocation2 + $0x1c8] sm:$0xff]
      %v10649 = vld [vmem:[#allocation2 + $0x1d0] sm:$0xff]
      %v10650 = vld [vmem:[#allocation2 + $0x1d8] sm:$0xff]
      %v10651 = vld [vmem:[#allocation2 + $0x1e0] sm:$0xff]
      %v10652 = vld [vmem:[#allocation2 + $0x1e8] sm:$0xff]
      %v10653 = vld [vmem:[#allocation2 + $0x1f0] sm:$0xff]
      %v10654 = vld [vmem:[#allocation2 + $0x1f8] sm:$0xff]
      %v10655 = vld [vmem:[#allocation2 + $0x200] sm:$0xff]
      %v10656 = vld [vmem:[#allocation2 + $0x208] sm:$0xff]
      %v10657 = vld [vmem:[#allocation2 + $0x210] sm:$0xff]
      %v10658 = vld [vmem:[#allocation2 + $0x218] sm:$0xff]
      %v10659 = vld [vmem:[#allocation2 + $0x220] sm:$0xff]
      %v10660 = vld [vmem:[#allocation2 + $0x228] sm:$0xff]
      %v10661 = vld [vmem:[#allocation2 + $0x230] sm:$0xff]
      %v10662 = vld [vmem:[#allocation2 + $0x238] sm:$0xff]
      %v10663 = vld [vmem:[#allocation2 + $0x240] sm:$0xff]
      %v10664 = vld [vmem:[%s5] sm:$0xff]
      %v10665 = vld [vmem:[%s5 + $0x8] sm:$0xff]
      %v10666 = vld [vmem:[%s5 + $0x10] sm:$0xff]
      %v10667 = vld [vmem:[%s5 + $0x18] sm:$0xff]
      %v10668 = vld [vmem:[%s6] sm:$0x1]
      %v10670 = vlaneseq
      %v10671 = vshrl.u32 %v10670, 7
      %v10672 = vsub.s32 0, %v10671
      %v10673 = vrot.slane %v10668, %v10672
      %v10676 = vsel %vm451, %v10592, 0
      %v10679 = vsel %vm451, %v10593, 0
      %v10682 = vsel %vm451, %v10594, 0
      %v10685 = vsel %vm451, %v10595, 0
      %v10688 = vsel %vm451, %v10596, 0
      %v10691 = vsel %vm451, %v10597, 0
      %v10694 = vsel %vm451, %v10598, 0
      %v10697 = vsel %vm451, %v10599, 0
      %v10700 = vsel %vm451, %v10600, 0
      %v10703 = vsel %vm451, %v10601, 0
      %v10706 = vsel %vm451, %v10602, 0
      %v10709 = vsel %vm451, %v10603, 0
      %v10712 = vsel %vm451, %v10604, 0
      %v10715 = vsel %vm451, %v10605, 0
      %v10718 = vsel %vm451, %v10606, 0
      %v10721 = vsel %vm451, %v10607, 0
      %v10724 = vsel %vm451, %v10608, 0
      %v10727 = vsel %vm451, %v10609, 0
      %v10730 = vsel %vm451, %v10610, 0
      %v10733 = vsel %vm451, %v10611, 0
      %v10736 = vsel %vm451, %v10612, 0
      %v10739 = vsel %vm451, %v10613, 0
      %v10742 = vsel %vm451, %v10614, 0
      %v10745 = vsel %vm451, %v10615, 0
      %v10748 = vsel %vm451, %v10616, 0
      %v10751 = vsel %vm451, %v10617, 0
      %v10754 = vsel %vm451, %v10618, 0
      %v10757 = vsel %vm451, %v10619, 0
      %v10760 = vsel %vm451, %v10620, 0
      %v10763 = vsel %vm451, %v10621, 0
      %v10766 = vsel %vm451, %v10622, 0
      %v10769 = vsel %vm451, %v10623, 0
      %v10772 = vsel %vm451, %v10624, 0
      %v10775 = vsel %vm451, %v10625, 0
      %v10778 = vsel %vm451, %v10626, 0
      %v10781 = vsel %vm451, %v10627, 0
      %v10784 = vsel %vm451, %v10628, 0
      %v10787 = vsel %vm451, %v10629, 0
      %v10790 = vsel %vm451, %v10630, 0
      %v10793 = vsel %vm451, %v10631, 0
      %v10796 = vsel %vm451, %v10632, 0
      %v10799 = vsel %vm451, %v10633, 0
      %v10802 = vsel %vm451, %v10634, 0
      %v10805 = vsel %vm451, %v10635, 0
      %v10808 = vsel %vm451, %v10636, 0
      %v10811 = vsel %vm451, %v10637, 0
      %v10814 = vsel %vm451, %v10638, 0
      %v10817 = vsel %vm451, %v10639, 0
      %v10820 = vsel %vm451, %v10640, 0
      %v10823 = vsel %vm451, %v10641, 0
      %v10826 = vsel %vm451, %v10642, 0
      %v10829 = vsel %vm451, %v10643, 0
      %v10832 = vsel %vm451, %v10644, 0
      %v10835 = vsel %vm451, %v10645, 0
      %v10838 = vsel %vm451, %v10646, 0
      %v10841 = vsel %vm451, %v10647, 0
      %v10844 = vsel %vm451, %v10648, 0
      %v10847 = vsel %vm451, %v10649, 0
      %v10850 = vsel %vm451, %v10650, 0
      %v10853 = vsel %vm451, %v10651, 0
      %v10856 = vsel %vm451, %v10652, 0
      %v10859 = vsel %vm451, %v10653, 0
      %v10862 = vsel %vm451, %v10654, 0
      %v10865 = vsel %vm451, %v10655, 0
      %v10868 = vsel %vm451, %v10656, 0
      %v10871 = vsel %vm451, %v10657, 0
      %v10874 = vsel %vm451, %v10658, 0
      %v10877 = vsel %vm451, %v10659, 0
      %v10880 = vsel %vm451, %v10660, 0
      %v10883 = vsel %vm451, %v10661, 0
      %v10886 = vsel %vm451, %v10662, 0
      %v10889 = vsel %vm451, %v10663, 0
      %10891 = vmatprep.subr.mxu0 0.0
      %10892 = vmatpush1.msra.mxu0 %v10664
      %10893 = vmatprep.subr.mxu0 0.0
      %10894 = vmatpush1.msra.mxu0 %v10665
      %10895 = vmatprep.subr.mxu0 0.0
      %10896 = vmatpush1.msra.mxu0 %v10666
      %10897 = vmatprep.subr.mxu0 0.0
      %10898 = vmatpush1.msra.mxu0 %v10667
      %10899 = vmatprep.subr.mxu0 0.0
      %10900 = vmatpush1.msra.mxu0 0.0
      %10901 = vmatprep.subr.mxu0 0.0
      %10902 = vmatpush1.msra.mxu0 0.0
      %10903 = vmatprep.subr.mxu0 0.0
      %10904 = vmatpush1.msra.mxu0 0.0
      %10905 = vmatprep.subr.mxu0 0.0
      %10906 = vmatpush1.msra.mxu0 0.0
      %10907 = vmatprep.subr.mxu0 0.0
      %10908 = vmatpush1.msra.mxu0 0.0
      %10909 = vmatprep.subr.mxu0 0.0
      %10910 = vmatpush1.msra.mxu0 0.0
      %10911 = vmatprep.subr.mxu0 0.0
      %10912 = vmatpush1.msra.mxu0 0.0
      %10913 = vmatprep.subr.mxu0 0.0
      %10914 = vmatpush1.msra.mxu0 0.0
      %10915 = vmatprep.subr.mxu0 0.0
      %10916 = vmatpush1.msra.mxu0 0.0
      %10917 = vmatprep.subr.mxu0 0.0
      %10918 = vmatpush1.msra.mxu0 0.0
      %10919 = vmatprep.subr.mxu0 0.0
      %10920 = vmatpush1.msra.mxu0 0.0
      %10921 = vmatprep.subr.mxu0 0.0
      %10922 = vmatpush1.msra.mxu0 0.0
      %10923 = vmatprep.subr.mxu0 0.0
      %10924 = vmatpush1.msra.mxu0 0.0
      %10925 = vmatprep.subr.mxu0 0.0
      %10926 = vmatpush1.msra.mxu0 0.0
      %10927 = vmatprep.subr.mxu0 0.0
      %10928 = vmatpush1.msra.mxu0 0.0
      %10929 = vmatprep.subr.mxu0 0.0
      %10930 = vmatpush1.msra.mxu0 0.0
      %10931 = vmatprep.subr.mxu0 0.0
      %10932 = vmatpush1.msra.mxu0 0.0
      %10933 = vmatprep.subr.mxu0 0.0
      %10934 = vmatpush1.msra.mxu0 0.0
      %10935 = vmatprep.subr.mxu0 0.0
      %10936 = vmatpush1.msra.mxu0 0.0
      %10937 = vmatprep.subr.mxu0 0.0
      %10938 = vmatpush1.msra.mxu0 0.0
      %10939 = vmatprep.subr.mxu0 0.0
      %10940 = vmatpush1.msra.mxu0 0.0
      %10941 = vmatprep.subr.mxu0 0.0
      %10942 = vmatpush1.msra.mxu0 0.0
      %10943 = vmatprep.subr.mxu0 0.0
      %10944 = vmatpush1.msra.mxu0 0.0
      %10945 = vmatprep.subr.mxu0 0.0
      %10946 = vmatpush1.msra.mxu0 0.0
      %10947 = vmatprep.subr.mxu0 0.0
      %10948 = vmatpush1.msra.mxu0 0.0
      %10949 = vmatprep.subr.mxu0 0.0
      %10950 = vmatpush1.msra.mxu0 0.0
      %10951 = vmatprep.subr.mxu0 0.0
      %10952 = vmatpush1.msra.mxu0 0.0
      %10953 = vmatprep.subr.mxu0 0.0
      %10954 = vmatpush1.msra.mxu0 0.0
      %10955 = vmatprep.mubr.f32.mxu0 0.0
      %10956 = vmatmul.mubr.f32.gmra.mrb[0].mxu0 %v10676
      %v10957 = vpop.f32.mrb[0].mxu0
      %v10958 = vadd.f32 %v10673, %v10957
      %v10959 = vpop.f32.mrb[0].mxu0
      %10960 = vmatprep.mubr.f32.mxu0 0.0
      %10961 = vmatmul.mubr.f32.gmra.mrb[0].mxu0 %v10679
      %v10962 = vpop.f32.mrb[0].mxu0
      %v10963 = vadd.f32 %v10673, %v10962
      %v10964 = vpop.f32.mrb[0].mxu0
      %10965 = vmatprep.mubr.f32.mxu0 0.0
      %10966 = vmatmul.mubr.f32.gmra.mrb[0].mxu0 %v10682
      %v10967 = vpop.f32.mrb[0].mxu0
      %v10968 = vadd.f32 %v10673, %v10967
      %v10969 = vpop.f32.mrb[0].mxu0
      %10970 = vmatprep.mubr.f32.mxu0 0.0
      %10971 = vmatmul.mubr.f32.gmra.mrb[0].mxu0 %v10685
      %v10972 = vpop.f32.mrb[0].mxu0
      %v10973 = vadd.f32 %v10673, %v10972
      %v10974 = vpop.f32.mrb[0].mxu0
      %10975 = vmatprep.mubr.f32.mxu0 0.0
      %10976 = vmatmul.mubr.f32.gmra.mrb[0].mxu0 %v10688
      %v10977 = vpop.f32.mrb[0].mxu0
      %v10978 = vadd.f32 %v10673, %v10977
      %v10979 = vpop.f32.mrb[0].mxu0
      %10980 = vmatprep.mubr.f32.mxu0 0.0
      %10981 = vmatmul.mubr.f32.gmra.mrb[0].mxu0 %v10691
      %v10982 = vpop.f32.mrb[0].mxu0
      %v10983 = vadd.f32 %v10673, %v10982
      %v10984 = vpop.f32.mrb[0].mxu0
      %10985 = vmatprep.mubr.f32.mxu0 0.0
      %10986 = vmatmul.mubr.f32.gmra.mrb[0].mxu0 %v10694
      %v10987 = vpop.f32.mrb[0].mxu0
      %v10988 = vadd.f32 %v10673, %v10987
      %v10989 = vpop.f32.mrb[0].mxu0
      %10990 = vmatprep.mubr.f32.mxu0 0.0
      %10991 = vmatmul.mubr.f32.gmra.mrb[0].mxu0 %v10697
      %v10992 = vpop.f32.mrb[0].mxu0
      %v10993 = vadd.f32 %v10673, %v10992
      %v10994 = vpop.f32.mrb[0].mxu0
      %10995 = vmatprep.mubr.f32.mxu0 0.0
      %10996 = vmatmul.mubr.f32.gmra.mrb[0].mxu0 %v10700
      %v10997 = vpop.f32.mrb[0].mxu0
      %v10998 = vadd.f32 %v10673, %v10997
      %v10999 = vpop.f32.mrb[0].mxu0
      %11000 = vmatprep.mubr.f32.mxu0 0.0
      %11001 = vmatmul.mubr.f32.gmra.mrb[0].mxu0 %v10703
      %v11002 = vpop.f32.mrb[0].mxu0
      %v11003 = vadd.f32 %v10673, %v11002
      %v11004 = vpop.f32.mrb[0].mxu0
      %11005 = vmatprep.mubr.f32.mxu0 0.0
      %11006 = vmatmul.mubr.f32.gmra.mrb[0].mxu0 %v10706
      %v11007 = vpop.f32.mrb[0].mxu0
      %v11008 = vadd.f32 %v10673, %v11007
      %v11009 = vpop.f32.mrb[0].mxu0
      %11010 = vmatprep.mubr.f32.mxu0 0.0
      %11011 = vmatmul.mubr.f32.gmra.mrb[0].mxu0 %v10709
      %v11012 = vpop.f32.mrb[0].mxu0
      %v11013 = vadd.f32 %v10673, %v11012
      %v11014 = vpop.f32.mrb[0].mxu0
      %11015 = vmatprep.mubr.f32.mxu0 0.0
      %11016 = vmatmul.mubr.f32.gmra.mrb[0].mxu0 %v10712
      %v11017 = vpop.f32.mrb[0].mxu0
      %v11018 = vadd.f32 %v10673, %v11017
      %v11019 = vpop.f32.mrb[0].mxu0
      %11020 = vmatprep.mubr.f32.mxu0 0.0
      %11021 = vmatmul.mubr.f32.gmra.mrb[0].mxu0 %v10715
      %v11022 = vpop.f32.mrb[0].mxu0
      %v11023 = vadd.f32 %v10673, %v11022
      %v11024 = vpop.f32.mrb[0].mxu0
      %11025 = vmatprep.mubr.f32.mxu0 0.0
      %11026 = vmatmul.mubr.f32.gmra.mrb[0].mxu0 %v10718
      %v11027 = vpop.f32.mrb[0].mxu0
      %v11028 = vadd.f32 %v10673, %v11027
      %v11029 = vpop.f32.mrb[0].mxu0
      %11030 = vmatprep.mubr.f32.mxu0 0.0
      %11031 = vmatmul.mubr.f32.gmra.mrb[0].mxu0 %v10721
      %v11032 = vpop.f32.mrb[0].mxu0
      %v11033 = vadd.f32 %v10673, %v11032
      %v11034 = vpop.f32.mrb[0].mxu0
      %11035 = vmatprep.mubr.f32.mxu0 0.0
      %11036 = vmatmul.mubr.f32.gmra.mrb[0].mxu0 %v10724
      %v11037 = vpop.f32.mrb[0].mxu0
      %v11038 = vadd.f32 %v10673, %v11037
      %v11039 = vpop.f32.mrb[0].mxu0
      %11040 = vmatprep.mubr.f32.mxu0 0.0
      %11041 = vmatmul.mubr.f32.gmra.mrb[0].mxu0 %v10727
      %v11042 = vpop.f32.mrb[0].mxu0
      %v11043 = vadd.f32 %v10673, %v11042
      %v11044 = vpop.f32.mrb[0].mxu0
      %11045 = vmatprep.mubr.f32.mxu0 0.0
      %11046 = vmatmul.mubr.f32.gmra.mrb[0].mxu0 %v10730
      %v11047 = vpop.f32.mrb[0].mxu0
      %v11048 = vadd.f32 %v10673, %v11047
      %v11049 = vpop.f32.mrb[0].mxu0
      %11050 = vmatprep.mubr.f32.mxu0 0.0
      %11051 = vmatmul.mubr.f32.gmra.mrb[0].mxu0 %v10733
      %v11052 = vpop.f32.mrb[0].mxu0
      %v11053 = vadd.f32 %v10673, %v11052
      %v11054 = vpop.f32.mrb[0].mxu0
      %11055 = vmatprep.mubr.f32.mxu0 0.0
      %11056 = vmatmul.mubr.f32.gmra.mrb[0].mxu0 %v10736
      %v11057 = vpop.f32.mrb[0].mxu0
      %v11058 = vadd.f32 %v10673, %v11057
      %v11059 = vpop.f32.mrb[0].mxu0
      %11060 = vmatprep.mubr.f32.mxu0 0.0
      %11061 = vmatmul.mubr.f32.gmra.mrb[0].mxu0 %v10739
      %v11062 = vpop.f32.mrb[0].mxu0
      %v11063 = vadd.f32 %v10673, %v11062
      %v11064 = vpop.f32.mrb[0].mxu0
      %11065 = vmatprep.mubr.f32.mxu0 0.0
      %11066 = vmatmul.mubr.f32.gmra.mrb[0].mxu0 %v10742
      %v11067 = vpop.f32.mrb[0].mxu0
      %v11068 = vadd.f32 %v10673, %v11067
      %v11069 = vpop.f32.mrb[0].mxu0
      %11070 = vmatprep.mubr.f32.mxu0 0.0
      %11071 = vmatmul.mubr.f32.gmra.mrb[0].mxu0 %v10745
      %v11072 = vpop.f32.mrb[0].mxu0
      %v11073 = vadd.f32 %v10673, %v11072
      %v11074 = vpop.f32.mrb[0].mxu0
      %11075 = vmatprep.mubr.f32.mxu0 0.0
      %11076 = vmatmul.mubr.f32.gmra.mrb[0].mxu0 %v10748
      %v11077 = vpop.f32.mrb[0].mxu0
      %v11078 = vadd.f32 %v10673, %v11077
      %v11079 = vpop.f32.mrb[0].mxu0
      %11080 = vmatprep.mubr.f32.mxu0 0.0
      %11081 = vmatmul.mubr.f32.gmra.mrb[0].mxu0 %v10751
      %v11082 = vpop.f32.mrb[0].mxu0
      %v11083 = vadd.f32 %v10673, %v11082
      %v11084 = vpop.f32.mrb[0].mxu0
      %11085 = vmatprep.mubr.f32.mxu0 0.0
      %11086 = vmatmul.mubr.f32.gmra.mrb[0].mxu0 %v10754
      %v11087 = vpop.f32.mrb[0].mxu0
      %v11088 = vadd.f32 %v10673, %v11087
      %v11089 = vpop.f32.mrb[0].mxu0
      %11090 = vmatprep.mubr.f32.mxu0 0.0
      %11091 = vmatmul.mubr.f32.gmra.mrb[0].mxu0 %v10757
      %v11092 = vpop.f32.mrb[0].mxu0
      %v11093 = vadd.f32 %v10673, %v11092
      %v11094 = vpop.f32.mrb[0].mxu0
      %11095 = vmatprep.mubr.f32.mxu0 0.0
      %11096 = vmatmul.mubr.f32.gmra.mrb[0].mxu0 %v10760
      %v11097 = vpop.f32.mrb[0].mxu0
      %v11098 = vadd.f32 %v10673, %v11097
      %v11099 = vpop.f32.mrb[0].mxu0
      %11100 = vmatprep.mubr.f32.mxu0 0.0
      %11101 = vmatmul.mubr.f32.gmra.mrb[0].mxu0 %v10763
      %v11102 = vpop.f32.mrb[0].mxu0
      %v11103 = vadd.f32 %v10673, %v11102
      %v11104 = vpop.f32.mrb[0].mxu0
      %11105 = vmatprep.mubr.f32.mxu0 0.0
      %11106 = vmatmul.mubr.f32.gmra.mrb[0].mxu0 %v10766
      %v11107 = vpop.f32.mrb[0].mxu0
      %v11108 = vadd.f32 %v10673, %v11107
      %v11109 = vpop.f32.mrb[0].mxu0
      %11110 = vmatprep.mubr.f32.mxu0 0.0
      %11111 = vmatmul.mubr.f32.gmra.mrb[0].mxu0 %v10769
      %v11112 = vpop.f32.mrb[0].mxu0
      %v11113 = vadd.f32 %v10673, %v11112
      %v11114 = vpop.f32.mrb[0].mxu0
      %11115 = vmatprep.mubr.f32.mxu0 0.0
      %11116 = vmatmul.mubr.f32.gmra.mrb[0].mxu0 %v10772
      %v11117 = vpop.f32.mrb[0].mxu0
      %v11118 = vadd.f32 %v10673, %v11117
      %v11119 = vpop.f32.mrb[0].mxu0
      %11120 = vmatprep.mubr.f32.mxu0 0.0
      %11121 = vmatmul.mubr.f32.gmra.mrb[0].mxu0 %v10775
      %v11122 = vpop.f32.mrb[0].mxu0
      %v11123 = vadd.f32 %v10673, %v11122
      %v11124 = vpop.f32.mrb[0].mxu0
      %11125 = vmatprep.mubr.f32.mxu0 0.0
      %11126 = vmatmul.mubr.f32.gmra.mrb[0].mxu0 %v10778
      %v11127 = vpop.f32.mrb[0].mxu0
      %v11128 = vadd.f32 %v10673, %v11127
      %v11129 = vpop.f32.mrb[0].mxu0
      %11130 = vmatprep.mubr.f32.mxu0 0.0
      %11131 = vmatmul.mubr.f32.gmra.mrb[0].mxu0 %v10781
      %v11132 = vpop.f32.mrb[0].mxu0
      %v11133 = vadd.f32 %v10673, %v11132
      %v11134 = vpop.f32.mrb[0].mxu0
      %11135 = vmatprep.mubr.f32.mxu0 0.0
      %11136 = vmatmul.mubr.f32.gmra.mrb[0].mxu0 %v10784
      %v11137 = vpop.f32.mrb[0].mxu0
      %v11138 = vadd.f32 %v10673, %v11137
      %v11139 = vpop.f32.mrb[0].mxu0
      %11140 = vmatprep.mubr.f32.mxu0 0.0
      %11141 = vmatmul.mubr.f32.gmra.mrb[0].mxu0 %v10787
      %v11142 = vpop.f32.mrb[0].mxu0
      %v11143 = vadd.f32 %v10673, %v11142
      %v11144 = vpop.f32.mrb[0].mxu0
      %11145 = vmatprep.mubr.f32.mxu0 0.0
      %11146 = vmatmul.mubr.f32.gmra.mrb[0].mxu0 %v10790
      %v11147 = vpop.f32.mrb[0].mxu0
      %v11148 = vadd.f32 %v10673, %v11147
      %v11149 = vpop.f32.mrb[0].mxu0
      %11150 = vmatprep.mubr.f32.mxu0 0.0
      %11151 = vmatmul.mubr.f32.gmra.mrb[0].mxu0 %v10793
      %v11152 = vpop.f32.mrb[0].mxu0
      %v11153 = vadd.f32 %v10673, %v11152
      %v11154 = vpop.f32.mrb[0].mxu0
      %11155 = vmatprep.mubr.f32.mxu0 0.0
      %11156 = vmatmul.mubr.f32.gmra.mrb[0].mxu0 %v10796
      %v11157 = vpop.f32.mrb[0].mxu0
      %v11158 = vadd.f32 %v10673, %v11157
      %v11159 = vpop.f32.mrb[0].mxu0
      %11160 = vmatprep.mubr.f32.mxu0 0.0
      %11161 = vmatmul.mubr.f32.gmra.mrb[0].mxu0 %v10799
      %v11162 = vpop.f32.mrb[0].mxu0
      %v11163 = vadd.f32 %v10673, %v11162
      %v11164 = vpop.f32.mrb[0].mxu0
      %11165 = vmatprep.mubr.f32.mxu0 0.0
      %11166 = vmatmul.mubr.f32.gmra.mrb[0].mxu0 %v10802
      %v11167 = vpop.f32.mrb[0].mxu0
      %v11168 = vadd.f32 %v10673, %v11167
      %v11169 = vpop.f32.mrb[0].mxu0
      %11170 = vmatprep.mubr.f32.mxu0 0.0
      %11171 = vmatmul.mubr.f32.gmra.mrb[0].mxu0 %v10805
      %v11172 = vpop.f32.mrb[0].mxu0
      %v11173 = vadd.f32 %v10673, %v11172
      %v11174 = vpop.f32.mrb[0].mxu0
      %11175 = vmatprep.mubr.f32.mxu0 0.0
      %11176 = vmatmul.mubr.f32.gmra.mrb[0].mxu0 %v10808
      %v11177 = vpop.f32.mrb[0].mxu0
      %v11178 = vadd.f32 %v10673, %v11177
      %v11179 = vpop.f32.mrb[0].mxu0
      %11180 = vmatprep.mubr.f32.mxu0 0.0
      %11181 = vmatmul.mubr.f32.gmra.mrb[0].mxu0 %v10811
      %v11182 = vpop.f32.mrb[0].mxu0
      %v11183 = vadd.f32 %v10673, %v11182
      %v11184 = vpop.f32.mrb[0].mxu0
      %11185 = vmatprep.mubr.f32.mxu0 0.0
      %11186 = vmatmul.mubr.f32.gmra.mrb[0].mxu0 %v10814
      %v11187 = vpop.f32.mrb[0].mxu0
      %v11188 = vadd.f32 %v10673, %v11187
      %v11189 = vpop.f32.mrb[0].mxu0
      %11190 = vmatprep.mubr.f32.mxu0 0.0
      %11191 = vmatmul.mubr.f32.gmra.mrb[0].mxu0 %v10817
      %v11192 = vpop.f32.mrb[0].mxu0
      %v11193 = vadd.f32 %v10673, %v11192
      %v11194 = vpop.f32.mrb[0].mxu0
      %11195 = vmatprep.mubr.f32.mxu0 0.0
      %11196 = vmatmul.mubr.f32.gmra.mrb[0].mxu0 %v10820
      %v11197 = vpop.f32.mrb[0].mxu0
      %v11198 = vadd.f32 %v10673, %v11197
      %v11199 = vpop.f32.mrb[0].mxu0
      %11200 = vmatprep.mubr.f32.mxu0 0.0
      %11201 = vmatmul.mubr.f32.gmra.mrb[0].mxu0 %v10823
      %v11202 = vpop.f32.mrb[0].mxu0
      %v11203 = vadd.f32 %v10673, %v11202
      %v11204 = vpop.f32.mrb[0].mxu0
      %11205 = vmatprep.mubr.f32.mxu0 0.0
      %11206 = vmatmul.mubr.f32.gmra.mrb[0].mxu0 %v10826
      %v11207 = vpop.f32.mrb[0].mxu0
      %v11208 = vadd.f32 %v10673, %v11207
      %v11209 = vpop.f32.mrb[0].mxu0
      %11210 = vmatprep.mubr.f32.mxu0 0.0
      %11211 = vmatmul.mubr.f32.gmra.mrb[0].mxu0 %v10829
      %v11212 = vpop.f32.mrb[0].mxu0
      %v11213 = vadd.f32 %v10673, %v11212
      %v11214 = vpop.f32.mrb[0].mxu0
      %11215 = vmatprep.mubr.f32.mxu0 0.0
      %11216 = vmatmul.mubr.f32.gmra.mrb[0].mxu0 %v10832
      %v11217 = vpop.f32.mrb[0].mxu0
      %v11218 = vadd.f32 %v10673, %v11217
      %v11219 = vpop.f32.mrb[0].mxu0
      %11220 = vmatprep.mubr.f32.mxu0 0.0
      %11221 = vmatmul.mubr.f32.gmra.mrb[0].mxu0 %v10835
      %v11222 = vpop.f32.mrb[0].mxu0
      %v11223 = vadd.f32 %v10673, %v11222
      %v11224 = vpop.f32.mrb[0].mxu0
      %11225 = vmatprep.mubr.f32.mxu0 0.0
      %11226 = vmatmul.mubr.f32.gmra.mrb[0].mxu0 %v10838
      %v11227 = vpop.f32.mrb[0].mxu0
      %v11228 = vadd.f32 %v10673, %v11227
      %v11229 = vpop.f32.mrb[0].mxu0
      %11230 = vmatprep.mubr.f32.mxu0 0.0
      %11231 = vmatmul.mubr.f32.gmra.mrb[0].mxu0 %v10841
      %v11232 = vpop.f32.mrb[0].mxu0
      %v11233 = vadd.f32 %v10673, %v11232
      %v11234 = vpop.f32.mrb[0].mxu0
      %11235 = vmatprep.mubr.f32.mxu0 0.0
      %11236 = vmatmul.mubr.f32.gmra.mrb[0].mxu0 %v10844
      %v11237 = vpop.f32.mrb[0].mxu0
      %v11238 = vadd.f32 %v10673, %v11237
      %v11239 = vpop.f32.mrb[0].mxu0
      %11240 = vmatprep.mubr.f32.mxu0 0.0
      %11241 = vmatmul.mubr.f32.gmra.mrb[0].mxu0 %v10847
      %v11242 = vpop.f32.mrb[0].mxu0
      %v11243 = vadd.f32 %v10673, %v11242
      %v11244 = vpop.f32.mrb[0].mxu0
      %11245 = vmatprep.mubr.f32.mxu0 0.0
      %11246 = vmatmul.mubr.f32.gmra.mrb[0].mxu0 %v10850
      %v11247 = vpop.f32.mrb[0].mxu0
      %v11248 = vadd.f32 %v10673, %v11247
      %v11249 = vpop.f32.mrb[0].mxu0
      %11250 = vmatprep.mubr.f32.mxu0 0.0
      %11251 = vmatmul.mubr.f32.gmra.mrb[0].mxu0 %v10853
      %v11252 = vpop.f32.mrb[0].mxu0
      %v11253 = vadd.f32 %v10673, %v11252
      %v11254 = vpop.f32.mrb[0].mxu0
      %11255 = vmatprep.mubr.f32.mxu0 0.0
      %11256 = vmatmul.mubr.f32.gmra.mrb[0].mxu0 %v10856
      %v11257 = vpop.f32.mrb[0].mxu0
      %v11258 = vadd.f32 %v10673, %v11257
      %v11259 = vpop.f32.mrb[0].mxu0
      %11260 = vmatprep.mubr.f32.mxu0 0.0
      %11261 = vmatmul.mubr.f32.gmra.mrb[0].mxu0 %v10859
      %v11262 = vpop.f32.mrb[0].mxu0
      %v11263 = vadd.f32 %v10673, %v11262
      %v11264 = vpop.f32.mrb[0].mxu0
      %11265 = vmatprep.mubr.f32.mxu0 0.0
      %11266 = vmatmul.mubr.f32.gmra.mrb[0].mxu0 %v10862
      %v11267 = vpop.f32.mrb[0].mxu0
      %v11268 = vadd.f32 %v10673, %v11267
      %v11269 = vpop.f32.mrb[0].mxu0
      %11270 = vmatprep.mubr.f32.mxu0 0.0
      %11271 = vmatmul.mubr.f32.gmra.mrb[0].mxu0 %v10865
      %v11272 = vpop.f32.mrb[0].mxu0
      %v11273 = vadd.f32 %v10673, %v11272
      %v11274 = vpop.f32.mrb[0].mxu0
      %11275 = vmatprep.mubr.f32.mxu0 0.0
      %11276 = vmatmul.mubr.f32.gmra.mrb[0].mxu0 %v10868
      %v11277 = vpop.f32.mrb[0].mxu0
      %v11278 = vadd.f32 %v10673, %v11277
      %v11279 = vpop.f32.mrb[0].mxu0
      %11280 = vmatprep.mubr.f32.mxu0 0.0
      %11281 = vmatmul.mubr.f32.gmra.mrb[0].mxu0 %v10871
      %v11282 = vpop.f32.mrb[0].mxu0
      %v11283 = vadd.f32 %v10673, %v11282
      %v11284 = vpop.f32.mrb[0].mxu0
      %11285 = vmatprep.mubr.f32.mxu0 0.0
      %11286 = vmatmul.mubr.f32.gmra.mrb[0].mxu0 %v10874
      %v11287 = vpop.f32.mrb[0].mxu0
      %v11288 = vadd.f32 %v10673, %v11287
      %v11289 = vpop.f32.mrb[0].mxu0
      %11290 = vmatprep.mubr.f32.mxu0 0.0
      %11291 = vmatmul.mubr.f32.gmra.mrb[0].mxu0 %v10877
      %v11292 = vpop.f32.mrb[0].mxu0
      %v11293 = vadd.f32 %v10673, %v11292
      %v11294 = vpop.f32.mrb[0].mxu0
      %11295 = vmatprep.mubr.f32.mxu0 0.0
      %11296 = vmatmul.mubr.f32.gmra.mrb[0].mxu0 %v10880
      %v11297 = vpop.f32.mrb[0].mxu0
      %v11298 = vadd.f32 %v10673, %v11297
      %v11299 = vpop.f32.mrb[0].mxu0
      %11300 = vmatprep.mubr.f32.mxu0 0.0
      %11301 = vmatmul.mubr.f32.gmra.mrb[0].mxu0 %v10883
      %v11302 = vpop.f32.mrb[0].mxu0
      %v11303 = vadd.f32 %v10673, %v11302
      %v11304 = vpop.f32.mrb[0].mxu0
      %11305 = vmatprep.mubr.f32.mxu0 0.0
      %11306 = vmatmul.mubr.f32.gmra.mrb[0].mxu0 %v10886
      %v11307 = vpop.f32.mrb[0].mxu0
      %v11308 = vadd.f32 %v10673, %v11307
      %v11309 = vpop.f32.mrb[0].mxu0
      %11310 = vmatprep.mubr.f32.mxu0 0.0
      %11311 = vmatmul.mubr.f32.gmra.mrb[0].mxu0 %v10889
      %v11312 = vpop.f32.mrb[0].mxu0
      %v11313 = vadd.f32 %v10673, %v11312
      %v11314 = vpop.f32.mrb[0].mxu0
      %11315 = vdwg.mxu0
      %v11316 = vsel %vm7865, %v10958, 0.0
      %v11317 = vsel %vm7866, %v10963, 0.0
      %v11318 = vsel %vm7867, %v10968, 0.0
      %v11319 = vsel %vm7868, %v10973, 0.0
      %v11320 = vsel %vm7869, %v10978, 0.0
      %v11321 = vsel %vm7870, %v10983, 0.0
      %v11322 = vsel %vm7871, %v10988, 0.0
      %v11323 = vsel %vm7872, %v10993, 0.0
      %v11324 = vsel %vm7873, %v10998, 0.0
      %v11325 = vsel %vm7874, %v11003, 0.0
      %v11326 = vsel %vm7875, %v11008, 0.0
      %v11327 = vsel %vm7876, %v11013, 0.0
      %v11328 = vsel %vm7877, %v11018, 0.0
      %v11329 = vsel %vm7878, %v11023, 0.0
      %v11330 = vsel %vm7879, %v11028, 0.0
      %v11331 = vsel %vm7880, %v11033, 0.0
      %v11332 = vsel %vm7881, %v11038, 0.0
      %v11333 = vsel %vm7882, %v11043, 0.0
      %v11334 = vsel %vm7883, %v11048, 0.0
      %v11335 = vsel %vm7884, %v11053, 0.0
      %v11336 = vsel %vm7885, %v11058, 0.0
      %v11337 = vsel %vm7886, %v11063, 0.0
      %v11338 = vsel %vm7887, %v11068, 0.0
      %v11339 = vsel %vm7888, %v11073, 0.0
      %v11340 = vsel %vm7889, %v11078, 0.0
      %v11341 = vsel %vm7890, %v11083, 0.0
      %v11342 = vsel %vm7891, %v11088, 0.0
      %v11343 = vsel %vm7892, %v11093, 0.0
      %v11344 = vsel %vm7893, %v11098, 0.0
      %v11345 = vsel %vm7894, %v11103, 0.0
      %v11346 = vsel %vm7895, %v11108, 0.0
      %v11347 = vsel %vm7896, %v11113, 0.0
      %v11348 = vsel %vm7897, %v11118, 0.0
      %v11349 = vsel %vm7898, %v11123, 0.0
      %v11350 = vsel %vm7899, %v11128, 0.0
      %v11351 = vsel %vm7900, %v11133, 0.0
      %v11352 = vsel %vm7901, %v11138, 0.0
      %v11353 = vsel %vm7902, %v11143, 0.0
      %v11354 = vsel %vm7903, %v11148, 0.0
      %v11355 = vsel %vm7904, %v11153, 0.0
      %v11356 = vsel %vm7905, %v11158, 0.0
      %v11357 = vsel %vm7906, %v11163, 0.0
      %v11358 = vsel %vm7907, %v11168, 0.0
      %v11359 = vsel %vm7908, %v11173, 0.0
      %v11360 = vsel %vm7909, %v11178, 0.0
      %v11361 = vsel %vm7910, %v11183, 0.0
      %v11362 = vsel %vm7911, %v11188, 0.0
      %v11363 = vsel %vm7912, %v11193, 0.0
      %v11364 = vsel %vm7913, %v11198, 0.0
      %v11365 = vsel %vm7914, %v11203, 0.0
      %v11366 = vsel %vm7915, %v11208, 0.0
      %v11367 = vsel %vm7916, %v11213, 0.0
      %v11368 = vsel %vm7917, %v11218, 0.0
      %v11369 = vsel %vm7918, %v11223, 0.0
      %v11370 = vsel %vm7919, %v11228, 0.0
      %v11371 = vsel %vm7920, %v11233, 0.0
      %v11372 = vsel %vm7921, %v11238, 0.0
      %v11373 = vsel %vm7922, %v11243, 0.0
      %v11374 = vsel %vm7923, %v11248, 0.0
      %v11375 = vsel %vm7924, %v11253, 0.0
      %v11376 = vsel %vm7925, %v11258, 0.0
      %v11377 = vsel %vm7926, %v11263, 0.0
      %v11378 = vsel %vm7927, %v11268, 0.0
      %v11379 = vsel %vm7928, %v11273, 0.0
      %v11380 = vsel %vm7929, %v11278, 0.0
      %v11381 = vsel %vm7930, %v11283, 0.0
      %v11382 = vsel %vm7931, %v11288, 0.0
      %v11383 = vsel %vm7932, %v11293, 0.0
      %v11384 = vsel %vm7933, %v11298, 0.0
      %v11385 = vsel %vm7934, %v11303, 0.0
      %v11386 = vsel %vm7935, %v11308, 0.0
      %v11387 = vsel %vm7936, %v11313, 0.0
      %v11388 = vsel %vm606, %v11316, 0.0
      %v11389 = vsel %vm606, %v11317, 0.0
      %v11390 = vadd.f32 %v11388, %v11389
      %v11391 = vsel %vm606, %v11318, 0.0
      %v11392 = vadd.f32 %v11390, %v11391
      %v11393 = vsel %vm606, %v11319, 0.0
      %v11394 = vadd.f32 %v11392, %v11393
      %v11395 = vsel %vm606, %v11320, 0.0
      %v11396 = vadd.f32 %v11394, %v11395
      %v11397 = vsel %vm606, %v11321, 0.0
      %v11398 = vadd.f32 %v11396, %v11397
      %v11399 = vsel %vm606, %v11322, 0.0
      %v11400 = vadd.f32 %v11398, %v11399
      %v11401 = vsel %vm606, %v11323, 0.0
      %v11402 = vadd.f32 %v11400, %v11401
      %v11403 = vsel %vm606, %v11324, 0.0
      %v11404 = vadd.f32 %v11402, %v11403
      %v11405 = vsel %vm606, %v11325, 0.0
      %v11406 = vadd.f32 %v11404, %v11405
      %v11407 = vsel %vm606, %v11326, 0.0
      %v11408 = vadd.f32 %v11406, %v11407
      %v11409 = vsel %vm606, %v11327, 0.0
      %v11410 = vadd.f32 %v11408, %v11409
      %v11411 = vsel %vm606, %v11328, 0.0
      %v11412 = vadd.f32 %v11410, %v11411
      %v11413 = vsel %vm606, %v11329, 0.0
      %v11414 = vadd.f32 %v11412, %v11413
      %v11415 = vsel %vm606, %v11330, 0.0
      %v11416 = vadd.f32 %v11414, %v11415
      %v11417 = vsel %vm606, %v11331, 0.0
      %v11418 = vadd.f32 %v11416, %v11417
      %v11419 = vsel %vm606, %v11332, 0.0
      %v11420 = vadd.f32 %v11418, %v11419
      %v11421 = vsel %vm606, %v11333, 0.0
      %v11422 = vadd.f32 %v11420, %v11421
      %v11423 = vsel %vm606, %v11334, 0.0
      %v11424 = vadd.f32 %v11422, %v11423
      %v11425 = vsel %vm606, %v11335, 0.0
      %v11426 = vadd.f32 %v11424, %v11425
      %v11427 = vsel %vm606, %v11336, 0.0
      %v11428 = vadd.f32 %v11426, %v11427
      %v11429 = vsel %vm606, %v11337, 0.0
      %v11430 = vadd.f32 %v11428, %v11429
      %v11431 = vsel %vm606, %v11338, 0.0
      %v11432 = vadd.f32 %v11430, %v11431
      %v11433 = vsel %vm606, %v11339, 0.0
      %v11434 = vadd.f32 %v11432, %v11433
      %v11435 = vsel %vm606, %v11340, 0.0
      %v11436 = vadd.f32 %v11434, %v11435
      %v11437 = vsel %vm606, %v11341, 0.0
      %v11438 = vadd.f32 %v11436, %v11437
      %v11439 = vsel %vm606, %v11342, 0.0
      %v11440 = vadd.f32 %v11438, %v11439
      %v11441 = vsel %vm606, %v11343, 0.0
      %v11442 = vadd.f32 %v11440, %v11441
      %v11443 = vsel %vm606, %v11344, 0.0
      %v11444 = vadd.f32 %v11442, %v11443
      %v11445 = vsel %vm606, %v11345, 0.0
      %v11446 = vadd.f32 %v11444, %v11445
      %v11447 = vsel %vm606, %v11346, 0.0
      %v11448 = vadd.f32 %v11446, %v11447
      %v11449 = vsel %vm606, %v11347, 0.0
      %v11450 = vadd.f32 %v11448, %v11449
      %v11451 = vsel %vm606, %v11348, 0.0
      %v11452 = vadd.f32 %v11450, %v11451
      %v11453 = vsel %vm606, %v11349, 0.0
      %v11454 = vadd.f32 %v11452, %v11453
      %v11455 = vsel %vm606, %v11350, 0.0
      %v11456 = vadd.f32 %v11454, %v11455
      %v11457 = vsel %vm606, %v11351, 0.0
      %v11458 = vadd.f32 %v11456, %v11457
      %v11459 = vsel %vm606, %v11352, 0.0
      %v11460 = vadd.f32 %v11458, %v11459
      %v11461 = vsel %vm606, %v11353, 0.0
      %v11462 = vadd.f32 %v11460, %v11461
      %v11463 = vsel %vm606, %v11354, 0.0
      %v11464 = vadd.f32 %v11462, %v11463
      %v11465 = vsel %vm606, %v11355, 0.0
      %v11466 = vadd.f32 %v11464, %v11465
      %v11467 = vsel %vm606, %v11356, 0.0
      %v11468 = vadd.f32 %v11466, %v11467
      %v11469 = vsel %vm606, %v11357, 0.0
      %v11470 = vadd.f32 %v11468, %v11469
      %v11471 = vsel %vm606, %v11358, 0.0
      %v11472 = vadd.f32 %v11470, %v11471
      %v11473 = vsel %vm606, %v11359, 0.0
      %v11474 = vadd.f32 %v11472, %v11473
      %v11475 = vsel %vm606, %v11360, 0.0
      %v11476 = vadd.f32 %v11474, %v11475
      %v11477 = vsel %vm606, %v11361, 0.0
      %v11478 = vadd.f32 %v11476, %v11477
      %v11479 = vsel %vm606, %v11362, 0.0
      %v11480 = vadd.f32 %v11478, %v11479
      %v11481 = vsel %vm606, %v11363, 0.0
      %v11482 = vadd.f32 %v11480, %v11481
      %v11483 = vsel %vm606, %v11364, 0.0
      %v11484 = vadd.f32 %v11482, %v11483
      %v11485 = vsel %vm606, %v11365, 0.0
      %v11486 = vadd.f32 %v11484, %v11485
      %v11487 = vsel %vm606, %v11366, 0.0
      %v11488 = vadd.f32 %v11486, %v11487
      %v11489 = vsel %vm606, %v11367, 0.0
      %v11490 = vadd.f32 %v11488, %v11489
      %v11491 = vsel %vm606, %v11368, 0.0
      %v11492 = vadd.f32 %v11490, %v11491
      %v11493 = vsel %vm606, %v11369, 0.0
      %v11494 = vadd.f32 %v11492, %v11493
      %v11495 = vsel %vm606, %v11370, 0.0
      %v11496 = vadd.f32 %v11494, %v11495
      %v11497 = vsel %vm606, %v11371, 0.0
      %v11498 = vadd.f32 %v11496, %v11497
      %v11499 = vsel %vm606, %v11372, 0.0
      %v11500 = vadd.f32 %v11498, %v11499
      %v11501 = vsel %vm606, %v11373, 0.0
      %v11502 = vadd.f32 %v11500, %v11501
      %v11503 = vsel %vm606, %v11374, 0.0
      %v11504 = vadd.f32 %v11502, %v11503
      %v11505 = vsel %vm606, %v11375, 0.0
      %v11506 = vadd.f32 %v11504, %v11505
      %v11507 = vsel %vm606, %v11376, 0.0
      %v11508 = vadd.f32 %v11506, %v11507
      %v11509 = vsel %vm606, %v11377, 0.0
      %v11510 = vadd.f32 %v11508, %v11509
      %v11511 = vsel %vm606, %v11378, 0.0
      %v11512 = vadd.f32 %v11510, %v11511
      %v11513 = vsel %vm606, %v11379, 0.0
      %v11514 = vadd.f32 %v11512, %v11513
      %v11515 = vsel %vm606, %v11380, 0.0
      %v11516 = vadd.f32 %v11514, %v11515
      %v11517 = vsel %vm606, %v11381, 0.0
      %v11518 = vadd.f32 %v11516, %v11517
      %v11519 = vsel %vm606, %v11382, 0.0
      %v11520 = vadd.f32 %v11518, %v11519
      %v11521 = vsel %vm606, %v11383, 0.0
      %v11522 = vadd.f32 %v11520, %v11521
      %v11523 = vsel %vm606, %v11384, 0.0
      %v11524 = vadd.f32 %v11522, %v11523
      %v11525 = vsel %vm606, %v11385, 0.0
      %v11526 = vadd.f32 %v11524, %v11525
      %v11527 = vsel %vm606, %v11386, 0.0
      %v11528 = vadd.f32 %v11526, %v11527
      %v11529 = vsel %vm606, %v11387, 0.0
      %v11530 = vadd.f32 %v11528, %v11529
      %v11531 = vrot.slane %v11530, 4
      %v11532 = vadd.f32 %v11530, %v11531
      %v11533 = vrot.slane %v11532, 2
      %v11534 = vadd.f32 %v11532, %v11533
      %v11535 = vrot.slane %v11534, 1
      %v11536 = vadd.f32 %v11534, %v11535
      %v11537 = vmul.f32 %v11536, 0.00390625
      %v11538 = vsub.f32 %v11316, %v11537
      %v11539 = vsub.f32 %v11317, %v11537
      %v11540 = vsub.f32 %v11318, %v11537
      %v11541 = vsub.f32 %v11319, %v11537
      %v11542 = vsub.f32 %v11320, %v11537
      %v11543 = vsub.f32 %v11321, %v11537
      %v11544 = vsub.f32 %v11322, %v11537
      %v11545 = vsub.f32 %v11323, %v11537
      %v11546 = vsub.f32 %v11324, %v11537
      %v11547 = vsub.f32 %v11325, %v11537
      %v11548 = vsub.f32 %v11326, %v11537
      %v11549 = vsub.f32 %v11327, %v11537
      %v11550 = vsub.f32 %v11328, %v11537
      %v11551 = vsub.f32 %v11329, %v11537
      %v11552 = vsub.f32 %v11330, %v11537
      %v11553 = vsub.f32 %v11331, %v11537
      %v11554 = vsub.f32 %v11332, %v11537
      %v11555 = vsub.f32 %v11333, %v11537
      %v11556 = vsub.f32 %v11334, %v11537
      %v11557 = vsub.f32 %v11335, %v11537
      %v11558 = vsub.f32 %v11336, %v11537
      %v11559 = vsub.f32 %v11337, %v11537
      %v11560 = vsub.f32 %v11338, %v11537
      %v11561 = vsub.f32 %v11339, %v11537
      %v11562 = vsub.f32 %v11340, %v11537
      %v11563 = vsub.f32 %v11341, %v11537
      %v11564 = vsub.f32 %v11342, %v11537
      %v11565 = vsub.f32 %v11343, %v11537
      %v11566 = vsub.f32 %v11344, %v11537
      %v11567 = vsub.f32 %v11345, %v11537
      %v11568 = vsub.f32 %v11346, %v11537
      %v11569 = vsub.f32 %v11347, %v11537
      %v11570 = vsub.f32 %v11348, %v11537
      %v11571 = vsub.f32 %v11349, %v11537
      %v11572 = vsub.f32 %v11350, %v11537
      %v11573 = vsub.f32 %v11351, %v11537
      %v11574 = vsub.f32 %v11352, %v11537
      %v11575 = vsub.f32 %v11353, %v11537
      %v11576 = vsub.f32 %v11354, %v11537
      %v11577 = vsub.f32 %v11355, %v11537
      %v11578 = vsub.f32 %v11356, %v11537
      %v11579 = vsub.f32 %v11357, %v11537
      %v11580 = vsub.f32 %v11358, %v11537
      %v11581 = vsub.f32 %v11359, %v11537
      %v11582 = vsub.f32 %v11360, %v11537
      %v11583 = vsub.f32 %v11361, %v11537
      %v11584 = vsub.f32 %v11362, %v11537
      %v11585 = vsub.f32 %v11363, %v11537
      %v11586 = vsub.f32 %v11364, %v11537
      %v11587 = vsub.f32 %v11365, %v11537
      %v11588 = vsub.f32 %v11366, %v11537
      %v11589 = vsub.f32 %v11367, %v11537
      %v11590 = vsub.f32 %v11368, %v11537
      %v11591 = vsub.f32 %v11369, %v11537
      %v11592 = vsub.f32 %v11370, %v11537
      %v11593 = vsub.f32 %v11371, %v11537
      %v11594 = vsub.f32 %v11372, %v11537
      %v11595 = vsub.f32 %v11373, %v11537
      %v11596 = vsub.f32 %v11374, %v11537
      %v11597 = vsub.f32 %v11375, %v11537
      %v11598 = vsub.f32 %v11376, %v11537
      %v11599 = vsub.f32 %v11377, %v11537
      %v11600 = vsub.f32 %v11378, %v11537
      %v11601 = vsub.f32 %v11379, %v11537
      %v11602 = vsub.f32 %v11380, %v11537
      %v11603 = vsub.f32 %v11381, %v11537
      %v11604 = vsub.f32 %v11382, %v11537
      %v11605 = vsub.f32 %v11383, %v11537
      %v11606 = vsub.f32 %v11384, %v11537
      %v11607 = vsub.f32 %v11385, %v11537
      %v11608 = vsub.f32 %v11386, %v11537
      %v11609 = vsub.f32 %v11387, %v11537
      %v11610 = vsel %vm7865, %v11538, 0.0
      %v11611 = vsel %vm7866, %v11539, 0.0
      %v11612 = vsel %vm7867, %v11540, 0.0
      %v11613 = vsel %vm7868, %v11541, 0.0
      %v11614 = vsel %vm7869, %v11542, 0.0
      %v11615 = vsel %vm7870, %v11543, 0.0
      %v11616 = vsel %vm7871, %v11544, 0.0
      %v11617 = vsel %vm7872, %v11545, 0.0
      %v11618 = vsel %vm7873, %v11546, 0.0
      %v11619 = vsel %vm7874, %v11547, 0.0
      %v11620 = vsel %vm7875, %v11548, 0.0
      %v11621 = vsel %vm7876, %v11549, 0.0
      %v11622 = vsel %vm7877, %v11550, 0.0
      %v11623 = vsel %vm7878, %v11551, 0.0
      %v11624 = vsel %vm7879, %v11552, 0.0
      %v11625 = vsel %vm7880, %v11553, 0.0
      %v11626 = vsel %vm7881, %v11554, 0.0
      %v11627 = vsel %vm7882, %v11555, 0.0
      %v11628 = vsel %vm7883, %v11556, 0.0
      %v11629 = vsel %vm7884, %v11557, 0.0
      %v11630 = vsel %vm7885, %v11558, 0.0
      %v11631 = vsel %vm7886, %v11559, 0.0
      %v11632 = vsel %vm7887, %v11560, 0.0
      %v11633 = vsel %vm7888, %v11561, 0.0
      %v11634 = vsel %vm7889, %v11562, 0.0
      %v11635 = vsel %vm7890, %v11563, 0.0
      %v11636 = vsel %vm7891, %v11564, 0.0
      %v11637 = vsel %vm7892, %v11565, 0.0
      %v11638 = vsel %vm7893, %v11566, 0.0
      %v11639 = vsel %vm7894, %v11567, 0.0
      %v11640 = vsel %vm7895, %v11568, 0.0
      %v11641 = vsel %vm7896, %v11569, 0.0
      %v11642 = vsel %vm7897, %v11570, 0.0
      %v11643 = vsel %vm7898, %v11571, 0.0
      %v11644 = vsel %vm7899, %v11572, 0.0
      %v11645 = vsel %vm7900, %v11573, 0.0
      %v11646 = vsel %vm7901, %v11574, 0.0
      %v11647 = vsel %vm7902, %v11575, 0.0
      %v11648 = vsel %vm7903, %v11576, 0.0
      %v11649 = vsel %vm7904, %v11577, 0.0
      %v11650 = vsel %vm7905, %v11578, 0.0
      %v11651 = vsel %vm7906, %v11579, 0.0
      %v11652 = vsel %vm7907, %v11580, 0.0
      %v11653 = vsel %vm7908, %v11581, 0.0
      %v11654 = vsel %vm7909, %v11582, 0.0
      %v11655 = vsel %vm7910, %v11583, 0.0
      %v11656 = vsel %vm7911, %v11584, 0.0
      %v11657 = vsel %vm7912, %v11585, 0.0
      %v11658 = vsel %vm7913, %v11586, 0.0
      %v11659 = vsel %vm7914, %v11587, 0.0
      %v11660 = vsel %vm7915, %v11588, 0.0
      %v11661 = vsel %vm7916, %v11589, 0.0
      %v11662 = vsel %vm7917, %v11590, 0.0
      %v11663 = vsel %vm7918, %v11591, 0.0
      %v11664 = vsel %vm7919, %v11592, 0.0
      %v11665 = vsel %vm7920, %v11593, 0.0
      %v11666 = vsel %vm7921, %v11594, 0.0
      %v11667 = vsel %vm7922, %v11595, 0.0
      %v11668 = vsel %vm7923, %v11596, 0.0
      %v11669 = vsel %vm7924, %v11597, 0.0
      %v11670 = vsel %vm7925, %v11598, 0.0
      %v11671 = vsel %vm7926, %v11599, 0.0
      %v11672 = vsel %vm7927, %v11600, 0.0
      %v11673 = vsel %vm7928, %v11601, 0.0
      %v11674 = vsel %vm7929, %v11602, 0.0
      %v11675 = vsel %vm7930, %v11603, 0.0
      %v11676 = vsel %vm7931, %v11604, 0.0
      %v11677 = vsel %vm7932, %v11605, 0.0
      %v11678 = vsel %vm7933, %v11606, 0.0
      %v11679 = vsel %vm7934, %v11607, 0.0
      %v11680 = vsel %vm7935, %v11608, 0.0
      %v11681 = vsel %vm7936, %v11609, 0.0
      %11682 = vst.msk [vmem:[%s305] sm:$0xff] %vm606, %v11610
      %11683 = vst.msk [vmem:[%s305 + $0x8] sm:$0xff] %vm606, %v11611
      %11684 = vst.msk [vmem:[%s305 + $0x10] sm:$0xff] %vm606, %v11612
      %11685 = vst.msk [vmem:[%s305 + $0x18] sm:$0xff] %vm606, %v11613
      %11686 = vst.msk [vmem:[%s305 + $0x20] sm:$0xff] %vm606, %v11614
      %11687 = vst.msk [vmem:[%s305 + $0x28] sm:$0xff] %vm606, %v11615
      %11688 = vst.msk [vmem:[%s305 + $0x30] sm:$0xff] %vm606, %v11616
      %11689 = vst.msk [vmem:[%s305 + $0x38] sm:$0xff] %vm606, %v11617
      %11690 = vst.msk [vmem:[%s305 + $0x40] sm:$0xff] %vm606, %v11618
      %11691 = vst.msk [vmem:[%s305 + $0x48] sm:$0xff] %vm606, %v11619
      %11692 = vst.msk [vmem:[%s305 + $0x50] sm:$0xff] %vm606, %v11620
      %11693 = vst.msk [vmem:[%s305 + $0x58] sm:$0xff] %vm606, %v11621
      %11694 = vst.msk [vmem:[%s305 + $0x60] sm:$0xff] %vm606, %v11622
      %11695 = vst.msk [vmem:[%s305 + $0x68] sm:$0xff] %vm606, %v11623
      %11696 = vst.msk [vmem:[%s305 + $0x70] sm:$0xff] %vm606, %v11624
      %11697 = vst.msk [vmem:[%s305 + $0x78] sm:$0xff] %vm606, %v11625
      %11698 = vst.msk [vmem:[%s305 + $0x80] sm:$0xff] %vm606, %v11626
      %11699 = vst.msk [vmem:[%s305 + $0x88] sm:$0xff] %vm606, %v11627
      %11700 = vst.msk [vmem:[%s305 + $0x90] sm:$0xff] %vm606, %v11628
      %11701 = vst.msk [vmem:[%s305 + $0x98] sm:$0xff] %vm606, %v11629
      %11702 = vst.msk [vmem:[%s305 + $0xa0] sm:$0xff] %vm606, %v11630
      %11703 = vst.msk [vmem:[%s305 + $0xa8] sm:$0xff] %vm606, %v11631
      %11704 = vst.msk [vmem:[%s305 + $0xb0] sm:$0xff] %vm606, %v11632
      %11705 = vst.msk [vmem:[%s305 + $0xb8] sm:$0xff] %vm606, %v11633
      %11706 = vst.msk [vmem:[%s305 + $0xc0] sm:$0xff] %vm606, %v11634
      %11707 = vst.msk [vmem:[%s305 + $0xc8] sm:$0xff] %vm606, %v11635
      %11708 = vst.msk [vmem:[%s305 + $0xd0] sm:$0xff] %vm606, %v11636
      %11709 = vst.msk [vmem:[%s305 + $0xd8] sm:$0xff] %vm606, %v11637
      %11710 = vst.msk [vmem:[%s305 + $0xe0] sm:$0xff] %vm606, %v11638
      %11711 = vst.msk [vmem:[%s305 + $0xe8] sm:$0xff] %vm606, %v11639
      %11712 = vst.msk [vmem:[%s305 + $0xf0] sm:$0xff] %vm606, %v11640
      %11713 = vst.msk [vmem:[%s305 + $0xf8] sm:$0xff] %vm606, %v11641
      %11714 = vst.msk [vmem:[%s305 + $0x100] sm:$0xff] %vm606, %v11642
      %11715 = vst.msk [vmem:[%s305 + $0x108] sm:$0xff] %vm606, %v11643
      %11716 = vst.msk [vmem:[%s305 + $0x110] sm:$0xff] %vm606, %v11644
      %11717 = vst.msk [vmem:[%s305 + $0x118] sm:$0xff] %vm606, %v11645
      %11718 = vst.msk [vmem:[%s305 + $0x120] sm:$0xff] %vm606, %v11646
      %11719 = vst.msk [vmem:[%s305 + $0x128] sm:$0xff] %vm606, %v11647
      %11720 = vst.msk [vmem:[%s305 + $0x130] sm:$0xff] %vm606, %v11648
      %11721 = vst.msk [vmem:[%s305 + $0x138] sm:$0xff] %vm606, %v11649
      %11722 = vst.msk [vmem:[%s305 + $0x140] sm:$0xff] %vm606, %v11650
      %11723 = vst.msk [vmem:[%s305 + $0x148] sm:$0xff] %vm606, %v11651
      %11724 = vst.msk [vmem:[%s305 + $0x150] sm:$0xff] %vm606, %v11652
      %11725 = vst.msk [vmem:[%s305 + $0x158] sm:$0xff] %vm606, %v11653
      %11726 = vst.msk [vmem:[%s305 + $0x160] sm:$0xff] %vm606, %v11654
      %11727 = vst.msk [vmem:[%s305 + $0x168] sm:$0xff] %vm606, %v11655
      %11728 = vst.msk [vmem:[%s305 + $0x170] sm:$0xff] %vm606, %v11656
      %11729 = vst.msk [vmem:[%s305 + $0x178] sm:$0xff] %vm606, %v11657
      %11730 = vst.msk [vmem:[%s305 + $0x180] sm:$0xff] %vm606, %v11658
      %11731 = vst.msk [vmem:[%s305 + $0x188] sm:$0xff] %vm606, %v11659
      %11732 = vst.msk [vmem:[%s305 + $0x190] sm:$0xff] %vm606, %v11660
      %11733 = vst.msk [vmem:[%s305 + $0x198] sm:$0xff] %vm606, %v11661
      %11734 = vst.msk [vmem:[%s305 + $0x1a0] sm:$0xff] %vm606, %v11662
      %11735 = vst.msk [vmem:[%s305 + $0x1a8] sm:$0xff] %vm606, %v11663
      %11736 = vst.msk [vmem:[%s305 + $0x1b0] sm:$0xff] %vm606, %v11664
      %11737 = vst.msk [vmem:[%s305 + $0x1b8] sm:$0xff] %vm606, %v11665
      %11738 = vst.msk [vmem:[%s305 + $0x1c0] sm:$0xff] %vm606, %v11666
      %11739 = vst.msk [vmem:[%s305 + $0x1c8] sm:$0xff] %vm606, %v11667
      %11740 = vst.msk [vmem:[%s305 + $0x1d0] sm:$0xff] %vm606, %v11668
      %11741 = vst.msk [vmem:[%s305 + $0x1d8] sm:$0xff] %vm606, %v11669
      %11742 = vst.msk [vmem:[%s305 + $0x1e0] sm:$0xff] %vm606, %v11670
      %11743 = vst.msk [vmem:[%s305 + $0x1e8] sm:$0xff] %vm606, %v11671
      %11744 = vst.msk [vmem:[%s305 + $0x1f0] sm:$0xff] %vm606, %v11672
      %11745 = vst.msk [vmem:[%s305 + $0x1f8] sm:$0xff] %vm606, %v11673
      %11746 = vst.msk [vmem:[%s305 + $0x200] sm:$0xff] %vm606, %v11674
      %11747 = vst.msk [vmem:[%s305 + $0x208] sm:$0xff] %vm606, %v11675
      %11748 = vst.msk [vmem:[%s305 + $0x210] sm:$0xff] %vm606, %v11676
      %11749 = vst.msk [vmem:[%s305 + $0x218] sm:$0xff] %vm606, %v11677
      %11750 = vst.msk [vmem:[%s305 + $0x220] sm:$0xff] %vm606, %v11678
      %11751 = vst.msk [vmem:[%s305 + $0x228] sm:$0xff] %vm606, %v11679
      %11752 = vst.msk [vmem:[%s305 + $0x230] sm:$0xff] %vm606, %v11680
      %11753 = vst.msk [vmem:[%s305 + $0x238] sm:$0xff] %vm606, %v11681
      %p11754 = scmp.lt.s32.totalorder %s19, 1
      %s11755 = scalar_select %p11754, %s19, 1
      %s11756 = smul.addr %s11755, 72
      %s11757 = smul.addr %s11756, 8
      %s11758 = scalar_lea.vmem %s8, %s11757
      // Predicated region
      $region60: #{tpu_custom_call.1} parent=51 // pred_check
        %p11759 = pneg %p210
      $region61: #{tpu_custom_call.1} parent=51 // pred_check_branch
        %11761 = sbr.rel (%p11759) target = $region63
      $region62: #{tpu_custom_call.1} parent=51 // pred_region
        _
      $region63: #{tpu_custom_call.1} parent=51 // pred_fallthru
        _
    $region52: #{tpu_custom_call.1} parent=5 // pred_fallthru
      _
    %p11762 = scmp.le.s32.totalorder 2, %s14
    // Predicated region
    $region64: #{tpu_custom_call.1} parent=5 // pred_check
      %p11763 = pneg %p11762
    $region65: #{tpu_custom_call.1} parent=5 // pred_check_branch
      %11765 = sbr.rel (%p11763) target = $region67
    $region66: #{tpu_custom_call.1} parent=5 // pred_region
      %s11766 = ssub.s32 %s14, 2
      // Predicated region
      $region68: #{tpu_custom_call.1} parent=66 // pred_check
        %p11767 = pneg %p216
      $region69: #{tpu_custom_call.1} parent=66 // pred_check_branch
        %11769 = sbr.rel (%p11767) target = $region71
      $region70: #{tpu_custom_call.1} parent=66 // pred_region
        %p11770 = scmp.lt.s32.totalorder %s20, 1
        %s11771 = scalar_select %p11770, %s20, 1
        %s11772 = smul.addr %s11771, 72
        %s11773 = smul.addr %s11772, 8
        %s11774 = scalar_lea.vmem %s8, %s11773
      $region71: #{tpu_custom_call.1} parent=66 // pred_fallthru
        _
    $region67: #{tpu_custom_call.1} parent=5 // pred_fallthru
      _
  $region6: #{tpu_custom_call.1} parent=0 // loop_footer
    %s18 = sadd.s32 1, %s14
  $region7: #{tpu_custom_call.1} parent=0 // loop_footer_branch
    %13 = sbr.rel target = $region3
  $region8: #{tpu_custom_call.1} parent=0 // loop_exit
    _

</llo_original>
